<compile_context>
chip_gen: v6e
topology: v6e:2x2x1
jax: 0.10.0
libtpu: 0.0.40
codegen_flags: <defaults>
</compile_context>

<pallas_src>
import functools

import numpy as np

import jax
import jax.numpy as jnp
from jax.experimental import pallas as pl
from jax.experimental.pallas import tpu as pltpu


_LAYERS = ((3, 6), (6, 10), (10, 20))       # (Cin, Cout) per conv layer
_FC_TK = 128                                # fc1 K tile (streams w1)
_FC_KPAD = 1664                             # 1620 features padded to 13*128
_FC_N1 = 1024                               # fc1 out 1000 -> 1024
_FC_N2 = 128                                # fc2 out 100  -> 128


def _round_up(x, m):
    return (x + m - 1) // m * m


def _cp_of(c):                              # output channels -> sublane group
    return _round_up(c, 8)


def _cinp_of(c):                            # input channels so 4*cinp % 8 == 0
    return _round_up(c, 2)


# --------------------------------------------------------------------------
# Pallas kernels
# --------------------------------------------------------------------------
def _conv_pool_kernel(x_ref, w_ref, b_ref, o_ref, slab_ref, *, w2, cp, c4):
    """Fused 5x5 valid conv + bias + ReLU + 2x2/2 max-pool for one image.

    x_ref   : (1, c4, NCOL)  space-to-depth input (c4 = 4*cinp rows);
                             row = (a*2+b)*cinp + ci, col = i2*w2 + j2.
    w_ref   : (4*cp, 9*c4)   K-stacked weights: K block t = dh*3+dw holds the
                             taps read at column offset dh*w2+dw; output rows
                             are the 4 pool phases (di,dj) stacked (each cp).
    b_ref   : (cp, 1)        bias (zero padded).
    o_ref   : (1, cp, NCOL)  pooled output; junk columns stripped by caller.
    slab_ref: (9*c4, NCOL)   VMEM scratch: 9 column-shifted input copies
                             (the RHS of the single K-stacked matmul).
    """
    ncol = x_ref.shape[-1]
    xv = x_ref[0]                                       # load the slab once
    for t in range(9):
        dh, dw = divmod(t, 3)
        off = dh * w2 + dw
        slab_ref[t * c4:(t + 1) * c4, :] = (
            xv if off == 0 else pltpu.roll(xv, shift=ncol - off, axis=1))
    # One MXU matmul, K = 9*c4: accumulation over taps happens inside the MXU.
    acc = jnp.dot(w_ref[...], slab_ref[...],
                  preferred_element_type=jnp.float32)   # (4*cp, NCOL)
    pooled = jnp.maximum(jnp.maximum(acc[0 * cp:1 * cp], acc[1 * cp:2 * cp]),
                         jnp.maximum(acc[2 * cp:3 * cp], acc[3 * cp:4 * cp]))
    # bias + ReLU after the max is equivalent (constant per channel, monotone).
    o_ref[0] = jnp.maximum(pooled + b_ref[...], 0.0).astype(o_ref.dtype)


def _fc_kernel(x_ref, w1_ref, b1_ref, w2_ref, b2_ref, w3_ref, b3_ref,
               o_ref, acc_ref):
    """fc1 accumulated over K tiles (w1 DMA pipelined), fc2/fc3 at the last step."""
    k = pl.program_id(0)

    @pl.when(k == 0)
    def _():
        acc_ref[...] = jnp.zeros_like(acc_ref)

    acc_ref[...] += jnp.dot(x_ref[...], w1_ref[...],
                            preferred_element_type=jnp.float32)

    @pl.when(k == pl.num_programs(0) - 1)
    def _():
        h = jnp.maximum(acc_ref[...] + b1_ref[...], 0.0)
        h = jnp.dot(h, w2_ref[...], preferred_element_type=jnp.float32)
        h = jnp.maximum(h + b2_ref[...], 0.0)
        h = jnp.dot(h, w3_ref[...], preferred_element_type=jnp.float32)
        o_ref[...] = (h + b3_ref[...]).astype(o_ref.dtype)


# --------------------------------------------------------------------------
# pallas_call wrappers
# --------------------------------------------------------------------------
def conv_pool(xs, wk, b, *, w2):
    """xs: (B, c4, NCOL); wk: (4*cp, 9*c4); b: (cp, 1) -> (B, cp, NCOL)."""
    B, c4, ncol = xs.shape
    cp = wk.shape[0] // 4
    kern = functools.partial(_conv_pool_kernel, w2=w2, cp=cp, c4=c4)
    return pl.pallas_call(
        kern,
        out_shape=jax.ShapeDtypeStruct((B, cp, ncol), jnp.float32),
        grid_spec=pltpu.PrefetchScalarGridSpec(
            num_scalar_prefetch=0,
            grid=(B,),
            in_specs=[
                pl.BlockSpec((1, c4, ncol), lambda i: (i, 0, 0)),
                pl.BlockSpec(wk.shape, lambda i: (0, 0)),
                pl.BlockSpec(b.shape, lambda i: (0, 0)),
            ],
            out_specs=pl.BlockSpec((1, cp, ncol), lambda i: (i, 0, 0)),
            scratch_shapes=[pltpu.VMEM((9 * c4, ncol), jnp.float32)],
        ),
        compiler_params=pltpu.CompilerParams(
            dimension_semantics=("parallel",)),
    )(xs, wk, b)


def fc_fused(x, w1, b1, w2, b2, w3, b3):
    """One pallas_call for the FC head; grid streams fc1's K in 128-wide tiles."""
    B, kpad = x.shape
    npad = w1.shape[1]
    nk = kpad // _FC_TK
    return pl.pallas_call(
        _fc_kernel,
        out_shape=jax.ShapeDtypeStruct((B, w3.shape[1]), jnp.float32),
        grid_spec=pltpu.PrefetchScalarGridSpec(
            num_scalar_prefetch=0,
            grid=(nk,),
            in_specs=[
                pl.BlockSpec((B, _FC_TK), lambda k: (0, k)),
                pl.BlockSpec((_FC_TK, npad), lambda k: (k, 0)),
                pl.BlockSpec(b1.shape, lambda k: (0, 0)),
                pl.BlockSpec(w2.shape, lambda k: (0, 0)),
                pl.BlockSpec(b2.shape, lambda k: (0, 0)),
                pl.BlockSpec(w3.shape, lambda k: (0, 0)),
                pl.BlockSpec(b3.shape, lambda k: (0, 0)),
            ],
            out_specs=pl.BlockSpec((B, w3.shape[1]), lambda k: (0, 0)),
            scratch_shapes=[pltpu.VMEM((B, npad), jnp.float32)],
        ),
        compiler_params=pltpu.CompilerParams(
            dimension_semantics=("arbitrary",),
            vmem_limit_bytes=16 * 1024 * 1024),
    )(x, w1, b1, w2, b2, w3, b3)


def _space_to_depth(x_nchw):
    """(B, C, H, W) -> (B, 4*cinp, NCOL); row = (a*2+b)*cinp + c, col = i2*(W/2)+j2."""
    B, C, H, W = x_nchw.shape
    cinp = _cinp_of(C)
    h2, w2 = H // 2, W // 2
    z = x_nchw.reshape(B, C, h2, 2, w2, 2)
    z = jnp.transpose(z, (0, 3, 5, 1, 2, 4)).reshape(B, 4, C, h2 * w2)
    ncol = _round_up(h2 * w2, 128)
    z = jnp.pad(z, ((0, 0), (0, 0), (0, cinp - C), (0, ncol - h2 * w2)))
    return z.reshape(B, 4 * cinp, ncol)


# --------------------------------------------------------------------------
# Parameters: torch layout -> kernel layout, done ONCE at init
# --------------------------------------------------------------------------
def _prep_conv_weight(w, cp, cinp):
    """(Cout, Cin, 5, 5) -> (4*cp, 9*4*cinp) K-stacked layout.

    Row  (di*2+dj)*cp + co                         (pool phase, out channel)
    Col  (dh*3+dw)*4*cinp + (a*2+b)*cinp + ci       (tap group, parity, in ch)
    Value w[co, ci, 2*dh+a-di, 2*dw+b-dj] when that tap index lies in [0, 5).
    """
    w = np.asarray(w, np.float32)
    cout, cin, ksz, _ = w.shape
    out = np.zeros((4 * cp, 9 * 4 * cinp), np.float32)
    for di in range(2):
        for dj in range(2):
            ph = di * 2 + dj
            for dh in range(3):
                for dw in range(3):
                    t = dh * 3 + dw
                    for a in range(2):
                        for b in range(2):
                            kh = 2 * dh + a - di
                            kw = 2 * dw + b - dj
                            if 0 <= kh < ksz and 0 <= kw < ksz:
                                col0 = (t * 4 + a * 2 + b) * cinp
                                out[ph * cp:ph * cp + cout,
                                    col0:col0 + cin] = w[:, :, kh, kw]
    return jnp.asarray(out)


def prepare_params(raw):
    params = {}
    for li, (cin, cout) in enumerate(_LAYERS, start=1):
        cp, cinp = _cp_of(cout), _cinp_of(cin)
        params[f"conv{li}_w"] = _prep_conv_weight(raw[f"conv{li}_w"], cp, cinp)
        params[f"conv{li}_b"] = jnp.pad(raw[f"conv{li}_b"],
                                        (0, cp - cout)).reshape(cp, 1)
    # FC weights -> (in, out), zero-padded to lane/sublane friendly sizes.
    w1 = jnp.transpose(raw["fc1_w"])                 # (1620, 1000)
    w2 = jnp.transpose(raw["fc2_w"])                 # (1000, 100)
    w3 = jnp.transpose(raw["fc3_w"])                 # (100, 2)
    params["fc1_w"] = jnp.pad(w1, ((0, _FC_KPAD - 1620), (0, _FC_N1 - 1000)))
    params["fc1_b"] = jnp.pad(raw["fc1_b"], (0, _FC_N1 - 1000)).reshape(1, _FC_N1)
    params["fc2_w"] = jnp.pad(w2, ((0, _FC_N1 - 1000), (0, _FC_N2 - 100)))
    params["fc2_b"] = jnp.pad(raw["fc2_b"], (0, _FC_N2 - 100)).reshape(1, _FC_N2)
    params["fc3_w"] = jnp.pad(w3, ((0, _FC_N2 - 100), (0, 0)))
    params["fc3_b"] = raw["fc3_b"].reshape(1, 2)
    return params


def init_params(key):
    def uni(k, shape, fan_in):
        bound = 1.0 / (fan_in ** 0.5)
        return jax.random.uniform(k, shape, jnp.float32, -bound, bound)

    ks = jax.random.split(key, 12)
    raw = {
        "conv1_w": uni(ks[0], (6, 3, 5, 5), 3 * 25),
        "conv1_b": uni(ks[1], (6,), 3 * 25),
        "conv2_w": uni(ks[2], (10, 6, 5, 5), 6 * 25),
        "conv2_b": uni(ks[3], (10,), 6 * 25),
        "conv3_w": uni(ks[4], (20, 10, 5, 5), 10 * 25),
        "conv3_b": uni(ks[5], (20,), 10 * 25),
        "fc1_w": uni(ks[6], (1000, 1620), 1620),
        "fc1_b": uni(ks[7], (1000,), 1620),
        "fc2_w": uni(ks[8], (100, 1000), 1000),
        "fc2_b": uni(ks[9], (100,), 1000),
        "fc3_w": uni(ks[10], (2, 100), 100),
        "fc3_b": uni(ks[11], (2,), 100),
    }
    return prepare_params(raw)


# --------------------------------------------------------------------------
# Forward pass (mirrors the PyTorch CNN)
# --------------------------------------------------------------------------
def cnn_forward(params, x_nchw):
    x = x_nchw.astype(jnp.float32)                  # channels-major throughout
    B = x.shape[0]
    for li, (_, cout) in enumerate(_LAYERS, start=1):
        H, W = x.shape[2], x.shape[3]
        h2, w2 = H // 2, W // 2
        hp, wp = h2 - 2, w2 - 2                     # pooled output spatial dims
        xs = _space_to_depth(x)                     # (B, 4*cinp, NCOL)
        y = conv_pool(xs, params[f"conv{li}_w"], params[f"conv{li}_b"], w2=w2)
        # strip channel padding / junk columns -> pooled NCHW activation
        x = y[:, :cout, :hp * w2].reshape(B, cout, hp, w2)[:, :, :, :wp]
    feat = x.reshape(B, -1)                         # (B, 1620) == torch.flatten
    feat = jnp.pad(feat, ((0, 0), (0, _FC_KPAD - feat.shape[1])))
    return fc_fused(feat, params["fc1_w"], params["fc1_b"],
                    params["fc2_w"], params["fc2_b"],
                    params["fc3_w"], params["fc3_b"])


if __name__ == "__main__":
    key = jax.random.PRNGKey(0)
    pkey, xkey = jax.random.split(key)
    params = init_params(pkey)
    # fc1 expects 1620 = 20*9*9 features => input spatial size must be 100x100.
    x = jax.random.normal(xkey, (2, 3, 100, 100), dtype=jnp.float32)

    fwd = jax.jit(cnn_forward)
    out = jax.block_until_ready(fwd(params, x))

    assert out.shape == (2, 2), out.shape
    assert out.dtype == jnp.float32
    assert bool(jnp.all(jnp.isfinite(out)))
    print("KERNEL_OK")
</pallas_src>

<mosaic_0001>
module attributes {stable_mosaic.version = 11 : i64} {
  func.func @_conv_pool_kernel(%arg0: i32, %arg1: memref<1x16x2560xf32, #tpu.memory_space<vmem>>, %arg2: memref<32x144xf32, #tpu.memory_space<vmem>>, %arg3: memref<8x1xf32, #tpu.memory_space<vmem>>, %arg4: memref<1x8x2560xf32, #tpu.memory_space<vmem>>, %arg5: memref<144x2560xf32, #tpu.memory_space<vmem>>) attributes {dimension_semantics = [#tpu.dimension_semantics<parallel>], iteration_bounds = array<i64: 2>, scalar_prefetch = 0 : i64, scratch_operands = 1 : i64, tpu.core_type = #tpu.core_type<tc>, window_params = [{transform_indices = @transform_0, window_bounds = array<i64: 1, 16, 2560>}, {pipeline_mode = #tpu.pipeline_mode<synchronous>, transform_indices = @transform_1, window_bounds = array<i64: 32, 144>}, {pipeline_mode = #tpu.pipeline_mode<synchronous>, transform_indices = @transform_2, window_bounds = array<i64: 8, 1>}, {transform_indices = @transform_3, window_bounds = array<i64: 1, 8, 2560>}]} {
    %c0 = arith.constant 0 : index
    %c0_0 = arith.constant 0 : index
    %c0_1 = arith.constant 0 : index
    %0 = vector.load %arg1[%c0, %c0_0, %c0_1] : memref<1x16x2560xf32, #tpu.memory_space<vmem>>, vector<1x16x2560xf32>
    %1 = vector.shape_cast %0 : vector<1x16x2560xf32> to vector<16x2560xf32>
    %c0_2 = arith.constant 0 : index
    %c0_3 = arith.constant 0 : index
    %2 = vector.load %arg5[%c0_2, %c0_3] : memref<144x2560xf32, #tpu.memory_space<vmem>>, vector<16x2560xf32>
    tpu.vector_store %arg5[%c0_2, %c0_3], %1 {strides = array<i32>} : memref<144x2560xf32, #tpu.memory_space<vmem>>, vector<16x2560xf32>,
    %c2559_i32 = arith.constant 2559 : i32
    %3 = tpu.dynamic_rotate %1 by %c2559_i32 dim 1 : vector<16x2560xf32>, i32 -> vector<16x2560xf32>
    %c16 = arith.constant 16 : index
    %c0_4 = arith.constant 0 : index
    %4 = vector.load %arg5[%c16, %c0_4] : memref<144x2560xf32, #tpu.memory_space<vmem>>, vector<16x2560xf32>
    tpu.vector_store %arg5[%c16, %c0_4], %3 {strides = array<i32>} : memref<144x2560xf32, #tpu.memory_space<vmem>>, vector<16x2560xf32>,
    %c2558_i32 = arith.constant 2558 : i32
    %5 = tpu.dynamic_rotate %1 by %c2558_i32 dim 1 : vector<16x2560xf32>, i32 -> vector<16x2560xf32>
    %c32 = arith.constant 32 : index
    %c0_5 = arith.constant 0 : index
    %6 = vector.load %arg5[%c32, %c0_5] : memref<144x2560xf32, #tpu.memory_space<vmem>>, vector<16x2560xf32>
    tpu.vector_store %arg5[%c32, %c0_5], %5 {strides = array<i32>} : memref<144x2560xf32, #tpu.memory_space<vmem>>, vector<16x2560xf32>,
    %c2510_i32 = arith.constant 2510 : i32
    %7 = tpu.dynamic_rotate %1 by %c2510_i32 dim 1 : vector<16x2560xf32>, i32 -> vector<16x2560xf32>
    %c48 = arith.constant 48 : index
    %c0_6 = arith.constant 0 : index
    %8 = vector.load %arg5[%c48, %c0_6] : memref<144x2560xf32, #tpu.memory_space<vmem>>, vector<16x2560xf32>
    tpu.vector_store %arg5[%c48, %c0_6], %7 {strides = array<i32>} : memref<144x2560xf32, #tpu.memory_space<vmem>>, vector<16x2560xf32>,
    %c2509_i32 = arith.constant 2509 : i32
    %9 = tpu.dynamic_rotate %1 by %c2509_i32 dim 1 : vector<16x2560xf32>, i32 -> vector<16x2560xf32>
    %c64 = arith.constant 64 : index
    %c0_7 = arith.constant 0 : index
    %10 = vector.load %arg5[%c64, %c0_7] : memref<144x2560xf32, #tpu.memory_space<vmem>>, vector<16x2560xf32>
    tpu.vector_store %arg5[%c64, %c0_7], %9 {strides = array<i32>} : memref<144x2560xf32, #tpu.memory_space<vmem>>, vector<16x2560xf32>,
    %c2508_i32 = arith.constant 2508 : i32
    %11 = tpu.dynamic_rotate %1 by %c2508_i32 dim 1 : vector<16x2560xf32>, i32 -> vector<16x2560xf32>
    %c80 = arith.constant 80 : index
    %c0_8 = arith.constant 0 : index
    %12 = vector.load %arg5[%c80, %c0_8] : memref<144x2560xf32, #tpu.memory_space<vmem>>, vector<16x2560xf32>
    tpu.vector_store %arg5[%c80, %c0_8], %11 {strides = array<i32>} : memref<144x2560xf32, #tpu.memory_space<vmem>>, vector<16x2560xf32>,
    %c2460_i32 = arith.constant 2460 : i32
    %13 = tpu.dynamic_rotate %1 by %c2460_i32 dim 1 : vector<16x2560xf32>, i32 -> vector<16x2560xf32>
    %c96 = arith.constant 96 : index
    %c0_9 = arith.constant 0 : index
    %14 = vector.load %arg5[%c96, %c0_9] : memref<144x2560xf32, #tpu.memory_space<vmem>>, vector<16x2560xf32>
    tpu.vector_store %arg5[%c96, %c0_9], %13 {strides = array<i32>} : memref<144x2560xf32, #tpu.memory_space<vmem>>, vector<16x2560xf32>,
    %c2459_i32 = arith.constant 2459 : i32
    %15 = tpu.dynamic_rotate %1 by %c2459_i32 dim 1 : vector<16x2560xf32>, i32 -> vector<16x2560xf32>
    %c112 = arith.constant 112 : index
    %c0_10 = arith.constant 0 : index
    %16 = vector.load %arg5[%c112, %c0_10] : memref<144x2560xf32, #tpu.memory_space<vmem>>, vector<16x2560xf32>
    tpu.vector_store %arg5[%c112, %c0_10], %15 {strides = array<i32>} : memref<144x2560xf32, #tpu.memory_space<vmem>>, vector<16x2560xf32>,
    %c2458_i32 = arith.constant 2458 : i32
    %17 = tpu.dynamic_rotate %1 by %c2458_i32 dim 1 : vector<16x2560xf32>, i32 -> vector<16x2560xf32>
    %c128 = arith.constant 128 : index
    %c0_11 = arith.constant 0 : index
    %18 = vector.load %arg5[%c128, %c0_11] : memref<144x2560xf32, #tpu.memory_space<vmem>>, vector<16x2560xf32>
    tpu.vector_store %arg5[%c128, %c0_11], %17 {strides = array<i32>} : memref<144x2560xf32, #tpu.memory_space<vmem>>, vector<16x2560xf32>,
    %c0_12 = arith.constant 0 : index
    %c0_13 = arith.constant 0 : index
    %19 = vector.load %arg2[%c0_12, %c0_13] : memref<32x144xf32, #tpu.memory_space<vmem>>, vector<32x144xf32>
    %c0_14 = arith.constant 0 : index
    %c0_15 = arith.constant 0 : index
    %20 = vector.load %arg5[%c0_14, %c0_15] : memref<144x2560xf32, #tpu.memory_space<vmem>>, vector<144x2560xf32>
    %cst = arith.constant dense<0.000000e+00> : vector<32x2560xf32>
    %21 = tpu.matmul %19, %20, %cst {dimension_numbers = #tpu.dot_dimension_numbers<[1], [0], [0], [1], [0, 0, 1, 1], [], []>} : vector<32x144xf32>, vector<144x2560xf32>, vector<32x2560xf32> -> vector<32x2560xf32>
    %22 = vector.extract_strided_slice %21 {offsets = [0, 0], sizes = [8, 2560], strides = [1, 1]} : vector<32x2560xf32> to vector<8x2560xf32>
    %23 = vector.extract_strided_slice %21 {offsets = [8, 0], sizes = [8, 2560], strides = [1, 1]} : vector<32x2560xf32> to vector<8x2560xf32>
    %24 = arith.maximumf %22, %23 : vector<8x2560xf32>
    %25 = vector.extract_strided_slice %21 {offsets = [16, 0], sizes = [8, 2560], strides = [1, 1]} : vector<32x2560xf32> to vector<8x2560xf32>
    %26 = vector.extract_strided_slice %21 {offsets = [24, 0], sizes = [8, 2560], strides = [1, 1]} : vector<32x2560xf32> to vector<8x2560xf32>
    %27 = arith.maximumf %25, %26 : vector<8x2560xf32>
    %28 = arith.maximumf %24, %27 : vector<8x2560xf32>
    %c0_16 = arith.constant 0 : index
    %c0_17 = arith.constant 0 : index
    %29 = vector.load %arg3[%c0_16, %c0_17] : memref<8x1xf32, #tpu.memory_space<vmem>>, vector<8x1xf32>
    %30 = vector.broadcast %29 : vector<8x1xf32> to vector<8x2560xf32>
    %31 = arith.addf %28, %30 : vector<8x2560xf32>
    %cst_18 = arith.constant 0.000000e+00 : f32
    %32 = vector.broadcast %cst_18 : f32 to vector<8x2560xf32>
    %33 = arith.maximumf %31, %32 : vector<8x2560xf32>
    %c0_19 = arith.constant 0 : index
    %c0_20 = arith.constant 0 : index
    %c0_21 = arith.constant 0 : index
    %34 = vector.load %arg4[%c0_19, %c0_20, %c0_21] : memref<1x8x2560xf32, #tpu.memory_space<vmem>>, vector<1x8x2560xf32>
    %35 = vector.shape_cast %34 : vector<1x8x2560xf32> to vector<8x2560xf32>
    %36 = vector.shape_cast %33 : vector<8x2560xf32> to vector<1x8x2560xf32>
    tpu.vector_store %arg4[%c0_19, %c0_20, %c0_21], %36 {strides = array<i32>} : memref<1x8x2560xf32, #tpu.memory_space<vmem>>, vector<1x8x2560xf32>,
    return
  }
  func.func @transform_0(%arg0: i32) -> (i32, i32, i32) {
    %c0_i32 = arith.constant 0 : i32
    %c0_i32_0 = arith.constant 0 : i32
    %c0_i32_1 = arith.constant 0 : i32
    return %arg0, %c0_i32, %c0_i32_0 : i32, i32, i32
  }
  func.func @transform_1(%arg0: i32) -> (i32, i32) {
    %c0_i32 = arith.constant 0 : i32
    %c0_i32_0 = arith.constant 0 : i32
    %c0_i32_1 = arith.constant 0 : i32
    return %c0_i32, %c0_i32_0 : i32, i32
  }
  func.func @transform_2(%arg0: i32) -> (i32, i32) {
    %c0_i32 = arith.constant 0 : i32
    %c0_i32_0 = arith.constant 0 : i32
    %c0_i32_1 = arith.constant 0 : i32
    return %c0_i32, %c0_i32_0 : i32, i32
  }
  func.func @transform_3(%arg0: i32) -> (i32, i32, i32) {
    %c0_i32 = arith.constant 0 : i32
    %c0_i32_0 = arith.constant 0 : i32
    %c0_i32_1 = arith.constant 0 : i32
    return %arg0, %c0_i32, %c0_i32_0 : i32, i32, i32
  }
}

module attributes {stable_mosaic.version = 11 : i64} {
  func.func @_conv_pool_kernel(%arg0: i32, %arg1: memref<1x24x640xf32, #tpu.memory_space<vmem>>, %arg2: memref<64x216xf32, #tpu.memory_space<vmem>>, %arg3: memref<16x1xf32, #tpu.memory_space<vmem>>, %arg4: memref<1x16x640xf32, #tpu.memory_space<vmem>>, %arg5: memref<216x640xf32, #tpu.memory_space<vmem>>) attributes {dimension_semantics = [#tpu.dimension_semantics<parallel>], iteration_bounds = array<i64: 2>, scalar_prefetch = 0 : i64, scratch_operands = 1 : i64, tpu.core_type = #tpu.core_type<tc>, window_params = [{transform_indices = @transform_0, window_bounds = array<i64: 1, 24, 640>}, {pipeline_mode = #tpu.pipeline_mode<synchronous>, transform_indices = @transform_1, window_bounds = array<i64: 64, 216>}, {pipeline_mode = #tpu.pipeline_mode<synchronous>, transform_indices = @transform_2, window_bounds = array<i64: 16, 1>}, {transform_indices = @transform_3, window_bounds = array<i64: 1, 16, 640>}]} {
    %c0 = arith.constant 0 : index
    %c0_0 = arith.constant 0 : index
    %c0_1 = arith.constant 0 : index
    %0 = vector.load %arg1[%c0, %c0_0, %c0_1] : memref<1x24x640xf32, #tpu.memory_space<vmem>>, vector<1x24x640xf32>
    %1 = vector.shape_cast %0 : vector<1x24x640xf32> to vector<24x640xf32>
    %c0_2 = arith.constant 0 : index
    %c0_3 = arith.constant 0 : index
    %2 = vector.load %arg5[%c0_2, %c0_3] : memref<216x640xf32, #tpu.memory_space<vmem>>, vector<24x640xf32>
    tpu.vector_store %arg5[%c0_2, %c0_3], %1 {strides = array<i32>} : memref<216x640xf32, #tpu.memory_space<vmem>>, vector<24x640xf32>,
    %c639_i32 = arith.constant 639 : i32
    %3 = tpu.dynamic_rotate %1 by %c639_i32 dim 1 : vector<24x640xf32>, i32 -> vector<24x640xf32>
    %c24 = arith.constant 24 : index
    %c0_4 = arith.constant 0 : index
    %4 = vector.load %arg5[%c24, %c0_4] : memref<216x640xf32, #tpu.memory_space<vmem>>, vector<24x640xf32>
    tpu.vector_store %arg5[%c24, %c0_4], %3 {strides = array<i32>} : memref<216x640xf32, #tpu.memory_space<vmem>>, vector<24x640xf32>,
    %c638_i32 = arith.constant 638 : i32
    %5 = tpu.dynamic_rotate %1 by %c638_i32 dim 1 : vector<24x640xf32>, i32 -> vector<24x640xf32>
    %c48 = arith.constant 48 : index
    %c0_5 = arith.constant 0 : index
    %6 = vector.load %arg5[%c48, %c0_5] : memref<216x640xf32, #tpu.memory_space<vmem>>, vector<24x640xf32>
    tpu.vector_store %arg5[%c48, %c0_5], %5 {strides = array<i32>} : memref<216x640xf32, #tpu.memory_space<vmem>>, vector<24x640xf32>,
    %c616_i32 = arith.constant 616 : i32
    %7 = tpu.dynamic_rotate %1 by %c616_i32 dim 1 : vector<24x640xf32>, i32 -> vector<24x640xf32>
    %c72 = arith.constant 72 : index
    %c0_6 = arith.constant 0 : index
    %8 = vector.load %arg5[%c72, %c0_6] : memref<216x640xf32, #tpu.memory_space<vmem>>, vector<24x640xf32>
    tpu.vector_store %arg5[%c72, %c0_6], %7 {strides = array<i32>} : memref<216x640xf32, #tpu.memory_space<vmem>>, vector<24x640xf32>,
    %c615_i32 = arith.constant 615 : i32
    %9 = tpu.dynamic_rotate %1 by %c615_i32 dim 1 : vector<24x640xf32>, i32 -> vector<24x640xf32>
    %c96 = arith.constant 96 : index
    %c0_7 = arith.constant 0 : index
    %10 = vector.load %arg5[%c96, %c0_7] : memref<216x640xf32, #tpu.memory_space<vmem>>, vector<24x640xf32>
    tpu.vector_store %arg5[%c96, %c0_7], %9 {strides = array<i32>} : memref<216x640xf32, #tpu.memory_space<vmem>>, vector<24x640xf32>,
    %c614_i32 = arith.constant 614 : i32
    %11 = tpu.dynamic_rotate %1 by %c614_i32 dim 1 : vector<24x640xf32>, i32 -> vector<24x640xf32>
    %c120 = arith.constant 120 : index
    %c0_8 = arith.constant 0 : index
    %12 = vector.load %arg5[%c120, %c0_8] : memref<216x640xf32, #tpu.memory_space<vmem>>, vector<24x640xf32>
    tpu.vector_store %arg5[%c120, %c0_8], %11 {strides = array<i32>} : memref<216x640xf32, #tpu.memory_space<vmem>>, vector<24x640xf32>,
    %c592_i32 = arith.constant 592 : i32
    %13 = tpu.dynamic_rotate %1 by %c592_i32 dim 1 : vector<24x640xf32>, i32 -> vector<24x640xf32>
    %c144 = arith.constant 144 : index
    %c0_9 = arith.constant 0 : index
    %14 = vector.load %arg5[%c144, %c0_9] : memref<216x640xf32, #tpu.memory_space<vmem>>, vector<24x640xf32>
    tpu.vector_store %arg5[%c144, %c0_9], %13 {strides = array<i32>} : memref<216x640xf32, #tpu.memory_space<vmem>>, vector<24x640xf32>,
    %c591_i32 = arith.constant 591 : i32
    %15 = tpu.dynamic_rotate %1 by %c591_i32 dim 1 : vector<24x640xf32>, i32 -> vector<24x640xf32>
    %c168 = arith.constant 168 : index
    %c0_10 = arith.constant 0 : index
    %16 = vector.load %arg5[%c168, %c0_10] : memref<216x640xf32, #tpu.memory_space<vmem>>, vector<24x640xf32>
    tpu.vector_store %arg5[%c168, %c0_10], %15 {strides = array<i32>} : memref<216x640xf32, #tpu.memory_space<vmem>>, vector<24x640xf32>,
    %c590_i32 = arith.constant 590 : i32
    %17 = tpu.dynamic_rotate %1 by %c590_i32 dim 1 : vector<24x640xf32>, i32 -> vector<24x640xf32>
    %c192 = arith.constant 192 : index
    %c0_11 = arith.constant 0 : index
    %18 = vector.load %arg5[%c192, %c0_11] : memref<216x640xf32, #tpu.memory_space<vmem>>, vector<24x640xf32>
    tpu.vector_store %arg5[%c192, %c0_11], %17 {strides = array<i32>} : memref<216x640xf32, #tpu.memory_space<vmem>>, vector<24x640xf32>,
    %c0_12 = arith.constant 0 : index
    %c0_13 = arith.constant 0 : index
    %19 = vector.load %arg2[%c0_12, %c0_13] : memref<64x216xf32, #tpu.memory_space<vmem>>, vector<64x216xf32>
    %c0_14 = arith.constant 0 : index
    %c0_15 = arith.constant 0 : index
    %20 = vector.load %arg5[%c0_14, %c0_15] : memref<216x640xf32, #tpu.memory_space<vmem>>, vector<216x640xf32>
    %cst = arith.constant dense<0.000000e+00> : vector<64x640xf32>
    %21 = tpu.matmul %19, %20, %cst {dimension_numbers = #tpu.dot_dimension_numbers<[1], [0], [0], [1], [0, 0, 1, 1], [], []>} : vector<64x216xf32>, vector<216x640xf32>, vector<64x640xf32> -> vector<64x640xf32>
    %22 = vector.extract_strided_slice %21 {offsets = [0, 0], sizes = [16, 640], strides = [1, 1]} : vector<64x640xf32> to vector<16x640xf32>
    %23 = vector.extract_strided_slice %21 {offsets = [16, 0], sizes = [16, 640], strides = [1, 1]} : vector<64x640xf32> to vector<16x640xf32>
    %24 = arith.maximumf %22, %23 : vector<16x640xf32>
    %25 = vector.extract_strided_slice %21 {offsets = [32, 0], sizes = [16, 640], strides = [1, 1]} : vector<64x640xf32> to vector<16x640xf32>
    %26 = vector.extract_strided_slice %21 {offsets = [48, 0], sizes = [16, 640], strides = [1, 1]} : vector<64x640xf32> to vector<16x640xf32>
    %27 = arith.maximumf %25, %26 : vector<16x640xf32>
    %28 = arith.maximumf %24, %27 : vector<16x640xf32>
    %c0_16 = arith.constant 0 : index
    %c0_17 = arith.constant 0 : index
    %29 = vector.load %arg3[%c0_16, %c0_17] : memref<16x1xf32, #tpu.memory_space<vmem>>, vector<16x1xf32>
    %30 = vector.broadcast %29 : vector<16x1xf32> to vector<16x640xf32>
    %31 = arith.addf %28, %30 : vector<16x640xf32>
    %cst_18 = arith.constant 0.000000e+00 : f32
    %32 = vector.broadcast %cst_18 : f32 to vector<16x640xf32>
    %33 = arith.maximumf %31, %32 : vector<16x640xf32>
    %c0_19 = arith.constant 0 : index
    %c0_20 = arith.constant 0 : index
    %c0_21 = arith.constant 0 : index
    %34 = vector.load %arg4[%c0_19, %c0_20, %c0_21] : memref<1x16x640xf32, #tpu.memory_space<vmem>>, vector<1x16x640xf32>
    %35 = vector.shape_cast %34 : vector<1x16x640xf32> to vector<16x640xf32>
    %36 = vector.shape_cast %33 : vector<16x640xf32> to vector<1x16x640xf32>
    tpu.vector_store %arg4[%c0_19, %c0_20, %c0_21], %36 {strides = array<i32>} : memref<1x16x640xf32, #tpu.memory_space<vmem>>, vector<1x16x640xf32>,
    return
  }
  func.func @transform_0(%arg0: i32) -> (i32, i32, i32) {
    %c0_i32 = arith.constant 0 : i32
    %c0_i32_0 = arith.constant 0 : i32
    %c0_i32_1 = arith.constant 0 : i32
    return %arg0, %c0_i32, %c0_i32_0 : i32, i32, i32
  }
  func.func @transform_1(%arg0: i32) -> (i32, i32) {
    %c0_i32 = arith.constant 0 : i32
    %c0_i32_0 = arith.constant 0 : i32
    %c0_i32_1 = arith.constant 0 : i32
    return %c0_i32, %c0_i32_0 : i32, i32
  }
  func.func @transform_2(%arg0: i32) -> (i32, i32) {
    %c0_i32 = arith.constant 0 : i32
    %c0_i32_0 = arith.constant 0 : i32
    %c0_i32_1 = arith.constant 0 : i32
    return %c0_i32, %c0_i32_0 : i32, i32
  }
  func.func @transform_3(%arg0: i32) -> (i32, i32, i32) {
    %c0_i32 = arith.constant 0 : i32
    %c0_i32_0 = arith.constant 0 : i32
    %c0_i32_1 = arith.constant 0 : i32
    return %arg0, %c0_i32, %c0_i32_0 : i32, i32, i32
  }
}

module attributes {stable_mosaic.version = 11 : i64} {
  func.func @_conv_pool_kernel(%arg0: i32, %arg1: memref<1x40x128xf32, #tpu.memory_space<vmem>>, %arg2: memref<96x360xf32, #tpu.memory_space<vmem>>, %arg3: memref<24x1xf32, #tpu.memory_space<vmem>>, %arg4: memref<1x24x128xf32, #tpu.memory_space<vmem>>, %arg5: memref<360x128xf32, #tpu.memory_space<vmem>>) attributes {dimension_semantics = [#tpu.dimension_semantics<parallel>], iteration_bounds = array<i64: 2>, scalar_prefetch = 0 : i64, scratch_operands = 1 : i64, tpu.core_type = #tpu.core_type<tc>, window_params = [{transform_indices = @transform_0, window_bounds = array<i64: 1, 40, 128>}, {pipeline_mode = #tpu.pipeline_mode<synchronous>, transform_indices = @transform_1, window_bounds = array<i64: 96, 360>}, {pipeline_mode = #tpu.pipeline_mode<synchronous>, transform_indices = @transform_2, window_bounds = array<i64: 24, 1>}, {transform_indices = @transform_3, window_bounds = array<i64: 1, 24, 128>}]} {
    %c0 = arith.constant 0 : index
    %c0_0 = arith.constant 0 : index
    %c0_1 = arith.constant 0 : index
    %0 = vector.load %arg1[%c0, %c0_0, %c0_1] : memref<1x40x128xf32, #tpu.memory_space<vmem>>, vector<1x40x128xf32>
    %1 = vector.shape_cast %0 : vector<1x40x128xf32> to vector<40x128xf32>
    %c0_2 = arith.constant 0 : index
    %c0_3 = arith.constant 0 : index
    %2 = vector.load %arg5[%c0_2, %c0_3] : memref<360x128xf32, #tpu.memory_space<vmem>>, vector<40x128xf32>
    tpu.vector_store %arg5[%c0_2, %c0_3], %1 {strides = array<i32>} : memref<360x128xf32, #tpu.memory_space<vmem>>, vector<40x128xf32>,
    %c127_i32 = arith.constant 127 : i32
    %3 = tpu.dynamic_rotate %1 by %c127_i32 dim 1 : vector<40x128xf32>, i32 -> vector<40x128xf32>
    %c40 = arith.constant 40 : index
    %c0_4 = arith.constant 0 : index
    %4 = vector.load %arg5[%c40, %c0_4] : memref<360x128xf32, #tpu.memory_space<vmem>>, vector<40x128xf32>
    tpu.vector_store %arg5[%c40, %c0_4], %3 {strides = array<i32>} : memref<360x128xf32, #tpu.memory_space<vmem>>, vector<40x128xf32>,
    %c126_i32 = arith.constant 126 : i32
    %5 = tpu.dynamic_rotate %1 by %c126_i32 dim 1 : vector<40x128xf32>, i32 -> vector<40x128xf32>
    %c80 = arith.constant 80 : index
    %c0_5 = arith.constant 0 : index
    %6 = vector.load %arg5[%c80, %c0_5] : memref<360x128xf32, #tpu.memory_space<vmem>>, vector<40x128xf32>
    tpu.vector_store %arg5[%c80, %c0_5], %5 {strides = array<i32>} : memref<360x128xf32, #tpu.memory_space<vmem>>, vector<40x128xf32>,
    %c117_i32 = arith.constant 117 : i32
    %7 = tpu.dynamic_rotate %1 by %c117_i32 dim 1 : vector<40x128xf32>, i32 -> vector<40x128xf32>
    %c120 = arith.constant 120 : index
    %c0_6 = arith.constant 0 : index
    %8 = vector.load %arg5[%c120, %c0_6] : memref<360x128xf32, #tpu.memory_space<vmem>>, vector<40x128xf32>
    tpu.vector_store %arg5[%c120, %c0_6], %7 {strides = array<i32>} : memref<360x128xf32, #tpu.memory_space<vmem>>, vector<40x128xf32>,
    %c116_i32 = arith.constant 116 : i32
    %9 = tpu.dynamic_rotate %1 by %c116_i32 dim 1 : vector<40x128xf32>, i32 -> vector<40x128xf32>
    %c160 = arith.constant 160 : index
    %c0_7 = arith.constant 0 : index
    %10 = vector.load %arg5[%c160, %c0_7] : memref<360x128xf32, #tpu.memory_space<vmem>>, vector<40x128xf32>
    tpu.vector_store %arg5[%c160, %c0_7], %9 {strides = array<i32>} : memref<360x128xf32, #tpu.memory_space<vmem>>, vector<40x128xf32>,
    %c115_i32 = arith.constant 115 : i32
    %11 = tpu.dynamic_rotate %1 by %c115_i32 dim 1 : vector<40x128xf32>, i32 -> vector<40x128xf32>
    %c200 = arith.constant 200 : index
    %c0_8 = arith.constant 0 : index
    %12 = vector.load %arg5[%c200, %c0_8] : memref<360x128xf32, #tpu.memory_space<vmem>>, vector<40x128xf32>
    tpu.vector_store %arg5[%c200, %c0_8], %11 {strides = array<i32>} : memref<360x128xf32, #tpu.memory_space<vmem>>, vector<40x128xf32>,
    %c106_i32 = arith.constant 106 : i32
    %13 = tpu.dynamic_rotate %1 by %c106_i32 dim 1 : vector<40x128xf32>, i32 -> vector<40x128xf32>
    %c240 = arith.constant 240 : index
    %c0_9 = arith.constant 0 : index
    %14 = vector.load %arg5[%c240, %c0_9] : memref<360x128xf32, #tpu.memory_space<vmem>>, vector<40x128xf32>
    tpu.vector_store %arg5[%c240, %c0_9], %13 {strides = array<i32>} : memref<360x128xf32, #tpu.memory_space<vmem>>, vector<40x128xf32>,
    %c105_i32 = arith.constant 105 : i32
    %15 = tpu.dynamic_rotate %1 by %c105_i32 dim 1 : vector<40x128xf32>, i32 -> vector<40x128xf32>
    %c280 = arith.constant 280 : index
    %c0_10 = arith.constant 0 : index
    %16 = vector.load %arg5[%c280, %c0_10] : memref<360x128xf32, #tpu.memory_space<vmem>>, vector<40x128xf32>
    tpu.vector_store %arg5[%c280, %c0_10], %15 {strides = array<i32>} : memref<360x128xf32, #tpu.memory_space<vmem>>, vector<40x128xf32>,
    %c104_i32 = arith.constant 104 : i32
    %17 = tpu.dynamic_rotate %1 by %c104_i32 dim 1 : vector<40x128xf32>, i32 -> vector<40x128xf32>
    %c320 = arith.constant 320 : index
    %c0_11 = arith.constant 0 : index
    %18 = vector.load %arg5[%c320, %c0_11] : memref<360x128xf32, #tpu.memory_space<vmem>>, vector<40x128xf32>
    tpu.vector_store %arg5[%c320, %c0_11], %17 {strides = array<i32>} : memref<360x128xf32, #tpu.memory_space<vmem>>, vector<40x128xf32>,
    %c0_12 = arith.constant 0 : index
    %c0_13 = arith.constant 0 : index
    %19 = vector.load %arg2[%c0_12, %c0_13] : memref<96x360xf32, #tpu.memory_space<vmem>>, vector<96x360xf32>
    %c0_14 = arith.constant 0 : index
    %c0_15 = arith.constant 0 : index
    %20 = vector.load %arg5[%c0_14, %c0_15] : memref<360x128xf32, #tpu.memory_space<vmem>>, vector<360x128xf32>
    %cst = arith.constant dense<0.000000e+00> : vector<96x128xf32>
    %21 = tpu.matmul %19, %20, %cst {dimension_numbers = #tpu.dot_dimension_numbers<[1], [0], [0], [1], [0, 0, 1, 1], [], []>} : vector<96x360xf32>, vector<360x128xf32>, vector<96x128xf32> -> vector<96x128xf32>
    %22 = vector.extract_strided_slice %21 {offsets = [0, 0], sizes = [24, 128], strides = [1, 1]} : vector<96x128xf32> to vector<24x128xf32>
    %23 = vector.extract_strided_slice %21 {offsets = [24, 0], sizes = [24, 128], strides = [1, 1]} : vector<96x128xf32> to vector<24x128xf32>
    %24 = arith.maximumf %22, %23 : vector<24x128xf32>
    %25 = vector.extract_strided_slice %21 {offsets = [48, 0], sizes = [24, 128], strides = [1, 1]} : vector<96x128xf32> to vector<24x128xf32>
    %26 = vector.extract_strided_slice %21 {offsets = [72, 0], sizes = [24, 128], strides = [1, 1]} : vector<96x128xf32> to vector<24x128xf32>
    %27 = arith.maximumf %25, %26 : vector<24x128xf32>
    %28 = arith.maximumf %24, %27 : vector<24x128xf32>
    %c0_16 = arith.constant 0 : index
    %c0_17 = arith.constant 0 : index
    %29 = vector.load %arg3[%c0_16, %c0_17] : memref<24x1xf32, #tpu.memory_space<vmem>>, vector<24x1xf32>
    %30 = vector.broadcast %29 : vector<24x1xf32> to vector<24x128xf32>
    %31 = arith.addf %28, %30 : vector<24x128xf32>
    %cst_18 = arith.constant 0.000000e+00 : f32
    %32 = vector.broadcast %cst_18 : f32 to vector<24x128xf32>
    %33 = arith.maximumf %31, %32 : vector<24x128xf32>
    %c0_19 = arith.constant 0 : index
    %c0_20 = arith.constant 0 : index
    %c0_21 = arith.constant 0 : index
    %34 = vector.load %arg4[%c0_19, %c0_20, %c0_21] : memref<1x24x128xf32, #tpu.memory_space<vmem>>, vector<1x24x128xf32>
    %35 = vector.shape_cast %34 : vector<1x24x128xf32> to vector<24x128xf32>
    %36 = vector.shape_cast %33 : vector<24x128xf32> to vector<1x24x128xf32>
    tpu.vector_store %arg4[%c0_19, %c0_20, %c0_21], %36 {strides = array<i32>} : memref<1x24x128xf32, #tpu.memory_space<vmem>>, vector<1x24x128xf32>,
    return
  }
  func.func @transform_0(%arg0: i32) -> (i32, i32, i32) {
    %c0_i32 = arith.constant 0 : i32
    %c0_i32_0 = arith.constant 0 : i32
    %c0_i32_1 = arith.constant 0 : i32
    return %arg0, %c0_i32, %c0_i32_0 : i32, i32, i32
  }
  func.func @transform_1(%arg0: i32) -> (i32, i32) {
    %c0_i32 = arith.constant 0 : i32
    %c0_i32_0 = arith.constant 0 : i32
    %c0_i32_1 = arith.constant 0 : i32
    return %c0_i32, %c0_i32_0 : i32, i32
  }
  func.func @transform_2(%arg0: i32) -> (i32, i32) {
    %c0_i32 = arith.constant 0 : i32
    %c0_i32_0 = arith.constant 0 : i32
    %c0_i32_1 = arith.constant 0 : i32
    return %c0_i32, %c0_i32_0 : i32, i32
  }
  func.func @transform_3(%arg0: i32) -> (i32, i32, i32) {
    %c0_i32 = arith.constant 0 : i32
    %c0_i32_0 = arith.constant 0 : i32
    %c0_i32_1 = arith.constant 0 : i32
    return %arg0, %c0_i32, %c0_i32_0 : i32, i32, i32
  }
}

module attributes {stable_mosaic.version = 11 : i64} {
  func.func @_fc_kernel(%arg0: i32, %arg1: memref<2x128xf32, #tpu.memory_space<vmem>>, %arg2: memref<128x1024xf32, #tpu.memory_space<vmem>>, %arg3: memref<1x1024xf32, #tpu.memory_space<vmem>>, %arg4: memref<1024x128xf32, #tpu.memory_space<vmem>>, %arg5: memref<1x128xf32, #tpu.memory_space<vmem>>, %arg6: memref<128x2xf32, #tpu.memory_space<vmem>>, %arg7: memref<1x2xf32, #tpu.memory_space<vmem>>, %arg8: memref<2x2xf32, #tpu.memory_space<vmem>>, %arg9: memref<2x1024xf32, #tpu.memory_space<vmem>>) attributes {dimension_semantics = [#tpu.dimension_semantics<arbitrary>], iteration_bounds = array<i64: 13>, scalar_prefetch = 0 : i64, scratch_operands = 1 : i64, tpu.core_type = #tpu.core_type<tc>, window_params = [{transform_indices = @transform_0, window_bounds = array<i64: 2, 128>}, {transform_indices = @transform_1, window_bounds = array<i64: 128, 1024>}, {pipeline_mode = #tpu.pipeline_mode<synchronous>, transform_indices = @transform_2, window_bounds = array<i64: 1, 1024>}, {pipeline_mode = #tpu.pipeline_mode<synchronous>, transform_indices = @transform_3, window_bounds = array<i64: 1024, 128>}, {pipeline_mode = #tpu.pipeline_mode<synchronous>, transform_indices = @transform_4, window_bounds = array<i64: 1, 128>}, {pipeline_mode = #tpu.pipeline_mode<synchronous>, transform_indices = @transform_5, window_bounds = array<i64: 128, 2>}, {pipeline_mode = #tpu.pipeline_mode<synchronous>, transform_indices = @transform_6, window_bounds = array<i64: 1, 2>}, {pipeline_mode = #tpu.pipeline_mode<synchronous>, transform_indices = @transform_7, window_bounds = array<i64: 2, 2>}]} {
    %c0_i32 = arith.constant 0 : i32
    %0 = arith.cmpi eq, %arg0, %c0_i32 : i32
    %1 = arith.extui %0 : i1 to i32
    %c0_i32_0 = arith.constant 0 : i32
    %2 = arith.cmpi ne, %1, %c0_i32_0 : i32
    scf.if %2 {
      %cst_9 = arith.constant 0.000000e+00 : f32
      %12 = vector.broadcast %cst_9 : f32 to vector<2x1024xf32>
      %c0_10 = arith.constant 0 : index
      %c0_11 = arith.constant 0 : index
      %13 = vector.load %arg9[%c0_10, %c0_11] : memref<2x1024xf32, #tpu.memory_space<vmem>>, vector<2x1024xf32>
      tpu.vector_store %arg9[%c0_10, %c0_11], %12 {strides = array<i32>} : memref<2x1024xf32, #tpu.memory_space<vmem>>, vector<2x1024xf32>,
    } else {
    }
    %c0 = arith.constant 0 : index
    %c0_1 = arith.constant 0 : index
    %3 = vector.load %arg9[%c0, %c0_1] : memref<2x1024xf32, #tpu.memory_space<vmem>>, vector<2x1024xf32>
    %c0_2 = arith.constant 0 : index
    %c0_3 = arith.constant 0 : index
    %4 = vector.load %arg1[%c0_2, %c0_3] : memref<2x128xf32, #tpu.memory_space<vmem>>, vector<2x128xf32>
    %c0_4 = arith.constant 0 : index
    %c0_5 = arith.constant 0 : index
    %5 = vector.load %arg2[%c0_4, %c0_5] : memref<128x1024xf32, #tpu.memory_space<vmem>>, vector<128x1024xf32>
    %cst = arith.constant dense<0.000000e+00> : vector<2x1024xf32>
    %6 = tpu.matmul %4, %5, %cst {dimension_numbers = #tpu.dot_dimension_numbers<[1], [0], [0], [1], [0, 0, 1, 1], [], []>} : vector<2x128xf32>, vector<128x1024xf32>, vector<2x1024xf32> -> vector<2x1024xf32>
    %7 = arith.addf %3, %6 : vector<2x1024xf32>
    %c0_6 = arith.constant 0 : index
    %c0_7 = arith.constant 0 : index
    %8 = vector.load %arg9[%c0_6, %c0_7] : memref<2x1024xf32, #tpu.memory_space<vmem>>, vector<2x1024xf32>
    tpu.vector_store %arg9[%c0_6, %c0_7], %7 {strides = array<i32>} : memref<2x1024xf32, #tpu.memory_space<vmem>>, vector<2x1024xf32>,
    %c12_i32 = arith.constant 12 : i32
    %9 = arith.cmpi eq, %arg0, %c12_i32 : i32
    %10 = arith.extui %9 : i1 to i32
    %c0_i32_8 = arith.constant 0 : i32
    %11 = arith.cmpi ne, %10, %c0_i32_8 : i32
    scf.if %11 {
      %c0_9 = arith.constant 0 : index
      %c0_10 = arith.constant 0 : index
      %12 = vector.load %arg9[%c0_9, %c0_10] : memref<2x1024xf32, #tpu.memory_space<vmem>>, vector<2x1024xf32>
      %c0_11 = arith.constant 0 : index
      %c0_12 = arith.constant 0 : index
      %13 = vector.load %arg3[%c0_11, %c0_12] : memref<1x1024xf32, #tpu.memory_space<vmem>>, vector<1x1024xf32>
      %14 = vector.broadcast %13 : vector<1x1024xf32> to vector<2x1024xf32>
      %15 = arith.addf %12, %14 : vector<2x1024xf32>
      %cst_13 = arith.constant 0.000000e+00 : f32
      %16 = vector.broadcast %cst_13 : f32 to vector<2x1024xf32>
      %17 = arith.maximumf %15, %16 : vector<2x1024xf32>
      %c0_14 = arith.constant 0 : index
      %c0_15 = arith.constant 0 : index
      %18 = vector.load %arg4[%c0_14, %c0_15] : memref<1024x128xf32, #tpu.memory_space<vmem>>, vector<1024x128xf32>
      %cst_16 = arith.constant dense<0.000000e+00> : vector<2x128xf32>
      %19 = tpu.matmul %17, %18, %cst_16 {dimension_numbers = #tpu.dot_dimension_numbers<[1], [0], [0], [1], [0, 0, 1, 1], [], []>} : vector<2x1024xf32>, vector<1024x128xf32>, vector<2x128xf32> -> vector<2x128xf32>
      %c0_17 = arith.constant 0 : index
      %c0_18 = arith.constant 0 : index
      %20 = vector.load %arg5[%c0_17, %c0_18] : memref<1x128xf32, #tpu.memory_space<vmem>>, vector<1x128xf32>
      %21 = vector.broadcast %20 : vector<1x128xf32> to vector<2x128xf32>
      %22 = arith.addf %19, %21 : vector<2x128xf32>
      %cst_19 = arith.constant 0.000000e+00 : f32
      %23 = vector.broadcast %cst_19 : f32 to vector<2x128xf32>
      %24 = arith.maximumf %22, %23 : vector<2x128xf32>
      %c0_20 = arith.constant 0 : index
      %c0_21 = arith.constant 0 : index
      %25 = vector.load %arg6[%c0_20, %c0_21] : memref<128x2xf32, #tpu.memory_space<vmem>>, vector<128x2xf32>
      %cst_22 = arith.constant dense<0.000000e+00> : vector<2x2xf32>
      %26 = tpu.matmul %24, %25, %cst_22 {dimension_numbers = #tpu.dot_dimension_numbers<[1], [0], [0], [1], [0, 0, 1, 1], [], []>} : vector<2x128xf32>, vector<128x2xf32>, vector<2x2xf32> -> vector<2x2xf32>
      %c0_23 = arith.constant 0 : index
      %c0_24 = arith.constant 0 : index
      %27 = vector.load %arg7[%c0_23, %c0_24] : memref<1x2xf32, #tpu.memory_space<vmem>>, vector<1x2xf32>
      %28 = vector.broadcast %27 : vector<1x2xf32> to vector<2x2xf32>
      %29 = arith.addf %26, %28 : vector<2x2xf32>
      %c0_25 = arith.constant 0 : index
      %c0_26 = arith.constant 0 : index
      %30 = vector.load %arg8[%c0_25, %c0_26] : memref<2x2xf32, #tpu.memory_space<vmem>>, vector<2x2xf32>
      tpu.vector_store %arg8[%c0_25, %c0_26], %29 {strides = array<i32>} : memref<2x2xf32, #tpu.memory_space<vmem>>, vector<2x2xf32>,
    } else {
    }
    return
  }
  func.func @transform_0(%arg0: i32) -> (i32, i32) {
    %c0_i32 = arith.constant 0 : i32
    %c0_i32_0 = arith.constant 0 : i32
    return %c0_i32, %arg0 : i32, i32
  }
  func.func @transform_1(%arg0: i32) -> (i32, i32) {
    %c0_i32 = arith.constant 0 : i32
    %c0_i32_0 = arith.constant 0 : i32
    return %arg0, %c0_i32 : i32, i32
  }
  func.func @transform_2(%arg0: i32) -> (i32, i32) {
    %c0_i32 = arith.constant 0 : i32
    %c0_i32_0 = arith.constant 0 : i32
    %c0_i32_1 = arith.constant 0 : i32
    return %c0_i32, %c0_i32_0 : i32, i32
  }
  func.func @transform_3(%arg0: i32) -> (i32, i32) {
    %c0_i32 = arith.constant 0 : i32
    %c0_i32_0 = arith.constant 0 : i32
    %c0_i32_1 = arith.constant 0 : i32
    return %c0_i32, %c0_i32_0 : i32, i32
  }
  func.func @transform_4(%arg0: i32) -> (i32, i32) {
    %c0_i32 = arith.constant 0 : i32
    %c0_i32_0 = arith.constant 0 : i32
    %c0_i32_1 = arith.constant 0 : i32
    return %c0_i32, %c0_i32_0 : i32, i32
  }
  func.func @transform_5(%arg0: i32) -> (i32, i32) {
    %c0_i32 = arith.constant 0 : i32
    %c0_i32_0 = arith.constant 0 : i32
    %c0_i32_1 = arith.constant 0 : i32
    return %c0_i32, %c0_i32_0 : i32, i32
  }
  func.func @transform_6(%arg0: i32) -> (i32, i32) {
    %c0_i32 = arith.constant 0 : i32
    %c0_i32_0 = arith.constant 0 : i32
    %c0_i32_1 = arith.constant 0 : i32
    return %c0_i32, %c0_i32_0 : i32, i32
  }
  func.func @transform_7(%arg0: i32) -> (i32, i32) {
    %c0_i32 = arith.constant 0 : i32
    %c0_i32_0 = arith.constant 0 : i32
    %c0_i32_1 = arith.constant 0 : i32
    return %c0_i32, %c0_i32_0 : i32, i32
  }
}

</mosaic_0001>

<llo_original>
// kernel: cnn_forward.4
$region0: #{cnn_forward.4}
  #allocation0 [shape = 'u32[]', space=smem, size = 0x4, offset = 0x4, fixed_abs, tag = 'smem constant byte address 0x4 - core index']
  #allocation1 [shape = 'u32[144,128]{1,0:T(1,128)}', space=vmem, size = 0x12000, scoped, tag = 'internal scratch']
  #allocation2 [shape = 'f32[144,2560]{1,0:T(8,128)}', space=vmem, size = 0x168000, scoped, tag = 'scratch operand']
  %s0 = inlined_call_operand.vmem [shape: f32[2,16,2560], index: 0, kind: input, shape index: {}]
  %s1 = inlined_call_operand.vmem [shape: f32[32,144], index: 1, kind: input, shape index: {}]
  %s2 = inlined_call_operand.vmem [shape: f32[8,1], index: 2, kind: input, shape index: {}]
  %s3 = inlined_call_operand.vmem [shape: f32[2,8,2560], index: 3, kind: output, shape index: {}]
  %s4 = sld [smem:[#allocation0]]
  $region45: #{cnn_forward.4} parent=0
    _
  %s6 = ssub.s32 1, %s4
  %s7 = scalar_select 0, %s6, %s4
  loop: start=0, step=1, limit=4
  $region2: #{cnn_forward.4} parent=0 // loop_pre_header
    _
  $region3: #{cnn_forward.4} parent=0 // loop_header
    %s9 = sphi 0, %s13
    %p10 = scmp.ge.s32.totalorder %s9, 4
    %s19 = sphi 0, %s21
    %s22 = sphi 0, %s19
    %s23 = sphi 0, %s22
    %s39 = sphi 0, %s23
    %s43 = sphi 0, %s43
    %s45 = sphi 0, %s43
    %s46 = sphi 0, %s45
    %s60 = sphi 0, %s46
    %s64 = sphi 0, %s64
    %s66 = sphi 0, %s64
    %s67 = sphi 0, %s66
    %s81 = sphi 0, %s67
    %s87 = sphi 0, %s89
    %s90 = sphi 0, %s87
    %s91 = sphi 0, %s90
    %s107 = sphi 0, %s91
  $region4: #{cnn_forward.4} parent=0 // loop_header_branch
    %12 = sbr.rel (%p10) target = $region8
  $region5: #{cnn_forward.4} parent=0 // loop_body
    %s14 = ssub.s32 %s9, 1
    %s15 = ssub.s32 %s9, 2
    %s16 = sadd.s32 %s9, 1
    %s17 = ssub.s32 %s9, %s16
    %p18 = scmp.eq.s32.totalorder %s17, 0
    %s20 = sadd.s32 %s19, 1
    %s21 = scalar_select %p18, %s19, %s20
    %p24 = pneg %p18
    %p25 = scmp.eq.s32.totalorder %s9, 1
    %p26 = por %p24, %p25
    %p27 = scmp.ne.s32.totalorder %s19, %s22
    %p28 = scmp.eq.s32.totalorder %s9, 0
    %p29 = por %p27, %p28
    %p30 = scmp.ne.s32.totalorder %s19, %s22
    %p31 = scmp.eq.s32.totalorder %s14, 1
    %p32 = por %p30, %p31
    %p33 = scmp.ne.s32.totalorder %s22, %s23
    %p34 = scmp.eq.s32.totalorder %s14, 0
    %p35 = por %p33, %p34
    %p36 = scmp.ne.s32.totalorder %s22, %s23
    %p37 = scmp.eq.s32.totalorder %s15, 1
    %p38 = por %p36, %p37
    %p40 = scmp.ne.s32.totalorder %s23, %s39
    %p41 = scmp.eq.s32.totalorder %s15, 0
    %p42 = por %p40, %p41
    %s44 = sadd.s32 %s43, 1
    %p47 = scmp.eq.s32.totalorder %s9, 1
    %p48 = scmp.ne.s32.totalorder %s43, %s45
    %p49 = scmp.eq.s32.totalorder %s9, 0
    %p50 = por %p48, %p49
    %p51 = scmp.ne.s32.totalorder %s43, %s45
    %p52 = scmp.eq.s32.totalorder %s14, 1
    %p53 = por %p51, %p52
    %p54 = scmp.ne.s32.totalorder %s45, %s46
    %p55 = scmp.eq.s32.totalorder %s14, 0
    %p56 = por %p54, %p55
    %p57 = scmp.ne.s32.totalorder %s45, %s46
    %p58 = scmp.eq.s32.totalorder %s15, 1
    %p59 = por %p57, %p58
    %p61 = scmp.ne.s32.totalorder %s46, %s60
    %p62 = scmp.eq.s32.totalorder %s15, 0
    %p63 = por %p61, %p62
    %s65 = sadd.s32 %s64, 1
    %p68 = scmp.eq.s32.totalorder %s9, 1
    %p69 = scmp.ne.s32.totalorder %s64, %s66
    %p70 = scmp.eq.s32.totalorder %s9, 0
    %p71 = por %p69, %p70
    %p72 = scmp.ne.s32.totalorder %s64, %s66
    %p73 = scmp.eq.s32.totalorder %s14, 1
    %p74 = por %p72, %p73
    %p75 = scmp.ne.s32.totalorder %s66, %s67
    %p76 = scmp.eq.s32.totalorder %s14, 0
    %p77 = por %p75, %p76
    %p78 = scmp.ne.s32.totalorder %s66, %s67
    %p79 = scmp.eq.s32.totalorder %s15, 1
    %p80 = por %p78, %p79
    %p82 = scmp.ne.s32.totalorder %s67, %s81
    %p83 = scmp.eq.s32.totalorder %s15, 0
    %p84 = por %p82, %p83
    %s85 = ssub.s32 %s9, %s16
    %p86 = scmp.eq.s32.totalorder %s85, 0
    %s88 = sadd.s32 %s87, 1
    %s89 = scalar_select %p86, %s87, %s88
    %p92 = pneg %p86
    %p93 = scmp.eq.s32.totalorder %s9, 1
    %p94 = por %p92, %p93
    %p95 = scmp.ne.s32.totalorder %s87, %s90
    %p96 = scmp.eq.s32.totalorder %s9, 0
    %p97 = por %p95, %p96
    %p98 = scmp.ne.s32.totalorder %s87, %s90
    %p99 = scmp.eq.s32.totalorder %s14, 1
    %p100 = por %p98, %p99
    %p101 = scmp.ne.s32.totalorder %s90, %s91
    %p102 = scmp.eq.s32.totalorder %s14, 0
    %p103 = por %p101, %p102
    %p104 = scmp.ne.s32.totalorder %s90, %s91
    %p105 = scmp.eq.s32.totalorder %s15, 1
    %p106 = por %p104, %p105
    %p108 = scmp.ne.s32.totalorder %s91, %s107
    %p109 = scmp.eq.s32.totalorder %s15, 0
    %p110 = por %p108, %p109
    %p111 = scmp.le.s32.totalorder 1, %s9
    %p112 = scmp.lt.s32.totalorder %s9, 3
    %p113 = pnand %p111, %p112
    %p114 = pneg %p113
    // Predicated region
    $region9: #{cnn_forward.4} parent=5 // pred_check
      _
    $region10: #{cnn_forward.4} parent=5 // pred_check_branch
      %116 = sbr.rel (%p113) target = $region12
    $region11: #{cnn_forward.4} parent=5 // pred_region
      %s117 = ssub.s32 %s9, 1
      // Predicated region
      $region13: #{cnn_forward.4} parent=11 // pred_check
        %p118 = pneg %p56
      $region14: #{cnn_forward.4} parent=11 // pred_check_branch
        %120 = sbr.rel (%p118) target = $region16
      $region15: #{cnn_forward.4} parent=11 // pred_region
        _
      $region16: #{cnn_forward.4} parent=11 // pred_fallthru
        _
      // Predicated region
      $region17: #{cnn_forward.4} parent=11 // pred_check
        %p121 = pneg %p77
      $region18: #{cnn_forward.4} parent=11 // pred_check_branch
        %123 = sbr.rel (%p121) target = $region20
      $region19: #{cnn_forward.4} parent=11 // pred_region
        _
      $region20: #{cnn_forward.4} parent=11 // pred_fallthru
        _
    $region12: #{cnn_forward.4} parent=5 // pred_fallthru
      _
    %p124 = scmp.lt.s32.totalorder %s9, 2
    // Predicated region
    $region21: #{cnn_forward.4} parent=5 // pred_check
      %p125 = pneg %p124
    $region22: #{cnn_forward.4} parent=5 // pred_check_branch
      %127 = sbr.rel (%p125) target = $region24
    $region23: #{cnn_forward.4} parent=5 // pred_region
      // Predicated region
      $region25: #{cnn_forward.4} parent=23 // pred_check
        %p128 = pneg %p29
      $region26: #{cnn_forward.4} parent=23 // pred_check_branch
        %130 = sbr.rel (%p128) target = $region28
      $region27: #{cnn_forward.4} parent=23 // pred_region
        %p131 = scmp.lt.s32.totalorder %s9, 1
        %s132 = scalar_select %p131, %s9, 1
        %s133 = smul.addr %s132, 40
        %s134 = smul.addr %s133, 8
        %s135 = scalar_lea.vmem %s0, %s134
      $region28: #{cnn_forward.4} parent=23 // pred_fallthru
        _
    $region24: #{cnn_forward.4} parent=5 // pred_fallthru
      _
    %p136 = scmp.le.s32.totalorder 1, %s9
    %p137 = scmp.lt.s32.totalorder %s9, 3
    %p138 = pnand %p136, %p137
    %p139 = pneg %p138
    // Predicated region
    $region29: #{cnn_forward.4} parent=5 // pred_check
      _
    $region30: #{cnn_forward.4} parent=5 // pred_check_branch
      %141 = sbr.rel (%p138) target = $region32
    $region31: #{cnn_forward.4} parent=5 // pred_region
      %s142 = ssub.s32 %s9, 1
      %p143 = scmp.lt.s32.totalorder %s14, 1
      %s144 = scalar_select %p143, %s14, 1
      %s145 = smul.addr %s144, 40
      %s146 = smul.addr %s145, 8
      %s147 = scalar_lea.vmem %s0, %s146
      %p148 = pneg %p35
      %p149 = pneg %p32
      %p150 = pneg %p56
      %p151 = pneg %p53
      %p152 = pneg %p77
      %p153 = pneg %p74
      %p154 = pneg %p103
      %p155 = pneg %p100
      %p156 = scmp.lt.s32.totalorder %s14, 1
      %s157 = scalar_select %p156, %s14, 1
      %s158 = smul.addr %s157, 20
      %s159 = smul.addr %s158, 8
      %s160 = scalar_lea.vmem %s3, %s159
      %p161 = scmp.lt.s32.totalorder %s14, 1
      %s162 = scalar_select %p161, %s14, 1
      %s163 = smul.addr %s162, 40
      %s164 = smul.addr %s163, 8
      %s165 = scalar_lea.vmem %s0, %s164
      %p166 = scmp.lt.s32.totalorder %s14, 1
      %s167 = scalar_select %p166, %s14, 1
      %s168 = smul.addr %s167, 20
      %s169 = smul.addr %s168, 8
      %s170 = scalar_lea.vmem %s3, %s169
      %v171 = vld [vmem:[%s165] sm:$0xff]
      %v172 = vld [vmem:[%s165 + $0x8] sm:$0xff]
      %v173 = vld [vmem:[%s165 + $0x10] sm:$0xff]
      %v174 = vld [vmem:[%s165 + $0x18] sm:$0xff]
      %v175 = vld [vmem:[%s165 + $0x20] sm:$0xff]
      %v176 = vld [vmem:[%s165 + $0x28] sm:$0xff]
      %v177 = vld [vmem:[%s165 + $0x30] sm:$0xff]
      %v178 = vld [vmem:[%s165 + $0x38] sm:$0xff]
      %v179 = vld [vmem:[%s165 + $0x40] sm:$0xff]
      %v180 = vld [vmem:[%s165 + $0x48] sm:$0xff]
      %v181 = vld [vmem:[%s165 + $0x50] sm:$0xff]
      %v182 = vld [vmem:[%s165 + $0x58] sm:$0xff]
      %v183 = vld [vmem:[%s165 + $0x60] sm:$0xff]
      %v184 = vld [vmem:[%s165 + $0x68] sm:$0xff]
      %v185 = vld [vmem:[%s165 + $0x70] sm:$0xff]
      %v186 = vld [vmem:[%s165 + $0x78] sm:$0xff]
      %v187 = vld [vmem:[%s165 + $0x80] sm:$0xff]
      %v188 = vld [vmem:[%s165 + $0x88] sm:$0xff]
      %v189 = vld [vmem:[%s165 + $0x90] sm:$0xff]
      %v190 = vld [vmem:[%s165 + $0x98] sm:$0xff]
      %v191 = vld [vmem:[%s165 + $0xa0] sm:$0xff]
      %v192 = vld [vmem:[%s165 + $0xa8] sm:$0xff]
      %v193 = vld [vmem:[%s165 + $0xb0] sm:$0xff]
      %v194 = vld [vmem:[%s165 + $0xb8] sm:$0xff]
      %v195 = vld [vmem:[%s165 + $0xc0] sm:$0xff]
      %v196 = vld [vmem:[%s165 + $0xc8] sm:$0xff]
      %v197 = vld [vmem:[%s165 + $0xd0] sm:$0xff]
      %v198 = vld [vmem:[%s165 + $0xd8] sm:$0xff]
      %v199 = vld [vmem:[%s165 + $0xe0] sm:$0xff]
      %v200 = vld [vmem:[%s165 + $0xe8] sm:$0xff]
      %v201 = vld [vmem:[%s165 + $0xf0] sm:$0xff]
      %v202 = vld [vmem:[%s165 + $0xf8] sm:$0xff]
      %v203 = vld [vmem:[%s165 + $0x100] sm:$0xff]
      %v204 = vld [vmem:[%s165 + $0x108] sm:$0xff]
      %v205 = vld [vmem:[%s165 + $0x110] sm:$0xff]
      %v206 = vld [vmem:[%s165 + $0x118] sm:$0xff]
      %v207 = vld [vmem:[%s165 + $0x120] sm:$0xff]
      %v208 = vld [vmem:[%s165 + $0x128] sm:$0xff]
      %v209 = vld [vmem:[%s165 + $0x130] sm:$0xff]
      %v210 = vld [vmem:[%s165 + $0x138] sm:$0xff]
      %211 = vst [vmem:[#allocation2] sm:$0xff] %v171
      %212 = vst [vmem:[#allocation2 + $0x8] sm:$0xff] %v172
      %213 = vst [vmem:[#allocation2 + $0x10] sm:$0xff] %v173
      %214 = vst [vmem:[#allocation2 + $0x18] sm:$0xff] %v174
      %215 = vst [vmem:[#allocation2 + $0x20] sm:$0xff] %v175
      %216 = vst [vmem:[#allocation2 + $0x28] sm:$0xff] %v176
      %217 = vst [vmem:[#allocation2 + $0x30] sm:$0xff] %v177
      %218 = vst [vmem:[#allocation2 + $0x38] sm:$0xff] %v178
      %219 = vst [vmem:[#allocation2 + $0x40] sm:$0xff] %v179
      %220 = vst [vmem:[#allocation2 + $0x48] sm:$0xff] %v180
      %221 = vst [vmem:[#allocation2 + $0x50] sm:$0xff] %v181
      %222 = vst [vmem:[#allocation2 + $0x58] sm:$0xff] %v182
      %223 = vst [vmem:[#allocation2 + $0x60] sm:$0xff] %v183
      %224 = vst [vmem:[#allocation2 + $0x68] sm:$0xff] %v184
      %225 = vst [vmem:[#allocation2 + $0x70] sm:$0xff] %v185
      %226 = vst [vmem:[#allocation2 + $0x78] sm:$0xff] %v186
      %227 = vst [vmem:[#allocation2 + $0x80] sm:$0xff] %v187
      %228 = vst [vmem:[#allocation2 + $0x88] sm:$0xff] %v188
      %229 = vst [vmem:[#allocation2 + $0x90] sm:$0xff] %v189
      %230 = vst [vmem:[#allocation2 + $0x98] sm:$0xff] %v190
      %231 = vst [vmem:[#allocation2 + $0xa0] sm:$0xff] %v191
      %232 = vst [vmem:[#allocation2 + $0xa8] sm:$0xff] %v192
      %233 = vst [vmem:[#allocation2 + $0xb0] sm:$0xff] %v193
      %234 = vst [vmem:[#allocation2 + $0xb8] sm:$0xff] %v194
      %235 = vst [vmem:[#allocation2 + $0xc0] sm:$0xff] %v195
      %236 = vst [vmem:[#allocation2 + $0xc8] sm:$0xff] %v196
      %237 = vst [vmem:[#allocation2 + $0xd0] sm:$0xff] %v197
      %238 = vst [vmem:[#allocation2 + $0xd8] sm:$0xff] %v198
      %239 = vst [vmem:[#allocation2 + $0xe0] sm:$0xff] %v199
      %240 = vst [vmem:[#allocation2 + $0xe8] sm:$0xff] %v200
      %241 = vst [vmem:[#allocation2 + $0xf0] sm:$0xff] %v201
      %242 = vst [vmem:[#allocation2 + $0xf8] sm:$0xff] %v202
      %243 = vst [vmem:[#allocation2 + $0x100] sm:$0xff] %v203
      %244 = vst [vmem:[#allocation2 + $0x108] sm:$0xff] %v204
      %245 = vst [vmem:[#allocation2 + $0x110] sm:$0xff] %v205
      %246 = vst [vmem:[#allocation2 + $0x118] sm:$0xff] %v206
      %247 = vst [vmem:[#allocation2 + $0x120] sm:$0xff] %v207
      %248 = vst [vmem:[#allocation2 + $0x128] sm:$0xff] %v208
      %249 = vst [vmem:[#allocation2 + $0x130] sm:$0xff] %v209
      %250 = vst [vmem:[#allocation2 + $0x138] sm:$0xff] %v210
      %251 = vrot.lane.b32.xlu0 %v171, 127
      %v252 = vpop.permute.xlu0 %251
      %253 = vrot.lane.b32.xlu0 %v191, 127
      %v254 = vpop.permute.xlu0 %253
      %255 = vrot.lane.b32.xlu0 %v172, 127
      %v256 = vpop.permute.xlu0 %255
      %257 = vrot.lane.b32.xlu0 %v192, 127
      %v258 = vpop.permute.xlu0 %257
      %259 = vrot.lane.b32.xlu0 %v173, 127
      %v260 = vpop.permute.xlu0 %259
      %261 = vrot.lane.b32.xlu0 %v193, 127
      %v262 = vpop.permute.xlu0 %261
      %263 = vrot.lane.b32.xlu0 %v174, 127
      %v264 = vpop.permute.xlu0 %263
      %265 = vrot.lane.b32.xlu0 %v194, 127
      %v266 = vpop.permute.xlu0 %265
      %267 = vrot.lane.b32.xlu0 %v175, 127
      %v268 = vpop.permute.xlu0 %267
      %269 = vrot.lane.b32.xlu0 %v195, 127
      %v270 = vpop.permute.xlu0 %269
      %271 = vrot.lane.b32.xlu0 %v176, 127
      %v272 = vpop.permute.xlu0 %271
      %273 = vrot.lane.b32.xlu0 %v196, 127
      %v274 = vpop.permute.xlu0 %273
      %275 = vrot.lane.b32.xlu0 %v177, 127
      %v276 = vpop.permute.xlu0 %275
      %277 = vrot.lane.b32.xlu0 %v197, 127
      %v278 = vpop.permute.xlu0 %277
      %279 = vrot.lane.b32.xlu0 %v178, 127
      %v280 = vpop.permute.xlu0 %279
      %281 = vrot.lane.b32.xlu0 %v198, 127
      %v282 = vpop.permute.xlu0 %281
      %283 = vrot.lane.b32.xlu0 %v179, 127
      %v284 = vpop.permute.xlu0 %283
      %285 = vrot.lane.b32.xlu0 %v199, 127
      %v286 = vpop.permute.xlu0 %285
      %287 = vrot.lane.b32.xlu0 %v180, 127
      %v288 = vpop.permute.xlu0 %287
      %289 = vrot.lane.b32.xlu0 %v200, 127
      %v290 = vpop.permute.xlu0 %289
      %291 = vrot.lane.b32.xlu0 %v181, 127
      %v292 = vpop.permute.xlu0 %291
      %293 = vrot.lane.b32.xlu0 %v201, 127
      %v294 = vpop.permute.xlu0 %293
      %295 = vrot.lane.b32.xlu0 %v182, 127
      %v296 = vpop.permute.xlu0 %295
      %297 = vrot.lane.b32.xlu0 %v202, 127
      %v298 = vpop.permute.xlu0 %297
      %299 = vrot.lane.b32.xlu0 %v183, 127
      %v300 = vpop.permute.xlu0 %299
      %301 = vrot.lane.b32.xlu0 %v203, 127
      %v302 = vpop.permute.xlu0 %301
      %303 = vrot.lane.b32.xlu0 %v184, 127
      %v304 = vpop.permute.xlu0 %303
      %305 = vrot.lane.b32.xlu0 %v204, 127
      %v306 = vpop.permute.xlu0 %305
      %307 = vrot.lane.b32.xlu0 %v185, 127
      %v308 = vpop.permute.xlu0 %307
      %309 = vrot.lane.b32.xlu0 %v205, 127
      %v310 = vpop.permute.xlu0 %309
      %311 = vrot.lane.b32.xlu0 %v186, 127
      %v312 = vpop.permute.xlu0 %311
      %313 = vrot.lane.b32.xlu0 %v206, 127
      %v314 = vpop.permute.xlu0 %313
      %315 = vrot.lane.b32.xlu0 %v187, 127
      %v316 = vpop.permute.xlu0 %315
      %317 = vrot.lane.b32.xlu0 %v207, 127
      %v318 = vpop.permute.xlu0 %317
      %319 = vrot.lane.b32.xlu0 %v188, 127
      %v320 = vpop.permute.xlu0 %319
      %321 = vrot.lane.b32.xlu0 %v208, 127
      %v322 = vpop.permute.xlu0 %321
      %323 = vrot.lane.b32.xlu0 %v189, 127
      %v324 = vpop.permute.xlu0 %323
      %325 = vrot.lane.b32.xlu0 %v209, 127
      %v326 = vpop.permute.xlu0 %325
      %327 = vrot.lane.b32.xlu0 %v190, 127
      %v328 = vpop.permute.xlu0 %327
      %329 = vrot.lane.b32.xlu0 %v210, 127
      %v330 = vpop.permute.xlu0 %329
      %v331 = vlaneseq
      %v332 = vand.u32 %v331, 127
      %vm333 = vcmp.lt.s32.totalorder %v332, 127
      %v334 = vsel %vm333, %v324, %v328
      %v335 = vsel %vm333, %v326, %v330
      %v336 = vsel %vm333, %v320, %v324
      %v337 = vsel %vm333, %v322, %v326
      %v338 = vsel %vm333, %v316, %v320
      %v339 = vsel %vm333, %v318, %v322
      %v340 = vsel %vm333, %v312, %v316
      %v341 = vsel %vm333, %v314, %v318
      %v342 = vsel %vm333, %v308, %v312
      %v343 = vsel %vm333, %v310, %v314
      %v344 = vsel %vm333, %v304, %v308
      %v345 = vsel %vm333, %v306, %v310
      %v346 = vsel %vm333, %v300, %v304
      %v347 = vsel %vm333, %v302, %v306
      %v348 = vsel %vm333, %v296, %v300
      %v349 = vsel %vm333, %v298, %v302
      %v350 = vsel %vm333, %v292, %v296
      %v351 = vsel %vm333, %v294, %v298
      %v352 = vsel %vm333, %v288, %v292
      %v353 = vsel %vm333, %v290, %v294
      %v354 = vsel %vm333, %v284, %v288
      %v355 = vsel %vm333, %v286, %v290
      %v356 = vsel %vm333, %v280, %v284
      %v357 = vsel %vm333, %v282, %v286
      %v358 = vsel %vm333, %v276, %v280
      %v359 = vsel %vm333, %v278, %v282
      %v360 = vsel %vm333, %v272, %v276
      %v361 = vsel %vm333, %v274, %v278
      %v362 = vsel %vm333, %v268, %v272
      %v363 = vsel %vm333, %v270, %v274
      %v364 = vsel %vm333, %v264, %v268
      %v365 = vsel %vm333, %v266, %v270
      %v366 = vsel %vm333, %v260, %v264
      %v367 = vsel %vm333, %v262, %v266
      %v368 = vsel %vm333, %v256, %v260
      %v369 = vsel %vm333, %v258, %v262
      %v370 = vsel %vm333, %v252, %v256
      %v371 = vsel %vm333, %v254, %v258
      %v372 = vsel %vm333, %v328, %v252
      %v373 = vsel %vm333, %v330, %v254
      %374 = vst [vmem:[#allocation2 + $0x140] sm:$0xff] %v370
      %375 = vst [vmem:[#allocation2 + $0x148] sm:$0xff] %v368
      %376 = vst [vmem:[#allocation2 + $0x150] sm:$0xff] %v366
      %377 = vst [vmem:[#allocation2 + $0x158] sm:$0xff] %v364
      %378 = vst [vmem:[#allocation2 + $0x160] sm:$0xff] %v362
      %379 = vst [vmem:[#allocation2 + $0x168] sm:$0xff] %v360
      %380 = vst [vmem:[#allocation2 + $0x170] sm:$0xff] %v358
      %381 = vst [vmem:[#allocation2 + $0x178] sm:$0xff] %v356
      %382 = vst [vmem:[#allocation2 + $0x180] sm:$0xff] %v354
      %383 = vst [vmem:[#allocation2 + $0x188] sm:$0xff] %v352
      %384 = vst [vmem:[#allocation2 + $0x190] sm:$0xff] %v350
      %385 = vst [vmem:[#allocation2 + $0x198] sm:$0xff] %v348
      %386 = vst [vmem:[#allocation2 + $0x1a0] sm:$0xff] %v346
      %387 = vst [vmem:[#allocation2 + $0x1a8] sm:$0xff] %v344
      %388 = vst [vmem:[#allocation2 + $0x1b0] sm:$0xff] %v342
      %389 = vst [vmem:[#allocation2 + $0x1b8] sm:$0xff] %v340
      %390 = vst [vmem:[#allocation2 + $0x1c0] sm:$0xff] %v338
      %391 = vst [vmem:[#allocation2 + $0x1c8] sm:$0xff] %v336
      %392 = vst [vmem:[#allocation2 + $0x1d0] sm:$0xff] %v334
      %393 = vst [vmem:[#allocation2 + $0x1d8] sm:$0xff] %v372
      %394 = vst [vmem:[#allocation2 + $0x1e0] sm:$0xff] %v371
      %395 = vst [vmem:[#allocation2 + $0x1e8] sm:$0xff] %v369
      %396 = vst [vmem:[#allocation2 + $0x1f0] sm:$0xff] %v367
      %397 = vst [vmem:[#allocation2 + $0x1f8] sm:$0xff] %v365
      %398 = vst [vmem:[#allocation2 + $0x200] sm:$0xff] %v363
      %399 = vst [vmem:[#allocation2 + $0x208] sm:$0xff] %v361
      %400 = vst [vmem:[#allocation2 + $0x210] sm:$0xff] %v359
      %401 = vst [vmem:[#allocation2 + $0x218] sm:$0xff] %v357
      %402 = vst [vmem:[#allocation2 + $0x220] sm:$0xff] %v355
      %403 = vst [vmem:[#allocation2 + $0x228] sm:$0xff] %v353
      %404 = vst [vmem:[#allocation2 + $0x230] sm:$0xff] %v351
      %405 = vst [vmem:[#allocation2 + $0x238] sm:$0xff] %v349
      %406 = vst [vmem:[#allocation2 + $0x240] sm:$0xff] %v347
      %407 = vst [vmem:[#allocation2 + $0x248] sm:$0xff] %v345
      %408 = vst [vmem:[#allocation2 + $0x250] sm:$0xff] %v343
      %409 = vst [vmem:[#allocation2 + $0x258] sm:$0xff] %v341
      %410 = vst [vmem:[#allocation2 + $0x260] sm:$0xff] %v339
      %411 = vst [vmem:[#allocation2 + $0x268] sm:$0xff] %v337
      %412 = vst [vmem:[#allocation2 + $0x270] sm:$0xff] %v335
      %413 = vst [vmem:[#allocation2 + $0x278] sm:$0xff] %v373
      %414 = vrot.lane.b32.xlu0 %v171, 126
      %v415 = vpop.permute.xlu0 %414
      %416 = vrot.lane.b32.xlu0 %v191, 126
      %v417 = vpop.permute.xlu0 %416
      %418 = vrot.lane.b32.xlu0 %v172, 126
      %v419 = vpop.permute.xlu0 %418
      %420 = vrot.lane.b32.xlu0 %v192, 126
      %v421 = vpop.permute.xlu0 %420
      %422 = vrot.lane.b32.xlu0 %v173, 126
      %v423 = vpop.permute.xlu0 %422
      %424 = vrot.lane.b32.xlu0 %v193, 126
      %v425 = vpop.permute.xlu0 %424
      %426 = vrot.lane.b32.xlu0 %v174, 126
      %v427 = vpop.permute.xlu0 %426
      %428 = vrot.lane.b32.xlu0 %v194, 126
      %v429 = vpop.permute.xlu0 %428
      %430 = vrot.lane.b32.xlu0 %v175, 126
      %v431 = vpop.permute.xlu0 %430
      %432 = vrot.lane.b32.xlu0 %v195, 126
      %v433 = vpop.permute.xlu0 %432
      %434 = vrot.lane.b32.xlu0 %v176, 126
      %v435 = vpop.permute.xlu0 %434
      %436 = vrot.lane.b32.xlu0 %v196, 126
      %v437 = vpop.permute.xlu0 %436
      %438 = vrot.lane.b32.xlu0 %v177, 126
      %v439 = vpop.permute.xlu0 %438
      %440 = vrot.lane.b32.xlu0 %v197, 126
      %v441 = vpop.permute.xlu0 %440
      %442 = vrot.lane.b32.xlu0 %v178, 126
      %v443 = vpop.permute.xlu0 %442
      %444 = vrot.lane.b32.xlu0 %v198, 126
      %v445 = vpop.permute.xlu0 %444
      %446 = vrot.lane.b32.xlu0 %v179, 126
      %v447 = vpop.permute.xlu0 %446
      %448 = vrot.lane.b32.xlu0 %v199, 126
      %v449 = vpop.permute.xlu0 %448
      %450 = vrot.lane.b32.xlu0 %v180, 126
      %v451 = vpop.permute.xlu0 %450
      %452 = vrot.lane.b32.xlu0 %v200, 126
      %v453 = vpop.permute.xlu0 %452
      %454 = vrot.lane.b32.xlu0 %v181, 126
      %v455 = vpop.permute.xlu0 %454
      %456 = vrot.lane.b32.xlu0 %v201, 126
      %v457 = vpop.permute.xlu0 %456
      %458 = vrot.lane.b32.xlu0 %v182, 126
      %v459 = vpop.permute.xlu0 %458
      %460 = vrot.lane.b32.xlu0 %v202, 126
      %v461 = vpop.permute.xlu0 %460
      %462 = vrot.lane.b32.xlu0 %v183, 126
      %v463 = vpop.permute.xlu0 %462
      %464 = vrot.lane.b32.xlu0 %v203, 126
      %v465 = vpop.permute.xlu0 %464
      %466 = vrot.lane.b32.xlu0 %v184, 126
      %v467 = vpop.permute.xlu0 %466
      %468 = vrot.lane.b32.xlu0 %v204, 126
      %v469 = vpop.permute.xlu0 %468
      %470 = vrot.lane.b32.xlu0 %v185, 126
      %v471 = vpop.permute.xlu0 %470
      %472 = vrot.lane.b32.xlu0 %v205, 126
      %v473 = vpop.permute.xlu0 %472
      %474 = vrot.lane.b32.xlu0 %v186, 126
      %v475 = vpop.permute.xlu0 %474
      %476 = vrot.lane.b32.xlu0 %v206, 126
      %v477 = vpop.permute.xlu0 %476
      %478 = vrot.lane.b32.xlu0 %v187, 126
      %v479 = vpop.permute.xlu0 %478
      %480 = vrot.lane.b32.xlu0 %v207, 126
      %v481 = vpop.permute.xlu0 %480
      %482 = vrot.lane.b32.xlu0 %v188, 126
      %v483 = vpop.permute.xlu0 %482
      %484 = vrot.lane.b32.xlu0 %v208, 126
      %v485 = vpop.permute.xlu0 %484
      %486 = vrot.lane.b32.xlu0 %v189, 126
      %v487 = vpop.permute.xlu0 %486
      %488 = vrot.lane.b32.xlu0 %v209, 126
      %v489 = vpop.permute.xlu0 %488
      %490 = vrot.lane.b32.xlu0 %v190, 126
      %v491 = vpop.permute.xlu0 %490
      %492 = vrot.lane.b32.xlu0 %v210, 126
      %v493 = vpop.permute.xlu0 %492
      %vm494 = vcmp.lt.s32.totalorder %v332, 126
      %v495 = vsel %vm494, %v487, %v491
      %v496 = vsel %vm494, %v489, %v493
      %v497 = vsel %vm494, %v483, %v487
      %v498 = vsel %vm494, %v485, %v489
      %v499 = vsel %vm494, %v479, %v483
      %v500 = vsel %vm494, %v481, %v485
      %v501 = vsel %vm494, %v475, %v479
      %v502 = vsel %vm494, %v477, %v481
      %v503 = vsel %vm494, %v471, %v475
      %v504 = vsel %vm494, %v473, %v477
      %v505 = vsel %vm494, %v467, %v471
      %v506 = vsel %vm494, %v469, %v473
      %v507 = vsel %vm494, %v463, %v467
      %v508 = vsel %vm494, %v465, %v469
      %v509 = vsel %vm494, %v459, %v463
      %v510 = vsel %vm494, %v461, %v465
      %v511 = vsel %vm494, %v455, %v459
      %v512 = vsel %vm494, %v457, %v461
      %v513 = vsel %vm494, %v451, %v455
      %v514 = vsel %vm494, %v453, %v457
      %v515 = vsel %vm494, %v447, %v451
      %v516 = vsel %vm494, %v449, %v453
      %v517 = vsel %vm494, %v443, %v447
      %v518 = vsel %vm494, %v445, %v449
      %v519 = vsel %vm494, %v439, %v443
      %v520 = vsel %vm494, %v441, %v445
      %v521 = vsel %vm494, %v435, %v439
      %v522 = vsel %vm494, %v437, %v441
      %v523 = vsel %vm494, %v431, %v435
      %v524 = vsel %vm494, %v433, %v437
      %v525 = vsel %vm494, %v427, %v431
      %v526 = vsel %vm494, %v429, %v433
      %v527 = vsel %vm494, %v423, %v427
      %v528 = vsel %vm494, %v425, %v429
      %v529 = vsel %vm494, %v419, %v423
      %v530 = vsel %vm494, %v421, %v425
      %v531 = vsel %vm494, %v415, %v419
      %v532 = vsel %vm494, %v417, %v421
      %v533 = vsel %vm494, %v491, %v415
      %v534 = vsel %vm494, %v493, %v417
      %535 = vst [vmem:[#allocation2 + $0x280] sm:$0xff] %v531
      %536 = vst [vmem:[#allocation2 + $0x288] sm:$0xff] %v529
      %537 = vst [vmem:[#allocation2 + $0x290] sm:$0xff] %v527
      %538 = vst [vmem:[#allocation2 + $0x298] sm:$0xff] %v525
      %539 = vst [vmem:[#allocation2 + $0x2a0] sm:$0xff] %v523
      %540 = vst [vmem:[#allocation2 + $0x2a8] sm:$0xff] %v521
      %541 = vst [vmem:[#allocation2 + $0x2b0] sm:$0xff] %v519
      %542 = vst [vmem:[#allocation2 + $0x2b8] sm:$0xff] %v517
      %543 = vst [vmem:[#allocation2 + $0x2c0] sm:$0xff] %v515
      %544 = vst [vmem:[#allocation2 + $0x2c8] sm:$0xff] %v513
      %545 = vst [vmem:[#allocation2 + $0x2d0] sm:$0xff] %v511
      %546 = vst [vmem:[#allocation2 + $0x2d8] sm:$0xff] %v509
      %547 = vst [vmem:[#allocation2 + $0x2e0] sm:$0xff] %v507
      %548 = vst [vmem:[#allocation2 + $0x2e8] sm:$0xff] %v505
      %549 = vst [vmem:[#allocation2 + $0x2f0] sm:$0xff] %v503
      %550 = vst [vmem:[#allocation2 + $0x2f8] sm:$0xff] %v501
      %551 = vst [vmem:[#allocation2 + $0x300] sm:$0xff] %v499
      %552 = vst [vmem:[#allocation2 + $0x308] sm:$0xff] %v497
      %553 = vst [vmem:[#allocation2 + $0x310] sm:$0xff] %v495
      %554 = vst [vmem:[#allocation2 + $0x318] sm:$0xff] %v533
      %555 = vst [vmem:[#allocation2 + $0x320] sm:$0xff] %v532
      %556 = vst [vmem:[#allocation2 + $0x328] sm:$0xff] %v530
      %557 = vst [vmem:[#allocation2 + $0x330] sm:$0xff] %v528
      %558 = vst [vmem:[#allocation2 + $0x338] sm:$0xff] %v526
      %559 = vst [vmem:[#allocation2 + $0x340] sm:$0xff] %v524
      %560 = vst [vmem:[#allocation2 + $0x348] sm:$0xff] %v522
      %561 = vst [vmem:[#allocation2 + $0x350] sm:$0xff] %v520
      %562 = vst [vmem:[#allocation2 + $0x358] sm:$0xff] %v518
      %563 = vst [vmem:[#allocation2 + $0x360] sm:$0xff] %v516
      %564 = vst [vmem:[#allocation2 + $0x368] sm:$0xff] %v514
      %565 = vst [vmem:[#allocation2 + $0x370] sm:$0xff] %v512
      %566 = vst [vmem:[#allocation2 + $0x378] sm:$0xff] %v510
      %567 = vst [vmem:[#allocation2 + $0x380] sm:$0xff] %v508
      %568 = vst [vmem:[#allocation2 + $0x388] sm:$0xff] %v506
      %569 = vst [vmem:[#allocation2 + $0x390] sm:$0xff] %v504
      %570 = vst [vmem:[#allocation2 + $0x398] sm:$0xff] %v502
      %571 = vst [vmem:[#allocation2 + $0x3a0] sm:$0xff] %v500
      %572 = vst [vmem:[#allocation2 + $0x3a8] sm:$0xff] %v498
      %573 = vst [vmem:[#allocation2 + $0x3b0] sm:$0xff] %v496
      %574 = vst [vmem:[#allocation2 + $0x3b8] sm:$0xff] %v534
      %575 = vrot.lane.b32.xlu0 %v171, 78
      %v576 = vpop.permute.xlu0 %575
      %577 = vrot.lane.b32.xlu0 %v191, 78
      %v578 = vpop.permute.xlu0 %577
      %579 = vrot.lane.b32.xlu0 %v172, 78
      %v580 = vpop.permute.xlu0 %579
      %581 = vrot.lane.b32.xlu0 %v192, 78
      %v582 = vpop.permute.xlu0 %581
      %583 = vrot.lane.b32.xlu0 %v173, 78
      %v584 = vpop.permute.xlu0 %583
      %585 = vrot.lane.b32.xlu0 %v193, 78
      %v586 = vpop.permute.xlu0 %585
      %587 = vrot.lane.b32.xlu0 %v174, 78
      %v588 = vpop.permute.xlu0 %587
      %589 = vrot.lane.b32.xlu0 %v194, 78
      %v590 = vpop.permute.xlu0 %589
      %591 = vrot.lane.b32.xlu0 %v175, 78
      %v592 = vpop.permute.xlu0 %591
      %593 = vrot.lane.b32.xlu0 %v195, 78
      %v594 = vpop.permute.xlu0 %593
      %595 = vrot.lane.b32.xlu0 %v176, 78
      %v596 = vpop.permute.xlu0 %595
      %597 = vrot.lane.b32.xlu0 %v196, 78
      %v598 = vpop.permute.xlu0 %597
      %599 = vrot.lane.b32.xlu0 %v177, 78
      %v600 = vpop.permute.xlu0 %599
      %601 = vrot.lane.b32.xlu0 %v197, 78
      %v602 = vpop.permute.xlu0 %601
      %603 = vrot.lane.b32.xlu0 %v178, 78
      %v604 = vpop.permute.xlu0 %603
      %605 = vrot.lane.b32.xlu0 %v198, 78
      %v606 = vpop.permute.xlu0 %605
      %607 = vrot.lane.b32.xlu0 %v179, 78
      %v608 = vpop.permute.xlu0 %607
      %609 = vrot.lane.b32.xlu0 %v199, 78
      %v610 = vpop.permute.xlu0 %609
      %611 = vrot.lane.b32.xlu0 %v180, 78
      %v612 = vpop.permute.xlu0 %611
      %613 = vrot.lane.b32.xlu0 %v200, 78
      %v614 = vpop.permute.xlu0 %613
      %615 = vrot.lane.b32.xlu0 %v181, 78
      %v616 = vpop.permute.xlu0 %615
      %617 = vrot.lane.b32.xlu0 %v201, 78
      %v618 = vpop.permute.xlu0 %617
      %619 = vrot.lane.b32.xlu0 %v182, 78
      %v620 = vpop.permute.xlu0 %619
      %621 = vrot.lane.b32.xlu0 %v202, 78
      %v622 = vpop.permute.xlu0 %621
      %623 = vrot.lane.b32.xlu0 %v183, 78
      %v624 = vpop.permute.xlu0 %623
      %625 = vrot.lane.b32.xlu0 %v203, 78
      %v626 = vpop.permute.xlu0 %625
      %627 = vrot.lane.b32.xlu0 %v184, 78
      %v628 = vpop.permute.xlu0 %627
      %629 = vrot.lane.b32.xlu0 %v204, 78
      %v630 = vpop.permute.xlu0 %629
      %631 = vrot.lane.b32.xlu0 %v185, 78
      %v632 = vpop.permute.xlu0 %631
      %633 = vrot.lane.b32.xlu0 %v205, 78
      %v634 = vpop.permute.xlu0 %633
      %635 = vrot.lane.b32.xlu0 %v186, 78
      %v636 = vpop.permute.xlu0 %635
      %637 = vrot.lane.b32.xlu0 %v206, 78
      %v638 = vpop.permute.xlu0 %637
      %639 = vrot.lane.b32.xlu0 %v187, 78
      %v640 = vpop.permute.xlu0 %639
      %641 = vrot.lane.b32.xlu0 %v207, 78
      %v642 = vpop.permute.xlu0 %641
      %643 = vrot.lane.b32.xlu0 %v188, 78
      %v644 = vpop.permute.xlu0 %643
      %645 = vrot.lane.b32.xlu0 %v208, 78
      %v646 = vpop.permute.xlu0 %645
      %647 = vrot.lane.b32.xlu0 %v189, 78
      %v648 = vpop.permute.xlu0 %647
      %649 = vrot.lane.b32.xlu0 %v209, 78
      %v650 = vpop.permute.xlu0 %649
      %651 = vrot.lane.b32.xlu0 %v190, 78
      %v652 = vpop.permute.xlu0 %651
      %653 = vrot.lane.b32.xlu0 %v210, 78
      %v654 = vpop.permute.xlu0 %653
      %vm655 = vcmp.lt.s32.totalorder %v332, 78
      %v656 = vsel %vm655, %v648, %v652
      %v657 = vsel %vm655, %v650, %v654
      %v658 = vsel %vm655, %v644, %v648
      %v659 = vsel %vm655, %v646, %v650
      %v660 = vsel %vm655, %v640, %v644
      %v661 = vsel %vm655, %v642, %v646
      %v662 = vsel %vm655, %v636, %v640
      %v663 = vsel %vm655, %v638, %v642
      %v664 = vsel %vm655, %v632, %v636
      %v665 = vsel %vm655, %v634, %v638
      %v666 = vsel %vm655, %v628, %v632
      %v667 = vsel %vm655, %v630, %v634
      %v668 = vsel %vm655, %v624, %v628
      %v669 = vsel %vm655, %v626, %v630
      %v670 = vsel %vm655, %v620, %v624
      %v671 = vsel %vm655, %v622, %v626
      %v672 = vsel %vm655, %v616, %v620
      %v673 = vsel %vm655, %v618, %v622
      %v674 = vsel %vm655, %v612, %v616
      %v675 = vsel %vm655, %v614, %v618
      %v676 = vsel %vm655, %v608, %v612
      %v677 = vsel %vm655, %v610, %v614
      %v678 = vsel %vm655, %v604, %v608
      %v679 = vsel %vm655, %v606, %v610
      %v680 = vsel %vm655, %v600, %v604
      %v681 = vsel %vm655, %v602, %v606
      %v682 = vsel %vm655, %v596, %v600
      %v683 = vsel %vm655, %v598, %v602
      %v684 = vsel %vm655, %v592, %v596
      %v685 = vsel %vm655, %v594, %v598
      %v686 = vsel %vm655, %v588, %v592
      %v687 = vsel %vm655, %v590, %v594
      %v688 = vsel %vm655, %v584, %v588
      %v689 = vsel %vm655, %v586, %v590
      %v690 = vsel %vm655, %v580, %v584
      %v691 = vsel %vm655, %v582, %v586
      %v692 = vsel %vm655, %v576, %v580
      %v693 = vsel %vm655, %v578, %v582
      %v694 = vsel %vm655, %v652, %v576
      %v695 = vsel %vm655, %v654, %v578
      %696 = vst [vmem:[#allocation2 + $0x3c0] sm:$0xff] %v692
      %697 = vst [vmem:[#allocation2 + $0x3c8] sm:$0xff] %v690
      %698 = vst [vmem:[#allocation2 + $0x3d0] sm:$0xff] %v688
      %699 = vst [vmem:[#allocation2 + $0x3d8] sm:$0xff] %v686
      %700 = vst [vmem:[#allocation2 + $0x3e0] sm:$0xff] %v684
      %701 = vst [vmem:[#allocation2 + $0x3e8] sm:$0xff] %v682
      %702 = vst [vmem:[#allocation2 + $0x3f0] sm:$0xff] %v680
      %703 = vst [vmem:[#allocation2 + $0x3f8] sm:$0xff] %v678
      %704 = vst [vmem:[#allocation2 + $0x400] sm:$0xff] %v676
      %705 = vst [vmem:[#allocation2 + $0x408] sm:$0xff] %v674
      %706 = vst [vmem:[#allocation2 + $0x410] sm:$0xff] %v672
      %707 = vst [vmem:[#allocation2 + $0x418] sm:$0xff] %v670
      %708 = vst [vmem:[#allocation2 + $0x420] sm:$0xff] %v668
      %709 = vst [vmem:[#allocation2 + $0x428] sm:$0xff] %v666
      %710 = vst [vmem:[#allocation2 + $0x430] sm:$0xff] %v664
      %711 = vst [vmem:[#allocation2 + $0x438] sm:$0xff] %v662
      %712 = vst [vmem:[#allocation2 + $0x440] sm:$0xff] %v660
      %713 = vst [vmem:[#allocation2 + $0x448] sm:$0xff] %v658
      %714 = vst [vmem:[#allocation2 + $0x450] sm:$0xff] %v656
      %715 = vst [vmem:[#allocation2 + $0x458] sm:$0xff] %v694
      %716 = vst [vmem:[#allocation2 + $0x460] sm:$0xff] %v693
      %717 = vst [vmem:[#allocation2 + $0x468] sm:$0xff] %v691
      %718 = vst [vmem:[#allocation2 + $0x470] sm:$0xff] %v689
      %719 = vst [vmem:[#allocation2 + $0x478] sm:$0xff] %v687
      %720 = vst [vmem:[#allocation2 + $0x480] sm:$0xff] %v685
      %721 = vst [vmem:[#allocation2 + $0x488] sm:$0xff] %v683
      %722 = vst [vmem:[#allocation2 + $0x490] sm:$0xff] %v681
      %723 = vst [vmem:[#allocation2 + $0x498] sm:$0xff] %v679
      %724 = vst [vmem:[#allocation2 + $0x4a0] sm:$0xff] %v677
      %725 = vst [vmem:[#allocation2 + $0x4a8] sm:$0xff] %v675
      %726 = vst [vmem:[#allocation2 + $0x4b0] sm:$0xff] %v673
      %727 = vst [vmem:[#allocation2 + $0x4b8] sm:$0xff] %v671
      %728 = vst [vmem:[#allocation2 + $0x4c0] sm:$0xff] %v669
      %729 = vst [vmem:[#allocation2 + $0x4c8] sm:$0xff] %v667
      %730 = vst [vmem:[#allocation2 + $0x4d0] sm:$0xff] %v665
      %731 = vst [vmem:[#allocation2 + $0x4d8] sm:$0xff] %v663
      %732 = vst [vmem:[#allocation2 + $0x4e0] sm:$0xff] %v661
      %733 = vst [vmem:[#allocation2 + $0x4e8] sm:$0xff] %v659
      %734 = vst [vmem:[#allocation2 + $0x4f0] sm:$0xff] %v657
      %735 = vst [vmem:[#allocation2 + $0x4f8] sm:$0xff] %v695
      %736 = vrot.lane.b32.xlu0 %v171, 77
      %v737 = vpop.permute.xlu0 %736
      %738 = vrot.lane.b32.xlu0 %v191, 77
      %v739 = vpop.permute.xlu0 %738
      %740 = vrot.lane.b32.xlu0 %v172, 77
      %v741 = vpop.permute.xlu0 %740
      %742 = vrot.lane.b32.xlu0 %v192, 77
      %v743 = vpop.permute.xlu0 %742
      %744 = vrot.lane.b32.xlu0 %v173, 77
      %v745 = vpop.permute.xlu0 %744
      %746 = vrot.lane.b32.xlu0 %v193, 77
      %v747 = vpop.permute.xlu0 %746
      %748 = vrot.lane.b32.xlu0 %v174, 77
      %v749 = vpop.permute.xlu0 %748
      %750 = vrot.lane.b32.xlu0 %v194, 77
      %v751 = vpop.permute.xlu0 %750
      %752 = vrot.lane.b32.xlu0 %v175, 77
      %v753 = vpop.permute.xlu0 %752
      %754 = vrot.lane.b32.xlu0 %v195, 77
      %v755 = vpop.permute.xlu0 %754
      %756 = vrot.lane.b32.xlu0 %v176, 77
      %v757 = vpop.permute.xlu0 %756
      %758 = vrot.lane.b32.xlu0 %v196, 77
      %v759 = vpop.permute.xlu0 %758
      %760 = vrot.lane.b32.xlu0 %v177, 77
      %v761 = vpop.permute.xlu0 %760
      %762 = vrot.lane.b32.xlu0 %v197, 77
      %v763 = vpop.permute.xlu0 %762
      %764 = vrot.lane.b32.xlu0 %v178, 77
      %v765 = vpop.permute.xlu0 %764
      %766 = vrot.lane.b32.xlu0 %v198, 77
      %v767 = vpop.permute.xlu0 %766
      %768 = vrot.lane.b32.xlu0 %v179, 77
      %v769 = vpop.permute.xlu0 %768
      %770 = vrot.lane.b32.xlu0 %v199, 77
      %v771 = vpop.permute.xlu0 %770
      %772 = vrot.lane.b32.xlu0 %v180, 77
      %v773 = vpop.permute.xlu0 %772
      %774 = vrot.lane.b32.xlu0 %v200, 77
      %v775 = vpop.permute.xlu0 %774
      %776 = vrot.lane.b32.xlu0 %v181, 77
      %v777 = vpop.permute.xlu0 %776
      %778 = vrot.lane.b32.xlu0 %v201, 77
      %v779 = vpop.permute.xlu0 %778
      %780 = vrot.lane.b32.xlu0 %v182, 77
      %v781 = vpop.permute.xlu0 %780
      %782 = vrot.lane.b32.xlu0 %v202, 77
      %v783 = vpop.permute.xlu0 %782
      %784 = vrot.lane.b32.xlu0 %v183, 77
      %v785 = vpop.permute.xlu0 %784
      %786 = vrot.lane.b32.xlu0 %v203, 77
      %v787 = vpop.permute.xlu0 %786
      %788 = vrot.lane.b32.xlu0 %v184, 77
      %v789 = vpop.permute.xlu0 %788
      %790 = vrot.lane.b32.xlu0 %v204, 77
      %v791 = vpop.permute.xlu0 %790
      %792 = vrot.lane.b32.xlu0 %v185, 77
      %v793 = vpop.permute.xlu0 %792
      %794 = vrot.lane.b32.xlu0 %v205, 77
      %v795 = vpop.permute.xlu0 %794
      %796 = vrot.lane.b32.xlu0 %v186, 77
      %v797 = vpop.permute.xlu0 %796
      %798 = vrot.lane.b32.xlu0 %v206, 77
      %v799 = vpop.permute.xlu0 %798
      %800 = vrot.lane.b32.xlu0 %v187, 77
      %v801 = vpop.permute.xlu0 %800
      %802 = vrot.lane.b32.xlu0 %v207, 77
      %v803 = vpop.permute.xlu0 %802
      %804 = vrot.lane.b32.xlu0 %v188, 77
      %v805 = vpop.permute.xlu0 %804
      %806 = vrot.lane.b32.xlu0 %v208, 77
      %v807 = vpop.permute.xlu0 %806
      %808 = vrot.lane.b32.xlu0 %v189, 77
      %v809 = vpop.permute.xlu0 %808
      %810 = vrot.lane.b32.xlu0 %v209, 77
      %v811 = vpop.permute.xlu0 %810
      %812 = vrot.lane.b32.xlu0 %v190, 77
      %v813 = vpop.permute.xlu0 %812
      %814 = vrot.lane.b32.xlu0 %v210, 77
      %v815 = vpop.permute.xlu0 %814
      %vm816 = vcmp.lt.s32.totalorder %v332, 77
      %v817 = vsel %vm816, %v809, %v813
      %v818 = vsel %vm816, %v811, %v815
      %v819 = vsel %vm816, %v805, %v809
      %v820 = vsel %vm816, %v807, %v811
      %v821 = vsel %vm816, %v801, %v805
      %v822 = vsel %vm816, %v803, %v807
      %v823 = vsel %vm816, %v797, %v801
      %v824 = vsel %vm816, %v799, %v803
      %v825 = vsel %vm816, %v793, %v797
      %v826 = vsel %vm816, %v795, %v799
      %v827 = vsel %vm816, %v789, %v793
      %v828 = vsel %vm816, %v791, %v795
      %v829 = vsel %vm816, %v785, %v789
      %v830 = vsel %vm816, %v787, %v791
      %v831 = vsel %vm816, %v781, %v785
      %v832 = vsel %vm816, %v783, %v787
      %v833 = vsel %vm816, %v777, %v781
      %v834 = vsel %vm816, %v779, %v783
      %v835 = vsel %vm816, %v773, %v777
      %v836 = vsel %vm816, %v775, %v779
      %v837 = vsel %vm816, %v769, %v773
      %v838 = vsel %vm816, %v771, %v775
      %v839 = vsel %vm816, %v765, %v769
      %v840 = vsel %vm816, %v767, %v771
      %v841 = vsel %vm816, %v761, %v765
      %v842 = vsel %vm816, %v763, %v767
      %v843 = vsel %vm816, %v757, %v761
      %v844 = vsel %vm816, %v759, %v763
      %v845 = vsel %vm816, %v753, %v757
      %v846 = vsel %vm816, %v755, %v759
      %v847 = vsel %vm816, %v749, %v753
      %v848 = vsel %vm816, %v751, %v755
      %v849 = vsel %vm816, %v745, %v749
      %v850 = vsel %vm816, %v747, %v751
      %v851 = vsel %vm816, %v741, %v745
      %v852 = vsel %vm816, %v743, %v747
      %v853 = vsel %vm816, %v737, %v741
      %v854 = vsel %vm816, %v739, %v743
      %v855 = vsel %vm816, %v813, %v737
      %v856 = vsel %vm816, %v815, %v739
      %857 = vst [vmem:[#allocation2 + $0x500] sm:$0xff] %v853
      %858 = vst [vmem:[#allocation2 + $0x508] sm:$0xff] %v851
      %859 = vst [vmem:[#allocation2 + $0x510] sm:$0xff] %v849
      %860 = vst [vmem:[#allocation2 + $0x518] sm:$0xff] %v847
      %861 = vst [vmem:[#allocation2 + $0x520] sm:$0xff] %v845
      %862 = vst [vmem:[#allocation2 + $0x528] sm:$0xff] %v843
      %863 = vst [vmem:[#allocation2 + $0x530] sm:$0xff] %v841
      %864 = vst [vmem:[#allocation2 + $0x538] sm:$0xff] %v839
      %865 = vst [vmem:[#allocation2 + $0x540] sm:$0xff] %v837
      %866 = vst [vmem:[#allocation2 + $0x548] sm:$0xff] %v835
      %867 = vst [vmem:[#allocation2 + $0x550] sm:$0xff] %v833
      %868 = vst [vmem:[#allocation2 + $0x558] sm:$0xff] %v831
      %869 = vst [vmem:[#allocation2 + $0x560] sm:$0xff] %v829
      %870 = vst [vmem:[#allocation2 + $0x568] sm:$0xff] %v827
      %871 = vst [vmem:[#allocation2 + $0x570] sm:$0xff] %v825
      %872 = vst [vmem:[#allocation2 + $0x578] sm:$0xff] %v823
      %873 = vst [vmem:[#allocation2 + $0x580] sm:$0xff] %v821
      %874 = vst [vmem:[#allocation2 + $0x588] sm:$0xff] %v819
      %875 = vst [vmem:[#allocation2 + $0x590] sm:$0xff] %v817
      %876 = vst [vmem:[#allocation2 + $0x598] sm:$0xff] %v855
      %877 = vst [vmem:[#allocation2 + $0x5a0] sm:$0xff] %v854
      %878 = vst [vmem:[#allocation2 + $0x5a8] sm:$0xff] %v852
      %879 = vst [vmem:[#allocation2 + $0x5b0] sm:$0xff] %v850
      %880 = vst [vmem:[#allocation2 + $0x5b8] sm:$0xff] %v848
      %881 = vst [vmem:[#allocation2 + $0x5c0] sm:$0xff] %v846
      %882 = vst [vmem:[#allocation2 + $0x5c8] sm:$0xff] %v844
      %883 = vst [vmem:[#allocation2 + $0x5d0] sm:$0xff] %v842
      %884 = vst [vmem:[#allocation2 + $0x5d8] sm:$0xff] %v840
      %885 = vst [vmem:[#allocation2 + $0x5e0] sm:$0xff] %v838
      %886 = vst [vmem:[#allocation2 + $0x5e8] sm:$0xff] %v836
      %887 = vst [vmem:[#allocation2 + $0x5f0] sm:$0xff] %v834
      %888 = vst [vmem:[#allocation2 + $0x5f8] sm:$0xff] %v832
      %889 = vst [vmem:[#allocation2 + $0x600] sm:$0xff] %v830
      %890 = vst [vmem:[#allocation2 + $0x608] sm:$0xff] %v828
      %891 = vst [vmem:[#allocation2 + $0x610] sm:$0xff] %v826
      %892 = vst [vmem:[#allocation2 + $0x618] sm:$0xff] %v824
      %893 = vst [vmem:[#allocation2 + $0x620] sm:$0xff] %v822
      %894 = vst [vmem:[#allocation2 + $0x628] sm:$0xff] %v820
      %895 = vst [vmem:[#allocation2 + $0x630] sm:$0xff] %v818
      %896 = vst [vmem:[#allocation2 + $0x638] sm:$0xff] %v856
      %897 = vrot.lane.b32.xlu0 %v171, 76
      %v898 = vpop.permute.xlu0 %897
      %899 = vrot.lane.b32.xlu0 %v191, 76
      %v900 = vpop.permute.xlu0 %899
      %901 = vrot.lane.b32.xlu0 %v172, 76
      %v902 = vpop.permute.xlu0 %901
      %903 = vrot.lane.b32.xlu0 %v192, 76
      %v904 = vpop.permute.xlu0 %903
      %905 = vrot.lane.b32.xlu0 %v173, 76
      %v906 = vpop.permute.xlu0 %905
      %907 = vrot.lane.b32.xlu0 %v193, 76
      %v908 = vpop.permute.xlu0 %907
      %909 = vrot.lane.b32.xlu0 %v174, 76
      %v910 = vpop.permute.xlu0 %909
      %911 = vrot.lane.b32.xlu0 %v194, 76
      %v912 = vpop.permute.xlu0 %911
      %913 = vrot.lane.b32.xlu0 %v175, 76
      %v914 = vpop.permute.xlu0 %913
      %915 = vrot.lane.b32.xlu0 %v195, 76
      %v916 = vpop.permute.xlu0 %915
      %917 = vrot.lane.b32.xlu0 %v176, 76
      %v918 = vpop.permute.xlu0 %917
      %919 = vrot.lane.b32.xlu0 %v196, 76
      %v920 = vpop.permute.xlu0 %919
      %921 = vrot.lane.b32.xlu0 %v177, 76
      %v922 = vpop.permute.xlu0 %921
      %923 = vrot.lane.b32.xlu0 %v197, 76
      %v924 = vpop.permute.xlu0 %923
      %925 = vrot.lane.b32.xlu0 %v178, 76
      %v926 = vpop.permute.xlu0 %925
      %927 = vrot.lane.b32.xlu0 %v198, 76
      %v928 = vpop.permute.xlu0 %927
      %929 = vrot.lane.b32.xlu0 %v179, 76
      %v930 = vpop.permute.xlu0 %929
      %931 = vrot.lane.b32.xlu0 %v199, 76
      %v932 = vpop.permute.xlu0 %931
      %933 = vrot.lane.b32.xlu0 %v180, 76
      %v934 = vpop.permute.xlu0 %933
      %935 = vrot.lane.b32.xlu0 %v200, 76
      %v936 = vpop.permute.xlu0 %935
      %937 = vrot.lane.b32.xlu0 %v181, 76
      %v938 = vpop.permute.xlu0 %937
      %939 = vrot.lane.b32.xlu0 %v201, 76
      %v940 = vpop.permute.xlu0 %939
      %941 = vrot.lane.b32.xlu0 %v182, 76
      %v942 = vpop.permute.xlu0 %941
      %943 = vrot.lane.b32.xlu0 %v202, 76
      %v944 = vpop.permute.xlu0 %943
      %945 = vrot.lane.b32.xlu0 %v183, 76
      %v946 = vpop.permute.xlu0 %945
      %947 = vrot.lane.b32.xlu0 %v203, 76
      %v948 = vpop.permute.xlu0 %947
      %949 = vrot.lane.b32.xlu0 %v184, 76
      %v950 = vpop.permute.xlu0 %949
      %951 = vrot.lane.b32.xlu0 %v204, 76
      %v952 = vpop.permute.xlu0 %951
      %953 = vrot.lane.b32.xlu0 %v185, 76
      %v954 = vpop.permute.xlu0 %953
      %955 = vrot.lane.b32.xlu0 %v205, 76
      %v956 = vpop.permute.xlu0 %955
      %957 = vrot.lane.b32.xlu0 %v186, 76
      %v958 = vpop.permute.xlu0 %957
      %959 = vrot.lane.b32.xlu0 %v206, 76
      %v960 = vpop.permute.xlu0 %959
      %961 = vrot.lane.b32.xlu0 %v187, 76
      %v962 = vpop.permute.xlu0 %961
      %963 = vrot.lane.b32.xlu0 %v207, 76
      %v964 = vpop.permute.xlu0 %963
      %965 = vrot.lane.b32.xlu0 %v188, 76
      %v966 = vpop.permute.xlu0 %965
      %967 = vrot.lane.b32.xlu0 %v208, 76
      %v968 = vpop.permute.xlu0 %967
      %969 = vrot.lane.b32.xlu0 %v189, 76
      %v970 = vpop.permute.xlu0 %969
      %971 = vrot.lane.b32.xlu0 %v209, 76
      %v972 = vpop.permute.xlu0 %971
      %973 = vrot.lane.b32.xlu0 %v190, 76
      %v974 = vpop.permute.xlu0 %973
      %975 = vrot.lane.b32.xlu0 %v210, 76
      %v976 = vpop.permute.xlu0 %975
      %vm977 = vcmp.lt.s32.totalorder %v332, 76
      %v978 = vsel %vm977, %v970, %v974
      %v979 = vsel %vm977, %v972, %v976
      %v980 = vsel %vm977, %v966, %v970
      %v981 = vsel %vm977, %v968, %v972
      %v982 = vsel %vm977, %v962, %v966
      %v983 = vsel %vm977, %v964, %v968
      %v984 = vsel %vm977, %v958, %v962
      %v985 = vsel %vm977, %v960, %v964
      %v986 = vsel %vm977, %v954, %v958
      %v987 = vsel %vm977, %v956, %v960
      %v988 = vsel %vm977, %v950, %v954
      %v989 = vsel %vm977, %v952, %v956
      %v990 = vsel %vm977, %v946, %v950
      %v991 = vsel %vm977, %v948, %v952
      %v992 = vsel %vm977, %v942, %v946
      %v993 = vsel %vm977, %v944, %v948
      %v994 = vsel %vm977, %v938, %v942
      %v995 = vsel %vm977, %v940, %v944
      %v996 = vsel %vm977, %v934, %v938
      %v997 = vsel %vm977, %v936, %v940
      %v998 = vsel %vm977, %v930, %v934
      %v999 = vsel %vm977, %v932, %v936
      %v1000 = vsel %vm977, %v926, %v930
      %v1001 = vsel %vm977, %v928, %v932
      %v1002 = vsel %vm977, %v922, %v926
      %v1003 = vsel %vm977, %v924, %v928
      %v1004 = vsel %vm977, %v918, %v922
      %v1005 = vsel %vm977, %v920, %v924
      %v1006 = vsel %vm977, %v914, %v918
      %v1007 = vsel %vm977, %v916, %v920
      %v1008 = vsel %vm977, %v910, %v914
      %v1009 = vsel %vm977, %v912, %v916
      %v1010 = vsel %vm977, %v906, %v910
      %v1011 = vsel %vm977, %v908, %v912
      %v1012 = vsel %vm977, %v902, %v906
      %v1013 = vsel %vm977, %v904, %v908
      %v1014 = vsel %vm977, %v898, %v902
      %v1015 = vsel %vm977, %v900, %v904
      %v1016 = vsel %vm977, %v974, %v898
      %v1017 = vsel %vm977, %v976, %v900
      %1018 = vst [vmem:[#allocation2 + $0x640] sm:$0xff] %v1014
      %1019 = vst [vmem:[#allocation2 + $0x648] sm:$0xff] %v1012
      %1020 = vst [vmem:[#allocation2 + $0x650] sm:$0xff] %v1010
      %1021 = vst [vmem:[#allocation2 + $0x658] sm:$0xff] %v1008
      %1022 = vst [vmem:[#allocation2 + $0x660] sm:$0xff] %v1006
      %1023 = vst [vmem:[#allocation2 + $0x668] sm:$0xff] %v1004
      %1024 = vst [vmem:[#allocation2 + $0x670] sm:$0xff] %v1002
      %1025 = vst [vmem:[#allocation2 + $0x678] sm:$0xff] %v1000
      %1026 = vst [vmem:[#allocation2 + $0x680] sm:$0xff] %v998
      %1027 = vst [vmem:[#allocation2 + $0x688] sm:$0xff] %v996
      %1028 = vst [vmem:[#allocation2 + $0x690] sm:$0xff] %v994
      %1029 = vst [vmem:[#allocation2 + $0x698] sm:$0xff] %v992
      %1030 = vst [vmem:[#allocation2 + $0x6a0] sm:$0xff] %v990
      %1031 = vst [vmem:[#allocation2 + $0x6a8] sm:$0xff] %v988
      %1032 = vst [vmem:[#allocation2 + $0x6b0] sm:$0xff] %v986
      %1033 = vst [vmem:[#allocation2 + $0x6b8] sm:$0xff] %v984
      %1034 = vst [vmem:[#allocation2 + $0x6c0] sm:$0xff] %v982
      %1035 = vst [vmem:[#allocation2 + $0x6c8] sm:$0xff] %v980
      %1036 = vst [vmem:[#allocation2 + $0x6d0] sm:$0xff] %v978
      %1037 = vst [vmem:[#allocation2 + $0x6d8] sm:$0xff] %v1016
      %1038 = vst [vmem:[#allocation2 + $0x6e0] sm:$0xff] %v1015
      %1039 = vst [vmem:[#allocation2 + $0x6e8] sm:$0xff] %v1013
      %1040 = vst [vmem:[#allocation2 + $0x6f0] sm:$0xff] %v1011
      %1041 = vst [vmem:[#allocation2 + $0x6f8] sm:$0xff] %v1009
      %1042 = vst [vmem:[#allocation2 + $0x700] sm:$0xff] %v1007
      %1043 = vst [vmem:[#allocation2 + $0x708] sm:$0xff] %v1005
      %1044 = vst [vmem:[#allocation2 + $0x710] sm:$0xff] %v1003
      %1045 = vst [vmem:[#allocation2 + $0x718] sm:$0xff] %v1001
      %1046 = vst [vmem:[#allocation2 + $0x720] sm:$0xff] %v999
      %1047 = vst [vmem:[#allocation2 + $0x728] sm:$0xff] %v997
      %1048 = vst [vmem:[#allocation2 + $0x730] sm:$0xff] %v995
      %1049 = vst [vmem:[#allocation2 + $0x738] sm:$0xff] %v993
      %1050 = vst [vmem:[#allocation2 + $0x740] sm:$0xff] %v991
      %1051 = vst [vmem:[#allocation2 + $0x748] sm:$0xff] %v989
      %1052 = vst [vmem:[#allocation2 + $0x750] sm:$0xff] %v987
      %1053 = vst [vmem:[#allocation2 + $0x758] sm:$0xff] %v985
      %1054 = vst [vmem:[#allocation2 + $0x760] sm:$0xff] %v983
      %1055 = vst [vmem:[#allocation2 + $0x768] sm:$0xff] %v981
      %1056 = vst [vmem:[#allocation2 + $0x770] sm:$0xff] %v979
      %1057 = vst [vmem:[#allocation2 + $0x778] sm:$0xff] %v1017
      %1058 = vrot.lane.b32.xlu0 %v171, 28
      %v1059 = vpop.permute.xlu0 %1058
      %1060 = vrot.lane.b32.xlu0 %v191, 28
      %v1061 = vpop.permute.xlu0 %1060
      %1062 = vrot.lane.b32.xlu0 %v172, 28
      %v1063 = vpop.permute.xlu0 %1062
      %1064 = vrot.lane.b32.xlu0 %v192, 28
      %v1065 = vpop.permute.xlu0 %1064
      %1066 = vrot.lane.b32.xlu0 %v173, 28
      %v1067 = vpop.permute.xlu0 %1066
      %1068 = vrot.lane.b32.xlu0 %v193, 28
      %v1069 = vpop.permute.xlu0 %1068
      %1070 = vrot.lane.b32.xlu0 %v174, 28
      %v1071 = vpop.permute.xlu0 %1070
      %1072 = vrot.lane.b32.xlu0 %v194, 28
      %v1073 = vpop.permute.xlu0 %1072
      %1074 = vrot.lane.b32.xlu0 %v175, 28
      %v1075 = vpop.permute.xlu0 %1074
      %1076 = vrot.lane.b32.xlu0 %v195, 28
      %v1077 = vpop.permute.xlu0 %1076
      %1078 = vrot.lane.b32.xlu0 %v176, 28
      %v1079 = vpop.permute.xlu0 %1078
      %1080 = vrot.lane.b32.xlu0 %v196, 28
      %v1081 = vpop.permute.xlu0 %1080
      %1082 = vrot.lane.b32.xlu0 %v177, 28
      %v1083 = vpop.permute.xlu0 %1082
      %1084 = vrot.lane.b32.xlu0 %v197, 28
      %v1085 = vpop.permute.xlu0 %1084
      %1086 = vrot.lane.b32.xlu0 %v178, 28
      %v1087 = vpop.permute.xlu0 %1086
      %1088 = vrot.lane.b32.xlu0 %v198, 28
      %v1089 = vpop.permute.xlu0 %1088
      %1090 = vrot.lane.b32.xlu0 %v179, 28
      %v1091 = vpop.permute.xlu0 %1090
      %1092 = vrot.lane.b32.xlu0 %v199, 28
      %v1093 = vpop.permute.xlu0 %1092
      %1094 = vrot.lane.b32.xlu0 %v180, 28
      %v1095 = vpop.permute.xlu0 %1094
      %1096 = vrot.lane.b32.xlu0 %v200, 28
      %v1097 = vpop.permute.xlu0 %1096
      %1098 = vrot.lane.b32.xlu0 %v181, 28
      %v1099 = vpop.permute.xlu0 %1098
      %1100 = vrot.lane.b32.xlu0 %v201, 28
      %v1101 = vpop.permute.xlu0 %1100
      %1102 = vrot.lane.b32.xlu0 %v182, 28
      %v1103 = vpop.permute.xlu0 %1102
      %1104 = vrot.lane.b32.xlu0 %v202, 28
      %v1105 = vpop.permute.xlu0 %1104
      %1106 = vrot.lane.b32.xlu0 %v183, 28
      %v1107 = vpop.permute.xlu0 %1106
      %1108 = vrot.lane.b32.xlu0 %v203, 28
      %v1109 = vpop.permute.xlu0 %1108
      %1110 = vrot.lane.b32.xlu0 %v184, 28
      %v1111 = vpop.permute.xlu0 %1110
      %1112 = vrot.lane.b32.xlu0 %v204, 28
      %v1113 = vpop.permute.xlu0 %1112
      %1114 = vrot.lane.b32.xlu0 %v185, 28
      %v1115 = vpop.permute.xlu0 %1114
      %1116 = vrot.lane.b32.xlu0 %v205, 28
      %v1117 = vpop.permute.xlu0 %1116
      %1118 = vrot.lane.b32.xlu0 %v186, 28
      %v1119 = vpop.permute.xlu0 %1118
      %1120 = vrot.lane.b32.xlu0 %v206, 28
      %v1121 = vpop.permute.xlu0 %1120
      %1122 = vrot.lane.b32.xlu0 %v187, 28
      %v1123 = vpop.permute.xlu0 %1122
      %1124 = vrot.lane.b32.xlu0 %v207, 28
      %v1125 = vpop.permute.xlu0 %1124
      %1126 = vrot.lane.b32.xlu0 %v188, 28
      %v1127 = vpop.permute.xlu0 %1126
      %1128 = vrot.lane.b32.xlu0 %v208, 28
      %v1129 = vpop.permute.xlu0 %1128
      %1130 = vrot.lane.b32.xlu0 %v189, 28
      %v1131 = vpop.permute.xlu0 %1130
      %1132 = vrot.lane.b32.xlu0 %v209, 28
      %v1133 = vpop.permute.xlu0 %1132
      %1134 = vrot.lane.b32.xlu0 %v190, 28
      %v1135 = vpop.permute.xlu0 %1134
      %1136 = vrot.lane.b32.xlu0 %v210, 28
      %v1137 = vpop.permute.xlu0 %1136
      %vm1138 = vcmp.lt.s32.totalorder %v332, 28
      %v1139 = vsel %vm1138, %v1131, %v1135
      %v1140 = vsel %vm1138, %v1133, %v1137
      %v1141 = vsel %vm1138, %v1127, %v1131
      %v1142 = vsel %vm1138, %v1129, %v1133
      %v1143 = vsel %vm1138, %v1123, %v1127
      %v1144 = vsel %vm1138, %v1125, %v1129
      %v1145 = vsel %vm1138, %v1119, %v1123
      %v1146 = vsel %vm1138, %v1121, %v1125
      %v1147 = vsel %vm1138, %v1115, %v1119
      %v1148 = vsel %vm1138, %v1117, %v1121
      %v1149 = vsel %vm1138, %v1111, %v1115
      %v1150 = vsel %vm1138, %v1113, %v1117
      %v1151 = vsel %vm1138, %v1107, %v1111
      %v1152 = vsel %vm1138, %v1109, %v1113
      %v1153 = vsel %vm1138, %v1103, %v1107
      %v1154 = vsel %vm1138, %v1105, %v1109
      %v1155 = vsel %vm1138, %v1099, %v1103
      %v1156 = vsel %vm1138, %v1101, %v1105
      %v1157 = vsel %vm1138, %v1095, %v1099
      %v1158 = vsel %vm1138, %v1097, %v1101
      %v1159 = vsel %vm1138, %v1091, %v1095
      %v1160 = vsel %vm1138, %v1093, %v1097
      %v1161 = vsel %vm1138, %v1087, %v1091
      %v1162 = vsel %vm1138, %v1089, %v1093
      %v1163 = vsel %vm1138, %v1083, %v1087
      %v1164 = vsel %vm1138, %v1085, %v1089
      %v1165 = vsel %vm1138, %v1079, %v1083
      %v1166 = vsel %vm1138, %v1081, %v1085
      %v1167 = vsel %vm1138, %v1075, %v1079
      %v1168 = vsel %vm1138, %v1077, %v1081
      %v1169 = vsel %vm1138, %v1071, %v1075
      %v1170 = vsel %vm1138, %v1073, %v1077
      %v1171 = vsel %vm1138, %v1067, %v1071
      %v1172 = vsel %vm1138, %v1069, %v1073
      %v1173 = vsel %vm1138, %v1063, %v1067
      %v1174 = vsel %vm1138, %v1065, %v1069
      %v1175 = vsel %vm1138, %v1059, %v1063
      %v1176 = vsel %vm1138, %v1061, %v1065
      %v1177 = vsel %vm1138, %v1135, %v1059
      %v1178 = vsel %vm1138, %v1137, %v1061
      %1179 = vst [vmem:[#allocation2 + $0x780] sm:$0xff] %v1175
      %1180 = vst [vmem:[#allocation2 + $0x788] sm:$0xff] %v1173
      %1181 = vst [vmem:[#allocation2 + $0x790] sm:$0xff] %v1171
      %1182 = vst [vmem:[#allocation2 + $0x798] sm:$0xff] %v1169
      %1183 = vst [vmem:[#allocation2 + $0x7a0] sm:$0xff] %v1167
      %1184 = vst [vmem:[#allocation2 + $0x7a8] sm:$0xff] %v1165
      %1185 = vst [vmem:[#allocation2 + $0x7b0] sm:$0xff] %v1163
      %1186 = vst [vmem:[#allocation2 + $0x7b8] sm:$0xff] %v1161
      %1187 = vst [vmem:[#allocation2 + $0x7c0] sm:$0xff] %v1159
      %1188 = vst [vmem:[#allocation2 + $0x7c8] sm:$0xff] %v1157
      %1189 = vst [vmem:[#allocation2 + $0x7d0] sm:$0xff] %v1155
      %1190 = vst [vmem:[#allocation2 + $0x7d8] sm:$0xff] %v1153
      %1191 = vst [vmem:[#allocation2 + $0x7e0] sm:$0xff] %v1151
      %1192 = vst [vmem:[#allocation2 + $0x7e8] sm:$0xff] %v1149
      %1193 = vst [vmem:[#allocation2 + $0x7f0] sm:$0xff] %v1147
      %1194 = vst [vmem:[#allocation2 + $0x7f8] sm:$0xff] %v1145
      %1195 = vst [vmem:[#allocation2 + $0x800] sm:$0xff] %v1143
      %1196 = vst [vmem:[#allocation2 + $0x808] sm:$0xff] %v1141
      %1197 = vst [vmem:[#allocation2 + $0x810] sm:$0xff] %v1139
      %1198 = vst [vmem:[#allocation2 + $0x818] sm:$0xff] %v1177
      %1199 = vst [vmem:[#allocation2 + $0x820] sm:$0xff] %v1176
      %1200 = vst [vmem:[#allocation2 + $0x828] sm:$0xff] %v1174
      %1201 = vst [vmem:[#allocation2 + $0x830] sm:$0xff] %v1172
      %1202 = vst [vmem:[#allocation2 + $0x838] sm:$0xff] %v1170
      %1203 = vst [vmem:[#allocation2 + $0x840] sm:$0xff] %v1168
      %1204 = vst [vmem:[#allocation2 + $0x848] sm:$0xff] %v1166
      %1205 = vst [vmem:[#allocation2 + $0x850] sm:$0xff] %v1164
      %1206 = vst [vmem:[#allocation2 + $0x858] sm:$0xff] %v1162
      %1207 = vst [vmem:[#allocation2 + $0x860] sm:$0xff] %v1160
      %1208 = vst [vmem:[#allocation2 + $0x868] sm:$0xff] %v1158
      %1209 = vst [vmem:[#allocation2 + $0x870] sm:$0xff] %v1156
      %1210 = vst [vmem:[#allocation2 + $0x878] sm:$0xff] %v1154
      %1211 = vst [vmem:[#allocation2 + $0x880] sm:$0xff] %v1152
      %1212 = vst [vmem:[#allocation2 + $0x888] sm:$0xff] %v1150
      %1213 = vst [vmem:[#allocation2 + $0x890] sm:$0xff] %v1148
      %1214 = vst [vmem:[#allocation2 + $0x898] sm:$0xff] %v1146
      %1215 = vst [vmem:[#allocation2 + $0x8a0] sm:$0xff] %v1144
      %1216 = vst [vmem:[#allocation2 + $0x8a8] sm:$0xff] %v1142
      %1217 = vst [vmem:[#allocation2 + $0x8b0] sm:$0xff] %v1140
      %1218 = vst [vmem:[#allocation2 + $0x8b8] sm:$0xff] %v1178
      %1219 = vrot.lane.b32.xlu0 %v171, 27
      %v1220 = vpop.permute.xlu0 %1219
      %1221 = vrot.lane.b32.xlu0 %v191, 27
      %v1222 = vpop.permute.xlu0 %1221
      %1223 = vrot.lane.b32.xlu0 %v172, 27
      %v1224 = vpop.permute.xlu0 %1223
      %1225 = vrot.lane.b32.xlu0 %v192, 27
      %v1226 = vpop.permute.xlu0 %1225
      %1227 = vrot.lane.b32.xlu0 %v173, 27
      %v1228 = vpop.permute.xlu0 %1227
      %1229 = vrot.lane.b32.xlu0 %v193, 27
      %v1230 = vpop.permute.xlu0 %1229
      %1231 = vrot.lane.b32.xlu0 %v174, 27
      %v1232 = vpop.permute.xlu0 %1231
      %1233 = vrot.lane.b32.xlu0 %v194, 27
      %v1234 = vpop.permute.xlu0 %1233
      %1235 = vrot.lane.b32.xlu0 %v175, 27
      %v1236 = vpop.permute.xlu0 %1235
      %1237 = vrot.lane.b32.xlu0 %v195, 27
      %v1238 = vpop.permute.xlu0 %1237
      %1239 = vrot.lane.b32.xlu0 %v176, 27
      %v1240 = vpop.permute.xlu0 %1239
      %1241 = vrot.lane.b32.xlu0 %v196, 27
      %v1242 = vpop.permute.xlu0 %1241
      %1243 = vrot.lane.b32.xlu0 %v177, 27
      %v1244 = vpop.permute.xlu0 %1243
      %1245 = vrot.lane.b32.xlu0 %v197, 27
      %v1246 = vpop.permute.xlu0 %1245
      %1247 = vrot.lane.b32.xlu0 %v178, 27
      %v1248 = vpop.permute.xlu0 %1247
      %1249 = vrot.lane.b32.xlu0 %v198, 27
      %v1250 = vpop.permute.xlu0 %1249
      %1251 = vrot.lane.b32.xlu0 %v179, 27
      %v1252 = vpop.permute.xlu0 %1251
      %1253 = vrot.lane.b32.xlu0 %v199, 27
      %v1254 = vpop.permute.xlu0 %1253
      %1255 = vrot.lane.b32.xlu0 %v180, 27
      %v1256 = vpop.permute.xlu0 %1255
      %1257 = vrot.lane.b32.xlu0 %v200, 27
      %v1258 = vpop.permute.xlu0 %1257
      %1259 = vrot.lane.b32.xlu0 %v181, 27
      %v1260 = vpop.permute.xlu0 %1259
      %1261 = vrot.lane.b32.xlu0 %v201, 27
      %v1262 = vpop.permute.xlu0 %1261
      %1263 = vrot.lane.b32.xlu0 %v182, 27
      %v1264 = vpop.permute.xlu0 %1263
      %1265 = vrot.lane.b32.xlu0 %v202, 27
      %v1266 = vpop.permute.xlu0 %1265
      %1267 = vrot.lane.b32.xlu0 %v183, 27
      %v1268 = vpop.permute.xlu0 %1267
      %1269 = vrot.lane.b32.xlu0 %v203, 27
      %v1270 = vpop.permute.xlu0 %1269
      %1271 = vrot.lane.b32.xlu0 %v184, 27
      %v1272 = vpop.permute.xlu0 %1271
      %1273 = vrot.lane.b32.xlu0 %v204, 27
      %v1274 = vpop.permute.xlu0 %1273
      %1275 = vrot.lane.b32.xlu0 %v185, 27
      %v1276 = vpop.permute.xlu0 %1275
      %1277 = vrot.lane.b32.xlu0 %v205, 27
      %v1278 = vpop.permute.xlu0 %1277
      %1279 = vrot.lane.b32.xlu0 %v186, 27
      %v1280 = vpop.permute.xlu0 %1279
      %1281 = vrot.lane.b32.xlu0 %v206, 27
      %v1282 = vpop.permute.xlu0 %1281
      %1283 = vrot.lane.b32.xlu0 %v187, 27
      %v1284 = vpop.permute.xlu0 %1283
      %1285 = vrot.lane.b32.xlu0 %v207, 27
      %v1286 = vpop.permute.xlu0 %1285
      %1287 = vrot.lane.b32.xlu0 %v188, 27
      %v1288 = vpop.permute.xlu0 %1287
      %1289 = vrot.lane.b32.xlu0 %v208, 27
      %v1290 = vpop.permute.xlu0 %1289
      %1291 = vrot.lane.b32.xlu0 %v189, 27
      %v1292 = vpop.permute.xlu0 %1291
      %1293 = vrot.lane.b32.xlu0 %v209, 27
      %v1294 = vpop.permute.xlu0 %1293
      %1295 = vrot.lane.b32.xlu0 %v190, 27
      %v1296 = vpop.permute.xlu0 %1295
      %1297 = vrot.lane.b32.xlu0 %v210, 27
      %v1298 = vpop.permute.xlu0 %1297
      %vm1299 = vcmp.lt.s32.totalorder %v332, 27
      %v1300 = vsel %vm1299, %v1292, %v1296
      %v1301 = vsel %vm1299, %v1294, %v1298
      %v1302 = vsel %vm1299, %v1288, %v1292
      %v1303 = vsel %vm1299, %v1290, %v1294
      %v1304 = vsel %vm1299, %v1284, %v1288
      %v1305 = vsel %vm1299, %v1286, %v1290
      %v1306 = vsel %vm1299, %v1280, %v1284
      %v1307 = vsel %vm1299, %v1282, %v1286
      %v1308 = vsel %vm1299, %v1276, %v1280
      %v1309 = vsel %vm1299, %v1278, %v1282
      %v1310 = vsel %vm1299, %v1272, %v1276
      %v1311 = vsel %vm1299, %v1274, %v1278
      %v1312 = vsel %vm1299, %v1268, %v1272
      %v1313 = vsel %vm1299, %v1270, %v1274
      %v1314 = vsel %vm1299, %v1264, %v1268
      %v1315 = vsel %vm1299, %v1266, %v1270
      %v1316 = vsel %vm1299, %v1260, %v1264
      %v1317 = vsel %vm1299, %v1262, %v1266
      %v1318 = vsel %vm1299, %v1256, %v1260
      %v1319 = vsel %vm1299, %v1258, %v1262
      %v1320 = vsel %vm1299, %v1252, %v1256
      %v1321 = vsel %vm1299, %v1254, %v1258
      %v1322 = vsel %vm1299, %v1248, %v1252
      %v1323 = vsel %vm1299, %v1250, %v1254
      %v1324 = vsel %vm1299, %v1244, %v1248
      %v1325 = vsel %vm1299, %v1246, %v1250
      %v1326 = vsel %vm1299, %v1240, %v1244
      %v1327 = vsel %vm1299, %v1242, %v1246
      %v1328 = vsel %vm1299, %v1236, %v1240
      %v1329 = vsel %vm1299, %v1238, %v1242
      %v1330 = vsel %vm1299, %v1232, %v1236
      %v1331 = vsel %vm1299, %v1234, %v1238
      %v1332 = vsel %vm1299, %v1228, %v1232
      %v1333 = vsel %vm1299, %v1230, %v1234
      %v1334 = vsel %vm1299, %v1224, %v1228
      %v1335 = vsel %vm1299, %v1226, %v1230
      %v1336 = vsel %vm1299, %v1220, %v1224
      %v1337 = vsel %vm1299, %v1222, %v1226
      %v1338 = vsel %vm1299, %v1296, %v1220
      %v1339 = vsel %vm1299, %v1298, %v1222
      %1340 = vst [vmem:[#allocation2 + $0x8c0] sm:$0xff] %v1336
      %1341 = vst [vmem:[#allocation2 + $0x8c8] sm:$0xff] %v1334
      %1342 = vst [vmem:[#allocation2 + $0x8d0] sm:$0xff] %v1332
      %1343 = vst [vmem:[#allocation2 + $0x8d8] sm:$0xff] %v1330
      %1344 = vst [vmem:[#allocation2 + $0x8e0] sm:$0xff] %v1328
      %1345 = vst [vmem:[#allocation2 + $0x8e8] sm:$0xff] %v1326
      %1346 = vst [vmem:[#allocation2 + $0x8f0] sm:$0xff] %v1324
      %1347 = vst [vmem:[#allocation2 + $0x8f8] sm:$0xff] %v1322
      %1348 = vst [vmem:[#allocation2 + $0x900] sm:$0xff] %v1320
      %1349 = vst [vmem:[#allocation2 + $0x908] sm:$0xff] %v1318
      %1350 = vst [vmem:[#allocation2 + $0x910] sm:$0xff] %v1316
      %1351 = vst [vmem:[#allocation2 + $0x918] sm:$0xff] %v1314
      %1352 = vst [vmem:[#allocation2 + $0x920] sm:$0xff] %v1312
      %1353 = vst [vmem:[#allocation2 + $0x928] sm:$0xff] %v1310
      %1354 = vst [vmem:[#allocation2 + $0x930] sm:$0xff] %v1308
      %1355 = vst [vmem:[#allocation2 + $0x938] sm:$0xff] %v1306
      %1356 = vst [vmem:[#allocation2 + $0x940] sm:$0xff] %v1304
      %1357 = vst [vmem:[#allocation2 + $0x948] sm:$0xff] %v1302
      %1358 = vst [vmem:[#allocation2 + $0x950] sm:$0xff] %v1300
      %1359 = vst [vmem:[#allocation2 + $0x958] sm:$0xff] %v1338
      %1360 = vst [vmem:[#allocation2 + $0x960] sm:$0xff] %v1337
      %1361 = vst [vmem:[#allocation2 + $0x968] sm:$0xff] %v1335
      %1362 = vst [vmem:[#allocation2 + $0x970] sm:$0xff] %v1333
      %1363 = vst [vmem:[#allocation2 + $0x978] sm:$0xff] %v1331
      %1364 = vst [vmem:[#allocation2 + $0x980] sm:$0xff] %v1329
      %1365 = vst [vmem:[#allocation2 + $0x988] sm:$0xff] %v1327
      %1366 = vst [vmem:[#allocation2 + $0x990] sm:$0xff] %v1325
      %1367 = vst [vmem:[#allocation2 + $0x998] sm:$0xff] %v1323
      %1368 = vst [vmem:[#allocation2 + $0x9a0] sm:$0xff] %v1321
      %1369 = vst [vmem:[#allocation2 + $0x9a8] sm:$0xff] %v1319
      %1370 = vst [vmem:[#allocation2 + $0x9b0] sm:$0xff] %v1317
      %1371 = vst [vmem:[#allocation2 + $0x9b8] sm:$0xff] %v1315
      %1372 = vst [vmem:[#allocation2 + $0x9c0] sm:$0xff] %v1313
      %1373 = vst [vmem:[#allocation2 + $0x9c8] sm:$0xff] %v1311
      %1374 = vst [vmem:[#allocation2 + $0x9d0] sm:$0xff] %v1309
      %1375 = vst [vmem:[#allocation2 + $0x9d8] sm:$0xff] %v1307
      %1376 = vst [vmem:[#allocation2 + $0x9e0] sm:$0xff] %v1305
      %1377 = vst [vmem:[#allocation2 + $0x9e8] sm:$0xff] %v1303
      %1378 = vst [vmem:[#allocation2 + $0x9f0] sm:$0xff] %v1301
      %1379 = vst [vmem:[#allocation2 + $0x9f8] sm:$0xff] %v1339
      %1380 = vrot.lane.b32.xlu0 %v171, 26
      %v1381 = vpop.permute.xlu0 %1380
      %1382 = vrot.lane.b32.xlu0 %v191, 26
      %v1383 = vpop.permute.xlu0 %1382
      %1384 = vrot.lane.b32.xlu0 %v172, 26
      %v1385 = vpop.permute.xlu0 %1384
      %1386 = vrot.lane.b32.xlu0 %v192, 26
      %v1387 = vpop.permute.xlu0 %1386
      %1388 = vrot.lane.b32.xlu0 %v173, 26
      %v1389 = vpop.permute.xlu0 %1388
      %1390 = vrot.lane.b32.xlu0 %v193, 26
      %v1391 = vpop.permute.xlu0 %1390
      %1392 = vrot.lane.b32.xlu0 %v174, 26
      %v1393 = vpop.permute.xlu0 %1392
      %1394 = vrot.lane.b32.xlu0 %v194, 26
      %v1395 = vpop.permute.xlu0 %1394
      %1396 = vrot.lane.b32.xlu0 %v175, 26
      %v1397 = vpop.permute.xlu0 %1396
      %1398 = vrot.lane.b32.xlu0 %v195, 26
      %v1399 = vpop.permute.xlu0 %1398
      %1400 = vrot.lane.b32.xlu0 %v176, 26
      %v1401 = vpop.permute.xlu0 %1400
      %1402 = vrot.lane.b32.xlu0 %v196, 26
      %v1403 = vpop.permute.xlu0 %1402
      %1404 = vrot.lane.b32.xlu0 %v177, 26
      %v1405 = vpop.permute.xlu0 %1404
      %1406 = vrot.lane.b32.xlu0 %v197, 26
      %v1407 = vpop.permute.xlu0 %1406
      %1408 = vrot.lane.b32.xlu0 %v178, 26
      %v1409 = vpop.permute.xlu0 %1408
      %1410 = vrot.lane.b32.xlu0 %v198, 26
      %v1411 = vpop.permute.xlu0 %1410
      %1412 = vrot.lane.b32.xlu0 %v179, 26
      %v1413 = vpop.permute.xlu0 %1412
      %1414 = vrot.lane.b32.xlu0 %v199, 26
      %v1415 = vpop.permute.xlu0 %1414
      %1416 = vrot.lane.b32.xlu0 %v180, 26
      %v1417 = vpop.permute.xlu0 %1416
      %1418 = vrot.lane.b32.xlu0 %v200, 26
      %v1419 = vpop.permute.xlu0 %1418
      %1420 = vrot.lane.b32.xlu0 %v181, 26
      %v1421 = vpop.permute.xlu0 %1420
      %1422 = vrot.lane.b32.xlu0 %v201, 26
      %v1423 = vpop.permute.xlu0 %1422
      %1424 = vrot.lane.b32.xlu0 %v182, 26
      %v1425 = vpop.permute.xlu0 %1424
      %1426 = vrot.lane.b32.xlu0 %v202, 26
      %v1427 = vpop.permute.xlu0 %1426
      %1428 = vrot.lane.b32.xlu0 %v183, 26
      %v1429 = vpop.permute.xlu0 %1428
      %1430 = vrot.lane.b32.xlu0 %v203, 26
      %v1431 = vpop.permute.xlu0 %1430
      %1432 = vrot.lane.b32.xlu0 %v184, 26
      %v1433 = vpop.permute.xlu0 %1432
      %1434 = vrot.lane.b32.xlu0 %v204, 26
      %v1435 = vpop.permute.xlu0 %1434
      %1436 = vrot.lane.b32.xlu0 %v185, 26
      %v1437 = vpop.permute.xlu0 %1436
      %1438 = vrot.lane.b32.xlu0 %v205, 26
      %v1439 = vpop.permute.xlu0 %1438
      %1440 = vrot.lane.b32.xlu0 %v186, 26
      %v1441 = vpop.permute.xlu0 %1440
      %1442 = vrot.lane.b32.xlu0 %v206, 26
      %v1443 = vpop.permute.xlu0 %1442
      %1444 = vrot.lane.b32.xlu0 %v187, 26
      %v1445 = vpop.permute.xlu0 %1444
      %1446 = vrot.lane.b32.xlu0 %v207, 26
      %v1447 = vpop.permute.xlu0 %1446
      %1448 = vrot.lane.b32.xlu0 %v188, 26
      %v1449 = vpop.permute.xlu0 %1448
      %1450 = vrot.lane.b32.xlu0 %v208, 26
      %v1451 = vpop.permute.xlu0 %1450
      %1452 = vrot.lane.b32.xlu0 %v189, 26
      %v1453 = vpop.permute.xlu0 %1452
      %1454 = vrot.lane.b32.xlu0 %v209, 26
      %v1455 = vpop.permute.xlu0 %1454
      %1456 = vrot.lane.b32.xlu0 %v190, 26
      %v1457 = vpop.permute.xlu0 %1456
      %1458 = vrot.lane.b32.xlu0 %v210, 26
      %v1459 = vpop.permute.xlu0 %1458
      %vm1460 = vcmp.lt.s32.totalorder %v332, 26
      %v1461 = vsel %vm1460, %v1453, %v1457
      %v1462 = vsel %vm1460, %v1455, %v1459
      %v1463 = vsel %vm1460, %v1449, %v1453
      %v1464 = vsel %vm1460, %v1451, %v1455
      %v1465 = vsel %vm1460, %v1445, %v1449
      %v1466 = vsel %vm1460, %v1447, %v1451
      %v1467 = vsel %vm1460, %v1441, %v1445
      %v1468 = vsel %vm1460, %v1443, %v1447
      %v1469 = vsel %vm1460, %v1437, %v1441
      %v1470 = vsel %vm1460, %v1439, %v1443
      %v1471 = vsel %vm1460, %v1433, %v1437
      %v1472 = vsel %vm1460, %v1435, %v1439
      %v1473 = vsel %vm1460, %v1429, %v1433
      %v1474 = vsel %vm1460, %v1431, %v1435
      %v1475 = vsel %vm1460, %v1425, %v1429
      %v1476 = vsel %vm1460, %v1427, %v1431
      %v1477 = vsel %vm1460, %v1421, %v1425
      %v1478 = vsel %vm1460, %v1423, %v1427
      %v1479 = vsel %vm1460, %v1417, %v1421
      %v1480 = vsel %vm1460, %v1419, %v1423
      %v1481 = vsel %vm1460, %v1413, %v1417
      %v1482 = vsel %vm1460, %v1415, %v1419
      %v1483 = vsel %vm1460, %v1409, %v1413
      %v1484 = vsel %vm1460, %v1411, %v1415
      %v1485 = vsel %vm1460, %v1405, %v1409
      %v1486 = vsel %vm1460, %v1407, %v1411
      %v1487 = vsel %vm1460, %v1401, %v1405
      %v1488 = vsel %vm1460, %v1403, %v1407
      %v1489 = vsel %vm1460, %v1397, %v1401
      %v1490 = vsel %vm1460, %v1399, %v1403
      %v1491 = vsel %vm1460, %v1393, %v1397
      %v1492 = vsel %vm1460, %v1395, %v1399
      %v1493 = vsel %vm1460, %v1389, %v1393
      %v1494 = vsel %vm1460, %v1391, %v1395
      %v1495 = vsel %vm1460, %v1385, %v1389
      %v1496 = vsel %vm1460, %v1387, %v1391
      %v1497 = vsel %vm1460, %v1381, %v1385
      %v1498 = vsel %vm1460, %v1383, %v1387
      %v1499 = vsel %vm1460, %v1457, %v1381
      %v1500 = vsel %vm1460, %v1459, %v1383
      %1501 = vst [vmem:[#allocation2 + $0xa00] sm:$0xff] %v1497
      %1502 = vst [vmem:[#allocation2 + $0xa08] sm:$0xff] %v1495
      %1503 = vst [vmem:[#allocation2 + $0xa10] sm:$0xff] %v1493
      %1504 = vst [vmem:[#allocation2 + $0xa18] sm:$0xff] %v1491
      %1505 = vst [vmem:[#allocation2 + $0xa20] sm:$0xff] %v1489
      %1506 = vst [vmem:[#allocation2 + $0xa28] sm:$0xff] %v1487
      %1507 = vst [vmem:[#allocation2 + $0xa30] sm:$0xff] %v1485
      %1508 = vst [vmem:[#allocation2 + $0xa38] sm:$0xff] %v1483
      %1509 = vst [vmem:[#allocation2 + $0xa40] sm:$0xff] %v1481
      %1510 = vst [vmem:[#allocation2 + $0xa48] sm:$0xff] %v1479
      %1511 = vst [vmem:[#allocation2 + $0xa50] sm:$0xff] %v1477
      %1512 = vst [vmem:[#allocation2 + $0xa58] sm:$0xff] %v1475
      %1513 = vst [vmem:[#allocation2 + $0xa60] sm:$0xff] %v1473
      %1514 = vst [vmem:[#allocation2 + $0xa68] sm:$0xff] %v1471
      %1515 = vst [vmem:[#allocation2 + $0xa70] sm:$0xff] %v1469
      %1516 = vst [vmem:[#allocation2 + $0xa78] sm:$0xff] %v1467
      %1517 = vst [vmem:[#allocation2 + $0xa80] sm:$0xff] %v1465
      %1518 = vst [vmem:[#allocation2 + $0xa88] sm:$0xff] %v1463
      %1519 = vst [vmem:[#allocation2 + $0xa90] sm:$0xff] %v1461
      %1520 = vst [vmem:[#allocation2 + $0xa98] sm:$0xff] %v1499
      %1521 = vst [vmem:[#allocation2 + $0xaa0] sm:$0xff] %v1498
      %1522 = vst [vmem:[#allocation2 + $0xaa8] sm:$0xff] %v1496
      %1523 = vst [vmem:[#allocation2 + $0xab0] sm:$0xff] %v1494
      %1524 = vst [vmem:[#allocation2 + $0xab8] sm:$0xff] %v1492
      %1525 = vst [vmem:[#allocation2 + $0xac0] sm:$0xff] %v1490
      %1526 = vst [vmem:[#allocation2 + $0xac8] sm:$0xff] %v1488
      %1527 = vst [vmem:[#allocation2 + $0xad0] sm:$0xff] %v1486
      %1528 = vst [vmem:[#allocation2 + $0xad8] sm:$0xff] %v1484
      %1529 = vst [vmem:[#allocation2 + $0xae0] sm:$0xff] %v1482
      %1530 = vst [vmem:[#allocation2 + $0xae8] sm:$0xff] %v1480
      %1531 = vst [vmem:[#allocation2 + $0xaf0] sm:$0xff] %v1478
      %1532 = vst [vmem:[#allocation2 + $0xaf8] sm:$0xff] %v1476
      %1533 = vst [vmem:[#allocation2 + $0xb00] sm:$0xff] %v1474
      %1534 = vst [vmem:[#allocation2 + $0xb08] sm:$0xff] %v1472
      %1535 = vst [vmem:[#allocation2 + $0xb10] sm:$0xff] %v1470
      %1536 = vst [vmem:[#allocation2 + $0xb18] sm:$0xff] %v1468
      %1537 = vst [vmem:[#allocation2 + $0xb20] sm:$0xff] %v1466
      %1538 = vst [vmem:[#allocation2 + $0xb28] sm:$0xff] %v1464
      %1539 = vst [vmem:[#allocation2 + $0xb30] sm:$0xff] %v1462
      %1540 = vst [vmem:[#allocation2 + $0xb38] sm:$0xff] %v1500
      %v1541 = vld [vmem:[%s1] sm:$0xff]
      %v1542 = vld [vmem:[%s1 + $0x8] sm:$0xff]
      %v1543 = vld [vmem:[%s1 + $0x10] sm:$0xff]
      %v1544 = vld [vmem:[%s1 + $0x18] sm:$0xff]
      %v1545 = vld [vmem:[%s1 + $0x20] sm:$0xff]
      %v1546 = vld [vmem:[%s1 + $0x28] sm:$0xff]
      %v1547 = vld [vmem:[%s1 + $0x30] sm:$0xff]
      %v1548 = vld [vmem:[%s1 + $0x38] sm:$0xff]
      %v1549 = vld [vmem:[#allocation2] sm:$0xff]
      %v1550 = vld [vmem:[#allocation2 + $0x8] sm:$0xff]
      %v1551 = vld [vmem:[#allocation2 + $0x10] sm:$0xff]
      %v1552 = vld [vmem:[#allocation2 + $0x18] sm:$0xff]
      %v1553 = vld [vmem:[#allocation2 + $0x20] sm:$0xff]
      %v1554 = vld [vmem:[#allocation2 + $0x28] sm:$0xff]
      %v1555 = vld [vmem:[#allocation2 + $0x30] sm:$0xff]
      %v1556 = vld [vmem:[#allocation2 + $0x38] sm:$0xff]
      %v1557 = vld [vmem:[#allocation2 + $0x40] sm:$0xff]
      %v1558 = vld [vmem:[#allocation2 + $0x48] sm:$0xff]
      %v1559 = vld [vmem:[#allocation2 + $0x50] sm:$0xff]
      %v1560 = vld [vmem:[#allocation2 + $0x58] sm:$0xff]
      %v1561 = vld [vmem:[#allocation2 + $0x60] sm:$0xff]
      %v1562 = vld [vmem:[#allocation2 + $0x68] sm:$0xff]
      %v1563 = vld [vmem:[#allocation2 + $0x70] sm:$0xff]
      %v1564 = vld [vmem:[#allocation2 + $0x78] sm:$0xff]
      %v1565 = vld [vmem:[#allocation2 + $0x80] sm:$0xff]
      %v1566 = vld [vmem:[#allocation2 + $0x88] sm:$0xff]
      %v1567 = vld [vmem:[#allocation2 + $0x90] sm:$0xff]
      %v1568 = vld [vmem:[#allocation2 + $0x98] sm:$0xff]
      %v1569 = vld [vmem:[#allocation2 + $0xa0] sm:$0xff]
      %v1570 = vld [vmem:[#allocation2 + $0xa8] sm:$0xff]
      %v1571 = vld [vmem:[#allocation2 + $0xb0] sm:$0xff]
      %v1572 = vld [vmem:[#allocation2 + $0xb8] sm:$0xff]
      %v1573 = vld [vmem:[#allocation2 + $0xc0] sm:$0xff]
      %v1574 = vld [vmem:[#allocation2 + $0xc8] sm:$0xff]
      %v1575 = vld [vmem:[#allocation2 + $0xd0] sm:$0xff]
      %v1576 = vld [vmem:[#allocation2 + $0xd8] sm:$0xff]
      %v1577 = vld [vmem:[#allocation2 + $0xe0] sm:$0xff]
      %v1578 = vld [vmem:[#allocation2 + $0xe8] sm:$0xff]
      %v1579 = vld [vmem:[#allocation2 + $0xf0] sm:$0xff]
      %v1580 = vld [vmem:[#allocation2 + $0xf8] sm:$0xff]
      %v1581 = vld [vmem:[#allocation2 + $0x100] sm:$0xff]
      %v1582 = vld [vmem:[#allocation2 + $0x108] sm:$0xff]
      %v1583 = vld [vmem:[#allocation2 + $0x110] sm:$0xff]
      %v1584 = vld [vmem:[#allocation2 + $0x118] sm:$0xff]
      %v1585 = vld [vmem:[#allocation2 + $0x120] sm:$0xff]
      %v1586 = vld [vmem:[#allocation2 + $0x128] sm:$0xff]
      %v1587 = vld [vmem:[#allocation2 + $0x130] sm:$0xff]
      %v1588 = vld [vmem:[#allocation2 + $0x138] sm:$0xff]
      %v1589 = vld [vmem:[#allocation2 + $0x140] sm:$0xff]
      %v1590 = vld [vmem:[#allocation2 + $0x148] sm:$0xff]
      %v1591 = vld [vmem:[#allocation2 + $0x150] sm:$0xff]
      %v1592 = vld [vmem:[#allocation2 + $0x158] sm:$0xff]
      %v1593 = vld [vmem:[#allocation2 + $0x160] sm:$0xff]
      %v1594 = vld [vmem:[#allocation2 + $0x168] sm:$0xff]
      %v1595 = vld [vmem:[#allocation2 + $0x170] sm:$0xff]
      %v1596 = vld [vmem:[#allocation2 + $0x178] sm:$0xff]
      %v1597 = vld [vmem:[#allocation2 + $0x180] sm:$0xff]
      %v1598 = vld [vmem:[#allocation2 + $0x188] sm:$0xff]
      %v1599 = vld [vmem:[#allocation2 + $0x190] sm:$0xff]
      %v1600 = vld [vmem:[#allocation2 + $0x198] sm:$0xff]
      %v1601 = vld [vmem:[#allocation2 + $0x1a0] sm:$0xff]
      %v1602 = vld [vmem:[#allocation2 + $0x1a8] sm:$0xff]
      %v1603 = vld [vmem:[#allocation2 + $0x1b0] sm:$0xff]
      %v1604 = vld [vmem:[#allocation2 + $0x1b8] sm:$0xff]
      %v1605 = vld [vmem:[#allocation2 + $0x1c0] sm:$0xff]
      %v1606 = vld [vmem:[#allocation2 + $0x1c8] sm:$0xff]
      %v1607 = vld [vmem:[#allocation2 + $0x1d0] sm:$0xff]
      %v1608 = vld [vmem:[#allocation2 + $0x1d8] sm:$0xff]
      %v1609 = vld [vmem:[#allocation2 + $0x1e0] sm:$0xff]
      %v1610 = vld [vmem:[#allocation2 + $0x1e8] sm:$0xff]
      %v1611 = vld [vmem:[#allocation2 + $0x1f0] sm:$0xff]
      %v1612 = vld [vmem:[#allocation2 + $0x1f8] sm:$0xff]
      %v1613 = vld [vmem:[#allocation2 + $0x200] sm:$0xff]
      %v1614 = vld [vmem:[#allocation2 + $0x208] sm:$0xff]
      %v1615 = vld [vmem:[#allocation2 + $0x210] sm:$0xff]
      %v1616 = vld [vmem:[#allocation2 + $0x218] sm:$0xff]
      %v1617 = vld [vmem:[#allocation2 + $0x220] sm:$0xff]
      %v1618 = vld [vmem:[#allocation2 + $0x228] sm:$0xff]
      %v1619 = vld [vmem:[#allocation2 + $0x230] sm:$0xff]
      %v1620 = vld [vmem:[#allocation2 + $0x238] sm:$0xff]
      %v1621 = vld [vmem:[#allocation2 + $0x240] sm:$0xff]
      %v1622 = vld [vmem:[#allocation2 + $0x248] sm:$0xff]
      %v1623 = vld [vmem:[#allocation2 + $0x250] sm:$0xff]
      %v1624 = vld [vmem:[#allocation2 + $0x258] sm:$0xff]
      %v1625 = vld [vmem:[#allocation2 + $0x260] sm:$0xff]
      %v1626 = vld [vmem:[#allocation2 + $0x268] sm:$0xff]
      %v1627 = vld [vmem:[#allocation2 + $0x270] sm:$0xff]
      %v1628 = vld [vmem:[#allocation2 + $0x278] sm:$0xff]
      %v1629 = vld [vmem:[#allocation2 + $0x280] sm:$0xff]
      %v1630 = vld [vmem:[#allocation2 + $0x288] sm:$0xff]
      %v1631 = vld [vmem:[#allocation2 + $0x290] sm:$0xff]
      %v1632 = vld [vmem:[#allocation2 + $0x298] sm:$0xff]
      %v1633 = vld [vmem:[#allocation2 + $0x2a0] sm:$0xff]
      %v1634 = vld [vmem:[#allocation2 + $0x2a8] sm:$0xff]
      %v1635 = vld [vmem:[#allocation2 + $0x2b0] sm:$0xff]
      %v1636 = vld [vmem:[#allocation2 + $0x2b8] sm:$0xff]
      %v1637 = vld [vmem:[#allocation2 + $0x2c0] sm:$0xff]
      %v1638 = vld [vmem:[#allocation2 + $0x2c8] sm:$0xff]
      %v1639 = vld [vmem:[#allocation2 + $0x2d0] sm:$0xff]
      %v1640 = vld [vmem:[#allocation2 + $0x2d8] sm:$0xff]
      %v1641 = vld [vmem:[#allocation2 + $0x2e0] sm:$0xff]
      %v1642 = vld [vmem:[#allocation2 + $0x2e8] sm:$0xff]
      %v1643 = vld [vmem:[#allocation2 + $0x2f0] sm:$0xff]
      %v1644 = vld [vmem:[#allocation2 + $0x2f8] sm:$0xff]
      %v1645 = vld [vmem:[#allocation2 + $0x300] sm:$0xff]
      %v1646 = vld [vmem:[#allocation2 + $0x308] sm:$0xff]
      %v1647 = vld [vmem:[#allocation2 + $0x310] sm:$0xff]
      %v1648 = vld [vmem:[#allocation2 + $0x318] sm:$0xff]
      %v1649 = vld [vmem:[#allocation2 + $0x320] sm:$0xff]
      %v1650 = vld [vmem:[#allocation2 + $0x328] sm:$0xff]
      %v1651 = vld [vmem:[#allocation2 + $0x330] sm:$0xff]
      %v1652 = vld [vmem:[#allocation2 + $0x338] sm:$0xff]
      %v1653 = vld [vmem:[#allocation2 + $0x340] sm:$0xff]
      %v1654 = vld [vmem:[#allocation2 + $0x348] sm:$0xff]
      %v1655 = vld [vmem:[#allocation2 + $0x350] sm:$0xff]
      %v1656 = vld [vmem:[#allocation2 + $0x358] sm:$0xff]
      %v1657 = vld [vmem:[#allocation2 + $0x360] sm:$0xff]
      %v1658 = vld [vmem:[#allocation2 + $0x368] sm:$0xff]
      %v1659 = vld [vmem:[#allocation2 + $0x370] sm:$0xff]
      %v1660 = vld [vmem:[#allocation2 + $0x378] sm:$0xff]
      %v1661 = vld [vmem:[#allocation2 + $0x380] sm:$0xff]
      %v1662 = vld [vmem:[#allocation2 + $0x388] sm:$0xff]
      %v1663 = vld [vmem:[#allocation2 + $0x390] sm:$0xff]
      %v1664 = vld [vmem:[#allocation2 + $0x398] sm:$0xff]
      %v1665 = vld [vmem:[#allocation2 + $0x3a0] sm:$0xff]
      %v1666 = vld [vmem:[#allocation2 + $0x3a8] sm:$0xff]
      %v1667 = vld [vmem:[#allocation2 + $0x3b0] sm:$0xff]
      %v1668 = vld [vmem:[#allocation2 + $0x3b8] sm:$0xff]
      %v1669 = vld [vmem:[#allocation2 + $0x3c0] sm:$0xff]
      %v1670 = vld [vmem:[#allocation2 + $0x3c8] sm:$0xff]
      %v1671 = vld [vmem:[#allocation2 + $0x3d0] sm:$0xff]
      %v1672 = vld [vmem:[#allocation2 + $0x3d8] sm:$0xff]
      %v1673 = vld [vmem:[#allocation2 + $0x3e0] sm:$0xff]
      %v1674 = vld [vmem:[#allocation2 + $0x3e8] sm:$0xff]
      %v1675 = vld [vmem:[#allocation2 + $0x3f0] sm:$0xff]
      %v1676 = vld [vmem:[#allocation2 + $0x3f8] sm:$0xff]
      %v1677 = vld [vmem:[#allocation2 + $0x400] sm:$0xff]
      %v1678 = vld [vmem:[#allocation2 + $0x408] sm:$0xff]
      %v1679 = vld [vmem:[#allocation2 + $0x410] sm:$0xff]
      %v1680 = vld [vmem:[#allocation2 + $0x418] sm:$0xff]
      %v1681 = vld [vmem:[#allocation2 + $0x420] sm:$0xff]
      %v1682 = vld [vmem:[#allocation2 + $0x428] sm:$0xff]
      %v1683 = vld [vmem:[#allocation2 + $0x430] sm:$0xff]
      %v1684 = vld [vmem:[#allocation2 + $0x438] sm:$0xff]
      %v1685 = vld [vmem:[#allocation2 + $0x440] sm:$0xff]
      %v1686 = vld [vmem:[#allocation2 + $0x448] sm:$0xff]
      %v1687 = vld [vmem:[#allocation2 + $0x450] sm:$0xff]
      %v1688 = vld [vmem:[#allocation2 + $0x458] sm:$0xff]
      %v1689 = vld [vmem:[#allocation2 + $0x460] sm:$0xff]
      %v1690 = vld [vmem:[#allocation2 + $0x468] sm:$0xff]
      %v1691 = vld [vmem:[#allocation2 + $0x470] sm:$0xff]
      %v1692 = vld [vmem:[#allocation2 + $0x478] sm:$0xff]
      %v1693 = vld [vmem:[#allocation2 + $0x480] sm:$0xff]
      %v1694 = vld [vmem:[#allocation2 + $0x488] sm:$0xff]
      %v1695 = vld [vmem:[#allocation2 + $0x490] sm:$0xff]
      %v1696 = vld [vmem:[#allocation2 + $0x498] sm:$0xff]
      %v1697 = vld [vmem:[#allocation2 + $0x4a0] sm:$0xff]
      %v1698 = vld [vmem:[#allocation2 + $0x4a8] sm:$0xff]
      %v1699 = vld [vmem:[#allocation2 + $0x4b0] sm:$0xff]
      %v1700 = vld [vmem:[#allocation2 + $0x4b8] sm:$0xff]
      %v1701 = vld [vmem:[#allocation2 + $0x4c0] sm:$0xff]
      %v1702 = vld [vmem:[#allocation2 + $0x4c8] sm:$0xff]
      %v1703 = vld [vmem:[#allocation2 + $0x4d0] sm:$0xff]
      %v1704 = vld [vmem:[#allocation2 + $0x4d8] sm:$0xff]
      %v1705 = vld [vmem:[#allocation2 + $0x4e0] sm:$0xff]
      %v1706 = vld [vmem:[#allocation2 + $0x4e8] sm:$0xff]
      %v1707 = vld [vmem:[#allocation2 + $0x4f0] sm:$0xff]
      %v1708 = vld [vmem:[#allocation2 + $0x4f8] sm:$0xff]
      %v1709 = vld [vmem:[#allocation2 + $0x500] sm:$0xff]
      %v1710 = vld [vmem:[#allocation2 + $0x508] sm:$0xff]
      %v1711 = vld [vmem:[#allocation2 + $0x510] sm:$0xff]
      %v1712 = vld [vmem:[#allocation2 + $0x518] sm:$0xff]
      %v1713 = vld [vmem:[#allocation2 + $0x520] sm:$0xff]
      %v1714 = vld [vmem:[#allocation2 + $0x528] sm:$0xff]
      %v1715 = vld [vmem:[#allocation2 + $0x530] sm:$0xff]
      %v1716 = vld [vmem:[#allocation2 + $0x538] sm:$0xff]
      %v1717 = vld [vmem:[#allocation2 + $0x540] sm:$0xff]
      %v1718 = vld [vmem:[#allocation2 + $0x548] sm:$0xff]
      %v1719 = vld [vmem:[#allocation2 + $0x550] sm:$0xff]
      %v1720 = vld [vmem:[#allocation2 + $0x558] sm:$0xff]
      %v1721 = vld [vmem:[#allocation2 + $0x560] sm:$0xff]
      %v1722 = vld [vmem:[#allocation2 + $0x568] sm:$0xff]
      %v1723 = vld [vmem:[#allocation2 + $0x570] sm:$0xff]
      %v1724 = vld [vmem:[#allocation2 + $0x578] sm:$0xff]
      %v1725 = vld [vmem:[#allocation2 + $0x580] sm:$0xff]
      %v1726 = vld [vmem:[#allocation2 + $0x588] sm:$0xff]
      %v1727 = vld [vmem:[#allocation2 + $0x590] sm:$0xff]
      %v1728 = vld [vmem:[#allocation2 + $0x598] sm:$0xff]
      %v1729 = vld [vmem:[#allocation2 + $0x5a0] sm:$0xff]
      %v1730 = vld [vmem:[#allocation2 + $0x5a8] sm:$0xff]
      %v1731 = vld [vmem:[#allocation2 + $0x5b0] sm:$0xff]
      %v1732 = vld [vmem:[#allocation2 + $0x5b8] sm:$0xff]
      %v1733 = vld [vmem:[#allocation2 + $0x5c0] sm:$0xff]
      %v1734 = vld [vmem:[#allocation2 + $0x5c8] sm:$0xff]
      %v1735 = vld [vmem:[#allocation2 + $0x5d0] sm:$0xff]
      %v1736 = vld [vmem:[#allocation2 + $0x5d8] sm:$0xff]
      %v1737 = vld [vmem:[#allocation2 + $0x5e0] sm:$0xff]
      %v1738 = vld [vmem:[#allocation2 + $0x5e8] sm:$0xff]
      %v1739 = vld [vmem:[#allocation2 + $0x5f0] sm:$0xff]
      %v1740 = vld [vmem:[#allocation2 + $0x5f8] sm:$0xff]
      %v1741 = vld [vmem:[#allocation2 + $0x600] sm:$0xff]
      %v1742 = vld [vmem:[#allocation2 + $0x608] sm:$0xff]
      %v1743 = vld [vmem:[#allocation2 + $0x610] sm:$0xff]
      %v1744 = vld [vmem:[#allocation2 + $0x618] sm:$0xff]
      %v1745 = vld [vmem:[#allocation2 + $0x620] sm:$0xff]
      %v1746 = vld [vmem:[#allocation2 + $0x628] sm:$0xff]
      %v1747 = vld [vmem:[#allocation2 + $0x630] sm:$0xff]
      %v1748 = vld [vmem:[#allocation2 + $0x638] sm:$0xff]
      %v1749 = vld [vmem:[#allocation2 + $0x640] sm:$0xff]
      %v1750 = vld [vmem:[#allocation2 + $0x648] sm:$0xff]
      %v1751 = vld [vmem:[#allocation2 + $0x650] sm:$0xff]
      %v1752 = vld [vmem:[#allocation2 + $0x658] sm:$0xff]
      %v1753 = vld [vmem:[#allocation2 + $0x660] sm:$0xff]
      %v1754 = vld [vmem:[#allocation2 + $0x668] sm:$0xff]
      %v1755 = vld [vmem:[#allocation2 + $0x670] sm:$0xff]
      %v1756 = vld [vmem:[#allocation2 + $0x678] sm:$0xff]
      %v1757 = vld [vmem:[#allocation2 + $0x680] sm:$0xff]
      %v1758 = vld [vmem:[#allocation2 + $0x688] sm:$0xff]
      %v1759 = vld [vmem:[#allocation2 + $0x690] sm:$0xff]
      %v1760 = vld [vmem:[#allocation2 + $0x698] sm:$0xff]
      %v1761 = vld [vmem:[#allocation2 + $0x6a0] sm:$0xff]
      %v1762 = vld [vmem:[#allocation2 + $0x6a8] sm:$0xff]
      %v1763 = vld [vmem:[#allocation2 + $0x6b0] sm:$0xff]
      %v1764 = vld [vmem:[#allocation2 + $0x6b8] sm:$0xff]
      %v1765 = vld [vmem:[#allocation2 + $0x6c0] sm:$0xff]
      %v1766 = vld [vmem:[#allocation2 + $0x6c8] sm:$0xff]
      %v1767 = vld [vmem:[#allocation2 + $0x6d0] sm:$0xff]
      %v1768 = vld [vmem:[#allocation2 + $0x6d8] sm:$0xff]
      %v1769 = vld [vmem:[#allocation2 + $0x6e0] sm:$0xff]
      %v1770 = vld [vmem:[#allocation2 + $0x6e8] sm:$0xff]
      %v1771 = vld [vmem:[#allocation2 + $0x6f0] sm:$0xff]
      %v1772 = vld [vmem:[#allocation2 + $0x6f8] sm:$0xff]
      %v1773 = vld [vmem:[#allocation2 + $0x700] sm:$0xff]
      %v1774 = vld [vmem:[#allocation2 + $0x708] sm:$0xff]
      %v1775 = vld [vmem:[#allocation2 + $0x710] sm:$0xff]
      %v1776 = vld [vmem:[#allocation2 + $0x718] sm:$0xff]
      %v1777 = vld [vmem:[#allocation2 + $0x720] sm:$0xff]
      %v1778 = vld [vmem:[#allocation2 + $0x728] sm:$0xff]
      %v1779 = vld [vmem:[#allocation2 + $0x730] sm:$0xff]
      %v1780 = vld [vmem:[#allocation2 + $0x738] sm:$0xff]
      %v1781 = vld [vmem:[#allocation2 + $0x740] sm:$0xff]
      %v1782 = vld [vmem:[#allocation2 + $0x748] sm:$0xff]
      %v1783 = vld [vmem:[#allocation2 + $0x750] sm:$0xff]
      %v1784 = vld [vmem:[#allocation2 + $0x758] sm:$0xff]
      %v1785 = vld [vmem:[#allocation2 + $0x760] sm:$0xff]
      %v1786 = vld [vmem:[#allocation2 + $0x768] sm:$0xff]
      %v1787 = vld [vmem:[#allocation2 + $0x770] sm:$0xff]
      %v1788 = vld [vmem:[#allocation2 + $0x778] sm:$0xff]
      %v1789 = vld [vmem:[#allocation2 + $0x780] sm:$0xff]
      %v1790 = vld [vmem:[#allocation2 + $0x788] sm:$0xff]
      %v1791 = vld [vmem:[#allocation2 + $0x790] sm:$0xff]
      %v1792 = vld [vmem:[#allocation2 + $0x798] sm:$0xff]
      %v1793 = vld [vmem:[#allocation2 + $0x7a0] sm:$0xff]
      %v1794 = vld [vmem:[#allocation2 + $0x7a8] sm:$0xff]
      %v1795 = vld [vmem:[#allocation2 + $0x7b0] sm:$0xff]
      %v1796 = vld [vmem:[#allocation2 + $0x7b8] sm:$0xff]
      %v1797 = vld [vmem:[#allocation2 + $0x7c0] sm:$0xff]
      %v1798 = vld [vmem:[#allocation2 + $0x7c8] sm:$0xff]
      %v1799 = vld [vmem:[#allocation2 + $0x7d0] sm:$0xff]
      %v1800 = vld [vmem:[#allocation2 + $0x7d8] sm:$0xff]
      %v1801 = vld [vmem:[#allocation2 + $0x7e0] sm:$0xff]
      %v1802 = vld [vmem:[#allocation2 + $0x7e8] sm:$0xff]
      %v1803 = vld [vmem:[#allocation2 + $0x7f0] sm:$0xff]
      %v1804 = vld [vmem:[#allocation2 + $0x7f8] sm:$0xff]
      %v1805 = vld [vmem:[#allocation2 + $0x800] sm:$0xff]
      %v1806 = vld [vmem:[#allocation2 + $0x808] sm:$0xff]
      %v1807 = vld [vmem:[#allocation2 + $0x810] sm:$0xff]
      %v1808 = vld [vmem:[#allocation2 + $0x818] sm:$0xff]
      %v1809 = vld [vmem:[#allocation2 + $0x820] sm:$0xff]
      %v1810 = vld [vmem:[#allocation2 + $0x828] sm:$0xff]
      %v1811 = vld [vmem:[#allocation2 + $0x830] sm:$0xff]
      %v1812 = vld [vmem:[#allocation2 + $0x838] sm:$0xff]
      %v1813 = vld [vmem:[#allocation2 + $0x840] sm:$0xff]
      %v1814 = vld [vmem:[#allocation2 + $0x848] sm:$0xff]
      %v1815 = vld [vmem:[#allocation2 + $0x850] sm:$0xff]
      %v1816 = vld [vmem:[#allocation2 + $0x858] sm:$0xff]
      %v1817 = vld [vmem:[#allocation2 + $0x860] sm:$0xff]
      %v1818 = vld [vmem:[#allocation2 + $0x868] sm:$0xff]
      %v1819 = vld [vmem:[#allocation2 + $0x870] sm:$0xff]
      %v1820 = vld [vmem:[#allocation2 + $0x878] sm:$0xff]
      %v1821 = vld [vmem:[#allocation2 + $0x880] sm:$0xff]
      %v1822 = vld [vmem:[#allocation2 + $0x888] sm:$0xff]
      %v1823 = vld [vmem:[#allocation2 + $0x890] sm:$0xff]
      %v1824 = vld [vmem:[#allocation2 + $0x898] sm:$0xff]
      %v1825 = vld [vmem:[#allocation2 + $0x8a0] sm:$0xff]
      %v1826 = vld [vmem:[#allocation2 + $0x8a8] sm:$0xff]
      %v1827 = vld [vmem:[#allocation2 + $0x8b0] sm:$0xff]
      %v1828 = vld [vmem:[#allocation2 + $0x8b8] sm:$0xff]
      %v1829 = vld [vmem:[#allocation2 + $0x8c0] sm:$0xff]
      %v1830 = vld [vmem:[#allocation2 + $0x8c8] sm:$0xff]
      %v1831 = vld [vmem:[#allocation2 + $0x8d0] sm:$0xff]
      %v1832 = vld [vmem:[#allocation2 + $0x8d8] sm:$0xff]
      %v1833 = vld [vmem:[#allocation2 + $0x8e0] sm:$0xff]
      %v1834 = vld [vmem:[#allocation2 + $0x8e8] sm:$0xff]
      %v1835 = vld [vmem:[#allocation2 + $0x8f0] sm:$0xff]
      %v1836 = vld [vmem:[#allocation2 + $0x8f8] sm:$0xff]
      %v1837 = vld [vmem:[#allocation2 + $0x900] sm:$0xff]
      %v1838 = vld [vmem:[#allocation2 + $0x908] sm:$0xff]
      %v1839 = vld [vmem:[#allocation2 + $0x910] sm:$0xff]
      %v1840 = vld [vmem:[#allocation2 + $0x918] sm:$0xff]
      %v1841 = vld [vmem:[#allocation2 + $0x920] sm:$0xff]
      %v1842 = vld [vmem:[#allocation2 + $0x928] sm:$0xff]
      %v1843 = vld [vmem:[#allocation2 + $0x930] sm:$0xff]
      %v1844 = vld [vmem:[#allocation2 + $0x938] sm:$0xff]
      %v1845 = vld [vmem:[#allocation2 + $0x940] sm:$0xff]
      %v1846 = vld [vmem:[#allocation2 + $0x948] sm:$0xff]
      %v1847 = vld [vmem:[#allocation2 + $0x950] sm:$0xff]
      %v1848 = vld [vmem:[#allocation2 + $0x958] sm:$0xff]
      %v1849 = vld [vmem:[#allocation2 + $0x960] sm:$0xff]
      %v1850 = vld [vmem:[#allocation2 + $0x968] sm:$0xff]
      %v1851 = vld [vmem:[#allocation2 + $0x970] sm:$0xff]
      %v1852 = vld [vmem:[#allocation2 + $0x978] sm:$0xff]
      %v1853 = vld [vmem:[#allocation2 + $0x980] sm:$0xff]
      %v1854 = vld [vmem:[#allocation2 + $0x988] sm:$0xff]
      %v1855 = vld [vmem:[#allocation2 + $0x990] sm:$0xff]
      %v1856 = vld [vmem:[#allocation2 + $0x998] sm:$0xff]
      %v1857 = vld [vmem:[#allocation2 + $0x9a0] sm:$0xff]
      %v1858 = vld [vmem:[#allocation2 + $0x9a8] sm:$0xff]
      %v1859 = vld [vmem:[#allocation2 + $0x9b0] sm:$0xff]
      %v1860 = vld [vmem:[#allocation2 + $0x9b8] sm:$0xff]
      %v1861 = vld [vmem:[#allocation2 + $0x9c0] sm:$0xff]
      %v1862 = vld [vmem:[#allocation2 + $0x9c8] sm:$0xff]
      %v1863 = vld [vmem:[#allocation2 + $0x9d0] sm:$0xff]
      %v1864 = vld [vmem:[#allocation2 + $0x9d8] sm:$0xff]
      %v1865 = vld [vmem:[#allocation2 + $0x9e0] sm:$0xff]
      %v1866 = vld [vmem:[#allocation2 + $0x9e8] sm:$0xff]
      %v1867 = vld [vmem:[#allocation2 + $0x9f0] sm:$0xff]
      %v1868 = vld [vmem:[#allocation2 + $0x9f8] sm:$0xff]
      %v1869 = vld [vmem:[#allocation2 + $0xa00] sm:$0xff]
      %v1870 = vld [vmem:[#allocation2 + $0xa08] sm:$0xff]
      %v1871 = vld [vmem:[#allocation2 + $0xa10] sm:$0xff]
      %v1872 = vld [vmem:[#allocation2 + $0xa18] sm:$0xff]
      %v1873 = vld [vmem:[#allocation2 + $0xa20] sm:$0xff]
      %v1874 = vld [vmem:[#allocation2 + $0xa28] sm:$0xff]
      %v1875 = vld [vmem:[#allocation2 + $0xa30] sm:$0xff]
      %v1876 = vld [vmem:[#allocation2 + $0xa38] sm:$0xff]
      %v1877 = vld [vmem:[#allocation2 + $0xa40] sm:$0xff]
      %v1878 = vld [vmem:[#allocation2 + $0xa48] sm:$0xff]
      %v1879 = vld [vmem:[#allocation2 + $0xa50] sm:$0xff]
      %v1880 = vld [vmem:[#allocation2 + $0xa58] sm:$0xff]
      %v1881 = vld [vmem:[#allocation2 + $0xa60] sm:$0xff]
      %v1882 = vld [vmem:[#allocation2 + $0xa68] sm:$0xff]
      %v1883 = vld [vmem:[#allocation2 + $0xa70] sm:$0xff]
      %v1884 = vld [vmem:[#allocation2 + $0xa78] sm:$0xff]
      %v1885 = vld [vmem:[#allocation2 + $0xa80] sm:$0xff]
      %v1886 = vld [vmem:[#allocation2 + $0xa88] sm:$0xff]
      %v1887 = vld [vmem:[#allocation2 + $0xa90] sm:$0xff]
      %v1888 = vld [vmem:[#allocation2 + $0xa98] sm:$0xff]
      %v1889 = vld [vmem:[#allocation2 + $0xaa0] sm:$0xff]
      %v1890 = vld [vmem:[#allocation2 + $0xaa8] sm:$0xff]
      %v1891 = vld [vmem:[#allocation2 + $0xab0] sm:$0xff]
      %v1892 = vld [vmem:[#allocation2 + $0xab8] sm:$0xff]
      %v1893 = vld [vmem:[#allocation2 + $0xac0] sm:$0xff]
      %v1894 = vld [vmem:[#allocation2 + $0xac8] sm:$0xff]
      %v1895 = vld [vmem:[#allocation2 + $0xad0] sm:$0xff]
      %v1896 = vld [vmem:[#allocation2 + $0xad8] sm:$0xff]
      %v1897 = vld [vmem:[#allocation2 + $0xae0] sm:$0xff]
      %v1898 = vld [vmem:[#allocation2 + $0xae8] sm:$0xff]
      %v1899 = vld [vmem:[#allocation2 + $0xaf0] sm:$0xff]
      %v1900 = vld [vmem:[#allocation2 + $0xaf8] sm:$0xff]
      %v1901 = vld [vmem:[#allocation2 + $0xb00] sm:$0xff]
      %v1902 = vld [vmem:[#allocation2 + $0xb08] sm:$0xff]
      %v1903 = vld [vmem:[#allocation2 + $0xb10] sm:$0xff]
      %v1904 = vld [vmem:[#allocation2 + $0xb18] sm:$0xff]
      %v1905 = vld [vmem:[#allocation2 + $0xb20] sm:$0xff]
      %v1906 = vld [vmem:[#allocation2 + $0xb28] sm:$0xff]
      %v1907 = vld [vmem:[#allocation2 + $0xb30] sm:$0xff]
      %v1908 = vld [vmem:[#allocation2 + $0xb38] sm:$0xff]
      %vm1909 = vcmask 130048
      %v1911 = vsel %vm1909, %v1542, 0
      %v1914 = vsel %vm1909, %v1544, 0
      %v1917 = vsel %vm1909, %v1546, 0
      %v1920 = vsel %vm1909, %v1548, 0
      %1922 = vmatprep.subr.mxu0 %v1850
      %1923 = vmatpush1.msra.mxu0 %v1849
      %1924 = vmatprep.subr.mxu0 %v1830
      %1925 = vmatpush1.msra.mxu0 %v1829
      %1926 = vmatprep.subr.mxu0 %v1810
      %1927 = vmatpush1.msra.mxu0 %v1809
      %1928 = vmatprep.subr.mxu0 %v1790
      %1929 = vmatpush1.msra.mxu0 %v1789
      %1930 = vmatprep.subr.mxu0 %v1770
      %1931 = vmatpush1.msra.mxu0 %v1769
      %1932 = vmatprep.subr.mxu0 %v1750
      %1933 = vmatpush1.msra.mxu0 %v1749
      %1934 = vmatprep.subr.mxu0 %v1730
      %1935 = vmatpush1.msra.mxu0 %v1729
      %1936 = vmatprep.subr.mxu0 %v1710
      %1937 = vmatpush1.msra.mxu0 %v1709
      %1938 = vmatprep.subr.mxu0 %v1690
      %1939 = vmatpush1.msra.mxu0 %v1689
      %1940 = vmatprep.subr.mxu0 %v1670
      %1941 = vmatpush1.msra.mxu0 %v1669
      %1942 = vmatprep.subr.mxu0 %v1650
      %1943 = vmatpush1.msra.mxu0 %v1649
      %1944 = vmatprep.subr.mxu0 %v1630
      %1945 = vmatpush1.msra.mxu0 %v1629
      %1946 = vmatprep.subr.mxu0 %v1610
      %1947 = vmatpush1.msra.mxu0 %v1609
      %1948 = vmatprep.subr.mxu0 %v1590
      %1949 = vmatpush1.msra.mxu0 %v1589
      %1950 = vmatprep.subr.mxu0 %v1570
      %1951 = vmatpush1.msra.mxu0 %v1569
      %1952 = vmatprep.subr.mxu0 %v1550
      %1953 = vmatpush1.msra.mxu0 %v1549
      %1954 = vmatprep.subr.mxu0 0.0
      %1955 = vmatpush2.msra.mxu0 0.0
      %1956 = vmatprep.subr.mxu0 0.0
      %1957 = vmatpush2.msra.mxu0 0.0
      %1958 = vmatprep.subr.mxu0 0.0
      %1959 = vmatpush2.msra.mxu0 0.0
      %1960 = vmatprep.subr.mxu0 0.0
      %1961 = vmatpush2.msra.mxu0 0.0
      %1962 = vmatprep.subr.mxu0 0.0
      %1963 = vmatpush2.msra.mxu0 0.0
      %1964 = vmatprep.subr.mxu0 0.0
      %1965 = vmatpush2.msra.mxu0 0.0
      %1966 = vmatprep.subr.mxu0 0.0
      %1967 = vmatpush2.msra.mxu0 0.0
      %1968 = vmatprep.subr.mxu0 0.0
      %1969 = vmatpush2.msra.mxu0 0.0
      %1970 = vmatprep.subr.mxu0 0.0
      %1971 = vmatpush2.msra.mxu0 0.0
      %1972 = vmatprep.subr.mxu0 0.0
      %1973 = vmatpush2.msra.mxu0 0.0
      %1974 = vmatprep.subr.mxu0 0.0
      %1975 = vmatpush2.msra.mxu0 0.0
      %1976 = vmatprep.subr.mxu0 0.0
      %1977 = vmatpush2.msra.mxu0 0.0
      %1978 = vmatprep.subr.mxu0 0.0
      %1979 = vmatpush2.msra.mxu0 0.0
      %1980 = vmatprep.subr.mxu0 0.0
      %1981 = vmatpush2.msra.mxu0 0.0
      %1982 = vmatprep.subr.mxu0 %v1890
      %1983 = vmatpush2.msra.mxu0 %v1889
      %1984 = vmatprep.subr.mxu0 %v1870
      %1985 = vmatpush2.msra.mxu0 %v1869
      %1986 = vmatprep.mubr.f32.mxu0 %v1911
      %1987 = vmatmul.mubr.f32.gmra.mxu0 %v1541
      %v1988 = vpop.f32.mrf.mxu0
      %v1989 = vadd.f32 0.0, %v1988
      %v1990 = vpop.f32.mrf.mxu0
      %v1991 = vadd.f32 0.0, %v1990
      %1992 = vmatprep.mubr.f32.mxu0 %v1914
      %1993 = vmatmul.mubr.f32.gmra.mxu0 %v1543
      %v1994 = vpop.f32.mrf.mxu0
      %v1995 = vadd.f32 0.0, %v1994
      %v1996 = vpop.f32.mrf.mxu0
      %v1997 = vadd.f32 0.0, %v1996
      %1998 = vmatprep.mubr.f32.mxu0 %v1917
      %1999 = vmatmul.mubr.f32.gmra.mxu0 %v1545
      %v2000 = vpop.f32.mrf.mxu0
      %v2001 = vadd.f32 0.0, %v2000
      %v2002 = vpop.f32.mrf.mxu0
      %v2003 = vadd.f32 0.0, %v2002
      %2004 = vmatprep.mubr.f32.mxu0 %v1920
      %2005 = vmatmul.mubr.f32.gmra.mxu0 %v1547
      %v2006 = vpop.f32.mrf.mxu0
      %v2007 = vadd.f32 0.0, %v2006
      %v2008 = vpop.f32.mrf.mxu0
      %v2009 = vadd.f32 0.0, %v2008
      %2010 = vdwg.mxu0
      %2011 = vmatprep.subr.mxu0 %v1852
      %2012 = vmatpush1.msra.mxu0 %v1851
      %2013 = vmatprep.subr.mxu0 %v1832
      %2014 = vmatpush1.msra.mxu0 %v1831
      %2015 = vmatprep.subr.mxu0 %v1812
      %2016 = vmatpush1.msra.mxu0 %v1811
      %2017 = vmatprep.subr.mxu0 %v1792
      %2018 = vmatpush1.msra.mxu0 %v1791
      %2019 = vmatprep.subr.mxu0 %v1772
      %2020 = vmatpush1.msra.mxu0 %v1771
      %2021 = vmatprep.subr.mxu0 %v1752
      %2022 = vmatpush1.msra.mxu0 %v1751
      %2023 = vmatprep.subr.mxu0 %v1732
      %2024 = vmatpush1.msra.mxu0 %v1731
      %2025 = vmatprep.subr.mxu0 %v1712
      %2026 = vmatpush1.msra.mxu0 %v1711
      %2027 = vmatprep.subr.mxu0 %v1692
      %2028 = vmatpush1.msra.mxu0 %v1691
      %2029 = vmatprep.subr.mxu0 %v1672
      %2030 = vmatpush1.msra.mxu0 %v1671
      %2031 = vmatprep.subr.mxu0 %v1652
      %2032 = vmatpush1.msra.mxu0 %v1651
      %2033 = vmatprep.subr.mxu0 %v1632
      %2034 = vmatpush1.msra.mxu0 %v1631
      %2035 = vmatprep.subr.mxu0 %v1612
      %2036 = vmatpush1.msra.mxu0 %v1611
      %2037 = vmatprep.subr.mxu0 %v1592
      %2038 = vmatpush1.msra.mxu0 %v1591
      %2039 = vmatprep.subr.mxu0 %v1572
      %2040 = vmatpush1.msra.mxu0 %v1571
      %2041 = vmatprep.subr.mxu0 %v1552
      %2042 = vmatpush1.msra.mxu0 %v1551
      %2043 = vmatprep.subr.mxu0 0.0
      %2044 = vmatpush2.msra.mxu0 0.0
      %2045 = vmatprep.subr.mxu0 0.0
      %2046 = vmatpush2.msra.mxu0 0.0
      %2047 = vmatprep.subr.mxu0 0.0
      %2048 = vmatpush2.msra.mxu0 0.0
      %2049 = vmatprep.subr.mxu0 0.0
      %2050 = vmatpush2.msra.mxu0 0.0
      %2051 = vmatprep.subr.mxu0 0.0
      %2052 = vmatpush2.msra.mxu0 0.0
      %2053 = vmatprep.subr.mxu0 0.0
      %2054 = vmatpush2.msra.mxu0 0.0
      %2055 = vmatprep.subr.mxu0 0.0
      %2056 = vmatpush2.msra.mxu0 0.0
      %2057 = vmatprep.subr.mxu0 0.0
      %2058 = vmatpush2.msra.mxu0 0.0
      %2059 = vmatprep.subr.mxu0 0.0
      %2060 = vmatpush2.msra.mxu0 0.0
      %2061 = vmatprep.subr.mxu0 0.0
      %2062 = vmatpush2.msra.mxu0 0.0
      %2063 = vmatprep.subr.mxu0 0.0
      %2064 = vmatpush2.msra.mxu0 0.0
      %2065 = vmatprep.subr.mxu0 0.0
      %2066 = vmatpush2.msra.mxu0 0.0
      %2067 = vmatprep.subr.mxu0 0.0
      %2068 = vmatpush2.msra.mxu0 0.0
      %2069 = vmatprep.subr.mxu0 0.0
      %2070 = vmatpush2.msra.mxu0 0.0
      %2071 = vmatprep.subr.mxu0 %v1892
      %2072 = vmatpush2.msra.mxu0 %v1891
      %2073 = vmatprep.subr.mxu0 %v1872
      %2074 = vmatpush2.msra.mxu0 %v1871
      %2075 = vmatprep.mubr.f32.mxu0 %v1911
      %2076 = vmatmul.mubr.f32.gmra.mxu0 %v1541
      %v2077 = vpop.f32.mrf.mxu0
      %v2078 = vadd.f32 0.0, %v2077
      %v2079 = vpop.f32.mrf.mxu0
      %v2080 = vadd.f32 0.0, %v2079
      %2081 = vmatprep.mubr.f32.mxu0 %v1914
      %2082 = vmatmul.mubr.f32.gmra.mxu0 %v1543
      %v2083 = vpop.f32.mrf.mxu0
      %v2084 = vadd.f32 0.0, %v2083
      %v2085 = vpop.f32.mrf.mxu0
      %v2086 = vadd.f32 0.0, %v2085
      %2087 = vmatprep.mubr.f32.mxu0 %v1917
      %2088 = vmatmul.mubr.f32.gmra.mxu0 %v1545
      %v2089 = vpop.f32.mrf.mxu0
      %v2090 = vadd.f32 0.0, %v2089
      %v2091 = vpop.f32.mrf.mxu0
      %v2092 = vadd.f32 0.0, %v2091
      %2093 = vmatprep.mubr.f32.mxu0 %v1920
      %2094 = vmatmul.mubr.f32.gmra.mxu0 %v1547
      %v2095 = vpop.f32.mrf.mxu0
      %v2096 = vadd.f32 0.0, %v2095
      %v2097 = vpop.f32.mrf.mxu0
      %v2098 = vadd.f32 0.0, %v2097
      %2099 = vdwg.mxu0
      %2100 = vmatprep.subr.mxu0 %v1854
      %2101 = vmatpush1.msra.mxu0 %v1853
      %2102 = vmatprep.subr.mxu0 %v1834
      %2103 = vmatpush1.msra.mxu0 %v1833
      %2104 = vmatprep.subr.mxu0 %v1814
      %2105 = vmatpush1.msra.mxu0 %v1813
      %2106 = vmatprep.subr.mxu0 %v1794
      %2107 = vmatpush1.msra.mxu0 %v1793
      %2108 = vmatprep.subr.mxu0 %v1774
      %2109 = vmatpush1.msra.mxu0 %v1773
      %2110 = vmatprep.subr.mxu0 %v1754
      %2111 = vmatpush1.msra.mxu0 %v1753
      %2112 = vmatprep.subr.mxu0 %v1734
      %2113 = vmatpush1.msra.mxu0 %v1733
      %2114 = vmatprep.subr.mxu0 %v1714
      %2115 = vmatpush1.msra.mxu0 %v1713
      %2116 = vmatprep.subr.mxu0 %v1694
      %2117 = vmatpush1.msra.mxu0 %v1693
      %2118 = vmatprep.subr.mxu0 %v1674
      %2119 = vmatpush1.msra.mxu0 %v1673
      %2120 = vmatprep.subr.mxu0 %v1654
      %2121 = vmatpush1.msra.mxu0 %v1653
      %2122 = vmatprep.subr.mxu0 %v1634
      %2123 = vmatpush1.msra.mxu0 %v1633
      %2124 = vmatprep.subr.mxu0 %v1614
      %2125 = vmatpush1.msra.mxu0 %v1613
      %2126 = vmatprep.subr.mxu0 %v1594
      %2127 = vmatpush1.msra.mxu0 %v1593
      %2128 = vmatprep.subr.mxu0 %v1574
      %2129 = vmatpush1.msra.mxu0 %v1573
      %2130 = vmatprep.subr.mxu0 %v1554
      %2131 = vmatpush1.msra.mxu0 %v1553
      %2132 = vmatprep.subr.mxu0 0.0
      %2133 = vmatpush2.msra.mxu0 0.0
      %2134 = vmatprep.subr.mxu0 0.0
      %2135 = vmatpush2.msra.mxu0 0.0
      %2136 = vmatprep.subr.mxu0 0.0
      %2137 = vmatpush2.msra.mxu0 0.0
      %2138 = vmatprep.subr.mxu0 0.0
      %2139 = vmatpush2.msra.mxu0 0.0
      %2140 = vmatprep.subr.mxu0 0.0
      %2141 = vmatpush2.msra.mxu0 0.0
      %2142 = vmatprep.subr.mxu0 0.0
      %2143 = vmatpush2.msra.mxu0 0.0
      %2144 = vmatprep.subr.mxu0 0.0
      %2145 = vmatpush2.msra.mxu0 0.0
      %2146 = vmatprep.subr.mxu0 0.0
      %2147 = vmatpush2.msra.mxu0 0.0
      %2148 = vmatprep.subr.mxu0 0.0
      %2149 = vmatpush2.msra.mxu0 0.0
      %2150 = vmatprep.subr.mxu0 0.0
      %2151 = vmatpush2.msra.mxu0 0.0
      %2152 = vmatprep.subr.mxu0 0.0
      %2153 = vmatpush2.msra.mxu0 0.0
      %2154 = vmatprep.subr.mxu0 0.0
      %2155 = vmatpush2.msra.mxu0 0.0
      %2156 = vmatprep.subr.mxu0 0.0
      %2157 = vmatpush2.msra.mxu0 0.0
      %2158 = vmatprep.subr.mxu0 0.0
      %2159 = vmatpush2.msra.mxu0 0.0
      %2160 = vmatprep.subr.mxu0 %v1894
      %2161 = vmatpush2.msra.mxu0 %v1893
      %2162 = vmatprep.subr.mxu0 %v1874
      %2163 = vmatpush2.msra.mxu0 %v1873
      %2164 = vmatprep.mubr.f32.mxu0 %v1911
      %2165 = vmatmul.mubr.f32.gmra.mxu0 %v1541
      %v2166 = vpop.f32.mrf.mxu0
      %v2167 = vadd.f32 0.0, %v2166
      %v2168 = vpop.f32.mrf.mxu0
      %v2169 = vadd.f32 0.0, %v2168
      %2170 = vmatprep.mubr.f32.mxu0 %v1914
      %2171 = vmatmul.mubr.f32.gmra.mxu0 %v1543
      %v2172 = vpop.f32.mrf.mxu0
      %v2173 = vadd.f32 0.0, %v2172
      %v2174 = vpop.f32.mrf.mxu0
      %v2175 = vadd.f32 0.0, %v2174
      %2176 = vmatprep.mubr.f32.mxu0 %v1917
      %2177 = vmatmul.mubr.f32.gmra.mxu0 %v1545
      %v2178 = vpop.f32.mrf.mxu0
      %v2179 = vadd.f32 0.0, %v2178
      %v2180 = vpop.f32.mrf.mxu0
      %v2181 = vadd.f32 0.0, %v2180
      %2182 = vmatprep.mubr.f32.mxu0 %v1920
      %2183 = vmatmul.mubr.f32.gmra.mxu0 %v1547
      %v2184 = vpop.f32.mrf.mxu0
      %v2185 = vadd.f32 0.0, %v2184
      %v2186 = vpop.f32.mrf.mxu0
      %v2187 = vadd.f32 0.0, %v2186
      %2188 = vdwg.mxu0
      %2189 = vmatprep.subr.mxu0 %v1856
      %2190 = vmatpush1.msra.mxu0 %v1855
      %2191 = vmatprep.subr.mxu0 %v1836
      %2192 = vmatpush1.msra.mxu0 %v1835
      %2193 = vmatprep.subr.mxu0 %v1816
      %2194 = vmatpush1.msra.mxu0 %v1815
      %2195 = vmatprep.subr.mxu0 %v1796
      %2196 = vmatpush1.msra.mxu0 %v1795
      %2197 = vmatprep.subr.mxu0 %v1776
      %2198 = vmatpush1.msra.mxu0 %v1775
      %2199 = vmatprep.subr.mxu0 %v1756
      %2200 = vmatpush1.msra.mxu0 %v1755
      %2201 = vmatprep.subr.mxu0 %v1736
      %2202 = vmatpush1.msra.mxu0 %v1735
      %2203 = vmatprep.subr.mxu0 %v1716
      %2204 = vmatpush1.msra.mxu0 %v1715
      %2205 = vmatprep.subr.mxu0 %v1696
      %2206 = vmatpush1.msra.mxu0 %v1695
      %2207 = vmatprep.subr.mxu0 %v1676
      %2208 = vmatpush1.msra.mxu0 %v1675
      %2209 = vmatprep.subr.mxu0 %v1656
      %2210 = vmatpush1.msra.mxu0 %v1655
      %2211 = vmatprep.subr.mxu0 %v1636
      %2212 = vmatpush1.msra.mxu0 %v1635
      %2213 = vmatprep.subr.mxu0 %v1616
      %2214 = vmatpush1.msra.mxu0 %v1615
      %2215 = vmatprep.subr.mxu0 %v1596
      %2216 = vmatpush1.msra.mxu0 %v1595
      %2217 = vmatprep.subr.mxu0 %v1576
      %2218 = vmatpush1.msra.mxu0 %v1575
      %2219 = vmatprep.subr.mxu0 %v1556
      %2220 = vmatpush1.msra.mxu0 %v1555
      %2221 = vmatprep.subr.mxu0 0.0
      %2222 = vmatpush2.msra.mxu0 0.0
      %2223 = vmatprep.subr.mxu0 0.0
      %2224 = vmatpush2.msra.mxu0 0.0
      %2225 = vmatprep.subr.mxu0 0.0
      %2226 = vmatpush2.msra.mxu0 0.0
      %2227 = vmatprep.subr.mxu0 0.0
      %2228 = vmatpush2.msra.mxu0 0.0
      %2229 = vmatprep.subr.mxu0 0.0
      %2230 = vmatpush2.msra.mxu0 0.0
      %2231 = vmatprep.subr.mxu0 0.0
      %2232 = vmatpush2.msra.mxu0 0.0
      %2233 = vmatprep.subr.mxu0 0.0
      %2234 = vmatpush2.msra.mxu0 0.0
      %2235 = vmatprep.subr.mxu0 0.0
      %2236 = vmatpush2.msra.mxu0 0.0
      %2237 = vmatprep.subr.mxu0 0.0
      %2238 = vmatpush2.msra.mxu0 0.0
      %2239 = vmatprep.subr.mxu0 0.0
      %2240 = vmatpush2.msra.mxu0 0.0
      %2241 = vmatprep.subr.mxu0 0.0
      %2242 = vmatpush2.msra.mxu0 0.0
      %2243 = vmatprep.subr.mxu0 0.0
      %2244 = vmatpush2.msra.mxu0 0.0
      %2245 = vmatprep.subr.mxu0 0.0
      %2246 = vmatpush2.msra.mxu0 0.0
      %2247 = vmatprep.subr.mxu0 0.0
      %2248 = vmatpush2.msra.mxu0 0.0
      %2249 = vmatprep.subr.mxu0 %v1896
      %2250 = vmatpush2.msra.mxu0 %v1895
      %2251 = vmatprep.subr.mxu0 %v1876
      %2252 = vmatpush2.msra.mxu0 %v1875
      %2253 = vmatprep.mubr.f32.mxu0 %v1911
      %2254 = vmatmul.mubr.f32.gmra.mxu0 %v1541
      %v2255 = vpop.f32.mrf.mxu0
      %v2256 = vadd.f32 0.0, %v2255
      %v2257 = vpop.f32.mrf.mxu0
      %v2258 = vadd.f32 0.0, %v2257
      %2259 = vmatprep.mubr.f32.mxu0 %v1914
      %2260 = vmatmul.mubr.f32.gmra.mxu0 %v1543
      %v2261 = vpop.f32.mrf.mxu0
      %v2262 = vadd.f32 0.0, %v2261
      %v2263 = vpop.f32.mrf.mxu0
      %v2264 = vadd.f32 0.0, %v2263
      %2265 = vmatprep.mubr.f32.mxu0 %v1917
      %2266 = vmatmul.mubr.f32.gmra.mxu0 %v1545
      %v2267 = vpop.f32.mrf.mxu0
      %v2268 = vadd.f32 0.0, %v2267
      %v2269 = vpop.f32.mrf.mxu0
      %v2270 = vadd.f32 0.0, %v2269
      %2271 = vmatprep.mubr.f32.mxu0 %v1920
      %2272 = vmatmul.mubr.f32.gmra.mxu0 %v1547
      %v2273 = vpop.f32.mrf.mxu0
      %v2274 = vadd.f32 0.0, %v2273
      %v2275 = vpop.f32.mrf.mxu0
      %v2276 = vadd.f32 0.0, %v2275
      %2277 = vdwg.mxu0
      %2278 = vmatprep.subr.mxu0 %v1858
      %2279 = vmatpush1.msra.mxu0 %v1857
      %2280 = vmatprep.subr.mxu0 %v1838
      %2281 = vmatpush1.msra.mxu0 %v1837
      %2282 = vmatprep.subr.mxu0 %v1818
      %2283 = vmatpush1.msra.mxu0 %v1817
      %2284 = vmatprep.subr.mxu0 %v1798
      %2285 = vmatpush1.msra.mxu0 %v1797
      %2286 = vmatprep.subr.mxu0 %v1778
      %2287 = vmatpush1.msra.mxu0 %v1777
      %2288 = vmatprep.subr.mxu0 %v1758
      %2289 = vmatpush1.msra.mxu0 %v1757
      %2290 = vmatprep.subr.mxu0 %v1738
      %2291 = vmatpush1.msra.mxu0 %v1737
      %2292 = vmatprep.subr.mxu0 %v1718
      %2293 = vmatpush1.msra.mxu0 %v1717
      %2294 = vmatprep.subr.mxu0 %v1698
      %2295 = vmatpush1.msra.mxu0 %v1697
      %2296 = vmatprep.subr.mxu0 %v1678
      %2297 = vmatpush1.msra.mxu0 %v1677
      %2298 = vmatprep.subr.mxu0 %v1658
      %2299 = vmatpush1.msra.mxu0 %v1657
      %2300 = vmatprep.subr.mxu0 %v1638
      %2301 = vmatpush1.msra.mxu0 %v1637
      %2302 = vmatprep.subr.mxu0 %v1618
      %2303 = vmatpush1.msra.mxu0 %v1617
      %2304 = vmatprep.subr.mxu0 %v1598
      %2305 = vmatpush1.msra.mxu0 %v1597
      %2306 = vmatprep.subr.mxu0 %v1578
      %2307 = vmatpush1.msra.mxu0 %v1577
      %2308 = vmatprep.subr.mxu0 %v1558
      %2309 = vmatpush1.msra.mxu0 %v1557
      %2310 = vmatprep.subr.mxu0 0.0
      %2311 = vmatpush2.msra.mxu0 0.0
      %2312 = vmatprep.subr.mxu0 0.0
      %2313 = vmatpush2.msra.mxu0 0.0
      %2314 = vmatprep.subr.mxu0 0.0
      %2315 = vmatpush2.msra.mxu0 0.0
      %2316 = vmatprep.subr.mxu0 0.0
      %2317 = vmatpush2.msra.mxu0 0.0
      %2318 = vmatprep.subr.mxu0 0.0
      %2319 = vmatpush2.msra.mxu0 0.0
      %2320 = vmatprep.subr.mxu0 0.0
      %2321 = vmatpush2.msra.mxu0 0.0
      %2322 = vmatprep.subr.mxu0 0.0
      %2323 = vmatpush2.msra.mxu0 0.0
      %2324 = vmatprep.subr.mxu0 0.0
      %2325 = vmatpush2.msra.mxu0 0.0
      %2326 = vmatprep.subr.mxu0 0.0
      %2327 = vmatpush2.msra.mxu0 0.0
      %2328 = vmatprep.subr.mxu0 0.0
      %2329 = vmatpush2.msra.mxu0 0.0
      %2330 = vmatprep.subr.mxu0 0.0
      %2331 = vmatpush2.msra.mxu0 0.0
      %2332 = vmatprep.subr.mxu0 0.0
      %2333 = vmatpush2.msra.mxu0 0.0
      %2334 = vmatprep.subr.mxu0 0.0
      %2335 = vmatpush2.msra.mxu0 0.0
      %2336 = vmatprep.subr.mxu0 0.0
      %2337 = vmatpush2.msra.mxu0 0.0
      %2338 = vmatprep.subr.mxu0 %v1898
      %2339 = vmatpush2.msra.mxu0 %v1897
      %2340 = vmatprep.subr.mxu0 %v1878
      %2341 = vmatpush2.msra.mxu0 %v1877
      %2342 = vmatprep.mubr.f32.mxu0 %v1911
      %2343 = vmatmul.mubr.f32.gmra.mxu0 %v1541
      %v2344 = vpop.f32.mrf.mxu0
      %v2345 = vadd.f32 0.0, %v2344
      %v2346 = vpop.f32.mrf.mxu0
      %v2347 = vadd.f32 0.0, %v2346
      %2348 = vmatprep.mubr.f32.mxu0 %v1914
      %2349 = vmatmul.mubr.f32.gmra.mxu0 %v1543
      %v2350 = vpop.f32.mrf.mxu0
      %v2351 = vadd.f32 0.0, %v2350
      %v2352 = vpop.f32.mrf.mxu0
      %v2353 = vadd.f32 0.0, %v2352
      %2354 = vmatprep.mubr.f32.mxu0 %v1917
      %2355 = vmatmul.mubr.f32.gmra.mxu0 %v1545
      %v2356 = vpop.f32.mrf.mxu0
      %v2357 = vadd.f32 0.0, %v2356
      %v2358 = vpop.f32.mrf.mxu0
      %v2359 = vadd.f32 0.0, %v2358
      %2360 = vmatprep.mubr.f32.mxu0 %v1920
      %2361 = vmatmul.mubr.f32.gmra.mxu0 %v1547
      %v2362 = vpop.f32.mrf.mxu0
      %v2363 = vadd.f32 0.0, %v2362
      %v2364 = vpop.f32.mrf.mxu0
      %v2365 = vadd.f32 0.0, %v2364
      %2366 = vdwg.mxu0
      %2367 = vmatprep.subr.mxu0 %v1860
      %2368 = vmatpush1.msra.mxu0 %v1859
      %2369 = vmatprep.subr.mxu0 %v1840
      %2370 = vmatpush1.msra.mxu0 %v1839
      %2371 = vmatprep.subr.mxu0 %v1820
      %2372 = vmatpush1.msra.mxu0 %v1819
      %2373 = vmatprep.subr.mxu0 %v1800
      %2374 = vmatpush1.msra.mxu0 %v1799
      %2375 = vmatprep.subr.mxu0 %v1780
      %2376 = vmatpush1.msra.mxu0 %v1779
      %2377 = vmatprep.subr.mxu0 %v1760
      %2378 = vmatpush1.msra.mxu0 %v1759
      %2379 = vmatprep.subr.mxu0 %v1740
      %2380 = vmatpush1.msra.mxu0 %v1739
      %2381 = vmatprep.subr.mxu0 %v1720
      %2382 = vmatpush1.msra.mxu0 %v1719
      %2383 = vmatprep.subr.mxu0 %v1700
      %2384 = vmatpush1.msra.mxu0 %v1699
      %2385 = vmatprep.subr.mxu0 %v1680
      %2386 = vmatpush1.msra.mxu0 %v1679
      %2387 = vmatprep.subr.mxu0 %v1660
      %2388 = vmatpush1.msra.mxu0 %v1659
      %2389 = vmatprep.subr.mxu0 %v1640
      %2390 = vmatpush1.msra.mxu0 %v1639
      %2391 = vmatprep.subr.mxu0 %v1620
      %2392 = vmatpush1.msra.mxu0 %v1619
      %2393 = vmatprep.subr.mxu0 %v1600
      %2394 = vmatpush1.msra.mxu0 %v1599
      %2395 = vmatprep.subr.mxu0 %v1580
      %2396 = vmatpush1.msra.mxu0 %v1579
      %2397 = vmatprep.subr.mxu0 %v1560
      %2398 = vmatpush1.msra.mxu0 %v1559
      %2399 = vmatprep.subr.mxu0 0.0
      %2400 = vmatpush2.msra.mxu0 0.0
      %2401 = vmatprep.subr.mxu0 0.0
      %2402 = vmatpush2.msra.mxu0 0.0
      %2403 = vmatprep.subr.mxu0 0.0
      %2404 = vmatpush2.msra.mxu0 0.0
      %2405 = vmatprep.subr.mxu0 0.0
      %2406 = vmatpush2.msra.mxu0 0.0
      %2407 = vmatprep.subr.mxu0 0.0
      %2408 = vmatpush2.msra.mxu0 0.0
      %2409 = vmatprep.subr.mxu0 0.0
      %2410 = vmatpush2.msra.mxu0 0.0
      %2411 = vmatprep.subr.mxu0 0.0
      %2412 = vmatpush2.msra.mxu0 0.0
      %2413 = vmatprep.subr.mxu0 0.0
      %2414 = vmatpush2.msra.mxu0 0.0
      %2415 = vmatprep.subr.mxu0 0.0
      %2416 = vmatpush2.msra.mxu0 0.0
      %2417 = vmatprep.subr.mxu0 0.0
      %2418 = vmatpush2.msra.mxu0 0.0
      %2419 = vmatprep.subr.mxu0 0.0
      %2420 = vmatpush2.msra.mxu0 0.0
      %2421 = vmatprep.subr.mxu0 0.0
      %2422 = vmatpush2.msra.mxu0 0.0
      %2423 = vmatprep.subr.mxu0 0.0
      %2424 = vmatpush2.msra.mxu0 0.0
      %2425 = vmatprep.subr.mxu0 0.0
      %2426 = vmatpush2.msra.mxu0 0.0
      %2427 = vmatprep.subr.mxu0 %v1900
      %2428 = vmatpush2.msra.mxu0 %v1899
      %2429 = vmatprep.subr.mxu0 %v1880
      %2430 = vmatpush2.msra.mxu0 %v1879
      %2431 = vmatprep.mubr.f32.mxu0 %v1911
      %2432 = vmatmul.mubr.f32.gmra.mxu0 %v1541
      %v2433 = vpop.f32.mrf.mxu0
      %v2434 = vadd.f32 0.0, %v2433
      %v2435 = vpop.f32.mrf.mxu0
      %v2436 = vadd.f32 0.0, %v2435
      %2437 = vmatprep.mubr.f32.mxu0 %v1914
      %2438 = vmatmul.mubr.f32.gmra.mxu0 %v1543
      %v2439 = vpop.f32.mrf.mxu0
      %v2440 = vadd.f32 0.0, %v2439
      %v2441 = vpop.f32.mrf.mxu0
      %v2442 = vadd.f32 0.0, %v2441
      %2443 = vmatprep.mubr.f32.mxu0 %v1917
      %2444 = vmatmul.mubr.f32.gmra.mxu0 %v1545
      %v2445 = vpop.f32.mrf.mxu0
      %v2446 = vadd.f32 0.0, %v2445
      %v2447 = vpop.f32.mrf.mxu0
      %v2448 = vadd.f32 0.0, %v2447
      %2449 = vmatprep.mubr.f32.mxu0 %v1920
      %2450 = vmatmul.mubr.f32.gmra.mxu0 %v1547
      %v2451 = vpop.f32.mrf.mxu0
      %v2452 = vadd.f32 0.0, %v2451
      %v2453 = vpop.f32.mrf.mxu0
      %v2454 = vadd.f32 0.0, %v2453
      %2455 = vdwg.mxu0
      %2456 = vmatprep.subr.mxu0 %v1862
      %2457 = vmatpush1.msra.mxu0 %v1861
      %2458 = vmatprep.subr.mxu0 %v1842
      %2459 = vmatpush1.msra.mxu0 %v1841
      %2460 = vmatprep.subr.mxu0 %v1822
      %2461 = vmatpush1.msra.mxu0 %v1821
      %2462 = vmatprep.subr.mxu0 %v1802
      %2463 = vmatpush1.msra.mxu0 %v1801
      %2464 = vmatprep.subr.mxu0 %v1782
      %2465 = vmatpush1.msra.mxu0 %v1781
      %2466 = vmatprep.subr.mxu0 %v1762
      %2467 = vmatpush1.msra.mxu0 %v1761
      %2468 = vmatprep.subr.mxu0 %v1742
      %2469 = vmatpush1.msra.mxu0 %v1741
      %2470 = vmatprep.subr.mxu0 %v1722
      %2471 = vmatpush1.msra.mxu0 %v1721
      %2472 = vmatprep.subr.mxu0 %v1702
      %2473 = vmatpush1.msra.mxu0 %v1701
      %2474 = vmatprep.subr.mxu0 %v1682
      %2475 = vmatpush1.msra.mxu0 %v1681
      %2476 = vmatprep.subr.mxu0 %v1662
      %2477 = vmatpush1.msra.mxu0 %v1661
      %2478 = vmatprep.subr.mxu0 %v1642
      %2479 = vmatpush1.msra.mxu0 %v1641
      %2480 = vmatprep.subr.mxu0 %v1622
      %2481 = vmatpush1.msra.mxu0 %v1621
      %2482 = vmatprep.subr.mxu0 %v1602
      %2483 = vmatpush1.msra.mxu0 %v1601
      %2484 = vmatprep.subr.mxu0 %v1582
      %2485 = vmatpush1.msra.mxu0 %v1581
      %2486 = vmatprep.subr.mxu0 %v1562
      %2487 = vmatpush1.msra.mxu0 %v1561
      %2488 = vmatprep.subr.mxu0 0.0
      %2489 = vmatpush2.msra.mxu0 0.0
      %2490 = vmatprep.subr.mxu0 0.0
      %2491 = vmatpush2.msra.mxu0 0.0
      %2492 = vmatprep.subr.mxu0 0.0
      %2493 = vmatpush2.msra.mxu0 0.0
      %2494 = vmatprep.subr.mxu0 0.0
      %2495 = vmatpush2.msra.mxu0 0.0
      %2496 = vmatprep.subr.mxu0 0.0
      %2497 = vmatpush2.msra.mxu0 0.0
      %2498 = vmatprep.subr.mxu0 0.0
      %2499 = vmatpush2.msra.mxu0 0.0
      %2500 = vmatprep.subr.mxu0 0.0
      %2501 = vmatpush2.msra.mxu0 0.0
      %2502 = vmatprep.subr.mxu0 0.0
      %2503 = vmatpush2.msra.mxu0 0.0
      %2504 = vmatprep.subr.mxu0 0.0
      %2505 = vmatpush2.msra.mxu0 0.0
      %2506 = vmatprep.subr.mxu0 0.0
      %2507 = vmatpush2.msra.mxu0 0.0
      %2508 = vmatprep.subr.mxu0 0.0
      %2509 = vmatpush2.msra.mxu0 0.0
      %2510 = vmatprep.subr.mxu0 0.0
      %2511 = vmatpush2.msra.mxu0 0.0
      %2512 = vmatprep.subr.mxu0 0.0
      %2513 = vmatpush2.msra.mxu0 0.0
      %2514 = vmatprep.subr.mxu0 0.0
      %2515 = vmatpush2.msra.mxu0 0.0
      %2516 = vmatprep.subr.mxu0 %v1902
      %2517 = vmatpush2.msra.mxu0 %v1901
      %2518 = vmatprep.subr.mxu0 %v1882
      %2519 = vmatpush2.msra.mxu0 %v1881
      %2520 = vmatprep.mubr.f32.mxu0 %v1911
      %2521 = vmatmul.mubr.f32.gmra.mxu0 %v1541
      %v2522 = vpop.f32.mrf.mxu0
      %v2523 = vadd.f32 0.0, %v2522
      %v2524 = vpop.f32.mrf.mxu0
      %v2525 = vadd.f32 0.0, %v2524
      %2526 = vmatprep.mubr.f32.mxu0 %v1914
      %2527 = vmatmul.mubr.f32.gmra.mxu0 %v1543
      %v2528 = vpop.f32.mrf.mxu0
      %v2529 = vadd.f32 0.0, %v2528
      %v2530 = vpop.f32.mrf.mxu0
      %v2531 = vadd.f32 0.0, %v2530
      %2532 = vmatprep.mubr.f32.mxu0 %v1917
      %2533 = vmatmul.mubr.f32.gmra.mxu0 %v1545
      %v2534 = vpop.f32.mrf.mxu0
      %v2535 = vadd.f32 0.0, %v2534
      %v2536 = vpop.f32.mrf.mxu0
      %v2537 = vadd.f32 0.0, %v2536
      %2538 = vmatprep.mubr.f32.mxu0 %v1920
      %2539 = vmatmul.mubr.f32.gmra.mxu0 %v1547
      %v2540 = vpop.f32.mrf.mxu0
      %v2541 = vadd.f32 0.0, %v2540
      %v2542 = vpop.f32.mrf.mxu0
      %v2543 = vadd.f32 0.0, %v2542
      %2544 = vdwg.mxu0
      %2545 = vmatprep.subr.mxu0 %v1864
      %2546 = vmatpush1.msra.mxu0 %v1863
      %2547 = vmatprep.subr.mxu0 %v1844
      %2548 = vmatpush1.msra.mxu0 %v1843
      %2549 = vmatprep.subr.mxu0 %v1824
      %2550 = vmatpush1.msra.mxu0 %v1823
      %2551 = vmatprep.subr.mxu0 %v1804
      %2552 = vmatpush1.msra.mxu0 %v1803
      %2553 = vmatprep.subr.mxu0 %v1784
      %2554 = vmatpush1.msra.mxu0 %v1783
      %2555 = vmatprep.subr.mxu0 %v1764
      %2556 = vmatpush1.msra.mxu0 %v1763
      %2557 = vmatprep.subr.mxu0 %v1744
      %2558 = vmatpush1.msra.mxu0 %v1743
      %2559 = vmatprep.subr.mxu0 %v1724
      %2560 = vmatpush1.msra.mxu0 %v1723
      %2561 = vmatprep.subr.mxu0 %v1704
      %2562 = vmatpush1.msra.mxu0 %v1703
      %2563 = vmatprep.subr.mxu0 %v1684
      %2564 = vmatpush1.msra.mxu0 %v1683
      %2565 = vmatprep.subr.mxu0 %v1664
      %2566 = vmatpush1.msra.mxu0 %v1663
      %2567 = vmatprep.subr.mxu0 %v1644
      %2568 = vmatpush1.msra.mxu0 %v1643
      %2569 = vmatprep.subr.mxu0 %v1624
      %2570 = vmatpush1.msra.mxu0 %v1623
      %2571 = vmatprep.subr.mxu0 %v1604
      %2572 = vmatpush1.msra.mxu0 %v1603
      %2573 = vmatprep.subr.mxu0 %v1584
      %2574 = vmatpush1.msra.mxu0 %v1583
      %2575 = vmatprep.subr.mxu0 %v1564
      %2576 = vmatpush1.msra.mxu0 %v1563
      %2577 = vmatprep.subr.mxu0 0.0
      %2578 = vmatpush2.msra.mxu0 0.0
      %2579 = vmatprep.subr.mxu0 0.0
      %2580 = vmatpush2.msra.mxu0 0.0
      %2581 = vmatprep.subr.mxu0 0.0
      %2582 = vmatpush2.msra.mxu0 0.0
      %2583 = vmatprep.subr.mxu0 0.0
      %2584 = vmatpush2.msra.mxu0 0.0
      %2585 = vmatprep.subr.mxu0 0.0
      %2586 = vmatpush2.msra.mxu0 0.0
      %2587 = vmatprep.subr.mxu0 0.0
      %2588 = vmatpush2.msra.mxu0 0.0
      %2589 = vmatprep.subr.mxu0 0.0
      %2590 = vmatpush2.msra.mxu0 0.0
      %2591 = vmatprep.subr.mxu0 0.0
      %2592 = vmatpush2.msra.mxu0 0.0
      %2593 = vmatprep.subr.mxu0 0.0
      %2594 = vmatpush2.msra.mxu0 0.0
      %2595 = vmatprep.subr.mxu0 0.0
      %2596 = vmatpush2.msra.mxu0 0.0
      %2597 = vmatprep.subr.mxu0 0.0
      %2598 = vmatpush2.msra.mxu0 0.0
      %2599 = vmatprep.subr.mxu0 0.0
      %2600 = vmatpush2.msra.mxu0 0.0
      %2601 = vmatprep.subr.mxu0 0.0
      %2602 = vmatpush2.msra.mxu0 0.0
      %2603 = vmatprep.subr.mxu0 0.0
      %2604 = vmatpush2.msra.mxu0 0.0
      %2605 = vmatprep.subr.mxu0 %v1904
      %2606 = vmatpush2.msra.mxu0 %v1903
      %2607 = vmatprep.subr.mxu0 %v1884
      %2608 = vmatpush2.msra.mxu0 %v1883
      %2609 = vmatprep.mubr.f32.mxu0 %v1911
      %2610 = vmatmul.mubr.f32.gmra.mxu0 %v1541
      %v2611 = vpop.f32.mrf.mxu0
      %v2612 = vadd.f32 0.0, %v2611
      %v2613 = vpop.f32.mrf.mxu0
      %v2614 = vadd.f32 0.0, %v2613
      %2615 = vmatprep.mubr.f32.mxu0 %v1914
      %2616 = vmatmul.mubr.f32.gmra.mxu0 %v1543
      %v2617 = vpop.f32.mrf.mxu0
      %v2618 = vadd.f32 0.0, %v2617
      %v2619 = vpop.f32.mrf.mxu0
      %v2620 = vadd.f32 0.0, %v2619
      %2621 = vmatprep.mubr.f32.mxu0 %v1917
      %2622 = vmatmul.mubr.f32.gmra.mxu0 %v1545
      %v2623 = vpop.f32.mrf.mxu0
      %v2624 = vadd.f32 0.0, %v2623
      %v2625 = vpop.f32.mrf.mxu0
      %v2626 = vadd.f32 0.0, %v2625
      %2627 = vmatprep.mubr.f32.mxu0 %v1920
      %2628 = vmatmul.mubr.f32.gmra.mxu0 %v1547
      %v2629 = vpop.f32.mrf.mxu0
      %v2630 = vadd.f32 0.0, %v2629
      %v2631 = vpop.f32.mrf.mxu0
      %v2632 = vadd.f32 0.0, %v2631
      %2633 = vdwg.mxu0
      %2634 = vmatprep.subr.mxu0 %v1866
      %2635 = vmatpush1.msra.mxu0 %v1865
      %2636 = vmatprep.subr.mxu0 %v1846
      %2637 = vmatpush1.msra.mxu0 %v1845
      %2638 = vmatprep.subr.mxu0 %v1826
      %2639 = vmatpush1.msra.mxu0 %v1825
      %2640 = vmatprep.subr.mxu0 %v1806
      %2641 = vmatpush1.msra.mxu0 %v1805
      %2642 = vmatprep.subr.mxu0 %v1786
      %2643 = vmatpush1.msra.mxu0 %v1785
      %2644 = vmatprep.subr.mxu0 %v1766
      %2645 = vmatpush1.msra.mxu0 %v1765
      %2646 = vmatprep.subr.mxu0 %v1746
      %2647 = vmatpush1.msra.mxu0 %v1745
      %2648 = vmatprep.subr.mxu0 %v1726
      %2649 = vmatpush1.msra.mxu0 %v1725
      %2650 = vmatprep.subr.mxu0 %v1706
      %2651 = vmatpush1.msra.mxu0 %v1705
      %2652 = vmatprep.subr.mxu0 %v1686
      %2653 = vmatpush1.msra.mxu0 %v1685
      %2654 = vmatprep.subr.mxu0 %v1666
      %2655 = vmatpush1.msra.mxu0 %v1665
      %2656 = vmatprep.subr.mxu0 %v1646
      %2657 = vmatpush1.msra.mxu0 %v1645
      %2658 = vmatprep.subr.mxu0 %v1626
      %2659 = vmatpush1.msra.mxu0 %v1625
      %2660 = vmatprep.subr.mxu0 %v1606
      %2661 = vmatpush1.msra.mxu0 %v1605
      %2662 = vmatprep.subr.mxu0 %v1586
      %2663 = vmatpush1.msra.mxu0 %v1585
      %2664 = vmatprep.subr.mxu0 %v1566
      %2665 = vmatpush1.msra.mxu0 %v1565
      %2666 = vmatprep.subr.mxu0 0.0
      %2667 = vmatpush2.msra.mxu0 0.0
      %2668 = vmatprep.subr.mxu0 0.0
      %2669 = vmatpush2.msra.mxu0 0.0
      %2670 = vmatprep.subr.mxu0 0.0
      %2671 = vmatpush2.msra.mxu0 0.0
      %2672 = vmatprep.subr.mxu0 0.0
      %2673 = vmatpush2.msra.mxu0 0.0
      %2674 = vmatprep.subr.mxu0 0.0
      %2675 = vmatpush2.msra.mxu0 0.0
      %2676 = vmatprep.subr.mxu0 0.0
      %2677 = vmatpush2.msra.mxu0 0.0
      %2678 = vmatprep.subr.mxu0 0.0
      %2679 = vmatpush2.msra.mxu0 0.0
      %2680 = vmatprep.subr.mxu0 0.0
      %2681 = vmatpush2.msra.mxu0 0.0
      %2682 = vmatprep.subr.mxu0 0.0
      %2683 = vmatpush2.msra.mxu0 0.0
      %2684 = vmatprep.subr.mxu0 0.0
      %2685 = vmatpush2.msra.mxu0 0.0
      %2686 = vmatprep.subr.mxu0 0.0
      %2687 = vmatpush2.msra.mxu0 0.0
      %2688 = vmatprep.subr.mxu0 0.0
      %2689 = vmatpush2.msra.mxu0 0.0
      %2690 = vmatprep.subr.mxu0 0.0
      %2691 = vmatpush2.msra.mxu0 0.0
      %2692 = vmatprep.subr.mxu0 0.0
      %2693 = vmatpush2.msra.mxu0 0.0
      %2694 = vmatprep.subr.mxu0 %v1906
      %2695 = vmatpush2.msra.mxu0 %v1905
      %2696 = vmatprep.subr.mxu0 %v1886
      %2697 = vmatpush2.msra.mxu0 %v1885
      %2698 = vmatprep.mubr.f32.mxu0 %v1911
      %2699 = vmatmul.mubr.f32.gmra.mxu0 %v1541
      %v2700 = vpop.f32.mrf.mxu0
      %v2701 = vadd.f32 0.0, %v2700
      %v2702 = vpop.f32.mrf.mxu0
      %v2703 = vadd.f32 0.0, %v2702
      %2704 = vmatprep.mubr.f32.mxu0 %v1914
      %2705 = vmatmul.mubr.f32.gmra.mxu0 %v1543
      %v2706 = vpop.f32.mrf.mxu0
      %v2707 = vadd.f32 0.0, %v2706
      %v2708 = vpop.f32.mrf.mxu0
      %v2709 = vadd.f32 0.0, %v2708
      %2710 = vmatprep.mubr.f32.mxu0 %v1917
      %2711 = vmatmul.mubr.f32.gmra.mxu0 %v1545
      %v2712 = vpop.f32.mrf.mxu0
      %v2713 = vadd.f32 0.0, %v2712
      %v2714 = vpop.f32.mrf.mxu0
      %v2715 = vadd.f32 0.0, %v2714
      %2716 = vmatprep.mubr.f32.mxu0 %v1920
      %2717 = vmatmul.mubr.f32.gmra.mxu0 %v1547
      %v2718 = vpop.f32.mrf.mxu0
      %v2719 = vadd.f32 0.0, %v2718
      %v2720 = vpop.f32.mrf.mxu0
      %v2721 = vadd.f32 0.0, %v2720
      %2722 = vdwg.mxu0
      %2723 = vmatprep.subr.mxu0 %v1868
      %2724 = vmatpush1.msra.mxu0 %v1867
      %2725 = vmatprep.subr.mxu0 %v1848
      %2726 = vmatpush1.msra.mxu0 %v1847
      %2727 = vmatprep.subr.mxu0 %v1828
      %2728 = vmatpush1.msra.mxu0 %v1827
      %2729 = vmatprep.subr.mxu0 %v1808
      %2730 = vmatpush1.msra.mxu0 %v1807
      %2731 = vmatprep.subr.mxu0 %v1788
      %2732 = vmatpush1.msra.mxu0 %v1787
      %2733 = vmatprep.subr.mxu0 %v1768
      %2734 = vmatpush1.msra.mxu0 %v1767
      %2735 = vmatprep.subr.mxu0 %v1748
      %2736 = vmatpush1.msra.mxu0 %v1747
      %2737 = vmatprep.subr.mxu0 %v1728
      %2738 = vmatpush1.msra.mxu0 %v1727
      %2739 = vmatprep.subr.mxu0 %v1708
      %2740 = vmatpush1.msra.mxu0 %v1707
      %2741 = vmatprep.subr.mxu0 %v1688
      %2742 = vmatpush1.msra.mxu0 %v1687
      %2743 = vmatprep.subr.mxu0 %v1668
      %2744 = vmatpush1.msra.mxu0 %v1667
      %2745 = vmatprep.subr.mxu0 %v1648
      %2746 = vmatpush1.msra.mxu0 %v1647
      %2747 = vmatprep.subr.mxu0 %v1628
      %2748 = vmatpush1.msra.mxu0 %v1627
      %2749 = vmatprep.subr.mxu0 %v1608
      %2750 = vmatpush1.msra.mxu0 %v1607
      %2751 = vmatprep.subr.mxu0 %v1588
      %2752 = vmatpush1.msra.mxu0 %v1587
      %2753 = vmatprep.subr.mxu0 %v1568
      %2754 = vmatpush1.msra.mxu0 %v1567
      %2755 = vmatprep.subr.mxu0 0.0
      %2756 = vmatpush2.msra.mxu0 0.0
      %2757 = vmatprep.subr.mxu0 0.0
      %2758 = vmatpush2.msra.mxu0 0.0
      %2759 = vmatprep.subr.mxu0 0.0
      %2760 = vmatpush2.msra.mxu0 0.0
      %2761 = vmatprep.subr.mxu0 0.0
      %2762 = vmatpush2.msra.mxu0 0.0
      %2763 = vmatprep.subr.mxu0 0.0
      %2764 = vmatpush2.msra.mxu0 0.0
      %2765 = vmatprep.subr.mxu0 0.0
      %2766 = vmatpush2.msra.mxu0 0.0
      %2767 = vmatprep.subr.mxu0 0.0
      %2768 = vmatpush2.msra.mxu0 0.0
      %2769 = vmatprep.subr.mxu0 0.0
      %2770 = vmatpush2.msra.mxu0 0.0
      %2771 = vmatprep.subr.mxu0 0.0
      %2772 = vmatpush2.msra.mxu0 0.0
      %2773 = vmatprep.subr.mxu0 0.0
      %2774 = vmatpush2.msra.mxu0 0.0
      %2775 = vmatprep.subr.mxu0 0.0
      %2776 = vmatpush2.msra.mxu0 0.0
      %2777 = vmatprep.subr.mxu0 0.0
      %2778 = vmatpush2.msra.mxu0 0.0
      %2779 = vmatprep.subr.mxu0 0.0
      %2780 = vmatpush2.msra.mxu0 0.0
      %2781 = vmatprep.subr.mxu0 0.0
      %2782 = vmatpush2.msra.mxu0 0.0
      %2783 = vmatprep.subr.mxu0 %v1908
      %2784 = vmatpush2.msra.mxu0 %v1907
      %2785 = vmatprep.subr.mxu0 %v1888
      %2786 = vmatpush2.msra.mxu0 %v1887
      %2787 = vmatprep.mubr.f32.mxu0 %v1911
      %2788 = vmatmul.mubr.f32.gmra.mxu0 %v1541
      %v2789 = vpop.f32.mrf.mxu0
      %v2790 = vadd.f32 0.0, %v2789
      %v2791 = vpop.f32.mrf.mxu0
      %v2792 = vadd.f32 0.0, %v2791
      %2793 = vmatprep.mubr.f32.mxu0 %v1914
      %2794 = vmatmul.mubr.f32.gmra.mxu0 %v1543
      %v2795 = vpop.f32.mrf.mxu0
      %v2796 = vadd.f32 0.0, %v2795
      %v2797 = vpop.f32.mrf.mxu0
      %v2798 = vadd.f32 0.0, %v2797
      %2799 = vmatprep.mubr.f32.mxu0 %v1917
      %2800 = vmatmul.mubr.f32.gmra.mxu0 %v1545
      %v2801 = vpop.f32.mrf.mxu0
      %v2802 = vadd.f32 0.0, %v2801
      %v2803 = vpop.f32.mrf.mxu0
      %v2804 = vadd.f32 0.0, %v2803
      %2805 = vmatprep.mubr.f32.mxu0 %v1920
      %2806 = vmatmul.mubr.f32.gmra.mxu0 %v1547
      %v2807 = vpop.f32.mrf.mxu0
      %v2808 = vadd.f32 0.0, %v2807
      %v2809 = vpop.f32.mrf.mxu0
      %v2810 = vadd.f32 0.0, %v2809
      %2811 = vdwg.mxu0
      %v2812 = vmax.f32 %v1989, %v1995
      %v2813 = vmax.f32 %v1991, %v1997
      %v2814 = vmax.f32 %v2078, %v2084
      %v2815 = vmax.f32 %v2080, %v2086
      %v2816 = vmax.f32 %v2167, %v2173
      %v2817 = vmax.f32 %v2169, %v2175
      %v2818 = vmax.f32 %v2256, %v2262
      %v2819 = vmax.f32 %v2258, %v2264
      %v2820 = vmax.f32 %v2345, %v2351
      %v2821 = vmax.f32 %v2347, %v2353
      %v2822 = vmax.f32 %v2434, %v2440
      %v2823 = vmax.f32 %v2436, %v2442
      %v2824 = vmax.f32 %v2523, %v2529
      %v2825 = vmax.f32 %v2525, %v2531
      %v2826 = vmax.f32 %v2612, %v2618
      %v2827 = vmax.f32 %v2614, %v2620
      %v2828 = vmax.f32 %v2701, %v2707
      %v2829 = vmax.f32 %v2703, %v2709
      %v2830 = vmax.f32 %v2790, %v2796
      %v2831 = vmax.f32 %v2792, %v2798
      %v2832 = vmax.f32 %v2001, %v2007
      %v2833 = vmax.f32 %v2003, %v2009
      %v2834 = vmax.f32 %v2090, %v2096
      %v2835 = vmax.f32 %v2092, %v2098
      %v2836 = vmax.f32 %v2179, %v2185
      %v2837 = vmax.f32 %v2181, %v2187
      %v2838 = vmax.f32 %v2268, %v2274
      %v2839 = vmax.f32 %v2270, %v2276
      %v2840 = vmax.f32 %v2357, %v2363
      %v2841 = vmax.f32 %v2359, %v2365
      %v2842 = vmax.f32 %v2446, %v2452
      %v2843 = vmax.f32 %v2448, %v2454
      %v2844 = vmax.f32 %v2535, %v2541
      %v2845 = vmax.f32 %v2537, %v2543
      %v2846 = vmax.f32 %v2624, %v2630
      %v2847 = vmax.f32 %v2626, %v2632
      %v2848 = vmax.f32 %v2713, %v2719
      %v2849 = vmax.f32 %v2715, %v2721
      %v2850 = vmax.f32 %v2802, %v2808
      %v2851 = vmax.f32 %v2804, %v2810
      %v2852 = vmax.f32 %v2812, %v2832
      %v2853 = vmax.f32 %v2813, %v2833
      %v2854 = vmax.f32 %v2814, %v2834
      %v2855 = vmax.f32 %v2815, %v2835
      %v2856 = vmax.f32 %v2816, %v2836
      %v2857 = vmax.f32 %v2817, %v2837
      %v2858 = vmax.f32 %v2818, %v2838
      %v2859 = vmax.f32 %v2819, %v2839
      %v2860 = vmax.f32 %v2820, %v2840
      %v2861 = vmax.f32 %v2821, %v2841
      %v2862 = vmax.f32 %v2822, %v2842
      %v2863 = vmax.f32 %v2823, %v2843
      %v2864 = vmax.f32 %v2824, %v2844
      %v2865 = vmax.f32 %v2825, %v2845
      %v2866 = vmax.f32 %v2826, %v2846
      %v2867 = vmax.f32 %v2827, %v2847
      %v2868 = vmax.f32 %v2828, %v2848
      %v2869 = vmax.f32 %v2829, %v2849
      %v2870 = vmax.f32 %v2830, %v2850
      %v2871 = vmax.f32 %v2831, %v2851
      %v2872 = vld [vmem:[%s2] sm:$0xff]
      %2874 = vset.pattern.permute.xlu0 0
      %2875 = vperm.xlu0 %2874, %v2872
      %v2876 = vpop.permute.xlu0 %2875
      %v2878 = vadd.f32 %v2852, %v2876
      %v2879 = vadd.f32 %v2853, %v2876
      %v2880 = vadd.f32 %v2854, %v2876
      %v2881 = vadd.f32 %v2855, %v2876
      %v2882 = vadd.f32 %v2856, %v2876
      %v2883 = vadd.f32 %v2857, %v2876
      %v2884 = vadd.f32 %v2858, %v2876
      %v2885 = vadd.f32 %v2859, %v2876
      %v2886 = vadd.f32 %v2860, %v2876
      %v2887 = vadd.f32 %v2861, %v2876
      %v2888 = vadd.f32 %v2862, %v2876
      %v2889 = vadd.f32 %v2863, %v2876
      %v2890 = vadd.f32 %v2864, %v2876
      %v2891 = vadd.f32 %v2865, %v2876
      %v2892 = vadd.f32 %v2866, %v2876
      %v2893 = vadd.f32 %v2867, %v2876
      %v2894 = vadd.f32 %v2868, %v2876
      %v2895 = vadd.f32 %v2869, %v2876
      %v2896 = vadd.f32 %v2870, %v2876
      %v2897 = vadd.f32 %v2871, %v2876
      %v2898 = vmax.f32 %v2878, 0.0
      %v2899 = vmax.f32 %v2879, 0.0
      %v2900 = vmax.f32 %v2880, 0.0
      %v2901 = vmax.f32 %v2881, 0.0
      %v2902 = vmax.f32 %v2882, 0.0
      %v2903 = vmax.f32 %v2883, 0.0
      %v2904 = vmax.f32 %v2884, 0.0
      %v2905 = vmax.f32 %v2885, 0.0
      %v2906 = vmax.f32 %v2886, 0.0
      %v2907 = vmax.f32 %v2887, 0.0
      %v2908 = vmax.f32 %v2888, 0.0
      %v2909 = vmax.f32 %v2889, 0.0
      %v2910 = vmax.f32 %v2890, 0.0
      %v2911 = vmax.f32 %v2891, 0.0
      %v2912 = vmax.f32 %v2892, 0.0
      %v2913 = vmax.f32 %v2893, 0.0
      %v2914 = vmax.f32 %v2894, 0.0
      %v2915 = vmax.f32 %v2895, 0.0
      %v2916 = vmax.f32 %v2896, 0.0
      %v2917 = vmax.f32 %v2897, 0.0
      %2918 = vst [vmem:[%s170] sm:$0xff] %v2898
      %2919 = vst [vmem:[%s170 + $0x8] sm:$0xff] %v2899
      %2920 = vst [vmem:[%s170 + $0x10] sm:$0xff] %v2900
      %2921 = vst [vmem:[%s170 + $0x18] sm:$0xff] %v2901
      %2922 = vst [vmem:[%s170 + $0x20] sm:$0xff] %v2902
      %2923 = vst [vmem:[%s170 + $0x28] sm:$0xff] %v2903
      %2924 = vst [vmem:[%s170 + $0x30] sm:$0xff] %v2904
      %2925 = vst [vmem:[%s170 + $0x38] sm:$0xff] %v2905
      %2926 = vst [vmem:[%s170 + $0x40] sm:$0xff] %v2906
      %2927 = vst [vmem:[%s170 + $0x48] sm:$0xff] %v2907
      %2928 = vst [vmem:[%s170 + $0x50] sm:$0xff] %v2908
      %2929 = vst [vmem:[%s170 + $0x58] sm:$0xff] %v2909
      %2930 = vst [vmem:[%s170 + $0x60] sm:$0xff] %v2910
      %2931 = vst [vmem:[%s170 + $0x68] sm:$0xff] %v2911
      %2932 = vst [vmem:[%s170 + $0x70] sm:$0xff] %v2912
      %2933 = vst [vmem:[%s170 + $0x78] sm:$0xff] %v2913
      %2934 = vst [vmem:[%s170 + $0x80] sm:$0xff] %v2914
      %2935 = vst [vmem:[%s170 + $0x88] sm:$0xff] %v2915
      %2936 = vst [vmem:[%s170 + $0x90] sm:$0xff] %v2916
      %2937 = vst [vmem:[%s170 + $0x98] sm:$0xff] %v2917
      %p2938 = scmp.lt.s32.totalorder %s14, 1
      %s2939 = scalar_select %p2938, %s14, 1
      %s2940 = smul.addr %s2939, 20
      %s2941 = smul.addr %s2940, 8
      %s2942 = scalar_lea.vmem %s3, %s2941
      // Predicated region
      $region33: #{cnn_forward.4} parent=31 // pred_check
        %p2943 = pneg %p100
      $region34: #{cnn_forward.4} parent=31 // pred_check_branch
        %2945 = sbr.rel (%p2943) target = $region36
      $region35: #{cnn_forward.4} parent=31 // pred_region
        _
      $region36: #{cnn_forward.4} parent=31 // pred_fallthru
        _
    $region32: #{cnn_forward.4} parent=5 // pred_fallthru
      _
    %p2946 = scmp.le.s32.totalorder 2, %s9
    // Predicated region
    $region37: #{cnn_forward.4} parent=5 // pred_check
      %p2947 = pneg %p2946
    $region38: #{cnn_forward.4} parent=5 // pred_check_branch
      %2949 = sbr.rel (%p2947) target = $region40
    $region39: #{cnn_forward.4} parent=5 // pred_region
      %s2950 = ssub.s32 %s9, 2
      // Predicated region
      $region41: #{cnn_forward.4} parent=39 // pred_check
        %p2951 = pneg %p106
      $region42: #{cnn_forward.4} parent=39 // pred_check_branch
        %2953 = sbr.rel (%p2951) target = $region44
      $region43: #{cnn_forward.4} parent=39 // pred_region
        %p2954 = scmp.lt.s32.totalorder %s15, 1
        %s2955 = scalar_select %p2954, %s15, 1
        %s2956 = smul.addr %s2955, 20
        %s2957 = smul.addr %s2956, 8
        %s2958 = scalar_lea.vmem %s3, %s2957
      $region44: #{cnn_forward.4} parent=39 // pred_fallthru
        _
    $region40: #{cnn_forward.4} parent=5 // pred_fallthru
      _
  $region6: #{cnn_forward.4} parent=0 // loop_footer
    %s13 = sadd.s32 1, %s9
  $region7: #{cnn_forward.4} parent=0 // loop_footer_branch
    %8 = sbr.rel target = $region3
  $region8: #{cnn_forward.4} parent=0 // loop_exit
    _

// kernel: cnn_forward.5
$region0: #{cnn_forward.5}
  #allocation0 [shape = 'u32[]', space=smem, size = 0x4, offset = 0x4, fixed_abs, tag = 'smem constant byte address 0x4 - core index']
  #allocation1 [shape = 'u32[144,128]{1,0:T(1,128)}', space=vmem, size = 0x12000, scoped, tag = 'internal scratch']
  #allocation2 [shape = 'f32[216,640]{1,0:T(8,128)}', space=vmem, size = 0x87000, scoped, tag = 'scratch operand']
  %s0 = inlined_call_operand.vmem [shape: f32[2,24,640], index: 0, kind: input, shape index: {}]
  %s1 = inlined_call_operand.vmem [shape: f32[64,216], index: 1, kind: input, shape index: {}]
  %s2 = inlined_call_operand.vmem [shape: f32[16,1], index: 2, kind: input, shape index: {}]
  %s3 = inlined_call_operand.vmem [shape: f32[2,16,640], index: 3, kind: output, shape index: {}]
  %s4 = sld [smem:[#allocation0]]
  $region45: #{cnn_forward.5} parent=0
    _
  %s6 = ssub.s32 1, %s4
  %s7 = scalar_select 0, %s6, %s4
  loop: start=0, step=1, limit=4
  $region2: #{cnn_forward.5} parent=0 // loop_pre_header
    _
  $region3: #{cnn_forward.5} parent=0 // loop_header
    %s9 = sphi 0, %s13
    %p10 = scmp.ge.s32.totalorder %s9, 4
    %s19 = sphi 0, %s21
    %s22 = sphi 0, %s19
    %s23 = sphi 0, %s22
    %s39 = sphi 0, %s23
    %s43 = sphi 0, %s43
    %s45 = sphi 0, %s43
    %s46 = sphi 0, %s45
    %s60 = sphi 0, %s46
    %s64 = sphi 0, %s64
    %s66 = sphi 0, %s64
    %s67 = sphi 0, %s66
    %s81 = sphi 0, %s67
    %s87 = sphi 0, %s89
    %s90 = sphi 0, %s87
    %s91 = sphi 0, %s90
    %s107 = sphi 0, %s91
  $region4: #{cnn_forward.5} parent=0 // loop_header_branch
    %12 = sbr.rel (%p10) target = $region8
  $region5: #{cnn_forward.5} parent=0 // loop_body
    %s14 = ssub.s32 %s9, 1
    %s15 = ssub.s32 %s9, 2
    %s16 = sadd.s32 %s9, 1
    %s17 = ssub.s32 %s9, %s16
    %p18 = scmp.eq.s32.totalorder %s17, 0
    %s20 = sadd.s32 %s19, 1
    %s21 = scalar_select %p18, %s19, %s20
    %p24 = pneg %p18
    %p25 = scmp.eq.s32.totalorder %s9, 1
    %p26 = por %p24, %p25
    %p27 = scmp.ne.s32.totalorder %s19, %s22
    %p28 = scmp.eq.s32.totalorder %s9, 0
    %p29 = por %p27, %p28
    %p30 = scmp.ne.s32.totalorder %s19, %s22
    %p31 = scmp.eq.s32.totalorder %s14, 1
    %p32 = por %p30, %p31
    %p33 = scmp.ne.s32.totalorder %s22, %s23
    %p34 = scmp.eq.s32.totalorder %s14, 0
    %p35 = por %p33, %p34
    %p36 = scmp.ne.s32.totalorder %s22, %s23
    %p37 = scmp.eq.s32.totalorder %s15, 1
    %p38 = por %p36, %p37
    %p40 = scmp.ne.s32.totalorder %s23, %s39
    %p41 = scmp.eq.s32.totalorder %s15, 0
    %p42 = por %p40, %p41
    %s44 = sadd.s32 %s43, 1
    %p47 = scmp.eq.s32.totalorder %s9, 1
    %p48 = scmp.ne.s32.totalorder %s43, %s45
    %p49 = scmp.eq.s32.totalorder %s9, 0
    %p50 = por %p48, %p49
    %p51 = scmp.ne.s32.totalorder %s43, %s45
    %p52 = scmp.eq.s32.totalorder %s14, 1
    %p53 = por %p51, %p52
    %p54 = scmp.ne.s32.totalorder %s45, %s46
    %p55 = scmp.eq.s32.totalorder %s14, 0
    %p56 = por %p54, %p55
    %p57 = scmp.ne.s32.totalorder %s45, %s46
    %p58 = scmp.eq.s32.totalorder %s15, 1
    %p59 = por %p57, %p58
    %p61 = scmp.ne.s32.totalorder %s46, %s60
    %p62 = scmp.eq.s32.totalorder %s15, 0
    %p63 = por %p61, %p62
    %s65 = sadd.s32 %s64, 1
    %p68 = scmp.eq.s32.totalorder %s9, 1
    %p69 = scmp.ne.s32.totalorder %s64, %s66
    %p70 = scmp.eq.s32.totalorder %s9, 0
    %p71 = por %p69, %p70
    %p72 = scmp.ne.s32.totalorder %s64, %s66
    %p73 = scmp.eq.s32.totalorder %s14, 1
    %p74 = por %p72, %p73
    %p75 = scmp.ne.s32.totalorder %s66, %s67
    %p76 = scmp.eq.s32.totalorder %s14, 0
    %p77 = por %p75, %p76
    %p78 = scmp.ne.s32.totalorder %s66, %s67
    %p79 = scmp.eq.s32.totalorder %s15, 1
    %p80 = por %p78, %p79
    %p82 = scmp.ne.s32.totalorder %s67, %s81
    %p83 = scmp.eq.s32.totalorder %s15, 0
    %p84 = por %p82, %p83
    %s85 = ssub.s32 %s9, %s16
    %p86 = scmp.eq.s32.totalorder %s85, 0
    %s88 = sadd.s32 %s87, 1
    %s89 = scalar_select %p86, %s87, %s88
    %p92 = pneg %p86
    %p93 = scmp.eq.s32.totalorder %s9, 1
    %p94 = por %p92, %p93
    %p95 = scmp.ne.s32.totalorder %s87, %s90
    %p96 = scmp.eq.s32.totalorder %s9, 0
    %p97 = por %p95, %p96
    %p98 = scmp.ne.s32.totalorder %s87, %s90
    %p99 = scmp.eq.s32.totalorder %s14, 1
    %p100 = por %p98, %p99
    %p101 = scmp.ne.s32.totalorder %s90, %s91
    %p102 = scmp.eq.s32.totalorder %s14, 0
    %p103 = por %p101, %p102
    %p104 = scmp.ne.s32.totalorder %s90, %s91
    %p105 = scmp.eq.s32.totalorder %s15, 1
    %p106 = por %p104, %p105
    %p108 = scmp.ne.s32.totalorder %s91, %s107
    %p109 = scmp.eq.s32.totalorder %s15, 0
    %p110 = por %p108, %p109
    %p111 = scmp.le.s32.totalorder 1, %s9
    %p112 = scmp.lt.s32.totalorder %s9, 3
    %p113 = pnand %p111, %p112
    %p114 = pneg %p113
    // Predicated region
    $region9: #{cnn_forward.5} parent=5 // pred_check
      _
    $region10: #{cnn_forward.5} parent=5 // pred_check_branch
      %116 = sbr.rel (%p113) target = $region12
    $region11: #{cnn_forward.5} parent=5 // pred_region
      %s117 = ssub.s32 %s9, 1
      // Predicated region
      $region13: #{cnn_forward.5} parent=11 // pred_check
        %p118 = pneg %p56
      $region14: #{cnn_forward.5} parent=11 // pred_check_branch
        %120 = sbr.rel (%p118) target = $region16
      $region15: #{cnn_forward.5} parent=11 // pred_region
        _
      $region16: #{cnn_forward.5} parent=11 // pred_fallthru
        _
      // Predicated region
      $region17: #{cnn_forward.5} parent=11 // pred_check
        %p121 = pneg %p77
      $region18: #{cnn_forward.5} parent=11 // pred_check_branch
        %123 = sbr.rel (%p121) target = $region20
      $region19: #{cnn_forward.5} parent=11 // pred_region
        _
      $region20: #{cnn_forward.5} parent=11 // pred_fallthru
        _
    $region12: #{cnn_forward.5} parent=5 // pred_fallthru
      _
    %p124 = scmp.lt.s32.totalorder %s9, 2
    // Predicated region
    $region21: #{cnn_forward.5} parent=5 // pred_check
      %p125 = pneg %p124
    $region22: #{cnn_forward.5} parent=5 // pred_check_branch
      %127 = sbr.rel (%p125) target = $region24
    $region23: #{cnn_forward.5} parent=5 // pred_region
      // Predicated region
      $region25: #{cnn_forward.5} parent=23 // pred_check
        %p128 = pneg %p29
      $region26: #{cnn_forward.5} parent=23 // pred_check_branch
        %130 = sbr.rel (%p128) target = $region28
      $region27: #{cnn_forward.5} parent=23 // pred_region
        %p131 = scmp.lt.s32.totalorder %s9, 1
        %s132 = scalar_select %p131, %s9, 1
        %s133 = smul.addr %s132, 15
        %s134 = smul.addr %s133, 8
        %s135 = scalar_lea.vmem %s0, %s134
      $region28: #{cnn_forward.5} parent=23 // pred_fallthru
        _
    $region24: #{cnn_forward.5} parent=5 // pred_fallthru
      _
    %p136 = scmp.le.s32.totalorder 1, %s9
    %p137 = scmp.lt.s32.totalorder %s9, 3
    %p138 = pnand %p136, %p137
    %p139 = pneg %p138
    // Predicated region
    $region29: #{cnn_forward.5} parent=5 // pred_check
      _
    $region30: #{cnn_forward.5} parent=5 // pred_check_branch
      %141 = sbr.rel (%p138) target = $region32
    $region31: #{cnn_forward.5} parent=5 // pred_region
      %s142 = ssub.s32 %s9, 1
      %p143 = scmp.lt.s32.totalorder %s14, 1
      %s144 = scalar_select %p143, %s14, 1
      %s145 = smul.addr %s144, 15
      %s146 = smul.addr %s145, 8
      %s147 = scalar_lea.vmem %s0, %s146
      %p148 = pneg %p35
      %p149 = pneg %p32
      %p150 = pneg %p56
      %p151 = pneg %p53
      %p152 = pneg %p77
      %p153 = pneg %p74
      %p154 = pneg %p103
      %p155 = pneg %p100
      %p156 = scmp.lt.s32.totalorder %s14, 1
      %s157 = scalar_select %p156, %s14, 1
      %s158 = smul.addr %s157, 10
      %s159 = smul.addr %s158, 8
      %s160 = scalar_lea.vmem %s3, %s159
      %p161 = scmp.lt.s32.totalorder %s14, 1
      %s162 = scalar_select %p161, %s14, 1
      %s163 = smul.addr %s162, 15
      %s164 = smul.addr %s163, 8
      %s165 = scalar_lea.vmem %s0, %s164
      %p166 = scmp.lt.s32.totalorder %s14, 1
      %s167 = scalar_select %p166, %s14, 1
      %s168 = smul.addr %s167, 10
      %s169 = smul.addr %s168, 8
      %s170 = scalar_lea.vmem %s3, %s169
      %v171 = vld [vmem:[%s165] sm:$0xff]
      %v172 = vld [vmem:[%s165 + $0x8] sm:$0xff]
      %v173 = vld [vmem:[%s165 + $0x10] sm:$0xff]
      %v174 = vld [vmem:[%s165 + $0x18] sm:$0xff]
      %v175 = vld [vmem:[%s165 + $0x20] sm:$0xff]
      %v176 = vld [vmem:[%s165 + $0x28] sm:$0xff]
      %v177 = vld [vmem:[%s165 + $0x30] sm:$0xff]
      %v178 = vld [vmem:[%s165 + $0x38] sm:$0xff]
      %v179 = vld [vmem:[%s165 + $0x40] sm:$0xff]
      %v180 = vld [vmem:[%s165 + $0x48] sm:$0xff]
      %v181 = vld [vmem:[%s165 + $0x50] sm:$0xff]
      %v182 = vld [vmem:[%s165 + $0x58] sm:$0xff]
      %v183 = vld [vmem:[%s165 + $0x60] sm:$0xff]
      %v184 = vld [vmem:[%s165 + $0x68] sm:$0xff]
      %v185 = vld [vmem:[%s165 + $0x70] sm:$0xff]
      %186 = vst [vmem:[#allocation2] sm:$0xff] %v171
      %187 = vst [vmem:[#allocation2 + $0x8] sm:$0xff] %v172
      %188 = vst [vmem:[#allocation2 + $0x10] sm:$0xff] %v173
      %189 = vst [vmem:[#allocation2 + $0x18] sm:$0xff] %v174
      %190 = vst [vmem:[#allocation2 + $0x20] sm:$0xff] %v175
      %191 = vst [vmem:[#allocation2 + $0x28] sm:$0xff] %v176
      %192 = vst [vmem:[#allocation2 + $0x30] sm:$0xff] %v177
      %193 = vst [vmem:[#allocation2 + $0x38] sm:$0xff] %v178
      %194 = vst [vmem:[#allocation2 + $0x40] sm:$0xff] %v179
      %195 = vst [vmem:[#allocation2 + $0x48] sm:$0xff] %v180
      %196 = vst [vmem:[#allocation2 + $0x50] sm:$0xff] %v181
      %197 = vst [vmem:[#allocation2 + $0x58] sm:$0xff] %v182
      %198 = vst [vmem:[#allocation2 + $0x60] sm:$0xff] %v183
      %199 = vst [vmem:[#allocation2 + $0x68] sm:$0xff] %v184
      %200 = vst [vmem:[#allocation2 + $0x70] sm:$0xff] %v185
      %201 = vrot.lane.b32.xlu0 %v171, 127
      %v202 = vpop.permute.xlu0 %201
      %203 = vrot.lane.b32.xlu0 %v176, 127
      %v204 = vpop.permute.xlu0 %203
      %205 = vrot.lane.b32.xlu0 %v181, 127
      %v206 = vpop.permute.xlu0 %205
      %207 = vrot.lane.b32.xlu0 %v172, 127
      %v208 = vpop.permute.xlu0 %207
      %209 = vrot.lane.b32.xlu0 %v177, 127
      %v210 = vpop.permute.xlu0 %209
      %211 = vrot.lane.b32.xlu0 %v182, 127
      %v212 = vpop.permute.xlu0 %211
      %213 = vrot.lane.b32.xlu0 %v173, 127
      %v214 = vpop.permute.xlu0 %213
      %215 = vrot.lane.b32.xlu0 %v178, 127
      %v216 = vpop.permute.xlu0 %215
      %217 = vrot.lane.b32.xlu0 %v183, 127
      %v218 = vpop.permute.xlu0 %217
      %219 = vrot.lane.b32.xlu0 %v174, 127
      %v220 = vpop.permute.xlu0 %219
      %221 = vrot.lane.b32.xlu0 %v179, 127
      %v222 = vpop.permute.xlu0 %221
      %223 = vrot.lane.b32.xlu0 %v184, 127
      %v224 = vpop.permute.xlu0 %223
      %225 = vrot.lane.b32.xlu0 %v175, 127
      %v226 = vpop.permute.xlu0 %225
      %227 = vrot.lane.b32.xlu0 %v180, 127
      %v228 = vpop.permute.xlu0 %227
      %229 = vrot.lane.b32.xlu0 %v185, 127
      %v230 = vpop.permute.xlu0 %229
      %v231 = vlaneseq
      %v232 = vand.u32 %v231, 127
      %vm233 = vcmp.lt.s32.totalorder %v232, 127
      %v234 = vsel %vm233, %v220, %v226
      %v235 = vsel %vm233, %v222, %v228
      %v236 = vsel %vm233, %v224, %v230
      %v237 = vsel %vm233, %v214, %v220
      %v238 = vsel %vm233, %v216, %v222
      %v239 = vsel %vm233, %v218, %v224
      %v240 = vsel %vm233, %v208, %v214
      %v241 = vsel %vm233, %v210, %v216
      %v242 = vsel %vm233, %v212, %v218
      %v243 = vsel %vm233, %v202, %v208
      %v244 = vsel %vm233, %v204, %v210
      %v245 = vsel %vm233, %v206, %v212
      %v246 = vsel %vm233, %v226, %v202
      %v247 = vsel %vm233, %v228, %v204
      %v248 = vsel %vm233, %v230, %v206
      %249 = vst [vmem:[#allocation2 + $0x78] sm:$0xff] %v243
      %250 = vst [vmem:[#allocation2 + $0x80] sm:$0xff] %v240
      %251 = vst [vmem:[#allocation2 + $0x88] sm:$0xff] %v237
      %252 = vst [vmem:[#allocation2 + $0x90] sm:$0xff] %v234
      %253 = vst [vmem:[#allocation2 + $0x98] sm:$0xff] %v246
      %254 = vst [vmem:[#allocation2 + $0xa0] sm:$0xff] %v244
      %255 = vst [vmem:[#allocation2 + $0xa8] sm:$0xff] %v241
      %256 = vst [vmem:[#allocation2 + $0xb0] sm:$0xff] %v238
      %257 = vst [vmem:[#allocation2 + $0xb8] sm:$0xff] %v235
      %258 = vst [vmem:[#allocation2 + $0xc0] sm:$0xff] %v247
      %259 = vst [vmem:[#allocation2 + $0xc8] sm:$0xff] %v245
      %260 = vst [vmem:[#allocation2 + $0xd0] sm:$0xff] %v242
      %261 = vst [vmem:[#allocation2 + $0xd8] sm:$0xff] %v239
      %262 = vst [vmem:[#allocation2 + $0xe0] sm:$0xff] %v236
      %263 = vst [vmem:[#allocation2 + $0xe8] sm:$0xff] %v248
      %264 = vrot.lane.b32.xlu0 %v171, 126
      %v265 = vpop.permute.xlu0 %264
      %266 = vrot.lane.b32.xlu0 %v176, 126
      %v267 = vpop.permute.xlu0 %266
      %268 = vrot.lane.b32.xlu0 %v181, 126
      %v269 = vpop.permute.xlu0 %268
      %270 = vrot.lane.b32.xlu0 %v172, 126
      %v271 = vpop.permute.xlu0 %270
      %272 = vrot.lane.b32.xlu0 %v177, 126
      %v273 = vpop.permute.xlu0 %272
      %274 = vrot.lane.b32.xlu0 %v182, 126
      %v275 = vpop.permute.xlu0 %274
      %276 = vrot.lane.b32.xlu0 %v173, 126
      %v277 = vpop.permute.xlu0 %276
      %278 = vrot.lane.b32.xlu0 %v178, 126
      %v279 = vpop.permute.xlu0 %278
      %280 = vrot.lane.b32.xlu0 %v183, 126
      %v281 = vpop.permute.xlu0 %280
      %282 = vrot.lane.b32.xlu0 %v174, 126
      %v283 = vpop.permute.xlu0 %282
      %284 = vrot.lane.b32.xlu0 %v179, 126
      %v285 = vpop.permute.xlu0 %284
      %286 = vrot.lane.b32.xlu0 %v184, 126
      %v287 = vpop.permute.xlu0 %286
      %288 = vrot.lane.b32.xlu0 %v175, 126
      %v289 = vpop.permute.xlu0 %288
      %290 = vrot.lane.b32.xlu0 %v180, 126
      %v291 = vpop.permute.xlu0 %290
      %292 = vrot.lane.b32.xlu0 %v185, 126
      %v293 = vpop.permute.xlu0 %292
      %vm294 = vcmp.lt.s32.totalorder %v232, 126
      %v295 = vsel %vm294, %v283, %v289
      %v296 = vsel %vm294, %v285, %v291
      %v297 = vsel %vm294, %v287, %v293
      %v298 = vsel %vm294, %v277, %v283
      %v299 = vsel %vm294, %v279, %v285
      %v300 = vsel %vm294, %v281, %v287
      %v301 = vsel %vm294, %v271, %v277
      %v302 = vsel %vm294, %v273, %v279
      %v303 = vsel %vm294, %v275, %v281
      %v304 = vsel %vm294, %v265, %v271
      %v305 = vsel %vm294, %v267, %v273
      %v306 = vsel %vm294, %v269, %v275
      %v307 = vsel %vm294, %v289, %v265
      %v308 = vsel %vm294, %v291, %v267
      %v309 = vsel %vm294, %v293, %v269
      %310 = vst [vmem:[#allocation2 + $0xf0] sm:$0xff] %v304
      %311 = vst [vmem:[#allocation2 + $0xf8] sm:$0xff] %v301
      %312 = vst [vmem:[#allocation2 + $0x100] sm:$0xff] %v298
      %313 = vst [vmem:[#allocation2 + $0x108] sm:$0xff] %v295
      %314 = vst [vmem:[#allocation2 + $0x110] sm:$0xff] %v307
      %315 = vst [vmem:[#allocation2 + $0x118] sm:$0xff] %v305
      %316 = vst [vmem:[#allocation2 + $0x120] sm:$0xff] %v302
      %317 = vst [vmem:[#allocation2 + $0x128] sm:$0xff] %v299
      %318 = vst [vmem:[#allocation2 + $0x130] sm:$0xff] %v296
      %319 = vst [vmem:[#allocation2 + $0x138] sm:$0xff] %v308
      %320 = vst [vmem:[#allocation2 + $0x140] sm:$0xff] %v306
      %321 = vst [vmem:[#allocation2 + $0x148] sm:$0xff] %v303
      %322 = vst [vmem:[#allocation2 + $0x150] sm:$0xff] %v300
      %323 = vst [vmem:[#allocation2 + $0x158] sm:$0xff] %v297
      %324 = vst [vmem:[#allocation2 + $0x160] sm:$0xff] %v309
      %325 = vrot.lane.b32.xlu0 %v171, 104
      %v326 = vpop.permute.xlu0 %325
      %327 = vrot.lane.b32.xlu0 %v176, 104
      %v328 = vpop.permute.xlu0 %327
      %329 = vrot.lane.b32.xlu0 %v181, 104
      %v330 = vpop.permute.xlu0 %329
      %331 = vrot.lane.b32.xlu0 %v172, 104
      %v332 = vpop.permute.xlu0 %331
      %333 = vrot.lane.b32.xlu0 %v177, 104
      %v334 = vpop.permute.xlu0 %333
      %335 = vrot.lane.b32.xlu0 %v182, 104
      %v336 = vpop.permute.xlu0 %335
      %337 = vrot.lane.b32.xlu0 %v173, 104
      %v338 = vpop.permute.xlu0 %337
      %339 = vrot.lane.b32.xlu0 %v178, 104
      %v340 = vpop.permute.xlu0 %339
      %341 = vrot.lane.b32.xlu0 %v183, 104
      %v342 = vpop.permute.xlu0 %341
      %343 = vrot.lane.b32.xlu0 %v174, 104
      %v344 = vpop.permute.xlu0 %343
      %345 = vrot.lane.b32.xlu0 %v179, 104
      %v346 = vpop.permute.xlu0 %345
      %347 = vrot.lane.b32.xlu0 %v184, 104
      %v348 = vpop.permute.xlu0 %347
      %349 = vrot.lane.b32.xlu0 %v175, 104
      %v350 = vpop.permute.xlu0 %349
      %351 = vrot.lane.b32.xlu0 %v180, 104
      %v352 = vpop.permute.xlu0 %351
      %353 = vrot.lane.b32.xlu0 %v185, 104
      %v354 = vpop.permute.xlu0 %353
      %vm355 = vcmp.lt.s32.totalorder %v232, 104
      %v356 = vsel %vm355, %v344, %v350
      %v357 = vsel %vm355, %v346, %v352
      %v358 = vsel %vm355, %v348, %v354
      %v359 = vsel %vm355, %v338, %v344
      %v360 = vsel %vm355, %v340, %v346
      %v361 = vsel %vm355, %v342, %v348
      %v362 = vsel %vm355, %v332, %v338
      %v363 = vsel %vm355, %v334, %v340
      %v364 = vsel %vm355, %v336, %v342
      %v365 = vsel %vm355, %v326, %v332
      %v366 = vsel %vm355, %v328, %v334
      %v367 = vsel %vm355, %v330, %v336
      %v368 = vsel %vm355, %v350, %v326
      %v369 = vsel %vm355, %v352, %v328
      %v370 = vsel %vm355, %v354, %v330
      %371 = vst [vmem:[#allocation2 + $0x168] sm:$0xff] %v365
      %372 = vst [vmem:[#allocation2 + $0x170] sm:$0xff] %v362
      %373 = vst [vmem:[#allocation2 + $0x178] sm:$0xff] %v359
      %374 = vst [vmem:[#allocation2 + $0x180] sm:$0xff] %v356
      %375 = vst [vmem:[#allocation2 + $0x188] sm:$0xff] %v368
      %376 = vst [vmem:[#allocation2 + $0x190] sm:$0xff] %v366
      %377 = vst [vmem:[#allocation2 + $0x198] sm:$0xff] %v363
      %378 = vst [vmem:[#allocation2 + $0x1a0] sm:$0xff] %v360
      %379 = vst [vmem:[#allocation2 + $0x1a8] sm:$0xff] %v357
      %380 = vst [vmem:[#allocation2 + $0x1b0] sm:$0xff] %v369
      %381 = vst [vmem:[#allocation2 + $0x1b8] sm:$0xff] %v367
      %382 = vst [vmem:[#allocation2 + $0x1c0] sm:$0xff] %v364
      %383 = vst [vmem:[#allocation2 + $0x1c8] sm:$0xff] %v361
      %384 = vst [vmem:[#allocation2 + $0x1d0] sm:$0xff] %v358
      %385 = vst [vmem:[#allocation2 + $0x1d8] sm:$0xff] %v370
      %386 = vrot.lane.b32.xlu0 %v171, 103
      %v387 = vpop.permute.xlu0 %386
      %388 = vrot.lane.b32.xlu0 %v176, 103
      %v389 = vpop.permute.xlu0 %388
      %390 = vrot.lane.b32.xlu0 %v181, 103
      %v391 = vpop.permute.xlu0 %390
      %392 = vrot.lane.b32.xlu0 %v172, 103
      %v393 = vpop.permute.xlu0 %392
      %394 = vrot.lane.b32.xlu0 %v177, 103
      %v395 = vpop.permute.xlu0 %394
      %396 = vrot.lane.b32.xlu0 %v182, 103
      %v397 = vpop.permute.xlu0 %396
      %398 = vrot.lane.b32.xlu0 %v173, 103
      %v399 = vpop.permute.xlu0 %398
      %400 = vrot.lane.b32.xlu0 %v178, 103
      %v401 = vpop.permute.xlu0 %400
      %402 = vrot.lane.b32.xlu0 %v183, 103
      %v403 = vpop.permute.xlu0 %402
      %404 = vrot.lane.b32.xlu0 %v174, 103
      %v405 = vpop.permute.xlu0 %404
      %406 = vrot.lane.b32.xlu0 %v179, 103
      %v407 = vpop.permute.xlu0 %406
      %408 = vrot.lane.b32.xlu0 %v184, 103
      %v409 = vpop.permute.xlu0 %408
      %410 = vrot.lane.b32.xlu0 %v175, 103
      %v411 = vpop.permute.xlu0 %410
      %412 = vrot.lane.b32.xlu0 %v180, 103
      %v413 = vpop.permute.xlu0 %412
      %414 = vrot.lane.b32.xlu0 %v185, 103
      %v415 = vpop.permute.xlu0 %414
      %vm416 = vcmp.lt.s32.totalorder %v232, 103
      %v417 = vsel %vm416, %v405, %v411
      %v418 = vsel %vm416, %v407, %v413
      %v419 = vsel %vm416, %v409, %v415
      %v420 = vsel %vm416, %v399, %v405
      %v421 = vsel %vm416, %v401, %v407
      %v422 = vsel %vm416, %v403, %v409
      %v423 = vsel %vm416, %v393, %v399
      %v424 = vsel %vm416, %v395, %v401
      %v425 = vsel %vm416, %v397, %v403
      %v426 = vsel %vm416, %v387, %v393
      %v427 = vsel %vm416, %v389, %v395
      %v428 = vsel %vm416, %v391, %v397
      %v429 = vsel %vm416, %v411, %v387
      %v430 = vsel %vm416, %v413, %v389
      %v431 = vsel %vm416, %v415, %v391
      %432 = vst [vmem:[#allocation2 + $0x1e0] sm:$0xff] %v426
      %433 = vst [vmem:[#allocation2 + $0x1e8] sm:$0xff] %v423
      %434 = vst [vmem:[#allocation2 + $0x1f0] sm:$0xff] %v420
      %435 = vst [vmem:[#allocation2 + $0x1f8] sm:$0xff] %v417
      %436 = vst [vmem:[#allocation2 + $0x200] sm:$0xff] %v429
      %437 = vst [vmem:[#allocation2 + $0x208] sm:$0xff] %v427
      %438 = vst [vmem:[#allocation2 + $0x210] sm:$0xff] %v424
      %439 = vst [vmem:[#allocation2 + $0x218] sm:$0xff] %v421
      %440 = vst [vmem:[#allocation2 + $0x220] sm:$0xff] %v418
      %441 = vst [vmem:[#allocation2 + $0x228] sm:$0xff] %v430
      %442 = vst [vmem:[#allocation2 + $0x230] sm:$0xff] %v428
      %443 = vst [vmem:[#allocation2 + $0x238] sm:$0xff] %v425
      %444 = vst [vmem:[#allocation2 + $0x240] sm:$0xff] %v422
      %445 = vst [vmem:[#allocation2 + $0x248] sm:$0xff] %v419
      %446 = vst [vmem:[#allocation2 + $0x250] sm:$0xff] %v431
      %447 = vrot.lane.b32.xlu0 %v171, 102
      %v448 = vpop.permute.xlu0 %447
      %449 = vrot.lane.b32.xlu0 %v176, 102
      %v450 = vpop.permute.xlu0 %449
      %451 = vrot.lane.b32.xlu0 %v181, 102
      %v452 = vpop.permute.xlu0 %451
      %453 = vrot.lane.b32.xlu0 %v172, 102
      %v454 = vpop.permute.xlu0 %453
      %455 = vrot.lane.b32.xlu0 %v177, 102
      %v456 = vpop.permute.xlu0 %455
      %457 = vrot.lane.b32.xlu0 %v182, 102
      %v458 = vpop.permute.xlu0 %457
      %459 = vrot.lane.b32.xlu0 %v173, 102
      %v460 = vpop.permute.xlu0 %459
      %461 = vrot.lane.b32.xlu0 %v178, 102
      %v462 = vpop.permute.xlu0 %461
      %463 = vrot.lane.b32.xlu0 %v183, 102
      %v464 = vpop.permute.xlu0 %463
      %465 = vrot.lane.b32.xlu0 %v174, 102
      %v466 = vpop.permute.xlu0 %465
      %467 = vrot.lane.b32.xlu0 %v179, 102
      %v468 = vpop.permute.xlu0 %467
      %469 = vrot.lane.b32.xlu0 %v184, 102
      %v470 = vpop.permute.xlu0 %469
      %471 = vrot.lane.b32.xlu0 %v175, 102
      %v472 = vpop.permute.xlu0 %471
      %473 = vrot.lane.b32.xlu0 %v180, 102
      %v474 = vpop.permute.xlu0 %473
      %475 = vrot.lane.b32.xlu0 %v185, 102
      %v476 = vpop.permute.xlu0 %475
      %vm477 = vcmp.lt.s32.totalorder %v232, 102
      %v478 = vsel %vm477, %v466, %v472
      %v479 = vsel %vm477, %v468, %v474
      %v480 = vsel %vm477, %v470, %v476
      %v481 = vsel %vm477, %v460, %v466
      %v482 = vsel %vm477, %v462, %v468
      %v483 = vsel %vm477, %v464, %v470
      %v484 = vsel %vm477, %v454, %v460
      %v485 = vsel %vm477, %v456, %v462
      %v486 = vsel %vm477, %v458, %v464
      %v487 = vsel %vm477, %v448, %v454
      %v488 = vsel %vm477, %v450, %v456
      %v489 = vsel %vm477, %v452, %v458
      %v490 = vsel %vm477, %v472, %v448
      %v491 = vsel %vm477, %v474, %v450
      %v492 = vsel %vm477, %v476, %v452
      %493 = vst [vmem:[#allocation2 + $0x258] sm:$0xff] %v487
      %494 = vst [vmem:[#allocation2 + $0x260] sm:$0xff] %v484
      %495 = vst [vmem:[#allocation2 + $0x268] sm:$0xff] %v481
      %496 = vst [vmem:[#allocation2 + $0x270] sm:$0xff] %v478
      %497 = vst [vmem:[#allocation2 + $0x278] sm:$0xff] %v490
      %498 = vst [vmem:[#allocation2 + $0x280] sm:$0xff] %v488
      %499 = vst [vmem:[#allocation2 + $0x288] sm:$0xff] %v485
      %500 = vst [vmem:[#allocation2 + $0x290] sm:$0xff] %v482
      %501 = vst [vmem:[#allocation2 + $0x298] sm:$0xff] %v479
      %502 = vst [vmem:[#allocation2 + $0x2a0] sm:$0xff] %v491
      %503 = vst [vmem:[#allocation2 + $0x2a8] sm:$0xff] %v489
      %504 = vst [vmem:[#allocation2 + $0x2b0] sm:$0xff] %v486
      %505 = vst [vmem:[#allocation2 + $0x2b8] sm:$0xff] %v483
      %506 = vst [vmem:[#allocation2 + $0x2c0] sm:$0xff] %v480
      %507 = vst [vmem:[#allocation2 + $0x2c8] sm:$0xff] %v492
      %508 = vrot.lane.b32.xlu0 %v171, 80
      %v509 = vpop.permute.xlu0 %508
      %510 = vrot.lane.b32.xlu0 %v176, 80
      %v511 = vpop.permute.xlu0 %510
      %512 = vrot.lane.b32.xlu0 %v181, 80
      %v513 = vpop.permute.xlu0 %512
      %514 = vrot.lane.b32.xlu0 %v172, 80
      %v515 = vpop.permute.xlu0 %514
      %516 = vrot.lane.b32.xlu0 %v177, 80
      %v517 = vpop.permute.xlu0 %516
      %518 = vrot.lane.b32.xlu0 %v182, 80
      %v519 = vpop.permute.xlu0 %518
      %520 = vrot.lane.b32.xlu0 %v173, 80
      %v521 = vpop.permute.xlu0 %520
      %522 = vrot.lane.b32.xlu0 %v178, 80
      %v523 = vpop.permute.xlu0 %522
      %524 = vrot.lane.b32.xlu0 %v183, 80
      %v525 = vpop.permute.xlu0 %524
      %526 = vrot.lane.b32.xlu0 %v174, 80
      %v527 = vpop.permute.xlu0 %526
      %528 = vrot.lane.b32.xlu0 %v179, 80
      %v529 = vpop.permute.xlu0 %528
      %530 = vrot.lane.b32.xlu0 %v184, 80
      %v531 = vpop.permute.xlu0 %530
      %532 = vrot.lane.b32.xlu0 %v175, 80
      %v533 = vpop.permute.xlu0 %532
      %534 = vrot.lane.b32.xlu0 %v180, 80
      %v535 = vpop.permute.xlu0 %534
      %536 = vrot.lane.b32.xlu0 %v185, 80
      %v537 = vpop.permute.xlu0 %536
      %vm538 = vcmp.lt.s32.totalorder %v232, 80
      %v539 = vsel %vm538, %v527, %v533
      %v540 = vsel %vm538, %v529, %v535
      %v541 = vsel %vm538, %v531, %v537
      %v542 = vsel %vm538, %v521, %v527
      %v543 = vsel %vm538, %v523, %v529
      %v544 = vsel %vm538, %v525, %v531
      %v545 = vsel %vm538, %v515, %v521
      %v546 = vsel %vm538, %v517, %v523
      %v547 = vsel %vm538, %v519, %v525
      %v548 = vsel %vm538, %v509, %v515
      %v549 = vsel %vm538, %v511, %v517
      %v550 = vsel %vm538, %v513, %v519
      %v551 = vsel %vm538, %v533, %v509
      %v552 = vsel %vm538, %v535, %v511
      %v553 = vsel %vm538, %v537, %v513
      %554 = vst [vmem:[#allocation2 + $0x2d0] sm:$0xff] %v548
      %555 = vst [vmem:[#allocation2 + $0x2d8] sm:$0xff] %v545
      %556 = vst [vmem:[#allocation2 + $0x2e0] sm:$0xff] %v542
      %557 = vst [vmem:[#allocation2 + $0x2e8] sm:$0xff] %v539
      %558 = vst [vmem:[#allocation2 + $0x2f0] sm:$0xff] %v551
      %559 = vst [vmem:[#allocation2 + $0x2f8] sm:$0xff] %v549
      %560 = vst [vmem:[#allocation2 + $0x300] sm:$0xff] %v546
      %561 = vst [vmem:[#allocation2 + $0x308] sm:$0xff] %v543
      %562 = vst [vmem:[#allocation2 + $0x310] sm:$0xff] %v540
      %563 = vst [vmem:[#allocation2 + $0x318] sm:$0xff] %v552
      %564 = vst [vmem:[#allocation2 + $0x320] sm:$0xff] %v550
      %565 = vst [vmem:[#allocation2 + $0x328] sm:$0xff] %v547
      %566 = vst [vmem:[#allocation2 + $0x330] sm:$0xff] %v544
      %567 = vst [vmem:[#allocation2 + $0x338] sm:$0xff] %v541
      %568 = vst [vmem:[#allocation2 + $0x340] sm:$0xff] %v553
      %569 = vrot.lane.b32.xlu0 %v171, 79
      %v570 = vpop.permute.xlu0 %569
      %571 = vrot.lane.b32.xlu0 %v176, 79
      %v572 = vpop.permute.xlu0 %571
      %573 = vrot.lane.b32.xlu0 %v181, 79
      %v574 = vpop.permute.xlu0 %573
      %575 = vrot.lane.b32.xlu0 %v172, 79
      %v576 = vpop.permute.xlu0 %575
      %577 = vrot.lane.b32.xlu0 %v177, 79
      %v578 = vpop.permute.xlu0 %577
      %579 = vrot.lane.b32.xlu0 %v182, 79
      %v580 = vpop.permute.xlu0 %579
      %581 = vrot.lane.b32.xlu0 %v173, 79
      %v582 = vpop.permute.xlu0 %581
      %583 = vrot.lane.b32.xlu0 %v178, 79
      %v584 = vpop.permute.xlu0 %583
      %585 = vrot.lane.b32.xlu0 %v183, 79
      %v586 = vpop.permute.xlu0 %585
      %587 = vrot.lane.b32.xlu0 %v174, 79
      %v588 = vpop.permute.xlu0 %587
      %589 = vrot.lane.b32.xlu0 %v179, 79
      %v590 = vpop.permute.xlu0 %589
      %591 = vrot.lane.b32.xlu0 %v184, 79
      %v592 = vpop.permute.xlu0 %591
      %593 = vrot.lane.b32.xlu0 %v175, 79
      %v594 = vpop.permute.xlu0 %593
      %595 = vrot.lane.b32.xlu0 %v180, 79
      %v596 = vpop.permute.xlu0 %595
      %597 = vrot.lane.b32.xlu0 %v185, 79
      %v598 = vpop.permute.xlu0 %597
      %vm599 = vcmp.lt.s32.totalorder %v232, 79
      %v600 = vsel %vm599, %v588, %v594
      %v601 = vsel %vm599, %v590, %v596
      %v602 = vsel %vm599, %v592, %v598
      %v603 = vsel %vm599, %v582, %v588
      %v604 = vsel %vm599, %v584, %v590
      %v605 = vsel %vm599, %v586, %v592
      %v606 = vsel %vm599, %v576, %v582
      %v607 = vsel %vm599, %v578, %v584
      %v608 = vsel %vm599, %v580, %v586
      %v609 = vsel %vm599, %v570, %v576
      %v610 = vsel %vm599, %v572, %v578
      %v611 = vsel %vm599, %v574, %v580
      %v612 = vsel %vm599, %v594, %v570
      %v613 = vsel %vm599, %v596, %v572
      %v614 = vsel %vm599, %v598, %v574
      %615 = vst [vmem:[#allocation2 + $0x348] sm:$0xff] %v609
      %616 = vst [vmem:[#allocation2 + $0x350] sm:$0xff] %v606
      %617 = vst [vmem:[#allocation2 + $0x358] sm:$0xff] %v603
      %618 = vst [vmem:[#allocation2 + $0x360] sm:$0xff] %v600
      %619 = vst [vmem:[#allocation2 + $0x368] sm:$0xff] %v612
      %620 = vst [vmem:[#allocation2 + $0x370] sm:$0xff] %v610
      %621 = vst [vmem:[#allocation2 + $0x378] sm:$0xff] %v607
      %622 = vst [vmem:[#allocation2 + $0x380] sm:$0xff] %v604
      %623 = vst [vmem:[#allocation2 + $0x388] sm:$0xff] %v601
      %624 = vst [vmem:[#allocation2 + $0x390] sm:$0xff] %v613
      %625 = vst [vmem:[#allocation2 + $0x398] sm:$0xff] %v611
      %626 = vst [vmem:[#allocation2 + $0x3a0] sm:$0xff] %v608
      %627 = vst [vmem:[#allocation2 + $0x3a8] sm:$0xff] %v605
      %628 = vst [vmem:[#allocation2 + $0x3b0] sm:$0xff] %v602
      %629 = vst [vmem:[#allocation2 + $0x3b8] sm:$0xff] %v614
      %630 = vrot.lane.b32.xlu0 %v171, 78
      %v631 = vpop.permute.xlu0 %630
      %632 = vrot.lane.b32.xlu0 %v176, 78
      %v633 = vpop.permute.xlu0 %632
      %634 = vrot.lane.b32.xlu0 %v181, 78
      %v635 = vpop.permute.xlu0 %634
      %636 = vrot.lane.b32.xlu0 %v172, 78
      %v637 = vpop.permute.xlu0 %636
      %638 = vrot.lane.b32.xlu0 %v177, 78
      %v639 = vpop.permute.xlu0 %638
      %640 = vrot.lane.b32.xlu0 %v182, 78
      %v641 = vpop.permute.xlu0 %640
      %642 = vrot.lane.b32.xlu0 %v173, 78
      %v643 = vpop.permute.xlu0 %642
      %644 = vrot.lane.b32.xlu0 %v178, 78
      %v645 = vpop.permute.xlu0 %644
      %646 = vrot.lane.b32.xlu0 %v183, 78
      %v647 = vpop.permute.xlu0 %646
      %648 = vrot.lane.b32.xlu0 %v174, 78
      %v649 = vpop.permute.xlu0 %648
      %650 = vrot.lane.b32.xlu0 %v179, 78
      %v651 = vpop.permute.xlu0 %650
      %652 = vrot.lane.b32.xlu0 %v184, 78
      %v653 = vpop.permute.xlu0 %652
      %654 = vrot.lane.b32.xlu0 %v175, 78
      %v655 = vpop.permute.xlu0 %654
      %656 = vrot.lane.b32.xlu0 %v180, 78
      %v657 = vpop.permute.xlu0 %656
      %658 = vrot.lane.b32.xlu0 %v185, 78
      %v659 = vpop.permute.xlu0 %658
      %vm660 = vcmp.lt.s32.totalorder %v232, 78
      %v661 = vsel %vm660, %v649, %v655
      %v662 = vsel %vm660, %v651, %v657
      %v663 = vsel %vm660, %v653, %v659
      %v664 = vsel %vm660, %v643, %v649
      %v665 = vsel %vm660, %v645, %v651
      %v666 = vsel %vm660, %v647, %v653
      %v667 = vsel %vm660, %v637, %v643
      %v668 = vsel %vm660, %v639, %v645
      %v669 = vsel %vm660, %v641, %v647
      %v670 = vsel %vm660, %v631, %v637
      %v671 = vsel %vm660, %v633, %v639
      %v672 = vsel %vm660, %v635, %v641
      %v673 = vsel %vm660, %v655, %v631
      %v674 = vsel %vm660, %v657, %v633
      %v675 = vsel %vm660, %v659, %v635
      %676 = vst [vmem:[#allocation2 + $0x3c0] sm:$0xff] %v670
      %677 = vst [vmem:[#allocation2 + $0x3c8] sm:$0xff] %v667
      %678 = vst [vmem:[#allocation2 + $0x3d0] sm:$0xff] %v664
      %679 = vst [vmem:[#allocation2 + $0x3d8] sm:$0xff] %v661
      %680 = vst [vmem:[#allocation2 + $0x3e0] sm:$0xff] %v673
      %681 = vst [vmem:[#allocation2 + $0x3e8] sm:$0xff] %v671
      %682 = vst [vmem:[#allocation2 + $0x3f0] sm:$0xff] %v668
      %683 = vst [vmem:[#allocation2 + $0x3f8] sm:$0xff] %v665
      %684 = vst [vmem:[#allocation2 + $0x400] sm:$0xff] %v662
      %685 = vst [vmem:[#allocation2 + $0x408] sm:$0xff] %v674
      %686 = vst [vmem:[#allocation2 + $0x410] sm:$0xff] %v672
      %687 = vst [vmem:[#allocation2 + $0x418] sm:$0xff] %v669
      %688 = vst [vmem:[#allocation2 + $0x420] sm:$0xff] %v666
      %689 = vst [vmem:[#allocation2 + $0x428] sm:$0xff] %v663
      %690 = vst [vmem:[#allocation2 + $0x430] sm:$0xff] %v675
      %v691 = vld [vmem:[%s1] sm:$0xff]
      %v692 = vld [vmem:[%s1 + $0x8] sm:$0xff]
      %v693 = vld [vmem:[%s1 + $0x10] sm:$0xff]
      %v694 = vld [vmem:[%s1 + $0x18] sm:$0xff]
      %v695 = vld [vmem:[%s1 + $0x20] sm:$0xff]
      %v696 = vld [vmem:[%s1 + $0x28] sm:$0xff]
      %v697 = vld [vmem:[%s1 + $0x30] sm:$0xff]
      %v698 = vld [vmem:[%s1 + $0x38] sm:$0xff]
      %v699 = vld [vmem:[%s1 + $0x40] sm:$0xff]
      %v700 = vld [vmem:[%s1 + $0x48] sm:$0xff]
      %v701 = vld [vmem:[%s1 + $0x50] sm:$0xff]
      %v702 = vld [vmem:[%s1 + $0x58] sm:$0xff]
      %v703 = vld [vmem:[%s1 + $0x60] sm:$0xff]
      %v704 = vld [vmem:[%s1 + $0x68] sm:$0xff]
      %v705 = vld [vmem:[%s1 + $0x70] sm:$0xff]
      %v706 = vld [vmem:[%s1 + $0x78] sm:$0xff]
      %v707 = vld [vmem:[#allocation2] sm:$0xff]
      %v708 = vld [vmem:[#allocation2 + $0x8] sm:$0xff]
      %v709 = vld [vmem:[#allocation2 + $0x10] sm:$0xff]
      %v710 = vld [vmem:[#allocation2 + $0x18] sm:$0xff]
      %v711 = vld [vmem:[#allocation2 + $0x20] sm:$0xff]
      %v712 = vld [vmem:[#allocation2 + $0x28] sm:$0xff]
      %v713 = vld [vmem:[#allocation2 + $0x30] sm:$0xff]
      %v714 = vld [vmem:[#allocation2 + $0x38] sm:$0xff]
      %v715 = vld [vmem:[#allocation2 + $0x40] sm:$0xff]
      %v716 = vld [vmem:[#allocation2 + $0x48] sm:$0xff]
      %v717 = vld [vmem:[#allocation2 + $0x50] sm:$0xff]
      %v718 = vld [vmem:[#allocation2 + $0x58] sm:$0xff]
      %v719 = vld [vmem:[#allocation2 + $0x60] sm:$0xff]
      %v720 = vld [vmem:[#allocation2 + $0x68] sm:$0xff]
      %v721 = vld [vmem:[#allocation2 + $0x70] sm:$0xff]
      %v722 = vld [vmem:[#allocation2 + $0x78] sm:$0xff]
      %v723 = vld [vmem:[#allocation2 + $0x80] sm:$0xff]
      %v724 = vld [vmem:[#allocation2 + $0x88] sm:$0xff]
      %v725 = vld [vmem:[#allocation2 + $0x90] sm:$0xff]
      %v726 = vld [vmem:[#allocation2 + $0x98] sm:$0xff]
      %v727 = vld [vmem:[#allocation2 + $0xa0] sm:$0xff]
      %v728 = vld [vmem:[#allocation2 + $0xa8] sm:$0xff]
      %v729 = vld [vmem:[#allocation2 + $0xb0] sm:$0xff]
      %v730 = vld [vmem:[#allocation2 + $0xb8] sm:$0xff]
      %v731 = vld [vmem:[#allocation2 + $0xc0] sm:$0xff]
      %v732 = vld [vmem:[#allocation2 + $0xc8] sm:$0xff]
      %v733 = vld [vmem:[#allocation2 + $0xd0] sm:$0xff]
      %v734 = vld [vmem:[#allocation2 + $0xd8] sm:$0xff]
      %v735 = vld [vmem:[#allocation2 + $0xe0] sm:$0xff]
      %v736 = vld [vmem:[#allocation2 + $0xe8] sm:$0xff]
      %v737 = vld [vmem:[#allocation2 + $0xf0] sm:$0xff]
      %v738 = vld [vmem:[#allocation2 + $0xf8] sm:$0xff]
      %v739 = vld [vmem:[#allocation2 + $0x100] sm:$0xff]
      %v740 = vld [vmem:[#allocation2 + $0x108] sm:$0xff]
      %v741 = vld [vmem:[#allocation2 + $0x110] sm:$0xff]
      %v742 = vld [vmem:[#allocation2 + $0x118] sm:$0xff]
      %v743 = vld [vmem:[#allocation2 + $0x120] sm:$0xff]
      %v744 = vld [vmem:[#allocation2 + $0x128] sm:$0xff]
      %v745 = vld [vmem:[#allocation2 + $0x130] sm:$0xff]
      %v746 = vld [vmem:[#allocation2 + $0x138] sm:$0xff]
      %v747 = vld [vmem:[#allocation2 + $0x140] sm:$0xff]
      %v748 = vld [vmem:[#allocation2 + $0x148] sm:$0xff]
      %v749 = vld [vmem:[#allocation2 + $0x150] sm:$0xff]
      %v750 = vld [vmem:[#allocation2 + $0x158] sm:$0xff]
      %v751 = vld [vmem:[#allocation2 + $0x160] sm:$0xff]
      %v752 = vld [vmem:[#allocation2 + $0x168] sm:$0xff]
      %v753 = vld [vmem:[#allocation2 + $0x170] sm:$0xff]
      %v754 = vld [vmem:[#allocation2 + $0x178] sm:$0xff]
      %v755 = vld [vmem:[#allocation2 + $0x180] sm:$0xff]
      %v756 = vld [vmem:[#allocation2 + $0x188] sm:$0xff]
      %v757 = vld [vmem:[#allocation2 + $0x190] sm:$0xff]
      %v758 = vld [vmem:[#allocation2 + $0x198] sm:$0xff]
      %v759 = vld [vmem:[#allocation2 + $0x1a0] sm:$0xff]
      %v760 = vld [vmem:[#allocation2 + $0x1a8] sm:$0xff]
      %v761 = vld [vmem:[#allocation2 + $0x1b0] sm:$0xff]
      %v762 = vld [vmem:[#allocation2 + $0x1b8] sm:$0xff]
      %v763 = vld [vmem:[#allocation2 + $0x1c0] sm:$0xff]
      %v764 = vld [vmem:[#allocation2 + $0x1c8] sm:$0xff]
      %v765 = vld [vmem:[#allocation2 + $0x1d0] sm:$0xff]
      %v766 = vld [vmem:[#allocation2 + $0x1d8] sm:$0xff]
      %v767 = vld [vmem:[#allocation2 + $0x1e0] sm:$0xff]
      %v768 = vld [vmem:[#allocation2 + $0x1e8] sm:$0xff]
      %v769 = vld [vmem:[#allocation2 + $0x1f0] sm:$0xff]
      %v770 = vld [vmem:[#allocation2 + $0x1f8] sm:$0xff]
      %v771 = vld [vmem:[#allocation2 + $0x200] sm:$0xff]
      %v772 = vld [vmem:[#allocation2 + $0x208] sm:$0xff]
      %v773 = vld [vmem:[#allocation2 + $0x210] sm:$0xff]
      %v774 = vld [vmem:[#allocation2 + $0x218] sm:$0xff]
      %v775 = vld [vmem:[#allocation2 + $0x220] sm:$0xff]
      %v776 = vld [vmem:[#allocation2 + $0x228] sm:$0xff]
      %v777 = vld [vmem:[#allocation2 + $0x230] sm:$0xff]
      %v778 = vld [vmem:[#allocation2 + $0x238] sm:$0xff]
      %v779 = vld [vmem:[#allocation2 + $0x240] sm:$0xff]
      %v780 = vld [vmem:[#allocation2 + $0x248] sm:$0xff]
      %v781 = vld [vmem:[#allocation2 + $0x250] sm:$0xff]
      %v782 = vld [vmem:[#allocation2 + $0x258] sm:$0xff]
      %v783 = vld [vmem:[#allocation2 + $0x260] sm:$0xff]
      %v784 = vld [vmem:[#allocation2 + $0x268] sm:$0xff]
      %v785 = vld [vmem:[#allocation2 + $0x270] sm:$0xff]
      %v786 = vld [vmem:[#allocation2 + $0x278] sm:$0xff]
      %v787 = vld [vmem:[#allocation2 + $0x280] sm:$0xff]
      %v788 = vld [vmem:[#allocation2 + $0x288] sm:$0xff]
      %v789 = vld [vmem:[#allocation2 + $0x290] sm:$0xff]
      %v790 = vld [vmem:[#allocation2 + $0x298] sm:$0xff]
      %v791 = vld [vmem:[#allocation2 + $0x2a0] sm:$0xff]
      %v792 = vld [vmem:[#allocation2 + $0x2a8] sm:$0xff]
      %v793 = vld [vmem:[#allocation2 + $0x2b0] sm:$0xff]
      %v794 = vld [vmem:[#allocation2 + $0x2b8] sm:$0xff]
      %v795 = vld [vmem:[#allocation2 + $0x2c0] sm:$0xff]
      %v796 = vld [vmem:[#allocation2 + $0x2c8] sm:$0xff]
      %v797 = vld [vmem:[#allocation2 + $0x2d0] sm:$0xff]
      %v798 = vld [vmem:[#allocation2 + $0x2d8] sm:$0xff]
      %v799 = vld [vmem:[#allocation2 + $0x2e0] sm:$0xff]
      %v800 = vld [vmem:[#allocation2 + $0x2e8] sm:$0xff]
      %v801 = vld [vmem:[#allocation2 + $0x2f0] sm:$0xff]
      %v802 = vld [vmem:[#allocation2 + $0x2f8] sm:$0xff]
      %v803 = vld [vmem:[#allocation2 + $0x300] sm:$0xff]
      %v804 = vld [vmem:[#allocation2 + $0x308] sm:$0xff]
      %v805 = vld [vmem:[#allocation2 + $0x310] sm:$0xff]
      %v806 = vld [vmem:[#allocation2 + $0x318] sm:$0xff]
      %v807 = vld [vmem:[#allocation2 + $0x320] sm:$0xff]
      %v808 = vld [vmem:[#allocation2 + $0x328] sm:$0xff]
      %v809 = vld [vmem:[#allocation2 + $0x330] sm:$0xff]
      %v810 = vld [vmem:[#allocation2 + $0x338] sm:$0xff]
      %v811 = vld [vmem:[#allocation2 + $0x340] sm:$0xff]
      %v812 = vld [vmem:[#allocation2 + $0x348] sm:$0xff]
      %v813 = vld [vmem:[#allocation2 + $0x350] sm:$0xff]
      %v814 = vld [vmem:[#allocation2 + $0x358] sm:$0xff]
      %v815 = vld [vmem:[#allocation2 + $0x360] sm:$0xff]
      %v816 = vld [vmem:[#allocation2 + $0x368] sm:$0xff]
      %v817 = vld [vmem:[#allocation2 + $0x370] sm:$0xff]
      %v818 = vld [vmem:[#allocation2 + $0x378] sm:$0xff]
      %v819 = vld [vmem:[#allocation2 + $0x380] sm:$0xff]
      %v820 = vld [vmem:[#allocation2 + $0x388] sm:$0xff]
      %v821 = vld [vmem:[#allocation2 + $0x390] sm:$0xff]
      %v822 = vld [vmem:[#allocation2 + $0x398] sm:$0xff]
      %v823 = vld [vmem:[#allocation2 + $0x3a0] sm:$0xff]
      %v824 = vld [vmem:[#allocation2 + $0x3a8] sm:$0xff]
      %v825 = vld [vmem:[#allocation2 + $0x3b0] sm:$0xff]
      %v826 = vld [vmem:[#allocation2 + $0x3b8] sm:$0xff]
      %v827 = vld [vmem:[#allocation2 + $0x3c0] sm:$0xff]
      %v828 = vld [vmem:[#allocation2 + $0x3c8] sm:$0xff]
      %v829 = vld [vmem:[#allocation2 + $0x3d0] sm:$0xff]
      %v830 = vld [vmem:[#allocation2 + $0x3d8] sm:$0xff]
      %v831 = vld [vmem:[#allocation2 + $0x3e0] sm:$0xff]
      %v832 = vld [vmem:[#allocation2 + $0x3e8] sm:$0xff]
      %v833 = vld [vmem:[#allocation2 + $0x3f0] sm:$0xff]
      %v834 = vld [vmem:[#allocation2 + $0x3f8] sm:$0xff]
      %v835 = vld [vmem:[#allocation2 + $0x400] sm:$0xff]
      %v836 = vld [vmem:[#allocation2 + $0x408] sm:$0xff]
      %v837 = vld [vmem:[#allocation2 + $0x410] sm:$0xff]
      %v838 = vld [vmem:[#allocation2 + $0x418] sm:$0xff]
      %v839 = vld [vmem:[#allocation2 + $0x420] sm:$0xff]
      %v840 = vld [vmem:[#allocation2 + $0x428] sm:$0xff]
      %v841 = vld [vmem:[#allocation2 + $0x430] sm:$0xff]
      %vm842 = vcmask 719872
      %v844 = vsel %vm842, %v692, 0
      %v847 = vsel %vm842, %v694, 0
      %v850 = vsel %vm842, %v696, 0
      %v853 = vsel %vm842, %v698, 0
      %v856 = vsel %vm842, %v700, 0
      %v859 = vsel %vm842, %v702, 0
      %v862 = vsel %vm842, %v704, 0
      %v865 = vsel %vm842, %v706, 0
      %867 = vmatprep.subr.mxu0 %v783
      %868 = vmatpush1.msra.mxu0 %v782
      %869 = vmatprep.subr.mxu0 %v778
      %870 = vmatpush1.msra.mxu0 %v777
      %871 = vmatprep.subr.mxu0 %v773
      %872 = vmatpush1.msra.mxu0 %v772
      %873 = vmatprep.subr.mxu0 %v768
      %874 = vmatpush1.msra.mxu0 %v767
      %875 = vmatprep.subr.mxu0 %v763
      %876 = vmatpush1.msra.mxu0 %v762
      %877 = vmatprep.subr.mxu0 %v758
      %878 = vmatpush1.msra.mxu0 %v757
      %879 = vmatprep.subr.mxu0 %v753
      %880 = vmatpush1.msra.mxu0 %v752
      %881 = vmatprep.subr.mxu0 %v748
      %882 = vmatpush1.msra.mxu0 %v747
      %883 = vmatprep.subr.mxu0 %v743
      %884 = vmatpush1.msra.mxu0 %v742
      %885 = vmatprep.subr.mxu0 %v738
      %886 = vmatpush1.msra.mxu0 %v737
      %887 = vmatprep.subr.mxu0 %v733
      %888 = vmatpush1.msra.mxu0 %v732
      %889 = vmatprep.subr.mxu0 %v728
      %890 = vmatpush1.msra.mxu0 %v727
      %891 = vmatprep.subr.mxu0 %v723
      %892 = vmatpush1.msra.mxu0 %v722
      %893 = vmatprep.subr.mxu0 %v718
      %894 = vmatpush1.msra.mxu0 %v717
      %895 = vmatprep.subr.mxu0 %v713
      %896 = vmatpush1.msra.mxu0 %v712
      %897 = vmatprep.subr.mxu0 %v708
      %898 = vmatpush1.msra.mxu0 %v707
      %899 = vmatprep.subr.mxu0 0.0
      %900 = vmatpush2.msra.mxu0 0.0
      %901 = vmatprep.subr.mxu0 0.0
      %902 = vmatpush2.msra.mxu0 0.0
      %903 = vmatprep.subr.mxu0 0.0
      %904 = vmatpush2.msra.mxu0 0.0
      %905 = vmatprep.subr.mxu0 0.0
      %906 = vmatpush2.msra.mxu0 0.0
      %907 = vmatprep.subr.mxu0 0.0
      %908 = vmatpush2.msra.mxu0 0.0
      %909 = vmatprep.subr.mxu0 %v838
      %910 = vmatpush2.msra.mxu0 %v837
      %911 = vmatprep.subr.mxu0 %v833
      %912 = vmatpush2.msra.mxu0 %v832
      %913 = vmatprep.subr.mxu0 %v828
      %914 = vmatpush2.msra.mxu0 %v827
      %915 = vmatprep.subr.mxu0 %v823
      %916 = vmatpush2.msra.mxu0 %v822
      %917 = vmatprep.subr.mxu0 %v818
      %918 = vmatpush2.msra.mxu0 %v817
      %919 = vmatprep.subr.mxu0 %v813
      %920 = vmatpush2.msra.mxu0 %v812
      %921 = vmatprep.subr.mxu0 %v808
      %922 = vmatpush2.msra.mxu0 %v807
      %923 = vmatprep.subr.mxu0 %v803
      %924 = vmatpush2.msra.mxu0 %v802
      %925 = vmatprep.subr.mxu0 %v798
      %926 = vmatpush2.msra.mxu0 %v797
      %927 = vmatprep.subr.mxu0 %v793
      %928 = vmatpush2.msra.mxu0 %v792
      %929 = vmatprep.subr.mxu0 %v788
      %930 = vmatpush2.msra.mxu0 %v787
      %931 = vmatprep.mubr.f32.mxu0 %v844
      %932 = vmatmul.mubr.f32.gmra.mxu0 %v691
      %v933 = vpop.f32.mrf.mxu0
      %v934 = vadd.f32 0.0, %v933
      %v935 = vpop.f32.mrf.mxu0
      %v936 = vadd.f32 0.0, %v935
      %937 = vmatprep.mubr.f32.mxu0 %v847
      %938 = vmatmul.mubr.f32.gmra.mxu0 %v693
      %v939 = vpop.f32.mrf.mxu0
      %v940 = vadd.f32 0.0, %v939
      %v941 = vpop.f32.mrf.mxu0
      %v942 = vadd.f32 0.0, %v941
      %943 = vmatprep.mubr.f32.mxu0 %v850
      %944 = vmatmul.mubr.f32.gmra.mxu0 %v695
      %v945 = vpop.f32.mrf.mxu0
      %v946 = vadd.f32 0.0, %v945
      %v947 = vpop.f32.mrf.mxu0
      %v948 = vadd.f32 0.0, %v947
      %949 = vmatprep.mubr.f32.mxu0 %v853
      %950 = vmatmul.mubr.f32.gmra.mxu0 %v697
      %v951 = vpop.f32.mrf.mxu0
      %v952 = vadd.f32 0.0, %v951
      %v953 = vpop.f32.mrf.mxu0
      %v954 = vadd.f32 0.0, %v953
      %955 = vmatprep.mubr.f32.mxu0 %v856
      %956 = vmatmul.mubr.f32.gmra.mxu0 %v699
      %v957 = vpop.f32.mrf.mxu0
      %v958 = vadd.f32 0.0, %v957
      %v959 = vpop.f32.mrf.mxu0
      %v960 = vadd.f32 0.0, %v959
      %961 = vmatprep.mubr.f32.mxu0 %v859
      %962 = vmatmul.mubr.f32.gmra.mxu0 %v701
      %v963 = vpop.f32.mrf.mxu0
      %v964 = vadd.f32 0.0, %v963
      %v965 = vpop.f32.mrf.mxu0
      %v966 = vadd.f32 0.0, %v965
      %967 = vmatprep.mubr.f32.mxu0 %v862
      %968 = vmatmul.mubr.f32.gmra.mxu0 %v703
      %v969 = vpop.f32.mrf.mxu0
      %v970 = vadd.f32 0.0, %v969
      %v971 = vpop.f32.mrf.mxu0
      %v972 = vadd.f32 0.0, %v971
      %973 = vmatprep.mubr.f32.mxu0 %v865
      %974 = vmatmul.mubr.f32.gmra.mxu0 %v705
      %v975 = vpop.f32.mrf.mxu0
      %v976 = vadd.f32 0.0, %v975
      %v977 = vpop.f32.mrf.mxu0
      %v978 = vadd.f32 0.0, %v977
      %979 = vdwg.mxu0
      %980 = vmatprep.subr.mxu0 %v785
      %981 = vmatpush1.msra.mxu0 %v784
      %982 = vmatprep.subr.mxu0 %v780
      %983 = vmatpush1.msra.mxu0 %v779
      %984 = vmatprep.subr.mxu0 %v775
      %985 = vmatpush1.msra.mxu0 %v774
      %986 = vmatprep.subr.mxu0 %v770
      %987 = vmatpush1.msra.mxu0 %v769
      %988 = vmatprep.subr.mxu0 %v765
      %989 = vmatpush1.msra.mxu0 %v764
      %990 = vmatprep.subr.mxu0 %v760
      %991 = vmatpush1.msra.mxu0 %v759
      %992 = vmatprep.subr.mxu0 %v755
      %993 = vmatpush1.msra.mxu0 %v754
      %994 = vmatprep.subr.mxu0 %v750
      %995 = vmatpush1.msra.mxu0 %v749
      %996 = vmatprep.subr.mxu0 %v745
      %997 = vmatpush1.msra.mxu0 %v744
      %998 = vmatprep.subr.mxu0 %v740
      %999 = vmatpush1.msra.mxu0 %v739
      %1000 = vmatprep.subr.mxu0 %v735
      %1001 = vmatpush1.msra.mxu0 %v734
      %1002 = vmatprep.subr.mxu0 %v730
      %1003 = vmatpush1.msra.mxu0 %v729
      %1004 = vmatprep.subr.mxu0 %v725
      %1005 = vmatpush1.msra.mxu0 %v724
      %1006 = vmatprep.subr.mxu0 %v720
      %1007 = vmatpush1.msra.mxu0 %v719
      %1008 = vmatprep.subr.mxu0 %v715
      %1009 = vmatpush1.msra.mxu0 %v714
      %1010 = vmatprep.subr.mxu0 %v710
      %1011 = vmatpush1.msra.mxu0 %v709
      %1012 = vmatprep.subr.mxu0 0.0
      %1013 = vmatpush2.msra.mxu0 0.0
      %1014 = vmatprep.subr.mxu0 0.0
      %1015 = vmatpush2.msra.mxu0 0.0
      %1016 = vmatprep.subr.mxu0 0.0
      %1017 = vmatpush2.msra.mxu0 0.0
      %1018 = vmatprep.subr.mxu0 0.0
      %1019 = vmatpush2.msra.mxu0 0.0
      %1020 = vmatprep.subr.mxu0 0.0
      %1021 = vmatpush2.msra.mxu0 0.0
      %1022 = vmatprep.subr.mxu0 %v840
      %1023 = vmatpush2.msra.mxu0 %v839
      %1024 = vmatprep.subr.mxu0 %v835
      %1025 = vmatpush2.msra.mxu0 %v834
      %1026 = vmatprep.subr.mxu0 %v830
      %1027 = vmatpush2.msra.mxu0 %v829
      %1028 = vmatprep.subr.mxu0 %v825
      %1029 = vmatpush2.msra.mxu0 %v824
      %1030 = vmatprep.subr.mxu0 %v820
      %1031 = vmatpush2.msra.mxu0 %v819
      %1032 = vmatprep.subr.mxu0 %v815
      %1033 = vmatpush2.msra.mxu0 %v814
      %1034 = vmatprep.subr.mxu0 %v810
      %1035 = vmatpush2.msra.mxu0 %v809
      %1036 = vmatprep.subr.mxu0 %v805
      %1037 = vmatpush2.msra.mxu0 %v804
      %1038 = vmatprep.subr.mxu0 %v800
      %1039 = vmatpush2.msra.mxu0 %v799
      %1040 = vmatprep.subr.mxu0 %v795
      %1041 = vmatpush2.msra.mxu0 %v794
      %1042 = vmatprep.subr.mxu0 %v790
      %1043 = vmatpush2.msra.mxu0 %v789
      %1044 = vmatprep.mubr.f32.mxu0 %v844
      %1045 = vmatmul.mubr.f32.gmra.mxu0 %v691
      %v1046 = vpop.f32.mrf.mxu0
      %v1047 = vadd.f32 0.0, %v1046
      %v1048 = vpop.f32.mrf.mxu0
      %v1049 = vadd.f32 0.0, %v1048
      %1050 = vmatprep.mubr.f32.mxu0 %v847
      %1051 = vmatmul.mubr.f32.gmra.mxu0 %v693
      %v1052 = vpop.f32.mrf.mxu0
      %v1053 = vadd.f32 0.0, %v1052
      %v1054 = vpop.f32.mrf.mxu0
      %v1055 = vadd.f32 0.0, %v1054
      %1056 = vmatprep.mubr.f32.mxu0 %v850
      %1057 = vmatmul.mubr.f32.gmra.mxu0 %v695
      %v1058 = vpop.f32.mrf.mxu0
      %v1059 = vadd.f32 0.0, %v1058
      %v1060 = vpop.f32.mrf.mxu0
      %v1061 = vadd.f32 0.0, %v1060
      %1062 = vmatprep.mubr.f32.mxu0 %v853
      %1063 = vmatmul.mubr.f32.gmra.mxu0 %v697
      %v1064 = vpop.f32.mrf.mxu0
      %v1065 = vadd.f32 0.0, %v1064
      %v1066 = vpop.f32.mrf.mxu0
      %v1067 = vadd.f32 0.0, %v1066
      %1068 = vmatprep.mubr.f32.mxu0 %v856
      %1069 = vmatmul.mubr.f32.gmra.mxu0 %v699
      %v1070 = vpop.f32.mrf.mxu0
      %v1071 = vadd.f32 0.0, %v1070
      %v1072 = vpop.f32.mrf.mxu0
      %v1073 = vadd.f32 0.0, %v1072
      %1074 = vmatprep.mubr.f32.mxu0 %v859
      %1075 = vmatmul.mubr.f32.gmra.mxu0 %v701
      %v1076 = vpop.f32.mrf.mxu0
      %v1077 = vadd.f32 0.0, %v1076
      %v1078 = vpop.f32.mrf.mxu0
      %v1079 = vadd.f32 0.0, %v1078
      %1080 = vmatprep.mubr.f32.mxu0 %v862
      %1081 = vmatmul.mubr.f32.gmra.mxu0 %v703
      %v1082 = vpop.f32.mrf.mxu0
      %v1083 = vadd.f32 0.0, %v1082
      %v1084 = vpop.f32.mrf.mxu0
      %v1085 = vadd.f32 0.0, %v1084
      %1086 = vmatprep.mubr.f32.mxu0 %v865
      %1087 = vmatmul.mubr.f32.gmra.mxu0 %v705
      %v1088 = vpop.f32.mrf.mxu0
      %v1089 = vadd.f32 0.0, %v1088
      %v1090 = vpop.f32.mrf.mxu0
      %v1091 = vadd.f32 0.0, %v1090
      %1092 = vdwg.mxu0
      %1093 = vmatprep.subr.mxu0 0.0
      %1094 = vmatpush1.msra.mxu0 %v786
      %1095 = vmatprep.subr.mxu0 0.0
      %1096 = vmatpush1.msra.mxu0 %v781
      %1097 = vmatprep.subr.mxu0 0.0
      %1098 = vmatpush1.msra.mxu0 %v776
      %1099 = vmatprep.subr.mxu0 0.0
      %1100 = vmatpush1.msra.mxu0 %v771
      %1101 = vmatprep.subr.mxu0 0.0
      %1102 = vmatpush1.msra.mxu0 %v766
      %1103 = vmatprep.subr.mxu0 0.0
      %1104 = vmatpush1.msra.mxu0 %v761
      %1105 = vmatprep.subr.mxu0 0.0
      %1106 = vmatpush1.msra.mxu0 %v756
      %1107 = vmatprep.subr.mxu0 0.0
      %1108 = vmatpush1.msra.mxu0 %v751
      %1109 = vmatprep.subr.mxu0 0.0
      %1110 = vmatpush1.msra.mxu0 %v746
      %1111 = vmatprep.subr.mxu0 0.0
      %1112 = vmatpush1.msra.mxu0 %v741
      %1113 = vmatprep.subr.mxu0 0.0
      %1114 = vmatpush1.msra.mxu0 %v736
      %1115 = vmatprep.subr.mxu0 0.0
      %1116 = vmatpush1.msra.mxu0 %v731
      %1117 = vmatprep.subr.mxu0 0.0
      %1118 = vmatpush1.msra.mxu0 %v726
      %1119 = vmatprep.subr.mxu0 0.0
      %1120 = vmatpush1.msra.mxu0 %v721
      %1121 = vmatprep.subr.mxu0 0.0
      %1122 = vmatpush1.msra.mxu0 %v716
      %1123 = vmatprep.subr.mxu0 0.0
      %1124 = vmatpush1.msra.mxu0 %v711
      %1125 = vmatprep.subr.mxu0 0.0
      %1126 = vmatpush2.msra.mxu0 0.0
      %1127 = vmatprep.subr.mxu0 0.0
      %1128 = vmatpush2.msra.mxu0 0.0
      %1129 = vmatprep.subr.mxu0 0.0
      %1130 = vmatpush2.msra.mxu0 0.0
      %1131 = vmatprep.subr.mxu0 0.0
      %1132 = vmatpush2.msra.mxu0 0.0
      %1133 = vmatprep.subr.mxu0 0.0
      %1134 = vmatpush2.msra.mxu0 0.0
      %1135 = vmatprep.subr.mxu0 0.0
      %1136 = vmatpush2.msra.mxu0 %v841
      %1137 = vmatprep.subr.mxu0 0.0
      %1138 = vmatpush2.msra.mxu0 %v836
      %1139 = vmatprep.subr.mxu0 0.0
      %1140 = vmatpush2.msra.mxu0 %v831
      %1141 = vmatprep.subr.mxu0 0.0
      %1142 = vmatpush2.msra.mxu0 %v826
      %1143 = vmatprep.subr.mxu0 0.0
      %1144 = vmatpush2.msra.mxu0 %v821
      %1145 = vmatprep.subr.mxu0 0.0
      %1146 = vmatpush2.msra.mxu0 %v816
      %1147 = vmatprep.subr.mxu0 0.0
      %1148 = vmatpush2.msra.mxu0 %v811
      %1149 = vmatprep.subr.mxu0 0.0
      %1150 = vmatpush2.msra.mxu0 %v806
      %1151 = vmatprep.subr.mxu0 0.0
      %1152 = vmatpush2.msra.mxu0 %v801
      %1153 = vmatprep.subr.mxu0 0.0
      %1154 = vmatpush2.msra.mxu0 %v796
      %1155 = vmatprep.subr.mxu0 0.0
      %1156 = vmatpush2.msra.mxu0 %v791
      %1157 = vmatprep.mubr.f32.mxu0 %v844
      %1158 = vmatmul.mubr.f32.gmra.mxu0 %v691
      %v1159 = vpop.f32.mrf.mxu0
      %v1160 = vadd.f32 0.0, %v1159
      %v1161 = vpop.f32.mrf.mxu0
      %1162 = vmatprep.mubr.f32.mxu0 %v847
      %1163 = vmatmul.mubr.f32.gmra.mxu0 %v693
      %v1164 = vpop.f32.mrf.mxu0
      %v1165 = vadd.f32 0.0, %v1164
      %v1166 = vpop.f32.mrf.mxu0
      %1167 = vmatprep.mubr.f32.mxu0 %v850
      %1168 = vmatmul.mubr.f32.gmra.mxu0 %v695
      %v1169 = vpop.f32.mrf.mxu0
      %v1170 = vadd.f32 0.0, %v1169
      %v1171 = vpop.f32.mrf.mxu0
      %1172 = vmatprep.mubr.f32.mxu0 %v853
      %1173 = vmatmul.mubr.f32.gmra.mxu0 %v697
      %v1174 = vpop.f32.mrf.mxu0
      %v1175 = vadd.f32 0.0, %v1174
      %v1176 = vpop.f32.mrf.mxu0
      %1177 = vmatprep.mubr.f32.mxu0 %v856
      %1178 = vmatmul.mubr.f32.gmra.mxu0 %v699
      %v1179 = vpop.f32.mrf.mxu0
      %v1180 = vadd.f32 0.0, %v1179
      %v1181 = vpop.f32.mrf.mxu0
      %1182 = vmatprep.mubr.f32.mxu0 %v859
      %1183 = vmatmul.mubr.f32.gmra.mxu0 %v701
      %v1184 = vpop.f32.mrf.mxu0
      %v1185 = vadd.f32 0.0, %v1184
      %v1186 = vpop.f32.mrf.mxu0
      %1187 = vmatprep.mubr.f32.mxu0 %v862
      %1188 = vmatmul.mubr.f32.gmra.mxu0 %v703
      %v1189 = vpop.f32.mrf.mxu0
      %v1190 = vadd.f32 0.0, %v1189
      %v1191 = vpop.f32.mrf.mxu0
      %1192 = vmatprep.mubr.f32.mxu0 %v865
      %1193 = vmatmul.mubr.f32.gmra.mxu0 %v705
      %v1194 = vpop.f32.mrf.mxu0
      %v1195 = vadd.f32 0.0, %v1194
      %v1196 = vpop.f32.mrf.mxu0
      %1197 = vdwg.mxu0
      %v1198 = vmax.f32 %v934, %v946
      %v1199 = vmax.f32 %v936, %v948
      %v1200 = vmax.f32 %v1047, %v1059
      %v1201 = vmax.f32 %v1049, %v1061
      %v1202 = vmax.f32 %v1160, %v1170
      %v1203 = vmax.f32 %v940, %v952
      %v1204 = vmax.f32 %v942, %v954
      %v1205 = vmax.f32 %v1053, %v1065
      %v1206 = vmax.f32 %v1055, %v1067
      %v1207 = vmax.f32 %v1165, %v1175
      %v1208 = vmax.f32 %v958, %v970
      %v1209 = vmax.f32 %v960, %v972
      %v1210 = vmax.f32 %v1071, %v1083
      %v1211 = vmax.f32 %v1073, %v1085
      %v1212 = vmax.f32 %v1180, %v1190
      %v1213 = vmax.f32 %v964, %v976
      %v1214 = vmax.f32 %v966, %v978
      %v1215 = vmax.f32 %v1077, %v1089
      %v1216 = vmax.f32 %v1079, %v1091
      %v1217 = vmax.f32 %v1185, %v1195
      %v1218 = vmax.f32 %v1198, %v1208
      %v1219 = vmax.f32 %v1199, %v1209
      %v1220 = vmax.f32 %v1200, %v1210
      %v1221 = vmax.f32 %v1201, %v1211
      %v1222 = vmax.f32 %v1202, %v1212
      %v1223 = vmax.f32 %v1203, %v1213
      %v1224 = vmax.f32 %v1204, %v1214
      %v1225 = vmax.f32 %v1205, %v1215
      %v1226 = vmax.f32 %v1206, %v1216
      %v1227 = vmax.f32 %v1207, %v1217
      %v1228 = vld [vmem:[%s2] sm:$0xff]
      %v1229 = vld [vmem:[%s2 + $0x8] sm:$0xff]
      %1231 = vset.pattern.permute.xlu0 0
      %1232 = vperm.xlu0 %1231, %v1228
      %v1233 = vpop.permute.xlu0 %1232
      %1236 = vset.pattern.permute.xlu0 0
      %1237 = vperm.xlu0 %1236, %v1229
      %v1238 = vpop.permute.xlu0 %1237
      %v1240 = vadd.f32 %v1218, %v1233
      %v1241 = vadd.f32 %v1219, %v1233
      %v1242 = vadd.f32 %v1220, %v1233
      %v1243 = vadd.f32 %v1221, %v1233
      %v1244 = vadd.f32 %v1222, %v1233
      %v1245 = vadd.f32 %v1223, %v1238
      %v1246 = vadd.f32 %v1224, %v1238
      %v1247 = vadd.f32 %v1225, %v1238
      %v1248 = vadd.f32 %v1226, %v1238
      %v1249 = vadd.f32 %v1227, %v1238
      %v1250 = vmax.f32 %v1240, 0.0
      %v1251 = vmax.f32 %v1241, 0.0
      %v1252 = vmax.f32 %v1242, 0.0
      %v1253 = vmax.f32 %v1243, 0.0
      %v1254 = vmax.f32 %v1244, 0.0
      %v1255 = vmax.f32 %v1245, 0.0
      %v1256 = vmax.f32 %v1246, 0.0
      %v1257 = vmax.f32 %v1247, 0.0
      %v1258 = vmax.f32 %v1248, 0.0
      %v1259 = vmax.f32 %v1249, 0.0
      %1260 = vst [vmem:[%s170] sm:$0xff] %v1250
      %1261 = vst [vmem:[%s170 + $0x8] sm:$0xff] %v1251
      %1262 = vst [vmem:[%s170 + $0x10] sm:$0xff] %v1252
      %1263 = vst [vmem:[%s170 + $0x18] sm:$0xff] %v1253
      %1264 = vst [vmem:[%s170 + $0x20] sm:$0xff] %v1254
      %1265 = vst [vmem:[%s170 + $0x28] sm:$0xff] %v1255
      %1266 = vst [vmem:[%s170 + $0x30] sm:$0xff] %v1256
      %1267 = vst [vmem:[%s170 + $0x38] sm:$0xff] %v1257
      %1268 = vst [vmem:[%s170 + $0x40] sm:$0xff] %v1258
      %1269 = vst [vmem:[%s170 + $0x48] sm:$0xff] %v1259
      %p1270 = scmp.lt.s32.totalorder %s14, 1
      %s1271 = scalar_select %p1270, %s14, 1
      %s1272 = smul.addr %s1271, 10
      %s1273 = smul.addr %s1272, 8
      %s1274 = scalar_lea.vmem %s3, %s1273
      // Predicated region
      $region33: #{cnn_forward.5} parent=31 // pred_check
        %p1275 = pneg %p100
      $region34: #{cnn_forward.5} parent=31 // pred_check_branch
        %1277 = sbr.rel (%p1275) target = $region36
      $region35: #{cnn_forward.5} parent=31 // pred_region
        _
      $region36: #{cnn_forward.5} parent=31 // pred_fallthru
        _
    $region32: #{cnn_forward.5} parent=5 // pred_fallthru
      _
    %p1278 = scmp.le.s32.totalorder 2, %s9
    // Predicated region
    $region37: #{cnn_forward.5} parent=5 // pred_check
      %p1279 = pneg %p1278
    $region38: #{cnn_forward.5} parent=5 // pred_check_branch
      %1281 = sbr.rel (%p1279) target = $region40
    $region39: #{cnn_forward.5} parent=5 // pred_region
      %s1282 = ssub.s32 %s9, 2
      // Predicated region
      $region41: #{cnn_forward.5} parent=39 // pred_check
        %p1283 = pneg %p106
      $region42: #{cnn_forward.5} parent=39 // pred_check_branch
        %1285 = sbr.rel (%p1283) target = $region44
      $region43: #{cnn_forward.5} parent=39 // pred_region
        %p1286 = scmp.lt.s32.totalorder %s15, 1
        %s1287 = scalar_select %p1286, %s15, 1
        %s1288 = smul.addr %s1287, 10
        %s1289 = smul.addr %s1288, 8
        %s1290 = scalar_lea.vmem %s3, %s1289
      $region44: #{cnn_forward.5} parent=39 // pred_fallthru
        _
    $region40: #{cnn_forward.5} parent=5 // pred_fallthru
      _
  $region6: #{cnn_forward.5} parent=0 // loop_footer
    %s13 = sadd.s32 1, %s9
  $region7: #{cnn_forward.5} parent=0 // loop_footer_branch
    %8 = sbr.rel target = $region3
  $region8: #{cnn_forward.5} parent=0 // loop_exit
    _

// kernel: cnn_forward.6
$region0: #{cnn_forward.6}
  #allocation0 [shape = 'u32[]', space=smem, size = 0x4, offset = 0x4, fixed_abs, tag = 'smem constant byte address 0x4 - core index']
  #allocation1 [shape = 'u32[144,128]{1,0:T(1,128)}', space=vmem, size = 0x12000, scoped, tag = 'internal scratch']
  #allocation2 [shape = 'f32[360,128]{1,0:T(8,128)}', space=vmem, size = 0x2d000, scoped, tag = 'scratch operand']
  %s0 = inlined_call_operand.vmem [shape: f32[2,40,128], index: 0, kind: input, shape index: {}]
  %s1 = inlined_call_operand.vmem [shape: f32[96,360], index: 1, kind: input, shape index: {}]
  %s2 = inlined_call_operand.vmem [shape: f32[24,1], index: 2, kind: input, shape index: {}]
  %s3 = inlined_call_operand.vmem [shape: f32[2,24,128], index: 3, kind: output, shape index: {}]
  %s4 = sld [smem:[#allocation0]]
  $region45: #{cnn_forward.6} parent=0
    _
  %s6 = ssub.s32 1, %s4
  %s7 = scalar_select 0, %s6, %s4
  loop: start=0, step=1, limit=4
  $region2: #{cnn_forward.6} parent=0 // loop_pre_header
    _
  $region3: #{cnn_forward.6} parent=0 // loop_header
    %s9 = sphi 0, %s13
    %p10 = scmp.ge.s32.totalorder %s9, 4
    %s19 = sphi 0, %s21
    %s22 = sphi 0, %s19
    %s23 = sphi 0, %s22
    %s39 = sphi 0, %s23
    %s43 = sphi 0, %s43
    %s45 = sphi 0, %s43
    %s46 = sphi 0, %s45
    %s60 = sphi 0, %s46
    %s64 = sphi 0, %s64
    %s66 = sphi 0, %s64
    %s67 = sphi 0, %s66
    %s81 = sphi 0, %s67
    %s87 = sphi 0, %s89
    %s90 = sphi 0, %s87
    %s91 = sphi 0, %s90
    %s107 = sphi 0, %s91
  $region4: #{cnn_forward.6} parent=0 // loop_header_branch
    %12 = sbr.rel (%p10) target = $region8
  $region5: #{cnn_forward.6} parent=0 // loop_body
    %s14 = ssub.s32 %s9, 1
    %s15 = ssub.s32 %s9, 2
    %s16 = sadd.s32 %s9, 1
    %s17 = ssub.s32 %s9, %s16
    %p18 = scmp.eq.s32.totalorder %s17, 0
    %s20 = sadd.s32 %s19, 1
    %s21 = scalar_select %p18, %s19, %s20
    %p24 = pneg %p18
    %p25 = scmp.eq.s32.totalorder %s9, 1
    %p26 = por %p24, %p25
    %p27 = scmp.ne.s32.totalorder %s19, %s22
    %p28 = scmp.eq.s32.totalorder %s9, 0
    %p29 = por %p27, %p28
    %p30 = scmp.ne.s32.totalorder %s19, %s22
    %p31 = scmp.eq.s32.totalorder %s14, 1
    %p32 = por %p30, %p31
    %p33 = scmp.ne.s32.totalorder %s22, %s23
    %p34 = scmp.eq.s32.totalorder %s14, 0
    %p35 = por %p33, %p34
    %p36 = scmp.ne.s32.totalorder %s22, %s23
    %p37 = scmp.eq.s32.totalorder %s15, 1
    %p38 = por %p36, %p37
    %p40 = scmp.ne.s32.totalorder %s23, %s39
    %p41 = scmp.eq.s32.totalorder %s15, 0
    %p42 = por %p40, %p41
    %s44 = sadd.s32 %s43, 1
    %p47 = scmp.eq.s32.totalorder %s9, 1
    %p48 = scmp.ne.s32.totalorder %s43, %s45
    %p49 = scmp.eq.s32.totalorder %s9, 0
    %p50 = por %p48, %p49
    %p51 = scmp.ne.s32.totalorder %s43, %s45
    %p52 = scmp.eq.s32.totalorder %s14, 1
    %p53 = por %p51, %p52
    %p54 = scmp.ne.s32.totalorder %s45, %s46
    %p55 = scmp.eq.s32.totalorder %s14, 0
    %p56 = por %p54, %p55
    %p57 = scmp.ne.s32.totalorder %s45, %s46
    %p58 = scmp.eq.s32.totalorder %s15, 1
    %p59 = por %p57, %p58
    %p61 = scmp.ne.s32.totalorder %s46, %s60
    %p62 = scmp.eq.s32.totalorder %s15, 0
    %p63 = por %p61, %p62
    %s65 = sadd.s32 %s64, 1
    %p68 = scmp.eq.s32.totalorder %s9, 1
    %p69 = scmp.ne.s32.totalorder %s64, %s66
    %p70 = scmp.eq.s32.totalorder %s9, 0
    %p71 = por %p69, %p70
    %p72 = scmp.ne.s32.totalorder %s64, %s66
    %p73 = scmp.eq.s32.totalorder %s14, 1
    %p74 = por %p72, %p73
    %p75 = scmp.ne.s32.totalorder %s66, %s67
    %p76 = scmp.eq.s32.totalorder %s14, 0
    %p77 = por %p75, %p76
    %p78 = scmp.ne.s32.totalorder %s66, %s67
    %p79 = scmp.eq.s32.totalorder %s15, 1
    %p80 = por %p78, %p79
    %p82 = scmp.ne.s32.totalorder %s67, %s81
    %p83 = scmp.eq.s32.totalorder %s15, 0
    %p84 = por %p82, %p83
    %s85 = ssub.s32 %s9, %s16
    %p86 = scmp.eq.s32.totalorder %s85, 0
    %s88 = sadd.s32 %s87, 1
    %s89 = scalar_select %p86, %s87, %s88
    %p92 = pneg %p86
    %p93 = scmp.eq.s32.totalorder %s9, 1
    %p94 = por %p92, %p93
    %p95 = scmp.ne.s32.totalorder %s87, %s90
    %p96 = scmp.eq.s32.totalorder %s9, 0
    %p97 = por %p95, %p96
    %p98 = scmp.ne.s32.totalorder %s87, %s90
    %p99 = scmp.eq.s32.totalorder %s14, 1
    %p100 = por %p98, %p99
    %p101 = scmp.ne.s32.totalorder %s90, %s91
    %p102 = scmp.eq.s32.totalorder %s14, 0
    %p103 = por %p101, %p102
    %p104 = scmp.ne.s32.totalorder %s90, %s91
    %p105 = scmp.eq.s32.totalorder %s15, 1
    %p106 = por %p104, %p105
    %p108 = scmp.ne.s32.totalorder %s91, %s107
    %p109 = scmp.eq.s32.totalorder %s15, 0
    %p110 = por %p108, %p109
    %p111 = scmp.le.s32.totalorder 1, %s9
    %p112 = scmp.lt.s32.totalorder %s9, 3
    %p113 = pnand %p111, %p112
    %p114 = pneg %p113
    // Predicated region
    $region9: #{cnn_forward.6} parent=5 // pred_check
      _
    $region10: #{cnn_forward.6} parent=5 // pred_check_branch
      %116 = sbr.rel (%p113) target = $region12
    $region11: #{cnn_forward.6} parent=5 // pred_region
      %s117 = ssub.s32 %s9, 1
      // Predicated region
      $region13: #{cnn_forward.6} parent=11 // pred_check
        %p118 = pneg %p56
      $region14: #{cnn_forward.6} parent=11 // pred_check_branch
        %120 = sbr.rel (%p118) target = $region16
      $region15: #{cnn_forward.6} parent=11 // pred_region
        _
      $region16: #{cnn_forward.6} parent=11 // pred_fallthru
        _
      // Predicated region
      $region17: #{cnn_forward.6} parent=11 // pred_check
        %p121 = pneg %p77
      $region18: #{cnn_forward.6} parent=11 // pred_check_branch
        %123 = sbr.rel (%p121) target = $region20
      $region19: #{cnn_forward.6} parent=11 // pred_region
        _
      $region20: #{cnn_forward.6} parent=11 // pred_fallthru
        _
    $region12: #{cnn_forward.6} parent=5 // pred_fallthru
      _
    %p124 = scmp.lt.s32.totalorder %s9, 2
    // Predicated region
    $region21: #{cnn_forward.6} parent=5 // pred_check
      %p125 = pneg %p124
    $region22: #{cnn_forward.6} parent=5 // pred_check_branch
      %127 = sbr.rel (%p125) target = $region24
    $region23: #{cnn_forward.6} parent=5 // pred_region
      // Predicated region
      $region25: #{cnn_forward.6} parent=23 // pred_check
        %p128 = pneg %p29
      $region26: #{cnn_forward.6} parent=23 // pred_check_branch
        %130 = sbr.rel (%p128) target = $region28
      $region27: #{cnn_forward.6} parent=23 // pred_region
        %p131 = scmp.lt.s32.totalorder %s9, 1
        %s132 = scalar_select %p131, %s9, 1
        %s133 = smul.addr %s132, 5
        %s134 = smul.addr %s133, 8
        %s135 = scalar_lea.vmem %s0, %s134
      $region28: #{cnn_forward.6} parent=23 // pred_fallthru
        _
    $region24: #{cnn_forward.6} parent=5 // pred_fallthru
      _
    %p136 = scmp.le.s32.totalorder 1, %s9
    %p137 = scmp.lt.s32.totalorder %s9, 3
    %p138 = pnand %p136, %p137
    %p139 = pneg %p138
    // Predicated region
    $region29: #{cnn_forward.6} parent=5 // pred_check
      _
    $region30: #{cnn_forward.6} parent=5 // pred_check_branch
      %141 = sbr.rel (%p138) target = $region32
    $region31: #{cnn_forward.6} parent=5 // pred_region
      %s142 = ssub.s32 %s9, 1
      %p143 = scmp.lt.s32.totalorder %s14, 1
      %s144 = scalar_select %p143, %s14, 1
      %s145 = smul.addr %s144, 5
      %s146 = smul.addr %s145, 8
      %s147 = scalar_lea.vmem %s0, %s146
      %p148 = pneg %p35
      %p149 = pneg %p32
      %p150 = pneg %p56
      %p151 = pneg %p53
      %p152 = pneg %p77
      %p153 = pneg %p74
      %p154 = pneg %p103
      %p155 = pneg %p100
      %p156 = scmp.lt.s32.totalorder %s14, 1
      %s157 = scalar_select %p156, %s14, 1
      %s158 = smul.addr %s157, 3
      %s159 = smul.addr %s158, 8
      %s160 = scalar_lea.vmem %s3, %s159
      %p161 = scmp.lt.s32.totalorder %s14, 1
      %s162 = scalar_select %p161, %s14, 1
      %s163 = smul.addr %s162, 5
      %s164 = smul.addr %s163, 8
      %s165 = scalar_lea.vmem %s0, %s164
      %p166 = scmp.lt.s32.totalorder %s14, 1
      %s167 = scalar_select %p166, %s14, 1
      %s168 = smul.addr %s167, 3
      %s169 = smul.addr %s168, 8
      %s170 = scalar_lea.vmem %s3, %s169
      %v171 = vld [vmem:[%s165] sm:$0xff]
      %v172 = vld [vmem:[%s165 + $0x8] sm:$0xff]
      %v173 = vld [vmem:[%s165 + $0x10] sm:$0xff]
      %v174 = vld [vmem:[%s165 + $0x18] sm:$0xff]
      %v175 = vld [vmem:[%s165 + $0x20] sm:$0xff]
      %176 = vst [vmem:[#allocation2] sm:$0xff] %v171
      %177 = vst [vmem:[#allocation2 + $0x8] sm:$0xff] %v172
      %178 = vst [vmem:[#allocation2 + $0x10] sm:$0xff] %v173
      %179 = vst [vmem:[#allocation2 + $0x18] sm:$0xff] %v174
      %180 = vst [vmem:[#allocation2 + $0x20] sm:$0xff] %v175
      %181 = vrot.lane.b32.xlu0 %v171, 127
      %v182 = vpop.permute.xlu0 %181
      %183 = vrot.lane.b32.xlu0 %v172, 127
      %v184 = vpop.permute.xlu0 %183
      %185 = vrot.lane.b32.xlu0 %v173, 127
      %v186 = vpop.permute.xlu0 %185
      %187 = vrot.lane.b32.xlu0 %v174, 127
      %v188 = vpop.permute.xlu0 %187
      %189 = vrot.lane.b32.xlu0 %v175, 127
      %v190 = vpop.permute.xlu0 %189
      %191 = vst [vmem:[#allocation2 + $0x28] sm:$0xff] %v182
      %192 = vst [vmem:[#allocation2 + $0x30] sm:$0xff] %v184
      %193 = vst [vmem:[#allocation2 + $0x38] sm:$0xff] %v186
      %194 = vst [vmem:[#allocation2 + $0x40] sm:$0xff] %v188
      %195 = vst [vmem:[#allocation2 + $0x48] sm:$0xff] %v190
      %196 = vrot.lane.b32.xlu0 %v171, 126
      %v197 = vpop.permute.xlu0 %196
      %198 = vrot.lane.b32.xlu0 %v172, 126
      %v199 = vpop.permute.xlu0 %198
      %200 = vrot.lane.b32.xlu0 %v173, 126
      %v201 = vpop.permute.xlu0 %200
      %202 = vrot.lane.b32.xlu0 %v174, 126
      %v203 = vpop.permute.xlu0 %202
      %204 = vrot.lane.b32.xlu0 %v175, 126
      %v205 = vpop.permute.xlu0 %204
      %206 = vst [vmem:[#allocation2 + $0x50] sm:$0xff] %v197
      %207 = vst [vmem:[#allocation2 + $0x58] sm:$0xff] %v199
      %208 = vst [vmem:[#allocation2 + $0x60] sm:$0xff] %v201
      %209 = vst [vmem:[#allocation2 + $0x68] sm:$0xff] %v203
      %210 = vst [vmem:[#allocation2 + $0x70] sm:$0xff] %v205
      %211 = vrot.lane.b32.xlu0 %v171, 117
      %v212 = vpop.permute.xlu0 %211
      %213 = vrot.lane.b32.xlu0 %v172, 117
      %v214 = vpop.permute.xlu0 %213
      %215 = vrot.lane.b32.xlu0 %v173, 117
      %v216 = vpop.permute.xlu0 %215
      %217 = vrot.lane.b32.xlu0 %v174, 117
      %v218 = vpop.permute.xlu0 %217
      %219 = vrot.lane.b32.xlu0 %v175, 117
      %v220 = vpop.permute.xlu0 %219
      %221 = vst [vmem:[#allocation2 + $0x78] sm:$0xff] %v212
      %222 = vst [vmem:[#allocation2 + $0x80] sm:$0xff] %v214
      %223 = vst [vmem:[#allocation2 + $0x88] sm:$0xff] %v216
      %224 = vst [vmem:[#allocation2 + $0x90] sm:$0xff] %v218
      %225 = vst [vmem:[#allocation2 + $0x98] sm:$0xff] %v220
      %226 = vrot.lane.b32.xlu0 %v171, 116
      %v227 = vpop.permute.xlu0 %226
      %228 = vrot.lane.b32.xlu0 %v172, 116
      %v229 = vpop.permute.xlu0 %228
      %230 = vrot.lane.b32.xlu0 %v173, 116
      %v231 = vpop.permute.xlu0 %230
      %232 = vrot.lane.b32.xlu0 %v174, 116
      %v233 = vpop.permute.xlu0 %232
      %234 = vrot.lane.b32.xlu0 %v175, 116
      %v235 = vpop.permute.xlu0 %234
      %236 = vst [vmem:[#allocation2 + $0xa0] sm:$0xff] %v227
      %237 = vst [vmem:[#allocation2 + $0xa8] sm:$0xff] %v229
      %238 = vst [vmem:[#allocation2 + $0xb0] sm:$0xff] %v231
      %239 = vst [vmem:[#allocation2 + $0xb8] sm:$0xff] %v233
      %240 = vst [vmem:[#allocation2 + $0xc0] sm:$0xff] %v235
      %241 = vrot.lane.b32.xlu0 %v171, 115
      %v242 = vpop.permute.xlu0 %241
      %243 = vrot.lane.b32.xlu0 %v172, 115
      %v244 = vpop.permute.xlu0 %243
      %245 = vrot.lane.b32.xlu0 %v173, 115
      %v246 = vpop.permute.xlu0 %245
      %247 = vrot.lane.b32.xlu0 %v174, 115
      %v248 = vpop.permute.xlu0 %247
      %249 = vrot.lane.b32.xlu0 %v175, 115
      %v250 = vpop.permute.xlu0 %249
      %251 = vst [vmem:[#allocation2 + $0xc8] sm:$0xff] %v242
      %252 = vst [vmem:[#allocation2 + $0xd0] sm:$0xff] %v244
      %253 = vst [vmem:[#allocation2 + $0xd8] sm:$0xff] %v246
      %254 = vst [vmem:[#allocation2 + $0xe0] sm:$0xff] %v248
      %255 = vst [vmem:[#allocation2 + $0xe8] sm:$0xff] %v250
      %256 = vrot.lane.b32.xlu0 %v171, 106
      %v257 = vpop.permute.xlu0 %256
      %258 = vrot.lane.b32.xlu0 %v172, 106
      %v259 = vpop.permute.xlu0 %258
      %260 = vrot.lane.b32.xlu0 %v173, 106
      %v261 = vpop.permute.xlu0 %260
      %262 = vrot.lane.b32.xlu0 %v174, 106
      %v263 = vpop.permute.xlu0 %262
      %264 = vrot.lane.b32.xlu0 %v175, 106
      %v265 = vpop.permute.xlu0 %264
      %266 = vst [vmem:[#allocation2 + $0xf0] sm:$0xff] %v257
      %267 = vst [vmem:[#allocation2 + $0xf8] sm:$0xff] %v259
      %268 = vst [vmem:[#allocation2 + $0x100] sm:$0xff] %v261
      %269 = vst [vmem:[#allocation2 + $0x108] sm:$0xff] %v263
      %270 = vst [vmem:[#allocation2 + $0x110] sm:$0xff] %v265
      %271 = vrot.lane.b32.xlu0 %v171, 105
      %v272 = vpop.permute.xlu0 %271
      %273 = vrot.lane.b32.xlu0 %v172, 105
      %v274 = vpop.permute.xlu0 %273
      %275 = vrot.lane.b32.xlu0 %v173, 105
      %v276 = vpop.permute.xlu0 %275
      %277 = vrot.lane.b32.xlu0 %v174, 105
      %v278 = vpop.permute.xlu0 %277
      %279 = vrot.lane.b32.xlu0 %v175, 105
      %v280 = vpop.permute.xlu0 %279
      %281 = vst [vmem:[#allocation2 + $0x118] sm:$0xff] %v272
      %282 = vst [vmem:[#allocation2 + $0x120] sm:$0xff] %v274
      %283 = vst [vmem:[#allocation2 + $0x128] sm:$0xff] %v276
      %284 = vst [vmem:[#allocation2 + $0x130] sm:$0xff] %v278
      %285 = vst [vmem:[#allocation2 + $0x138] sm:$0xff] %v280
      %286 = vrot.lane.b32.xlu0 %v171, 104
      %v287 = vpop.permute.xlu0 %286
      %288 = vrot.lane.b32.xlu0 %v172, 104
      %v289 = vpop.permute.xlu0 %288
      %290 = vrot.lane.b32.xlu0 %v173, 104
      %v291 = vpop.permute.xlu0 %290
      %292 = vrot.lane.b32.xlu0 %v174, 104
      %v293 = vpop.permute.xlu0 %292
      %294 = vrot.lane.b32.xlu0 %v175, 104
      %v295 = vpop.permute.xlu0 %294
      %296 = vst [vmem:[#allocation2 + $0x140] sm:$0xff] %v287
      %297 = vst [vmem:[#allocation2 + $0x148] sm:$0xff] %v289
      %298 = vst [vmem:[#allocation2 + $0x150] sm:$0xff] %v291
      %299 = vst [vmem:[#allocation2 + $0x158] sm:$0xff] %v293
      %300 = vst [vmem:[#allocation2 + $0x160] sm:$0xff] %v295
      %v301 = vld [vmem:[%s1] sm:$0xff]
      %v302 = vld [vmem:[%s1 + $0x8] sm:$0xff]
      %v303 = vld [vmem:[%s1 + $0x10] sm:$0xff]
      %v304 = vld [vmem:[%s1 + $0x18] sm:$0xff]
      %v305 = vld [vmem:[%s1 + $0x20] sm:$0xff]
      %v306 = vld [vmem:[%s1 + $0x28] sm:$0xff]
      %v307 = vld [vmem:[%s1 + $0x30] sm:$0xff]
      %v308 = vld [vmem:[%s1 + $0x38] sm:$0xff]
      %v309 = vld [vmem:[%s1 + $0x40] sm:$0xff]
      %v310 = vld [vmem:[%s1 + $0x48] sm:$0xff]
      %v311 = vld [vmem:[%s1 + $0x50] sm:$0xff]
      %v312 = vld [vmem:[%s1 + $0x58] sm:$0xff]
      %v313 = vld [vmem:[%s1 + $0x60] sm:$0xff]
      %v314 = vld [vmem:[%s1 + $0x68] sm:$0xff]
      %v315 = vld [vmem:[%s1 + $0x70] sm:$0xff]
      %v316 = vld [vmem:[%s1 + $0x78] sm:$0xff]
      %v317 = vld [vmem:[%s1 + $0x80] sm:$0xff]
      %v318 = vld [vmem:[%s1 + $0x88] sm:$0xff]
      %v319 = vld [vmem:[%s1 + $0x90] sm:$0xff]
      %v320 = vld [vmem:[%s1 + $0x98] sm:$0xff]
      %v321 = vld [vmem:[%s1 + $0xa0] sm:$0xff]
      %v322 = vld [vmem:[%s1 + $0xa8] sm:$0xff]
      %v323 = vld [vmem:[%s1 + $0xb0] sm:$0xff]
      %v324 = vld [vmem:[%s1 + $0xb8] sm:$0xff]
      %v325 = vld [vmem:[%s1 + $0xc0] sm:$0xff]
      %v326 = vld [vmem:[%s1 + $0xc8] sm:$0xff]
      %v327 = vld [vmem:[%s1 + $0xd0] sm:$0xff]
      %v328 = vld [vmem:[%s1 + $0xd8] sm:$0xff]
      %v329 = vld [vmem:[%s1 + $0xe0] sm:$0xff]
      %v330 = vld [vmem:[%s1 + $0xe8] sm:$0xff]
      %v331 = vld [vmem:[%s1 + $0xf0] sm:$0xff]
      %v332 = vld [vmem:[%s1 + $0xf8] sm:$0xff]
      %v333 = vld [vmem:[%s1 + $0x100] sm:$0xff]
      %v334 = vld [vmem:[%s1 + $0x108] sm:$0xff]
      %v335 = vld [vmem:[%s1 + $0x110] sm:$0xff]
      %v336 = vld [vmem:[%s1 + $0x118] sm:$0xff]
      %v337 = vld [vmem:[#allocation2] sm:$0xff]
      %v338 = vld [vmem:[#allocation2 + $0x8] sm:$0xff]
      %v339 = vld [vmem:[#allocation2 + $0x10] sm:$0xff]
      %v340 = vld [vmem:[#allocation2 + $0x18] sm:$0xff]
      %v341 = vld [vmem:[#allocation2 + $0x20] sm:$0xff]
      %v342 = vld [vmem:[#allocation2 + $0x28] sm:$0xff]
      %v343 = vld [vmem:[#allocation2 + $0x30] sm:$0xff]
      %v344 = vld [vmem:[#allocation2 + $0x38] sm:$0xff]
      %v345 = vld [vmem:[#allocation2 + $0x40] sm:$0xff]
      %v346 = vld [vmem:[#allocation2 + $0x48] sm:$0xff]
      %v347 = vld [vmem:[#allocation2 + $0x50] sm:$0xff]
      %v348 = vld [vmem:[#allocation2 + $0x58] sm:$0xff]
      %v349 = vld [vmem:[#allocation2 + $0x60] sm:$0xff]
      %v350 = vld [vmem:[#allocation2 + $0x68] sm:$0xff]
      %v351 = vld [vmem:[#allocation2 + $0x70] sm:$0xff]
      %v352 = vld [vmem:[#allocation2 + $0x78] sm:$0xff]
      %v353 = vld [vmem:[#allocation2 + $0x80] sm:$0xff]
      %v354 = vld [vmem:[#allocation2 + $0x88] sm:$0xff]
      %v355 = vld [vmem:[#allocation2 + $0x90] sm:$0xff]
      %v356 = vld [vmem:[#allocation2 + $0x98] sm:$0xff]
      %v357 = vld [vmem:[#allocation2 + $0xa0] sm:$0xff]
      %v358 = vld [vmem:[#allocation2 + $0xa8] sm:$0xff]
      %v359 = vld [vmem:[#allocation2 + $0xb0] sm:$0xff]
      %v360 = vld [vmem:[#allocation2 + $0xb8] sm:$0xff]
      %v361 = vld [vmem:[#allocation2 + $0xc0] sm:$0xff]
      %v362 = vld [vmem:[#allocation2 + $0xc8] sm:$0xff]
      %v363 = vld [vmem:[#allocation2 + $0xd0] sm:$0xff]
      %v364 = vld [vmem:[#allocation2 + $0xd8] sm:$0xff]
      %v365 = vld [vmem:[#allocation2 + $0xe0] sm:$0xff]
      %v366 = vld [vmem:[#allocation2 + $0xe8] sm:$0xff]
      %v367 = vld [vmem:[#allocation2 + $0xf0] sm:$0xff]
      %v368 = vld [vmem:[#allocation2 + $0xf8] sm:$0xff]
      %v369 = vld [vmem:[#allocation2 + $0x100] sm:$0xff]
      %v370 = vld [vmem:[#allocation2 + $0x108] sm:$0xff]
      %v371 = vld [vmem:[#allocation2 + $0x110] sm:$0xff]
      %v372 = vld [vmem:[#allocation2 + $0x118] sm:$0xff]
      %v373 = vld [vmem:[#allocation2 + $0x120] sm:$0xff]
      %v374 = vld [vmem:[#allocation2 + $0x128] sm:$0xff]
      %v375 = vld [vmem:[#allocation2 + $0x130] sm:$0xff]
      %v376 = vld [vmem:[#allocation2 + $0x138] sm:$0xff]
      %v377 = vld [vmem:[#allocation2 + $0x140] sm:$0xff]
      %v378 = vld [vmem:[#allocation2 + $0x148] sm:$0xff]
      %v379 = vld [vmem:[#allocation2 + $0x150] sm:$0xff]
      %v380 = vld [vmem:[#allocation2 + $0x158] sm:$0xff]
      %v381 = vld [vmem:[#allocation2 + $0x160] sm:$0xff]
      %vm382 = vcmask 850944
      %v384 = vsel %vm382, %v303, 0
      %v387 = vsel %vm382, %v306, 0
      %v390 = vsel %vm382, %v309, 0
      %v393 = vsel %vm382, %v312, 0
      %v396 = vsel %vm382, %v315, 0
      %v399 = vsel %vm382, %v318, 0
      %v402 = vsel %vm382, %v321, 0
      %v405 = vsel %vm382, %v324, 0
      %v408 = vsel %vm382, %v327, 0
      %v411 = vsel %vm382, %v330, 0
      %v414 = vsel %vm382, %v333, 0
      %v417 = vsel %vm382, %v336, 0
      %419 = vmatprep.subr.mxu0 0.0
      %420 = vmatpush1.msra.mxu0 %v352
      %421 = vmatprep.subr.mxu0 0.0
      %422 = vmatpush1.msra.mxu0 %v351
      %423 = vmatprep.subr.mxu0 0.0
      %424 = vmatpush1.msra.mxu0 %v350
      %425 = vmatprep.subr.mxu0 0.0
      %426 = vmatpush1.msra.mxu0 %v349
      %427 = vmatprep.subr.mxu0 0.0
      %428 = vmatpush1.msra.mxu0 %v348
      %429 = vmatprep.subr.mxu0 0.0
      %430 = vmatpush1.msra.mxu0 %v347
      %431 = vmatprep.subr.mxu0 0.0
      %432 = vmatpush1.msra.mxu0 %v346
      %433 = vmatprep.subr.mxu0 0.0
      %434 = vmatpush1.msra.mxu0 %v345
      %435 = vmatprep.subr.mxu0 0.0
      %436 = vmatpush1.msra.mxu0 %v344
      %437 = vmatprep.subr.mxu0 0.0
      %438 = vmatpush1.msra.mxu0 %v343
      %439 = vmatprep.subr.mxu0 0.0
      %440 = vmatpush1.msra.mxu0 %v342
      %441 = vmatprep.subr.mxu0 0.0
      %442 = vmatpush1.msra.mxu0 %v341
      %443 = vmatprep.subr.mxu0 0.0
      %444 = vmatpush1.msra.mxu0 %v340
      %445 = vmatprep.subr.mxu0 0.0
      %446 = vmatpush1.msra.mxu0 %v339
      %447 = vmatprep.subr.mxu0 0.0
      %448 = vmatpush1.msra.mxu0 %v338
      %449 = vmatprep.subr.mxu0 0.0
      %450 = vmatpush1.msra.mxu0 %v337
      %451 = vmatprep.subr.mxu0 0.0
      %452 = vmatpush2.msra.mxu0 %v368
      %453 = vmatprep.subr.mxu0 0.0
      %454 = vmatpush2.msra.mxu0 %v367
      %455 = vmatprep.subr.mxu0 0.0
      %456 = vmatpush2.msra.mxu0 %v366
      %457 = vmatprep.subr.mxu0 0.0
      %458 = vmatpush2.msra.mxu0 %v365
      %459 = vmatprep.subr.mxu0 0.0
      %460 = vmatpush2.msra.mxu0 %v364
      %461 = vmatprep.subr.mxu0 0.0
      %462 = vmatpush2.msra.mxu0 %v363
      %463 = vmatprep.subr.mxu0 0.0
      %464 = vmatpush2.msra.mxu0 %v362
      %465 = vmatprep.subr.mxu0 0.0
      %466 = vmatpush2.msra.mxu0 %v361
      %467 = vmatprep.subr.mxu0 0.0
      %468 = vmatpush2.msra.mxu0 %v360
      %469 = vmatprep.subr.mxu0 0.0
      %470 = vmatpush2.msra.mxu0 %v359
      %471 = vmatprep.subr.mxu0 0.0
      %472 = vmatpush2.msra.mxu0 %v358
      %473 = vmatprep.subr.mxu0 0.0
      %474 = vmatpush2.msra.mxu0 %v357
      %475 = vmatprep.subr.mxu0 0.0
      %476 = vmatpush2.msra.mxu0 %v356
      %477 = vmatprep.subr.mxu0 0.0
      %478 = vmatpush2.msra.mxu0 %v355
      %479 = vmatprep.subr.mxu0 0.0
      %480 = vmatpush2.msra.mxu0 %v354
      %481 = vmatprep.subr.mxu0 0.0
      %482 = vmatpush2.msra.mxu0 %v353
      %483 = vmatprep.mubr.f32.mxu0 %v302
      %484 = vmatmul.mubr.f32.gmra.mxu0 %v301
      %v485 = vpop.f32.mrf.mxu0
      %v486 = vadd.f32 0.0, %v485
      %v487 = vpop.f32.mrf.mxu0
      %488 = vmatprep.mubr.f32.mxu0 %v305
      %489 = vmatmul.mubr.f32.gmra.mxu0 %v304
      %v490 = vpop.f32.mrf.mxu0
      %v491 = vadd.f32 0.0, %v490
      %v492 = vpop.f32.mrf.mxu0
      %493 = vmatprep.mubr.f32.mxu0 %v308
      %494 = vmatmul.mubr.f32.gmra.mxu0 %v307
      %v495 = vpop.f32.mrf.mxu0
      %v496 = vadd.f32 0.0, %v495
      %v497 = vpop.f32.mrf.mxu0
      %498 = vmatprep.mubr.f32.mxu0 %v311
      %499 = vmatmul.mubr.f32.gmra.mxu0 %v310
      %v500 = vpop.f32.mrf.mxu0
      %v501 = vadd.f32 0.0, %v500
      %v502 = vpop.f32.mrf.mxu0
      %503 = vmatprep.mubr.f32.mxu0 %v314
      %504 = vmatmul.mubr.f32.gmra.mxu0 %v313
      %v505 = vpop.f32.mrf.mxu0
      %v506 = vadd.f32 0.0, %v505
      %v507 = vpop.f32.mrf.mxu0
      %508 = vmatprep.mubr.f32.mxu0 %v317
      %509 = vmatmul.mubr.f32.gmra.mxu0 %v316
      %v510 = vpop.f32.mrf.mxu0
      %v511 = vadd.f32 0.0, %v510
      %v512 = vpop.f32.mrf.mxu0
      %513 = vmatprep.mubr.f32.mxu0 %v320
      %514 = vmatmul.mubr.f32.gmra.mxu0 %v319
      %v515 = vpop.f32.mrf.mxu0
      %v516 = vadd.f32 0.0, %v515
      %v517 = vpop.f32.mrf.mxu0
      %518 = vmatprep.mubr.f32.mxu0 %v323
      %519 = vmatmul.mubr.f32.gmra.mxu0 %v322
      %v520 = vpop.f32.mrf.mxu0
      %v521 = vadd.f32 0.0, %v520
      %v522 = vpop.f32.mrf.mxu0
      %523 = vmatprep.mubr.f32.mxu0 %v326
      %524 = vmatmul.mubr.f32.gmra.mxu0 %v325
      %v525 = vpop.f32.mrf.mxu0
      %v526 = vadd.f32 0.0, %v525
      %v527 = vpop.f32.mrf.mxu0
      %528 = vmatprep.mubr.f32.mxu0 %v329
      %529 = vmatmul.mubr.f32.gmra.mxu0 %v328
      %v530 = vpop.f32.mrf.mxu0
      %v531 = vadd.f32 0.0, %v530
      %v532 = vpop.f32.mrf.mxu0
      %533 = vmatprep.mubr.f32.mxu0 %v332
      %534 = vmatmul.mubr.f32.gmra.mxu0 %v331
      %v535 = vpop.f32.mrf.mxu0
      %v536 = vadd.f32 0.0, %v535
      %v537 = vpop.f32.mrf.mxu0
      %538 = vmatprep.mubr.f32.mxu0 %v335
      %539 = vmatmul.mubr.f32.gmra.mxu0 %v334
      %v540 = vpop.f32.mrf.mxu0
      %v541 = vadd.f32 0.0, %v540
      %v542 = vpop.f32.mrf.mxu0
      %543 = vdwg.mxu0
      %544 = vmatprep.subr.mxu0 0.0
      %545 = vmatpush1.msra.mxu0 0.0
      %546 = vmatprep.subr.mxu0 0.0
      %547 = vmatpush1.msra.mxu0 0.0
      %548 = vmatprep.subr.mxu0 0.0
      %549 = vmatpush1.msra.mxu0 0.0
      %550 = vmatprep.subr.mxu0 0.0
      %551 = vmatpush1.msra.mxu0 %v381
      %552 = vmatprep.subr.mxu0 0.0
      %553 = vmatpush1.msra.mxu0 %v380
      %554 = vmatprep.subr.mxu0 0.0
      %555 = vmatpush1.msra.mxu0 %v379
      %556 = vmatprep.subr.mxu0 0.0
      %557 = vmatpush1.msra.mxu0 %v378
      %558 = vmatprep.subr.mxu0 0.0
      %559 = vmatpush1.msra.mxu0 %v377
      %560 = vmatprep.subr.mxu0 0.0
      %561 = vmatpush1.msra.mxu0 %v376
      %562 = vmatprep.subr.mxu0 0.0
      %563 = vmatpush1.msra.mxu0 %v375
      %564 = vmatprep.subr.mxu0 0.0
      %565 = vmatpush1.msra.mxu0 %v374
      %566 = vmatprep.subr.mxu0 0.0
      %567 = vmatpush1.msra.mxu0 %v373
      %568 = vmatprep.subr.mxu0 0.0
      %569 = vmatpush1.msra.mxu0 %v372
      %570 = vmatprep.subr.mxu0 0.0
      %571 = vmatpush1.msra.mxu0 %v371
      %572 = vmatprep.subr.mxu0 0.0
      %573 = vmatpush1.msra.mxu0 %v370
      %574 = vmatprep.subr.mxu0 0.0
      %575 = vmatpush1.msra.mxu0 %v369
      %576 = vmatprep.subr.mxu0 0.0
      %577 = vmatpush2.msra.mxu0 0.0
      %578 = vmatprep.subr.mxu0 0.0
      %579 = vmatpush2.msra.mxu0 0.0
      %580 = vmatprep.subr.mxu0 0.0
      %581 = vmatpush2.msra.mxu0 0.0
      %582 = vmatprep.subr.mxu0 0.0
      %583 = vmatpush2.msra.mxu0 0.0
      %584 = vmatprep.subr.mxu0 0.0
      %585 = vmatpush2.msra.mxu0 0.0
      %586 = vmatprep.subr.mxu0 0.0
      %587 = vmatpush2.msra.mxu0 0.0
      %588 = vmatprep.subr.mxu0 0.0
      %589 = vmatpush2.msra.mxu0 0.0
      %590 = vmatprep.subr.mxu0 0.0
      %591 = vmatpush2.msra.mxu0 0.0
      %592 = vmatprep.subr.mxu0 0.0
      %593 = vmatpush2.msra.mxu0 0.0
      %594 = vmatprep.subr.mxu0 0.0
      %595 = vmatpush2.msra.mxu0 0.0
      %596 = vmatprep.subr.mxu0 0.0
      %597 = vmatpush2.msra.mxu0 0.0
      %598 = vmatprep.subr.mxu0 0.0
      %599 = vmatpush2.msra.mxu0 0.0
      %600 = vmatprep.subr.mxu0 0.0
      %601 = vmatpush2.msra.mxu0 0.0
      %602 = vmatprep.subr.mxu0 0.0
      %603 = vmatpush2.msra.mxu0 0.0
      %604 = vmatprep.subr.mxu0 0.0
      %605 = vmatpush2.msra.mxu0 0.0
      %606 = vmatprep.subr.mxu0 0.0
      %607 = vmatpush2.msra.mxu0 0.0
      %608 = vmatprep.mubr.f32.mxu0 0.0
      %609 = vmatmul.mubr.f32.gmra.mxu0 %v384
      %v610 = vpop.f32.mrf.mxu0
      %v611 = vadd.f32 %v486, %v610
      %v612 = vpop.f32.mrf.mxu0
      %613 = vmatprep.mubr.f32.mxu0 0.0
      %614 = vmatmul.mubr.f32.gmra.mxu0 %v387
      %v615 = vpop.f32.mrf.mxu0
      %v616 = vadd.f32 %v491, %v615
      %v617 = vpop.f32.mrf.mxu0
      %618 = vmatprep.mubr.f32.mxu0 0.0
      %619 = vmatmul.mubr.f32.gmra.mxu0 %v390
      %v620 = vpop.f32.mrf.mxu0
      %v621 = vadd.f32 %v496, %v620
      %v622 = vpop.f32.mrf.mxu0
      %623 = vmatprep.mubr.f32.mxu0 0.0
      %624 = vmatmul.mubr.f32.gmra.mxu0 %v393
      %v625 = vpop.f32.mrf.mxu0
      %v626 = vadd.f32 %v501, %v625
      %v627 = vpop.f32.mrf.mxu0
      %628 = vmatprep.mubr.f32.mxu0 0.0
      %629 = vmatmul.mubr.f32.gmra.mxu0 %v396
      %v630 = vpop.f32.mrf.mxu0
      %v631 = vadd.f32 %v506, %v630
      %v632 = vpop.f32.mrf.mxu0
      %633 = vmatprep.mubr.f32.mxu0 0.0
      %634 = vmatmul.mubr.f32.gmra.mxu0 %v399
      %v635 = vpop.f32.mrf.mxu0
      %v636 = vadd.f32 %v511, %v635
      %v637 = vpop.f32.mrf.mxu0
      %638 = vmatprep.mubr.f32.mxu0 0.0
      %639 = vmatmul.mubr.f32.gmra.mxu0 %v402
      %v640 = vpop.f32.mrf.mxu0
      %v641 = vadd.f32 %v516, %v640
      %v642 = vpop.f32.mrf.mxu0
      %643 = vmatprep.mubr.f32.mxu0 0.0
      %644 = vmatmul.mubr.f32.gmra.mxu0 %v405
      %v645 = vpop.f32.mrf.mxu0
      %v646 = vadd.f32 %v521, %v645
      %v647 = vpop.f32.mrf.mxu0
      %648 = vmatprep.mubr.f32.mxu0 0.0
      %649 = vmatmul.mubr.f32.gmra.mxu0 %v408
      %v650 = vpop.f32.mrf.mxu0
      %v651 = vadd.f32 %v526, %v650
      %v652 = vpop.f32.mrf.mxu0
      %653 = vmatprep.mubr.f32.mxu0 0.0
      %654 = vmatmul.mubr.f32.gmra.mxu0 %v411
      %v655 = vpop.f32.mrf.mxu0
      %v656 = vadd.f32 %v531, %v655
      %v657 = vpop.f32.mrf.mxu0
      %658 = vmatprep.mubr.f32.mxu0 0.0
      %659 = vmatmul.mubr.f32.gmra.mxu0 %v414
      %v660 = vpop.f32.mrf.mxu0
      %v661 = vadd.f32 %v536, %v660
      %v662 = vpop.f32.mrf.mxu0
      %663 = vmatprep.mubr.f32.mxu0 0.0
      %664 = vmatmul.mubr.f32.gmra.mxu0 %v417
      %v665 = vpop.f32.mrf.mxu0
      %v666 = vadd.f32 %v541, %v665
      %v667 = vpop.f32.mrf.mxu0
      %668 = vdwg.mxu0
      %v669 = vmax.f32 %v611, %v626
      %v670 = vmax.f32 %v616, %v631
      %v671 = vmax.f32 %v621, %v636
      %v672 = vmax.f32 %v641, %v656
      %v673 = vmax.f32 %v646, %v661
      %v674 = vmax.f32 %v651, %v666
      %v675 = vmax.f32 %v669, %v672
      %v676 = vmax.f32 %v670, %v673
      %v677 = vmax.f32 %v671, %v674
      %v678 = vld [vmem:[%s2] sm:$0xff]
      %v679 = vld [vmem:[%s2 + $0x8] sm:$0xff]
      %v680 = vld [vmem:[%s2 + $0x10] sm:$0xff]
      %682 = vset.pattern.permute.xlu0 0
      %683 = vperm.xlu0 %682, %v678
      %v684 = vpop.permute.xlu0 %683
      %687 = vset.pattern.permute.xlu0 0
      %688 = vperm.xlu0 %687, %v679
      %v689 = vpop.permute.xlu0 %688
      %692 = vset.pattern.permute.xlu0 0
      %693 = vperm.xlu0 %692, %v680
      %v694 = vpop.permute.xlu0 %693
      %v696 = vadd.f32 %v675, %v684
      %v697 = vadd.f32 %v676, %v689
      %v698 = vadd.f32 %v677, %v694
      %v699 = vmax.f32 %v696, 0.0
      %v700 = vmax.f32 %v697, 0.0
      %v701 = vmax.f32 %v698, 0.0
      %702 = vst [vmem:[%s170] sm:$0xff] %v699
      %703 = vst [vmem:[%s170 + $0x8] sm:$0xff] %v700
      %704 = vst [vmem:[%s170 + $0x10] sm:$0xff] %v701
      %p705 = scmp.lt.s32.totalorder %s14, 1
      %s706 = scalar_select %p705, %s14, 1
      %s707 = smul.addr %s706, 3
      %s708 = smul.addr %s707, 8
      %s709 = scalar_lea.vmem %s3, %s708
      // Predicated region
      $region33: #{cnn_forward.6} parent=31 // pred_check
        %p710 = pneg %p100
      $region34: #{cnn_forward.6} parent=31 // pred_check_branch
        %712 = sbr.rel (%p710) target = $region36
      $region35: #{cnn_forward.6} parent=31 // pred_region
        _
      $region36: #{cnn_forward.6} parent=31 // pred_fallthru
        _
    $region32: #{cnn_forward.6} parent=5 // pred_fallthru
      _
    %p713 = scmp.le.s32.totalorder 2, %s9
    // Predicated region
    $region37: #{cnn_forward.6} parent=5 // pred_check
      %p714 = pneg %p713
    $region38: #{cnn_forward.6} parent=5 // pred_check_branch
      %716 = sbr.rel (%p714) target = $region40
    $region39: #{cnn_forward.6} parent=5 // pred_region
      %s717 = ssub.s32 %s9, 2
      // Predicated region
      $region41: #{cnn_forward.6} parent=39 // pred_check
        %p718 = pneg %p106
      $region42: #{cnn_forward.6} parent=39 // pred_check_branch
        %720 = sbr.rel (%p718) target = $region44
      $region43: #{cnn_forward.6} parent=39 // pred_region
        %p721 = scmp.lt.s32.totalorder %s15, 1
        %s722 = scalar_select %p721, %s15, 1
        %s723 = smul.addr %s722, 3
        %s724 = smul.addr %s723, 8
        %s725 = scalar_lea.vmem %s3, %s724
      $region44: #{cnn_forward.6} parent=39 // pred_fallthru
        _
    $region40: #{cnn_forward.6} parent=5 // pred_fallthru
      _
  $region6: #{cnn_forward.6} parent=0 // loop_footer
    %s13 = sadd.s32 1, %s9
  $region7: #{cnn_forward.6} parent=0 // loop_footer_branch
    %8 = sbr.rel target = $region3
  $region8: #{cnn_forward.6} parent=0 // loop_exit
    _

// kernel: cnn_forward.7
$region0: #{cnn_forward.7}
  #allocation0 [shape = 'u32[]', space=smem, size = 0x4, offset = 0x4, fixed_abs, tag = 'smem constant byte address 0x4 - core index']
  #allocation1 [shape = 'u32[144,128]{1,0:T(1,128)}', space=vmem, size = 0x12000, scoped, tag = 'internal scratch']
  #allocation2 [shape = 'f32[2,1024]{1,0:T(2,128)}', space=vmem, size = 0x2000, scoped, tag = 'scratch operand']
  %s0 = inlined_call_operand.vmem [shape: f32[2,1664], index: 0, kind: input, shape index: {}]
  %s1 = inlined_call_operand.vmem [shape: f32[1664,1024], index: 1, kind: input, shape index: {}]
  %s2 = inlined_call_operand.vmem [shape: f32[1,1024], index: 2, kind: input, shape index: {}]
  %s3 = inlined_call_operand.vmem [shape: f32[1024,128], index: 3, kind: input, shape index: {}]
  %s4 = inlined_call_operand.vmem [shape: f32[1,128], index: 4, kind: input, shape index: {}]
  %s5 = inlined_call_operand.vmem [shape: f32[128,2], index: 5, kind: input, shape index: {}]
  %s6 = inlined_call_operand.vmem [shape: f32[1,2], index: 6, kind: input, shape index: {}]
  %s7 = inlined_call_operand.hbm [shape: f32[2,2], index: 7, kind: output, shape index: {}]
  %s8 = sld [smem:[#allocation0]]
  $region69: #{cnn_forward.7} parent=0
    _
  %s10 = ssub.s32 1, %s8
  %s11 = scalar_select 0, %s10, %s8
  $region1: #{cnn_forward.7} parent=0
    #allocation3 [shape = 'u8[1024]{0}', space=vmem, size = 0x400, scoped, tag = 'output window, operand 0, single buffered']
    #allocation4 [shape = 's32[2]{0}', space=sflag, size = 0x8, scoped, tag = 'scoped memory for cnn_forward.7']
    %12 = vsyncpa [#allocation4], 0
    loop: start=0, step=1, limit=15
    $region2: #{cnn_forward.7} parent=1 // loop_pre_header
      _
    $region3: #{cnn_forward.7} parent=1 // loop_header
      %s14 = sphi 0, %s18
      %p15 = scmp.ge.s32.totalorder %s14, 15
      %s24 = sphi 0, %s26
      %s27 = sphi 0, %s24
      %s28 = sphi 0, %s27
      %s44 = sphi 0, %s28
      %s50 = sphi 0, %s52
      %s53 = sphi 0, %s50
      %s54 = sphi 0, %s53
      %s70 = sphi 0, %s54
      %s74 = sphi 0, %s74
      %s76 = sphi 0, %s74
      %s77 = sphi 0, %s76
      %s91 = sphi 0, %s77
      %s95 = sphi 0, %s95
      %s97 = sphi 0, %s95
      %s98 = sphi 0, %s97
      %s112 = sphi 0, %s98
      %s116 = sphi 0, %s116
      %s118 = sphi 0, %s116
      %s119 = sphi 0, %s118
      %s133 = sphi 0, %s119
      %s137 = sphi 0, %s137
      %s139 = sphi 0, %s137
      %s140 = sphi 0, %s139
      %s154 = sphi 0, %s140
      %s158 = sphi 0, %s158
      %s160 = sphi 0, %s158
      %s161 = sphi 0, %s160
      %s175 = sphi 0, %s161
      %s179 = sphi 0, %s179
      %s181 = sphi 0, %s179
      %s182 = sphi 0, %s181
      %s196 = sphi 0, %s182
    $region4: #{cnn_forward.7} parent=1 // loop_header_branch
      %17 = sbr.rel (%p15) target = $region8
    $region5: #{cnn_forward.7} parent=1 // loop_body
      %s19 = ssub.s32 %s14, 1
      %s20 = ssub.s32 %s14, 2
      %s21 = sadd.s32 %s14, 1
      %s22 = ssub.s32 %s14, %s21
      %p23 = scmp.eq.s32.totalorder %s22, 0
      %s25 = sadd.s32 %s24, 1
      %s26 = scalar_select %p23, %s24, %s25
      %p29 = pneg %p23
      %p30 = scmp.eq.s32.totalorder %s14, 12
      %p31 = por %p29, %p30
      %p32 = scmp.ne.s32.totalorder %s24, %s27
      %p33 = scmp.eq.s32.totalorder %s14, 0
      %p34 = por %p32, %p33
      %p35 = scmp.ne.s32.totalorder %s24, %s27
      %p36 = scmp.eq.s32.totalorder %s19, 12
      %p37 = por %p35, %p36
      %p38 = scmp.ne.s32.totalorder %s27, %s28
      %p39 = scmp.eq.s32.totalorder %s19, 0
      %p40 = por %p38, %p39
      %p41 = scmp.ne.s32.totalorder %s27, %s28
      %p42 = scmp.eq.s32.totalorder %s20, 12
      %p43 = por %p41, %p42
      %p45 = scmp.ne.s32.totalorder %s28, %s44
      %p46 = scmp.eq.s32.totalorder %s20, 0
      %p47 = por %p45, %p46
      %s48 = ssub.s32 %s14, %s21
      %p49 = scmp.eq.s32.totalorder %s48, 0
      %s51 = sadd.s32 %s50, 1
      %s52 = scalar_select %p49, %s50, %s51
      %p55 = pneg %p49
      %p56 = scmp.eq.s32.totalorder %s14, 12
      %p57 = por %p55, %p56
      %p58 = scmp.ne.s32.totalorder %s50, %s53
      %p59 = scmp.eq.s32.totalorder %s14, 0
      %p60 = por %p58, %p59
      %p61 = scmp.ne.s32.totalorder %s50, %s53
      %p62 = scmp.eq.s32.totalorder %s19, 12
      %p63 = por %p61, %p62
      %p64 = scmp.ne.s32.totalorder %s53, %s54
      %p65 = scmp.eq.s32.totalorder %s19, 0
      %p66 = por %p64, %p65
      %p67 = scmp.ne.s32.totalorder %s53, %s54
      %p68 = scmp.eq.s32.totalorder %s20, 12
      %p69 = por %p67, %p68
      %p71 = scmp.ne.s32.totalorder %s54, %s70
      %p72 = scmp.eq.s32.totalorder %s20, 0
      %p73 = por %p71, %p72
      %s75 = sadd.s32 %s74, 1
      %p78 = scmp.eq.s32.totalorder %s14, 12
      %p79 = scmp.ne.s32.totalorder %s74, %s76
      %p80 = scmp.eq.s32.totalorder %s14, 0
      %p81 = por %p79, %p80
      %p82 = scmp.ne.s32.totalorder %s74, %s76
      %p83 = scmp.eq.s32.totalorder %s19, 12
      %p84 = por %p82, %p83
      %p85 = scmp.ne.s32.totalorder %s76, %s77
      %p86 = scmp.eq.s32.totalorder %s19, 0
      %p87 = por %p85, %p86
      %p88 = scmp.ne.s32.totalorder %s76, %s77
      %p89 = scmp.eq.s32.totalorder %s20, 12
      %p90 = por %p88, %p89
      %p92 = scmp.ne.s32.totalorder %s77, %s91
      %p93 = scmp.eq.s32.totalorder %s20, 0
      %p94 = por %p92, %p93
      %s96 = sadd.s32 %s95, 1
      %p99 = scmp.eq.s32.totalorder %s14, 12
      %p100 = scmp.ne.s32.totalorder %s95, %s97
      %p101 = scmp.eq.s32.totalorder %s14, 0
      %p102 = por %p100, %p101
      %p103 = scmp.ne.s32.totalorder %s95, %s97
      %p104 = scmp.eq.s32.totalorder %s19, 12
      %p105 = por %p103, %p104
      %p106 = scmp.ne.s32.totalorder %s97, %s98
      %p107 = scmp.eq.s32.totalorder %s19, 0
      %p108 = por %p106, %p107
      %p109 = scmp.ne.s32.totalorder %s97, %s98
      %p110 = scmp.eq.s32.totalorder %s20, 12
      %p111 = por %p109, %p110
      %p113 = scmp.ne.s32.totalorder %s98, %s112
      %p114 = scmp.eq.s32.totalorder %s20, 0
      %p115 = por %p113, %p114
      %s117 = sadd.s32 %s116, 1
      %p120 = scmp.eq.s32.totalorder %s14, 12
      %p121 = scmp.ne.s32.totalorder %s116, %s118
      %p122 = scmp.eq.s32.totalorder %s14, 0
      %p123 = por %p121, %p122
      %p124 = scmp.ne.s32.totalorder %s116, %s118
      %p125 = scmp.eq.s32.totalorder %s19, 12
      %p126 = por %p124, %p125
      %p127 = scmp.ne.s32.totalorder %s118, %s119
      %p128 = scmp.eq.s32.totalorder %s19, 0
      %p129 = por %p127, %p128
      %p130 = scmp.ne.s32.totalorder %s118, %s119
      %p131 = scmp.eq.s32.totalorder %s20, 12
      %p132 = por %p130, %p131
      %p134 = scmp.ne.s32.totalorder %s119, %s133
      %p135 = scmp.eq.s32.totalorder %s20, 0
      %p136 = por %p134, %p135
      %s138 = sadd.s32 %s137, 1
      %p141 = scmp.eq.s32.totalorder %s14, 12
      %p142 = scmp.ne.s32.totalorder %s137, %s139
      %p143 = scmp.eq.s32.totalorder %s14, 0
      %p144 = por %p142, %p143
      %p145 = scmp.ne.s32.totalorder %s137, %s139
      %p146 = scmp.eq.s32.totalorder %s19, 12
      %p147 = por %p145, %p146
      %p148 = scmp.ne.s32.totalorder %s139, %s140
      %p149 = scmp.eq.s32.totalorder %s19, 0
      %p150 = por %p148, %p149
      %p151 = scmp.ne.s32.totalorder %s139, %s140
      %p152 = scmp.eq.s32.totalorder %s20, 12
      %p153 = por %p151, %p152
      %p155 = scmp.ne.s32.totalorder %s140, %s154
      %p156 = scmp.eq.s32.totalorder %s20, 0
      %p157 = por %p155, %p156
      %s159 = sadd.s32 %s158, 1
      %p162 = scmp.eq.s32.totalorder %s14, 12
      %p163 = scmp.ne.s32.totalorder %s158, %s160
      %p164 = scmp.eq.s32.totalorder %s14, 0
      %p165 = por %p163, %p164
      %p166 = scmp.ne.s32.totalorder %s158, %s160
      %p167 = scmp.eq.s32.totalorder %s19, 12
      %p168 = por %p166, %p167
      %p169 = scmp.ne.s32.totalorder %s160, %s161
      %p170 = scmp.eq.s32.totalorder %s19, 0
      %p171 = por %p169, %p170
      %p172 = scmp.ne.s32.totalorder %s160, %s161
      %p173 = scmp.eq.s32.totalorder %s20, 12
      %p174 = por %p172, %p173
      %p176 = scmp.ne.s32.totalorder %s161, %s175
      %p177 = scmp.eq.s32.totalorder %s20, 0
      %p178 = por %p176, %p177
      %s180 = sadd.s32 %s179, 1
      %p183 = scmp.eq.s32.totalorder %s14, 12
      %p184 = scmp.ne.s32.totalorder %s179, %s181
      %p185 = scmp.eq.s32.totalorder %s14, 0
      %p186 = por %p184, %p185
      %p187 = scmp.ne.s32.totalorder %s179, %s181
      %p188 = scmp.eq.s32.totalorder %s19, 12
      %p189 = por %p187, %p188
      %p190 = scmp.ne.s32.totalorder %s181, %s182
      %p191 = scmp.eq.s32.totalorder %s19, 0
      %p192 = por %p190, %p191
      %p193 = scmp.ne.s32.totalorder %s181, %s182
      %p194 = scmp.eq.s32.totalorder %s20, 12
      %p195 = por %p193, %p194
      %p197 = scmp.ne.s32.totalorder %s182, %s196
      %p198 = scmp.eq.s32.totalorder %s20, 0
      %p199 = por %p197, %p198
      %p200 = scmp.le.s32.totalorder 1, %s14
      %p201 = scmp.lt.s32.totalorder %s14, 14
      %p202 = pnand %p200, %p201
      %p203 = pneg %p202
      // Predicated region
      $region9: #{cnn_forward.7} parent=5 // pred_check
        _
      $region10: #{cnn_forward.7} parent=5 // pred_check_branch
        %205 = sbr.rel (%p202) target = $region12
      $region11: #{cnn_forward.7} parent=5 // pred_region
        %s206 = ssub.s32 %s14, 1
        // Predicated region
        $region13: #{cnn_forward.7} parent=11 // pred_check
          %p207 = pneg %p87
        $region14: #{cnn_forward.7} parent=11 // pred_check_branch
          %209 = sbr.rel (%p207) target = $region16
        $region15: #{cnn_forward.7} parent=11 // pred_region
          _
        $region16: #{cnn_forward.7} parent=11 // pred_fallthru
          _
        // Predicated region
        $region17: #{cnn_forward.7} parent=11 // pred_check
          %p210 = pneg %p108
        $region18: #{cnn_forward.7} parent=11 // pred_check_branch
          %212 = sbr.rel (%p210) target = $region20
        $region19: #{cnn_forward.7} parent=11 // pred_region
          _
        $region20: #{cnn_forward.7} parent=11 // pred_fallthru
          _
        // Predicated region
        $region21: #{cnn_forward.7} parent=11 // pred_check
          %p213 = pneg %p129
        $region22: #{cnn_forward.7} parent=11 // pred_check_branch
          %215 = sbr.rel (%p213) target = $region24
        $region23: #{cnn_forward.7} parent=11 // pred_region
          _
        $region24: #{cnn_forward.7} parent=11 // pred_fallthru
          _
        // Predicated region
        $region25: #{cnn_forward.7} parent=11 // pred_check
          %p216 = pneg %p150
        $region26: #{cnn_forward.7} parent=11 // pred_check_branch
          %218 = sbr.rel (%p216) target = $region28
        $region27: #{cnn_forward.7} parent=11 // pred_region
          _
        $region28: #{cnn_forward.7} parent=11 // pred_fallthru
          _
        // Predicated region
        $region29: #{cnn_forward.7} parent=11 // pred_check
          %p219 = pneg %p171
        $region30: #{cnn_forward.7} parent=11 // pred_check_branch
          %221 = sbr.rel (%p219) target = $region32
        $region31: #{cnn_forward.7} parent=11 // pred_region
          _
        $region32: #{cnn_forward.7} parent=11 // pred_fallthru
          _
      $region12: #{cnn_forward.7} parent=5 // pred_fallthru
        _
      %p222 = scmp.lt.s32.totalorder %s14, 13
      // Predicated region
      $region33: #{cnn_forward.7} parent=5 // pred_check
        %p223 = pneg %p222
      $region34: #{cnn_forward.7} parent=5 // pred_check_branch
        %225 = sbr.rel (%p223) target = $region36
      $region35: #{cnn_forward.7} parent=5 // pred_region
        // Predicated region
        $region37: #{cnn_forward.7} parent=35 // pred_check
          %p226 = pneg %p34
        $region38: #{cnn_forward.7} parent=35 // pred_check_branch
          %228 = sbr.rel (%p226) target = $region40
        $region39: #{cnn_forward.7} parent=35 // pred_region
          %p229 = scmp.lt.s32.totalorder %s14, 12
          %s230 = scalar_select %p229, %s14, 12
          %s231 = smul.addr %s230, 2
          %s232 = scalar_lea.vmem %s0, %s231
        $region40: #{cnn_forward.7} parent=35 // pred_fallthru
          _
        // Predicated region
        $region41: #{cnn_forward.7} parent=35 // pred_check
          %p233 = pneg %p60
        $region42: #{cnn_forward.7} parent=35 // pred_check_branch
          %235 = sbr.rel (%p233) target = $region44
        $region43: #{cnn_forward.7} parent=35 // pred_region
          %s236 = smul.u32 16, %s14
          %p237 = scmp.lt.s32.totalorder %s236, 207
          %s238 = scalar_select %p237, %s236, 207
          %s239 = smul.addr %s238, 8
          %s240 = smul.addr %s239, 8
          %s241 = scalar_lea.vmem %s1, %s240
          %s242 = smul.u32 16, %s14
        $region44: #{cnn_forward.7} parent=35 // pred_fallthru
          _
      $region36: #{cnn_forward.7} parent=5 // pred_fallthru
        _
      %p243 = scmp.le.s32.totalorder 1, %s14
      %p244 = scmp.lt.s32.totalorder %s14, 14
      %p245 = pnand %p243, %p244
      %p246 = pneg %p245
      // Predicated region
      $region45: #{cnn_forward.7} parent=5 // pred_check
        _
      $region46: #{cnn_forward.7} parent=5 // pred_check_branch
        %248 = sbr.rel (%p245) target = $region48
      $region47: #{cnn_forward.7} parent=5 // pred_region
        %s249 = ssub.s32 %s14, 1
        %p250 = scmp.lt.s32.totalorder %s19, 12
        %s251 = scalar_select %p250, %s19, 12
        %s252 = smul.addr %s251, 2
        %s253 = scalar_lea.vmem %s0, %s252
        %p254 = pneg %p40
        %p255 = pneg %p37
        %s256 = smul.u32 16, %s19
        %p257 = scmp.lt.s32.totalorder %s256, 207
        %s258 = scalar_select %p257, %s256, 207
        %s259 = smul.addr %s258, 8
        %s260 = smul.addr %s259, 8
        %s261 = scalar_lea.vmem %s1, %s260
        %p262 = pneg %p66
        %p263 = pneg %p63
        %p264 = pneg %p87
        %p265 = pneg %p84
        %p266 = pneg %p108
        %p267 = pneg %p105
        %p268 = pneg %p129
        %p269 = pneg %p126
        %p270 = pneg %p150
        %p271 = pneg %p147
        %p272 = pneg %p171
        %p273 = pneg %p168
        %p274 = pneg %p192
        %p275 = pneg %p189
        %p276 = scmp.lt.s32.totalorder %s19, 12
        %s277 = scalar_select %p276, %s19, 12
        %s278 = smul.addr %s277, 2
        %s279 = scalar_lea.vmem %s0, %s278
        %s280 = smul.u32 16, %s19
        %p281 = scmp.lt.s32.totalorder %s280, 207
        %s282 = scalar_select %p281, %s280, 207
        %s283 = smul.addr %s282, 8
        %s284 = smul.addr %s283, 8
        %s285 = scalar_lea.vmem %s1, %s284
        %s286 = smul.u32 16, %s19
        %p287 = scmp.eq.s32.totalorder %s19, 0
        // Predicated region
        $region49: #{cnn_forward.7} parent=47 // pred_check
          %p288 = pneg %p287
        $region50: #{cnn_forward.7} parent=47 // pred_check_branch
          %290 = sbr.rel (%p288) target = $region52
        $region51: #{cnn_forward.7} parent=47 // pred_region
          %291 = vst [vmem:[#allocation2] sm:$0xff] 0.0
          %292 = vst [vmem:[#allocation2 + $0x8] sm:$0xff] 0.0
        $region52: #{cnn_forward.7} parent=47 // pred_fallthru
          _
        %v293 = vld [vmem:[#allocation2] sm:$0xff]
        %v294 = vld [vmem:[#allocation2 + $0x8] sm:$0xff]
        %v295 = vld [vmem:[%s279] sm:$0x3]
        %v296 = vld [vmem:[%s285] sm:$0xff]
        %v297 = vld [vmem:[%s285 + $0x8] sm:$0xff]
        %v298 = vld [vmem:[%s285 + $0x10] sm:$0xff]
        %v299 = vld [vmem:[%s285 + $0x18] sm:$0xff]
        %v300 = vld [vmem:[%s285 + $0x20] sm:$0xff]
        %v301 = vld [vmem:[%s285 + $0x28] sm:$0xff]
        %v302 = vld [vmem:[%s285 + $0x30] sm:$0xff]
        %v303 = vld [vmem:[%s285 + $0x38] sm:$0xff]
        %v304 = vld [vmem:[%s285 + $0x40] sm:$0xff]
        %v305 = vld [vmem:[%s285 + $0x48] sm:$0xff]
        %v306 = vld [vmem:[%s285 + $0x50] sm:$0xff]
        %v307 = vld [vmem:[%s285 + $0x58] sm:$0xff]
        %v308 = vld [vmem:[%s285 + $0x60] sm:$0xff]
        %v309 = vld [vmem:[%s285 + $0x68] sm:$0xff]
        %v310 = vld [vmem:[%s285 + $0x70] sm:$0xff]
        %v311 = vld [vmem:[%s285 + $0x78] sm:$0xff]
        %v312 = vld [vmem:[%s285 + $0x80] sm:$0xff]
        %v313 = vld [vmem:[%s285 + $0x88] sm:$0xff]
        %v314 = vld [vmem:[%s285 + $0x90] sm:$0xff]
        %v315 = vld [vmem:[%s285 + $0x98] sm:$0xff]
        %v316 = vld [vmem:[%s285 + $0xa0] sm:$0xff]
        %v317 = vld [vmem:[%s285 + $0xa8] sm:$0xff]
        %v318 = vld [vmem:[%s285 + $0xb0] sm:$0xff]
        %v319 = vld [vmem:[%s285 + $0xb8] sm:$0xff]
        %v320 = vld [vmem:[%s285 + $0xc0] sm:$0xff]
        %v321 = vld [vmem:[%s285 + $0xc8] sm:$0xff]
        %v322 = vld [vmem:[%s285 + $0xd0] sm:$0xff]
        %v323 = vld [vmem:[%s285 + $0xd8] sm:$0xff]
        %v324 = vld [vmem:[%s285 + $0xe0] sm:$0xff]
        %v325 = vld [vmem:[%s285 + $0xe8] sm:$0xff]
        %v326 = vld [vmem:[%s285 + $0xf0] sm:$0xff]
        %v327 = vld [vmem:[%s285 + $0xf8] sm:$0xff]
        %v328 = vld [vmem:[%s285 + $0x100] sm:$0xff]
        %v329 = vld [vmem:[%s285 + $0x108] sm:$0xff]
        %v330 = vld [vmem:[%s285 + $0x110] sm:$0xff]
        %v331 = vld [vmem:[%s285 + $0x118] sm:$0xff]
        %v332 = vld [vmem:[%s285 + $0x120] sm:$0xff]
        %v333 = vld [vmem:[%s285 + $0x128] sm:$0xff]
        %v334 = vld [vmem:[%s285 + $0x130] sm:$0xff]
        %v335 = vld [vmem:[%s285 + $0x138] sm:$0xff]
        %v336 = vld [vmem:[%s285 + $0x140] sm:$0xff]
        %v337 = vld [vmem:[%s285 + $0x148] sm:$0xff]
        %v338 = vld [vmem:[%s285 + $0x150] sm:$0xff]
        %v339 = vld [vmem:[%s285 + $0x158] sm:$0xff]
        %v340 = vld [vmem:[%s285 + $0x160] sm:$0xff]
        %v341 = vld [vmem:[%s285 + $0x168] sm:$0xff]
        %v342 = vld [vmem:[%s285 + $0x170] sm:$0xff]
        %v343 = vld [vmem:[%s285 + $0x178] sm:$0xff]
        %v344 = vld [vmem:[%s285 + $0x180] sm:$0xff]
        %v345 = vld [vmem:[%s285 + $0x188] sm:$0xff]
        %v346 = vld [vmem:[%s285 + $0x190] sm:$0xff]
        %v347 = vld [vmem:[%s285 + $0x198] sm:$0xff]
        %v348 = vld [vmem:[%s285 + $0x1a0] sm:$0xff]
        %v349 = vld [vmem:[%s285 + $0x1a8] sm:$0xff]
        %v350 = vld [vmem:[%s285 + $0x1b0] sm:$0xff]
        %v351 = vld [vmem:[%s285 + $0x1b8] sm:$0xff]
        %v352 = vld [vmem:[%s285 + $0x1c0] sm:$0xff]
        %v353 = vld [vmem:[%s285 + $0x1c8] sm:$0xff]
        %v354 = vld [vmem:[%s285 + $0x1d0] sm:$0xff]
        %v355 = vld [vmem:[%s285 + $0x1d8] sm:$0xff]
        %v356 = vld [vmem:[%s285 + $0x1e0] sm:$0xff]
        %v357 = vld [vmem:[%s285 + $0x1e8] sm:$0xff]
        %v358 = vld [vmem:[%s285 + $0x1f0] sm:$0xff]
        %v359 = vld [vmem:[%s285 + $0x1f8] sm:$0xff]
        %v360 = vld [vmem:[%s285 + $0x200] sm:$0xff]
        %v361 = vld [vmem:[%s285 + $0x208] sm:$0xff]
        %v362 = vld [vmem:[%s285 + $0x210] sm:$0xff]
        %v363 = vld [vmem:[%s285 + $0x218] sm:$0xff]
        %v364 = vld [vmem:[%s285 + $0x220] sm:$0xff]
        %v365 = vld [vmem:[%s285 + $0x228] sm:$0xff]
        %v366 = vld [vmem:[%s285 + $0x230] sm:$0xff]
        %v367 = vld [vmem:[%s285 + $0x238] sm:$0xff]
        %v368 = vld [vmem:[%s285 + $0x240] sm:$0xff]
        %v369 = vld [vmem:[%s285 + $0x248] sm:$0xff]
        %v370 = vld [vmem:[%s285 + $0x250] sm:$0xff]
        %v371 = vld [vmem:[%s285 + $0x258] sm:$0xff]
        %v372 = vld [vmem:[%s285 + $0x260] sm:$0xff]
        %v373 = vld [vmem:[%s285 + $0x268] sm:$0xff]
        %v374 = vld [vmem:[%s285 + $0x270] sm:$0xff]
        %v375 = vld [vmem:[%s285 + $0x278] sm:$0xff]
        %v376 = vld [vmem:[%s285 + $0x280] sm:$0xff]
        %v377 = vld [vmem:[%s285 + $0x288] sm:$0xff]
        %v378 = vld [vmem:[%s285 + $0x290] sm:$0xff]
        %v379 = vld [vmem:[%s285 + $0x298] sm:$0xff]
        %v380 = vld [vmem:[%s285 + $0x2a0] sm:$0xff]
        %v381 = vld [vmem:[%s285 + $0x2a8] sm:$0xff]
        %v382 = vld [vmem:[%s285 + $0x2b0] sm:$0xff]
        %v383 = vld [vmem:[%s285 + $0x2b8] sm:$0xff]
        %v384 = vld [vmem:[%s285 + $0x2c0] sm:$0xff]
        %v385 = vld [vmem:[%s285 + $0x2c8] sm:$0xff]
        %v386 = vld [vmem:[%s285 + $0x2d0] sm:$0xff]
        %v387 = vld [vmem:[%s285 + $0x2d8] sm:$0xff]
        %v388 = vld [vmem:[%s285 + $0x2e0] sm:$0xff]
        %v389 = vld [vmem:[%s285 + $0x2e8] sm:$0xff]
        %v390 = vld [vmem:[%s285 + $0x2f0] sm:$0xff]
        %v391 = vld [vmem:[%s285 + $0x2f8] sm:$0xff]
        %v392 = vld [vmem:[%s285 + $0x300] sm:$0xff]
        %v393 = vld [vmem:[%s285 + $0x308] sm:$0xff]
        %v394 = vld [vmem:[%s285 + $0x310] sm:$0xff]
        %v395 = vld [vmem:[%s285 + $0x318] sm:$0xff]
        %v396 = vld [vmem:[%s285 + $0x320] sm:$0xff]
        %v397 = vld [vmem:[%s285 + $0x328] sm:$0xff]
        %v398 = vld [vmem:[%s285 + $0x330] sm:$0xff]
        %v399 = vld [vmem:[%s285 + $0x338] sm:$0xff]
        %v400 = vld [vmem:[%s285 + $0x340] sm:$0xff]
        %v401 = vld [vmem:[%s285 + $0x348] sm:$0xff]
        %v402 = vld [vmem:[%s285 + $0x350] sm:$0xff]
        %v403 = vld [vmem:[%s285 + $0x358] sm:$0xff]
        %v404 = vld [vmem:[%s285 + $0x360] sm:$0xff]
        %v405 = vld [vmem:[%s285 + $0x368] sm:$0xff]
        %v406 = vld [vmem:[%s285 + $0x370] sm:$0xff]
        %v407 = vld [vmem:[%s285 + $0x378] sm:$0xff]
        %v408 = vld [vmem:[%s285 + $0x380] sm:$0xff]
        %v409 = vld [vmem:[%s285 + $0x388] sm:$0xff]
        %v410 = vld [vmem:[%s285 + $0x390] sm:$0xff]
        %v411 = vld [vmem:[%s285 + $0x398] sm:$0xff]
        %v412 = vld [vmem:[%s285 + $0x3a0] sm:$0xff]
        %v413 = vld [vmem:[%s285 + $0x3a8] sm:$0xff]
        %v414 = vld [vmem:[%s285 + $0x3b0] sm:$0xff]
        %v415 = vld [vmem:[%s285 + $0x3b8] sm:$0xff]
        %v416 = vld [vmem:[%s285 + $0x3c0] sm:$0xff]
        %v417 = vld [vmem:[%s285 + $0x3c8] sm:$0xff]
        %v418 = vld [vmem:[%s285 + $0x3d0] sm:$0xff]
        %v419 = vld [vmem:[%s285 + $0x3d8] sm:$0xff]
        %v420 = vld [vmem:[%s285 + $0x3e0] sm:$0xff]
        %v421 = vld [vmem:[%s285 + $0x3e8] sm:$0xff]
        %v422 = vld [vmem:[%s285 + $0x3f0] sm:$0xff]
        %v423 = vld [vmem:[%s285 + $0x3f8] sm:$0xff]
        %424 = vmatprep.subr.mxu0 %v417
        %425 = vmatpush1.msra.mxu0 %v416
        %426 = vmatprep.subr.mxu0 %v409
        %427 = vmatpush1.msra.mxu0 %v408
        %428 = vmatprep.subr.mxu0 %v401
        %429 = vmatpush1.msra.mxu0 %v400
        %430 = vmatprep.subr.mxu0 %v393
        %431 = vmatpush1.msra.mxu0 %v392
        %432 = vmatprep.subr.mxu0 %v385
        %433 = vmatpush1.msra.mxu0 %v384
        %434 = vmatprep.subr.mxu0 %v377
        %435 = vmatpush1.msra.mxu0 %v376
        %436 = vmatprep.subr.mxu0 %v369
        %437 = vmatpush1.msra.mxu0 %v368
        %438 = vmatprep.subr.mxu0 %v361
        %439 = vmatpush1.msra.mxu0 %v360
        %440 = vmatprep.subr.mxu0 %v353
        %441 = vmatpush1.msra.mxu0 %v352
        %442 = vmatprep.subr.mxu0 %v345
        %443 = vmatpush1.msra.mxu0 %v344
        %444 = vmatprep.subr.mxu0 %v337
        %445 = vmatpush1.msra.mxu0 %v336
        %446 = vmatprep.subr.mxu0 %v329
        %447 = vmatpush1.msra.mxu0 %v328
        %448 = vmatprep.subr.mxu0 %v321
        %449 = vmatpush1.msra.mxu0 %v320
        %450 = vmatprep.subr.mxu0 %v313
        %451 = vmatpush1.msra.mxu0 %v312
        %452 = vmatprep.subr.mxu0 %v305
        %453 = vmatpush1.msra.mxu0 %v304
        %454 = vmatprep.subr.mxu0 %v297
        %455 = vmatpush1.msra.mxu0 %v296
        %456 = vmatprep.subr.mxu0 0.0
        %457 = vmatpush2.msra.mxu0 0.0
        %458 = vmatprep.subr.mxu0 0.0
        %459 = vmatpush2.msra.mxu0 0.0
        %460 = vmatprep.subr.mxu0 0.0
        %461 = vmatpush2.msra.mxu0 0.0
        %462 = vmatprep.subr.mxu0 0.0
        %463 = vmatpush2.msra.mxu0 0.0
        %464 = vmatprep.subr.mxu0 0.0
        %465 = vmatpush2.msra.mxu0 0.0
        %466 = vmatprep.subr.mxu0 0.0
        %467 = vmatpush2.msra.mxu0 0.0
        %468 = vmatprep.subr.mxu0 0.0
        %469 = vmatpush2.msra.mxu0 0.0
        %470 = vmatprep.subr.mxu0 0.0
        %471 = vmatpush2.msra.mxu0 0.0
        %472 = vmatprep.subr.mxu0 0.0
        %473 = vmatpush2.msra.mxu0 0.0
        %474 = vmatprep.subr.mxu0 0.0
        %475 = vmatpush2.msra.mxu0 0.0
        %476 = vmatprep.subr.mxu0 0.0
        %477 = vmatpush2.msra.mxu0 0.0
        %478 = vmatprep.subr.mxu0 0.0
        %479 = vmatpush2.msra.mxu0 0.0
        %480 = vmatprep.subr.mxu0 0.0
        %481 = vmatpush2.msra.mxu0 0.0
        %482 = vmatprep.subr.mxu0 0.0
        %483 = vmatpush2.msra.mxu0 0.0
        %484 = vmatprep.subr.mxu0 0.0
        %485 = vmatpush2.msra.mxu0 0.0
        %486 = vmatprep.subr.mxu0 0.0
        %487 = vmatpush2.msra.mxu0 0.0
        %488 = vmatprep.mubr.f32.mxu0 0.0
        %489 = vmatmul.mubr.f32.gmra.mxu0 %v295
        %v490 = vpop.f32.mrf.mxu0
        %v491 = vadd.f32 0.0, %v490
        %v492 = vpop.f32.mrf.mxu0
        %v493 = vadd.f32 0.0, %v492
        %494 = vdwg.mxu0
        %495 = vmatprep.subr.mxu0 %v419
        %496 = vmatpush1.msra.mxu0 %v418
        %497 = vmatprep.subr.mxu0 %v411
        %498 = vmatpush1.msra.mxu0 %v410
        %499 = vmatprep.subr.mxu0 %v403
        %500 = vmatpush1.msra.mxu0 %v402
        %501 = vmatprep.subr.mxu0 %v395
        %502 = vmatpush1.msra.mxu0 %v394
        %503 = vmatprep.subr.mxu0 %v387
        %504 = vmatpush1.msra.mxu0 %v386
        %505 = vmatprep.subr.mxu0 %v379
        %506 = vmatpush1.msra.mxu0 %v378
        %507 = vmatprep.subr.mxu0 %v371
        %508 = vmatpush1.msra.mxu0 %v370
        %509 = vmatprep.subr.mxu0 %v363
        %510 = vmatpush1.msra.mxu0 %v362
        %511 = vmatprep.subr.mxu0 %v355
        %512 = vmatpush1.msra.mxu0 %v354
        %513 = vmatprep.subr.mxu0 %v347
        %514 = vmatpush1.msra.mxu0 %v346
        %515 = vmatprep.subr.mxu0 %v339
        %516 = vmatpush1.msra.mxu0 %v338
        %517 = vmatprep.subr.mxu0 %v331
        %518 = vmatpush1.msra.mxu0 %v330
        %519 = vmatprep.subr.mxu0 %v323
        %520 = vmatpush1.msra.mxu0 %v322
        %521 = vmatprep.subr.mxu0 %v315
        %522 = vmatpush1.msra.mxu0 %v314
        %523 = vmatprep.subr.mxu0 %v307
        %524 = vmatpush1.msra.mxu0 %v306
        %525 = vmatprep.subr.mxu0 %v299
        %526 = vmatpush1.msra.mxu0 %v298
        %527 = vmatprep.subr.mxu0 0.0
        %528 = vmatpush2.msra.mxu0 0.0
        %529 = vmatprep.subr.mxu0 0.0
        %530 = vmatpush2.msra.mxu0 0.0
        %531 = vmatprep.subr.mxu0 0.0
        %532 = vmatpush2.msra.mxu0 0.0
        %533 = vmatprep.subr.mxu0 0.0
        %534 = vmatpush2.msra.mxu0 0.0
        %535 = vmatprep.subr.mxu0 0.0
        %536 = vmatpush2.msra.mxu0 0.0
        %537 = vmatprep.subr.mxu0 0.0
        %538 = vmatpush2.msra.mxu0 0.0
        %539 = vmatprep.subr.mxu0 0.0
        %540 = vmatpush2.msra.mxu0 0.0
        %541 = vmatprep.subr.mxu0 0.0
        %542 = vmatpush2.msra.mxu0 0.0
        %543 = vmatprep.subr.mxu0 0.0
        %544 = vmatpush2.msra.mxu0 0.0
        %545 = vmatprep.subr.mxu0 0.0
        %546 = vmatpush2.msra.mxu0 0.0
        %547 = vmatprep.subr.mxu0 0.0
        %548 = vmatpush2.msra.mxu0 0.0
        %549 = vmatprep.subr.mxu0 0.0
        %550 = vmatpush2.msra.mxu0 0.0
        %551 = vmatprep.subr.mxu0 0.0
        %552 = vmatpush2.msra.mxu0 0.0
        %553 = vmatprep.subr.mxu0 0.0
        %554 = vmatpush2.msra.mxu0 0.0
        %555 = vmatprep.subr.mxu0 0.0
        %556 = vmatpush2.msra.mxu0 0.0
        %557 = vmatprep.subr.mxu0 0.0
        %558 = vmatpush2.msra.mxu0 0.0
        %559 = vmatprep.mubr.f32.mxu0 0.0
        %560 = vmatmul.mubr.f32.gmra.mxu0 %v295
        %v561 = vpop.f32.mrf.mxu0
        %v562 = vadd.f32 0.0, %v561
        %v563 = vpop.f32.mrf.mxu0
        %v564 = vadd.f32 0.0, %v563
        %565 = vdwg.mxu0
        %566 = vmatprep.subr.mxu0 %v421
        %567 = vmatpush1.msra.mxu0 %v420
        %568 = vmatprep.subr.mxu0 %v413
        %569 = vmatpush1.msra.mxu0 %v412
        %570 = vmatprep.subr.mxu0 %v405
        %571 = vmatpush1.msra.mxu0 %v404
        %572 = vmatprep.subr.mxu0 %v397
        %573 = vmatpush1.msra.mxu0 %v396
        %574 = vmatprep.subr.mxu0 %v389
        %575 = vmatpush1.msra.mxu0 %v388
        %576 = vmatprep.subr.mxu0 %v381
        %577 = vmatpush1.msra.mxu0 %v380
        %578 = vmatprep.subr.mxu0 %v373
        %579 = vmatpush1.msra.mxu0 %v372
        %580 = vmatprep.subr.mxu0 %v365
        %581 = vmatpush1.msra.mxu0 %v364
        %582 = vmatprep.subr.mxu0 %v357
        %583 = vmatpush1.msra.mxu0 %v356
        %584 = vmatprep.subr.mxu0 %v349
        %585 = vmatpush1.msra.mxu0 %v348
        %586 = vmatprep.subr.mxu0 %v341
        %587 = vmatpush1.msra.mxu0 %v340
        %588 = vmatprep.subr.mxu0 %v333
        %589 = vmatpush1.msra.mxu0 %v332
        %590 = vmatprep.subr.mxu0 %v325
        %591 = vmatpush1.msra.mxu0 %v324
        %592 = vmatprep.subr.mxu0 %v317
        %593 = vmatpush1.msra.mxu0 %v316
        %594 = vmatprep.subr.mxu0 %v309
        %595 = vmatpush1.msra.mxu0 %v308
        %596 = vmatprep.subr.mxu0 %v301
        %597 = vmatpush1.msra.mxu0 %v300
        %598 = vmatprep.subr.mxu0 0.0
        %599 = vmatpush2.msra.mxu0 0.0
        %600 = vmatprep.subr.mxu0 0.0
        %601 = vmatpush2.msra.mxu0 0.0
        %602 = vmatprep.subr.mxu0 0.0
        %603 = vmatpush2.msra.mxu0 0.0
        %604 = vmatprep.subr.mxu0 0.0
        %605 = vmatpush2.msra.mxu0 0.0
        %606 = vmatprep.subr.mxu0 0.0
        %607 = vmatpush2.msra.mxu0 0.0
        %608 = vmatprep.subr.mxu0 0.0
        %609 = vmatpush2.msra.mxu0 0.0
        %610 = vmatprep.subr.mxu0 0.0
        %611 = vmatpush2.msra.mxu0 0.0
        %612 = vmatprep.subr.mxu0 0.0
        %613 = vmatpush2.msra.mxu0 0.0
        %614 = vmatprep.subr.mxu0 0.0
        %615 = vmatpush2.msra.mxu0 0.0
        %616 = vmatprep.subr.mxu0 0.0
        %617 = vmatpush2.msra.mxu0 0.0
        %618 = vmatprep.subr.mxu0 0.0
        %619 = vmatpush2.msra.mxu0 0.0
        %620 = vmatprep.subr.mxu0 0.0
        %621 = vmatpush2.msra.mxu0 0.0
        %622 = vmatprep.subr.mxu0 0.0
        %623 = vmatpush2.msra.mxu0 0.0
        %624 = vmatprep.subr.mxu0 0.0
        %625 = vmatpush2.msra.mxu0 0.0
        %626 = vmatprep.subr.mxu0 0.0
        %627 = vmatpush2.msra.mxu0 0.0
        %628 = vmatprep.subr.mxu0 0.0
        %629 = vmatpush2.msra.mxu0 0.0
        %630 = vmatprep.mubr.f32.mxu0 0.0
        %631 = vmatmul.mubr.f32.gmra.mxu0 %v295
        %v632 = vpop.f32.mrf.mxu0
        %v633 = vadd.f32 0.0, %v632
        %v634 = vpop.f32.mrf.mxu0
        %v635 = vadd.f32 0.0, %v634
        %636 = vdwg.mxu0
        %637 = vmatprep.subr.mxu0 %v423
        %638 = vmatpush1.msra.mxu0 %v422
        %639 = vmatprep.subr.mxu0 %v415
        %640 = vmatpush1.msra.mxu0 %v414
        %641 = vmatprep.subr.mxu0 %v407
        %642 = vmatpush1.msra.mxu0 %v406
        %643 = vmatprep.subr.mxu0 %v399
        %644 = vmatpush1.msra.mxu0 %v398
        %645 = vmatprep.subr.mxu0 %v391
        %646 = vmatpush1.msra.mxu0 %v390
        %647 = vmatprep.subr.mxu0 %v383
        %648 = vmatpush1.msra.mxu0 %v382
        %649 = vmatprep.subr.mxu0 %v375
        %650 = vmatpush1.msra.mxu0 %v374
        %651 = vmatprep.subr.mxu0 %v367
        %652 = vmatpush1.msra.mxu0 %v366
        %653 = vmatprep.subr.mxu0 %v359
        %654 = vmatpush1.msra.mxu0 %v358
        %655 = vmatprep.subr.mxu0 %v351
        %656 = vmatpush1.msra.mxu0 %v350
        %657 = vmatprep.subr.mxu0 %v343
        %658 = vmatpush1.msra.mxu0 %v342
        %659 = vmatprep.subr.mxu0 %v335
        %660 = vmatpush1.msra.mxu0 %v334
        %661 = vmatprep.subr.mxu0 %v327
        %662 = vmatpush1.msra.mxu0 %v326
        %663 = vmatprep.subr.mxu0 %v319
        %664 = vmatpush1.msra.mxu0 %v318
        %665 = vmatprep.subr.mxu0 %v311
        %666 = vmatpush1.msra.mxu0 %v310
        %667 = vmatprep.subr.mxu0 %v303
        %668 = vmatpush1.msra.mxu0 %v302
        %669 = vmatprep.subr.mxu0 0.0
        %670 = vmatpush2.msra.mxu0 0.0
        %671 = vmatprep.subr.mxu0 0.0
        %672 = vmatpush2.msra.mxu0 0.0
        %673 = vmatprep.subr.mxu0 0.0
        %674 = vmatpush2.msra.mxu0 0.0
        %675 = vmatprep.subr.mxu0 0.0
        %676 = vmatpush2.msra.mxu0 0.0
        %677 = vmatprep.subr.mxu0 0.0
        %678 = vmatpush2.msra.mxu0 0.0
        %679 = vmatprep.subr.mxu0 0.0
        %680 = vmatpush2.msra.mxu0 0.0
        %681 = vmatprep.subr.mxu0 0.0
        %682 = vmatpush2.msra.mxu0 0.0
        %683 = vmatprep.subr.mxu0 0.0
        %684 = vmatpush2.msra.mxu0 0.0
        %685 = vmatprep.subr.mxu0 0.0
        %686 = vmatpush2.msra.mxu0 0.0
        %687 = vmatprep.subr.mxu0 0.0
        %688 = vmatpush2.msra.mxu0 0.0
        %689 = vmatprep.subr.mxu0 0.0
        %690 = vmatpush2.msra.mxu0 0.0
        %691 = vmatprep.subr.mxu0 0.0
        %692 = vmatpush2.msra.mxu0 0.0
        %693 = vmatprep.subr.mxu0 0.0
        %694 = vmatpush2.msra.mxu0 0.0
        %695 = vmatprep.subr.mxu0 0.0
        %696 = vmatpush2.msra.mxu0 0.0
        %697 = vmatprep.subr.mxu0 0.0
        %698 = vmatpush2.msra.mxu0 0.0
        %699 = vmatprep.subr.mxu0 0.0
        %700 = vmatpush2.msra.mxu0 0.0
        %701 = vmatprep.mubr.f32.mxu0 0.0
        %702 = vmatmul.mubr.f32.gmra.mxu0 %v295
        %v703 = vpop.f32.mrf.mxu0
        %v704 = vadd.f32 0.0, %v703
        %v705 = vpop.f32.mrf.mxu0
        %v706 = vadd.f32 0.0, %v705
        %707 = vdwg.mxu0
        %v716 = vcombine.low %v491, %v493
        %v717 = vcombine.low %v562, %v564
        %v719 = vunpack.c.l.s4 1983009808
        %v720 = vunpack.c.0.s8 %v719
        %v721 = vlaneseq
        %v722 = vshrl.u32 %v721, 7
        %v723 = vsub.s32 %v720, %v722
        %v724 = vrot.slane %v716, %v723
        %v726 = vunpack.c.l.s4 1983009808
        %v727 = vunpack.c.0.s8 %v726
        %v728 = vlaneseq
        %v729 = vshrl.u32 %v728, 7
        %v730 = vsub.s32 %v727, %v729
        %v731 = vrot.slane %v717, %v730
        %v732 = vcombine.low %v724, %v731
        %v733 = vcombine.low %v633, %v635
        %v734 = vcombine.low %v704, %v706
        %v736 = vunpack.c.l.s4 1983009808
        %v737 = vunpack.c.0.s8 %v736
        %v738 = vlaneseq
        %v739 = vshrl.u32 %v738, 7
        %v740 = vsub.s32 %v737, %v739
        %v741 = vrot.slane %v733, %v740
        %v743 = vunpack.c.l.s4 1983009808
        %v744 = vunpack.c.0.s8 %v743
        %v745 = vlaneseq
        %v746 = vshrl.u32 %v745, 7
        %v747 = vsub.s32 %v744, %v746
        %v748 = vrot.slane %v734, %v747
        %v749 = vcombine.low %v741, %v748
        %v752 = vadd.f32 %v293, %v732
        %v753 = vadd.f32 %v294, %v749
        %754 = vst [vmem:[#allocation2] sm:$0xff] %v752
        %755 = vst [vmem:[#allocation2 + $0x8] sm:$0xff] %v753
        %p756 = scmp.eq.s32.totalorder %s19, 12
        // Predicated region
        $region53: #{cnn_forward.7} parent=47 // pred_check
          %p757 = pneg %p756
        $region54: #{cnn_forward.7} parent=47 // pred_check_branch
          %759 = sbr.rel (%p757) target = $region56
        $region55: #{cnn_forward.7} parent=47 // pred_region
          %v760 = vld [vmem:[#allocation2] sm:$0xff]
          %v761 = vld [vmem:[#allocation2 + $0x8] sm:$0xff]
          %v762 = vld [vmem:[%s2] sm:$0xff]
          %v764 = vlaneseq
          %v765 = vshrl.u32 %v764, 7
          %v766 = vsub.s32 0, %v765
          %v767 = vrot.slane %v762, %v766
          %v768 = vlaneseq
          %v769 = vshrl.u32 %v768, 7
          %v770 = vsub.s32 1, %v769
          %v771 = vrot.slane %v762, %v770
          %v772 = vlaneseq
          %v773 = vshrl.u32 %v772, 7
          %v774 = vsub.s32 2, %v773
          %v775 = vrot.slane %v762, %v774
          %v776 = vlaneseq
          %v777 = vshrl.u32 %v776, 7
          %v778 = vsub.s32 3, %v777
          %v779 = vrot.slane %v762, %v778
          %v780 = vlaneseq
          %v781 = vshrl.u32 %v780, 7
          %v782 = vsub.s32 4, %v781
          %v783 = vrot.slane %v762, %v782
          %v784 = vlaneseq
          %v785 = vshrl.u32 %v784, 7
          %v786 = vsub.s32 5, %v785
          %v787 = vrot.slane %v762, %v786
          %v788 = vlaneseq
          %v789 = vshrl.u32 %v788, 7
          %v790 = vsub.s32 6, %v789
          %v791 = vrot.slane %v762, %v790
          %v792 = vlaneseq
          %v793 = vshrl.u32 %v792, 7
          %v794 = vsub.s32 7, %v793
          %v795 = vrot.slane %v762, %v794
          %v796 = vcombine.low %v767, %v771
          %v797 = vcombine.low %v775, %v779
          %v799 = vunpack.c.l.s4 1983009808
          %v800 = vunpack.c.0.s8 %v799
          %v801 = vlaneseq
          %v802 = vshrl.u32 %v801, 7
          %v803 = vsub.s32 %v800, %v802
          %v804 = vrot.slane %v796, %v803
          %v806 = vunpack.c.l.s4 1983009808
          %v807 = vunpack.c.0.s8 %v806
          %v808 = vlaneseq
          %v809 = vshrl.u32 %v808, 7
          %v810 = vsub.s32 %v807, %v809
          %v811 = vrot.slane %v797, %v810
          %v812 = vcombine.low %v804, %v811
          %v813 = vcombine.low %v783, %v787
          %v814 = vcombine.low %v791, %v795
          %v816 = vunpack.c.l.s4 1983009808
          %v817 = vunpack.c.0.s8 %v816
          %v818 = vlaneseq
          %v819 = vshrl.u32 %v818, 7
          %v820 = vsub.s32 %v817, %v819
          %v821 = vrot.slane %v813, %v820
          %v823 = vunpack.c.l.s4 1983009808
          %v824 = vunpack.c.0.s8 %v823
          %v825 = vlaneseq
          %v826 = vshrl.u32 %v825, 7
          %v827 = vsub.s32 %v824, %v826
          %v828 = vrot.slane %v814, %v827
          %v829 = vcombine.low %v821, %v828
          %v832 = vadd.f32 %v760, %v812
          %v833 = vadd.f32 %v761, %v829
          %v834 = vmax.f32 %v832, 0.0
          %v835 = vmax.f32 %v833, 0.0
          %v836 = vld [vmem:[%s3] sm:$0xff]
          %v837 = vld [vmem:[%s3 + $0x8] sm:$0xff]
          %v838 = vld [vmem:[%s3 + $0x10] sm:$0xff]
          %v839 = vld [vmem:[%s3 + $0x18] sm:$0xff]
          %v840 = vld [vmem:[%s3 + $0x20] sm:$0xff]
          %v841 = vld [vmem:[%s3 + $0x28] sm:$0xff]
          %v842 = vld [vmem:[%s3 + $0x30] sm:$0xff]
          %v843 = vld [vmem:[%s3 + $0x38] sm:$0xff]
          %v844 = vld [vmem:[%s3 + $0x40] sm:$0xff]
          %v845 = vld [vmem:[%s3 + $0x48] sm:$0xff]
          %v846 = vld [vmem:[%s3 + $0x50] sm:$0xff]
          %v847 = vld [vmem:[%s3 + $0x58] sm:$0xff]
          %v848 = vld [vmem:[%s3 + $0x60] sm:$0xff]
          %v849 = vld [vmem:[%s3 + $0x68] sm:$0xff]
          %v850 = vld [vmem:[%s3 + $0x70] sm:$0xff]
          %v851 = vld [vmem:[%s3 + $0x78] sm:$0xff]
          %v852 = vld [vmem:[%s3 + $0x80] sm:$0xff]
          %v853 = vld [vmem:[%s3 + $0x88] sm:$0xff]
          %v854 = vld [vmem:[%s3 + $0x90] sm:$0xff]
          %v855 = vld [vmem:[%s3 + $0x98] sm:$0xff]
          %v856 = vld [vmem:[%s3 + $0xa0] sm:$0xff]
          %v857 = vld [vmem:[%s3 + $0xa8] sm:$0xff]
          %v858 = vld [vmem:[%s3 + $0xb0] sm:$0xff]
          %v859 = vld [vmem:[%s3 + $0xb8] sm:$0xff]
          %v860 = vld [vmem:[%s3 + $0xc0] sm:$0xff]
          %v861 = vld [vmem:[%s3 + $0xc8] sm:$0xff]
          %v862 = vld [vmem:[%s3 + $0xd0] sm:$0xff]
          %v863 = vld [vmem:[%s3 + $0xd8] sm:$0xff]
          %v864 = vld [vmem:[%s3 + $0xe0] sm:$0xff]
          %v865 = vld [vmem:[%s3 + $0xe8] sm:$0xff]
          %v866 = vld [vmem:[%s3 + $0xf0] sm:$0xff]
          %v867 = vld [vmem:[%s3 + $0xf8] sm:$0xff]
          %v868 = vld [vmem:[%s3 + $0x100] sm:$0xff]
          %v869 = vld [vmem:[%s3 + $0x108] sm:$0xff]
          %v870 = vld [vmem:[%s3 + $0x110] sm:$0xff]
          %v871 = vld [vmem:[%s3 + $0x118] sm:$0xff]
          %v872 = vld [vmem:[%s3 + $0x120] sm:$0xff]
          %v873 = vld [vmem:[%s3 + $0x128] sm:$0xff]
          %v874 = vld [vmem:[%s3 + $0x130] sm:$0xff]
          %v875 = vld [vmem:[%s3 + $0x138] sm:$0xff]
          %v876 = vld [vmem:[%s3 + $0x140] sm:$0xff]
          %v877 = vld [vmem:[%s3 + $0x148] sm:$0xff]
          %v878 = vld [vmem:[%s3 + $0x150] sm:$0xff]
          %v879 = vld [vmem:[%s3 + $0x158] sm:$0xff]
          %v880 = vld [vmem:[%s3 + $0x160] sm:$0xff]
          %v881 = vld [vmem:[%s3 + $0x168] sm:$0xff]
          %v882 = vld [vmem:[%s3 + $0x170] sm:$0xff]
          %v883 = vld [vmem:[%s3 + $0x178] sm:$0xff]
          %v884 = vld [vmem:[%s3 + $0x180] sm:$0xff]
          %v885 = vld [vmem:[%s3 + $0x188] sm:$0xff]
          %v886 = vld [vmem:[%s3 + $0x190] sm:$0xff]
          %v887 = vld [vmem:[%s3 + $0x198] sm:$0xff]
          %v888 = vld [vmem:[%s3 + $0x1a0] sm:$0xff]
          %v889 = vld [vmem:[%s3 + $0x1a8] sm:$0xff]
          %v890 = vld [vmem:[%s3 + $0x1b0] sm:$0xff]
          %v891 = vld [vmem:[%s3 + $0x1b8] sm:$0xff]
          %v892 = vld [vmem:[%s3 + $0x1c0] sm:$0xff]
          %v893 = vld [vmem:[%s3 + $0x1c8] sm:$0xff]
          %v894 = vld [vmem:[%s3 + $0x1d0] sm:$0xff]
          %v895 = vld [vmem:[%s3 + $0x1d8] sm:$0xff]
          %v896 = vld [vmem:[%s3 + $0x1e0] sm:$0xff]
          %v897 = vld [vmem:[%s3 + $0x1e8] sm:$0xff]
          %v898 = vld [vmem:[%s3 + $0x1f0] sm:$0xff]
          %v899 = vld [vmem:[%s3 + $0x1f8] sm:$0xff]
          %v900 = vld [vmem:[%s3 + $0x200] sm:$0xff]
          %v901 = vld [vmem:[%s3 + $0x208] sm:$0xff]
          %v902 = vld [vmem:[%s3 + $0x210] sm:$0xff]
          %v903 = vld [vmem:[%s3 + $0x218] sm:$0xff]
          %v904 = vld [vmem:[%s3 + $0x220] sm:$0xff]
          %v905 = vld [vmem:[%s3 + $0x228] sm:$0xff]
          %v906 = vld [vmem:[%s3 + $0x230] sm:$0xff]
          %v907 = vld [vmem:[%s3 + $0x238] sm:$0xff]
          %v908 = vld [vmem:[%s3 + $0x240] sm:$0xff]
          %v909 = vld [vmem:[%s3 + $0x248] sm:$0xff]
          %v910 = vld [vmem:[%s3 + $0x250] sm:$0xff]
          %v911 = vld [vmem:[%s3 + $0x258] sm:$0xff]
          %v912 = vld [vmem:[%s3 + $0x260] sm:$0xff]
          %v913 = vld [vmem:[%s3 + $0x268] sm:$0xff]
          %v914 = vld [vmem:[%s3 + $0x270] sm:$0xff]
          %v915 = vld [vmem:[%s3 + $0x278] sm:$0xff]
          %v916 = vld [vmem:[%s3 + $0x280] sm:$0xff]
          %v917 = vld [vmem:[%s3 + $0x288] sm:$0xff]
          %v918 = vld [vmem:[%s3 + $0x290] sm:$0xff]
          %v919 = vld [vmem:[%s3 + $0x298] sm:$0xff]
          %v920 = vld [vmem:[%s3 + $0x2a0] sm:$0xff]
          %v921 = vld [vmem:[%s3 + $0x2a8] sm:$0xff]
          %v922 = vld [vmem:[%s3 + $0x2b0] sm:$0xff]
          %v923 = vld [vmem:[%s3 + $0x2b8] sm:$0xff]
          %v924 = vld [vmem:[%s3 + $0x2c0] sm:$0xff]
          %v925 = vld [vmem:[%s3 + $0x2c8] sm:$0xff]
          %v926 = vld [vmem:[%s3 + $0x2d0] sm:$0xff]
          %v927 = vld [vmem:[%s3 + $0x2d8] sm:$0xff]
          %v928 = vld [vmem:[%s3 + $0x2e0] sm:$0xff]
          %v929 = vld [vmem:[%s3 + $0x2e8] sm:$0xff]
          %v930 = vld [vmem:[%s3 + $0x2f0] sm:$0xff]
          %v931 = vld [vmem:[%s3 + $0x2f8] sm:$0xff]
          %v932 = vld [vmem:[%s3 + $0x300] sm:$0xff]
          %v933 = vld [vmem:[%s3 + $0x308] sm:$0xff]
          %v934 = vld [vmem:[%s3 + $0x310] sm:$0xff]
          %v935 = vld [vmem:[%s3 + $0x318] sm:$0xff]
          %v936 = vld [vmem:[%s3 + $0x320] sm:$0xff]
          %v937 = vld [vmem:[%s3 + $0x328] sm:$0xff]
          %v938 = vld [vmem:[%s3 + $0x330] sm:$0xff]
          %v939 = vld [vmem:[%s3 + $0x338] sm:$0xff]
          %v940 = vld [vmem:[%s3 + $0x340] sm:$0xff]
          %v941 = vld [vmem:[%s3 + $0x348] sm:$0xff]
          %v942 = vld [vmem:[%s3 + $0x350] sm:$0xff]
          %v943 = vld [vmem:[%s3 + $0x358] sm:$0xff]
          %v944 = vld [vmem:[%s3 + $0x360] sm:$0xff]
          %v945 = vld [vmem:[%s3 + $0x368] sm:$0xff]
          %v946 = vld [vmem:[%s3 + $0x370] sm:$0xff]
          %v947 = vld [vmem:[%s3 + $0x378] sm:$0xff]
          %v948 = vld [vmem:[%s3 + $0x380] sm:$0xff]
          %v949 = vld [vmem:[%s3 + $0x388] sm:$0xff]
          %v950 = vld [vmem:[%s3 + $0x390] sm:$0xff]
          %v951 = vld [vmem:[%s3 + $0x398] sm:$0xff]
          %v952 = vld [vmem:[%s3 + $0x3a0] sm:$0xff]
          %v953 = vld [vmem:[%s3 + $0x3a8] sm:$0xff]
          %v954 = vld [vmem:[%s3 + $0x3b0] sm:$0xff]
          %v955 = vld [vmem:[%s3 + $0x3b8] sm:$0xff]
          %v956 = vld [vmem:[%s3 + $0x3c0] sm:$0xff]
          %v957 = vld [vmem:[%s3 + $0x3c8] sm:$0xff]
          %v958 = vld [vmem:[%s3 + $0x3d0] sm:$0xff]
          %v959 = vld [vmem:[%s3 + $0x3d8] sm:$0xff]
          %v960 = vld [vmem:[%s3 + $0x3e0] sm:$0xff]
          %v961 = vld [vmem:[%s3 + $0x3e8] sm:$0xff]
          %v962 = vld [vmem:[%s3 + $0x3f0] sm:$0xff]
          %v963 = vld [vmem:[%s3 + $0x3f8] sm:$0xff]
          %v964 = vld [vmem:[%s4] sm:$0x1]
          %v966 = vlaneseq
          %v967 = vshrl.u32 %v966, 7
          %v968 = vsub.s32 0, %v967
          %v969 = vrot.slane %v964, %v968
          %v973 = vcombine.high %v834, %v834
          %v975 = vunpack.c.l.s4 1983009808
          %v976 = vunpack.c.0.s8 %v975
          %v977 = vlaneseq
          %v978 = vshrl.u32 %v977, 7
          %v979 = vsub.s32 %v976, %v978
          %v980 = vrot.slane %v834, %v979
          %v982 = vunpack.c.l.s4 1983009808
          %v983 = vunpack.c.0.s8 %v982
          %v984 = vlaneseq
          %v985 = vshrl.u32 %v984, 7
          %v986 = vsub.s32 %v983, %v985
          %v987 = vrot.slane %v973, %v986
          %v988 = vcombine.high %v980, %v980
          %v989 = vcombine.high %v987, %v987
          %v990 = vcombine.high %v835, %v835
          %v992 = vunpack.c.l.s4 1983009808
          %v993 = vunpack.c.0.s8 %v992
          %v994 = vlaneseq
          %v995 = vshrl.u32 %v994, 7
          %v996 = vsub.s32 %v993, %v995
          %v997 = vrot.slane %v835, %v996
          %v999 = vunpack.c.l.s4 1983009808
          %v1000 = vunpack.c.0.s8 %v999
          %v1001 = vlaneseq
          %v1002 = vshrl.u32 %v1001, 7
          %v1003 = vsub.s32 %v1000, %v1002
          %v1004 = vrot.slane %v990, %v1003
          %v1005 = vcombine.high %v997, %v997
          %v1006 = vcombine.high %v1004, %v1004
          %1015 = vmatprep.subr.mxu0 0.0
          %1016 = vmatpush1.msra.mxu0 %v851
          %1017 = vmatprep.subr.mxu0 0.0
          %1018 = vmatpush1.msra.mxu0 %v850
          %1019 = vmatprep.subr.mxu0 0.0
          %1020 = vmatpush1.msra.mxu0 %v849
          %1021 = vmatprep.subr.mxu0 0.0
          %1022 = vmatpush1.msra.mxu0 %v848
          %1023 = vmatprep.subr.mxu0 0.0
          %1024 = vmatpush1.msra.mxu0 %v847
          %1025 = vmatprep.subr.mxu0 0.0
          %1026 = vmatpush1.msra.mxu0 %v846
          %1027 = vmatprep.subr.mxu0 0.0
          %1028 = vmatpush1.msra.mxu0 %v845
          %1029 = vmatprep.subr.mxu0 0.0
          %1030 = vmatpush1.msra.mxu0 %v844
          %1031 = vmatprep.subr.mxu0 0.0
          %1032 = vmatpush1.msra.mxu0 %v843
          %1033 = vmatprep.subr.mxu0 0.0
          %1034 = vmatpush1.msra.mxu0 %v842
          %1035 = vmatprep.subr.mxu0 0.0
          %1036 = vmatpush1.msra.mxu0 %v841
          %1037 = vmatprep.subr.mxu0 0.0
          %1038 = vmatpush1.msra.mxu0 %v840
          %1039 = vmatprep.subr.mxu0 0.0
          %1040 = vmatpush1.msra.mxu0 %v839
          %1041 = vmatprep.subr.mxu0 0.0
          %1042 = vmatpush1.msra.mxu0 %v838
          %1043 = vmatprep.subr.mxu0 0.0
          %1044 = vmatpush1.msra.mxu0 %v837
          %1045 = vmatprep.subr.mxu0 0.0
          %1046 = vmatpush1.msra.mxu0 %v836
          %1047 = vmatprep.subr.mxu0 0.0
          %1048 = vmatpush2.msra.mxu0 %v867
          %1049 = vmatprep.subr.mxu0 0.0
          %1050 = vmatpush2.msra.mxu0 %v866
          %1051 = vmatprep.subr.mxu0 0.0
          %1052 = vmatpush2.msra.mxu0 %v865
          %1053 = vmatprep.subr.mxu0 0.0
          %1054 = vmatpush2.msra.mxu0 %v864
          %1055 = vmatprep.subr.mxu0 0.0
          %1056 = vmatpush2.msra.mxu0 %v863
          %1057 = vmatprep.subr.mxu0 0.0
          %1058 = vmatpush2.msra.mxu0 %v862
          %1059 = vmatprep.subr.mxu0 0.0
          %1060 = vmatpush2.msra.mxu0 %v861
          %1061 = vmatprep.subr.mxu0 0.0
          %1062 = vmatpush2.msra.mxu0 %v860
          %1063 = vmatprep.subr.mxu0 0.0
          %1064 = vmatpush2.msra.mxu0 %v859
          %1065 = vmatprep.subr.mxu0 0.0
          %1066 = vmatpush2.msra.mxu0 %v858
          %1067 = vmatprep.subr.mxu0 0.0
          %1068 = vmatpush2.msra.mxu0 %v857
          %1069 = vmatprep.subr.mxu0 0.0
          %1070 = vmatpush2.msra.mxu0 %v856
          %1071 = vmatprep.subr.mxu0 0.0
          %1072 = vmatpush2.msra.mxu0 %v855
          %1073 = vmatprep.subr.mxu0 0.0
          %1074 = vmatpush2.msra.mxu0 %v854
          %1075 = vmatprep.subr.mxu0 0.0
          %1076 = vmatpush2.msra.mxu0 %v853
          %1077 = vmatprep.subr.mxu0 0.0
          %1078 = vmatpush2.msra.mxu0 %v852
          %1079 = vmatprep.mubr.f32.mxu0 %v988
          %1080 = vmatmul.mubr.f32.gmra.mxu0 %v980
          %v1081 = vpop.f32.mrf.mxu0
          %v1082 = vadd.f32 %v969, %v1081
          %v1083 = vpop.f32.mrf.mxu0
          %1084 = vdwg.mxu0
          %1085 = vmatprep.subr.mxu0 0.0
          %1086 = vmatpush1.msra.mxu0 %v883
          %1087 = vmatprep.subr.mxu0 0.0
          %1088 = vmatpush1.msra.mxu0 %v882
          %1089 = vmatprep.subr.mxu0 0.0
          %1090 = vmatpush1.msra.mxu0 %v881
          %1091 = vmatprep.subr.mxu0 0.0
          %1092 = vmatpush1.msra.mxu0 %v880
          %1093 = vmatprep.subr.mxu0 0.0
          %1094 = vmatpush1.msra.mxu0 %v879
          %1095 = vmatprep.subr.mxu0 0.0
          %1096 = vmatpush1.msra.mxu0 %v878
          %1097 = vmatprep.subr.mxu0 0.0
          %1098 = vmatpush1.msra.mxu0 %v877
          %1099 = vmatprep.subr.mxu0 0.0
          %1100 = vmatpush1.msra.mxu0 %v876
          %1101 = vmatprep.subr.mxu0 0.0
          %1102 = vmatpush1.msra.mxu0 %v875
          %1103 = vmatprep.subr.mxu0 0.0
          %1104 = vmatpush1.msra.mxu0 %v874
          %1105 = vmatprep.subr.mxu0 0.0
          %1106 = vmatpush1.msra.mxu0 %v873
          %1107 = vmatprep.subr.mxu0 0.0
          %1108 = vmatpush1.msra.mxu0 %v872
          %1109 = vmatprep.subr.mxu0 0.0
          %1110 = vmatpush1.msra.mxu0 %v871
          %1111 = vmatprep.subr.mxu0 0.0
          %1112 = vmatpush1.msra.mxu0 %v870
          %1113 = vmatprep.subr.mxu0 0.0
          %1114 = vmatpush1.msra.mxu0 %v869
          %1115 = vmatprep.subr.mxu0 0.0
          %1116 = vmatpush1.msra.mxu0 %v868
          %1117 = vmatprep.subr.mxu0 0.0
          %1118 = vmatpush2.msra.mxu0 %v899
          %1119 = vmatprep.subr.mxu0 0.0
          %1120 = vmatpush2.msra.mxu0 %v898
          %1121 = vmatprep.subr.mxu0 0.0
          %1122 = vmatpush2.msra.mxu0 %v897
          %1123 = vmatprep.subr.mxu0 0.0
          %1124 = vmatpush2.msra.mxu0 %v896
          %1125 = vmatprep.subr.mxu0 0.0
          %1126 = vmatpush2.msra.mxu0 %v895
          %1127 = vmatprep.subr.mxu0 0.0
          %1128 = vmatpush2.msra.mxu0 %v894
          %1129 = vmatprep.subr.mxu0 0.0
          %1130 = vmatpush2.msra.mxu0 %v893
          %1131 = vmatprep.subr.mxu0 0.0
          %1132 = vmatpush2.msra.mxu0 %v892
          %1133 = vmatprep.subr.mxu0 0.0
          %1134 = vmatpush2.msra.mxu0 %v891
          %1135 = vmatprep.subr.mxu0 0.0
          %1136 = vmatpush2.msra.mxu0 %v890
          %1137 = vmatprep.subr.mxu0 0.0
          %1138 = vmatpush2.msra.mxu0 %v889
          %1139 = vmatprep.subr.mxu0 0.0
          %1140 = vmatpush2.msra.mxu0 %v888
          %1141 = vmatprep.subr.mxu0 0.0
          %1142 = vmatpush2.msra.mxu0 %v887
          %1143 = vmatprep.subr.mxu0 0.0
          %1144 = vmatpush2.msra.mxu0 %v886
          %1145 = vmatprep.subr.mxu0 0.0
          %1146 = vmatpush2.msra.mxu0 %v885
          %1147 = vmatprep.subr.mxu0 0.0
          %1148 = vmatpush2.msra.mxu0 %v884
          %1149 = vmatprep.mubr.f32.mxu0 %v989
          %1150 = vmatmul.mubr.f32.gmra.mxu0 %v987
          %v1151 = vpop.f32.mrf.mxu0
          %v1152 = vadd.f32 %v1082, %v1151
          %v1153 = vpop.f32.mrf.mxu0
          %1154 = vdwg.mxu0
          %1155 = vmatprep.subr.mxu0 0.0
          %1156 = vmatpush1.msra.mxu0 %v915
          %1157 = vmatprep.subr.mxu0 0.0
          %1158 = vmatpush1.msra.mxu0 %v914
          %1159 = vmatprep.subr.mxu0 0.0
          %1160 = vmatpush1.msra.mxu0 %v913
          %1161 = vmatprep.subr.mxu0 0.0
          %1162 = vmatpush1.msra.mxu0 %v912
          %1163 = vmatprep.subr.mxu0 0.0
          %1164 = vmatpush1.msra.mxu0 %v911
          %1165 = vmatprep.subr.mxu0 0.0
          %1166 = vmatpush1.msra.mxu0 %v910
          %1167 = vmatprep.subr.mxu0 0.0
          %1168 = vmatpush1.msra.mxu0 %v909
          %1169 = vmatprep.subr.mxu0 0.0
          %1170 = vmatpush1.msra.mxu0 %v908
          %1171 = vmatprep.subr.mxu0 0.0
          %1172 = vmatpush1.msra.mxu0 %v907
          %1173 = vmatprep.subr.mxu0 0.0
          %1174 = vmatpush1.msra.mxu0 %v906
          %1175 = vmatprep.subr.mxu0 0.0
          %1176 = vmatpush1.msra.mxu0 %v905
          %1177 = vmatprep.subr.mxu0 0.0
          %1178 = vmatpush1.msra.mxu0 %v904
          %1179 = vmatprep.subr.mxu0 0.0
          %1180 = vmatpush1.msra.mxu0 %v903
          %1181 = vmatprep.subr.mxu0 0.0
          %1182 = vmatpush1.msra.mxu0 %v902
          %1183 = vmatprep.subr.mxu0 0.0
          %1184 = vmatpush1.msra.mxu0 %v901
          %1185 = vmatprep.subr.mxu0 0.0
          %1186 = vmatpush1.msra.mxu0 %v900
          %1187 = vmatprep.subr.mxu0 0.0
          %1188 = vmatpush2.msra.mxu0 %v931
          %1189 = vmatprep.subr.mxu0 0.0
          %1190 = vmatpush2.msra.mxu0 %v930
          %1191 = vmatprep.subr.mxu0 0.0
          %1192 = vmatpush2.msra.mxu0 %v929
          %1193 = vmatprep.subr.mxu0 0.0
          %1194 = vmatpush2.msra.mxu0 %v928
          %1195 = vmatprep.subr.mxu0 0.0
          %1196 = vmatpush2.msra.mxu0 %v927
          %1197 = vmatprep.subr.mxu0 0.0
          %1198 = vmatpush2.msra.mxu0 %v926
          %1199 = vmatprep.subr.mxu0 0.0
          %1200 = vmatpush2.msra.mxu0 %v925
          %1201 = vmatprep.subr.mxu0 0.0
          %1202 = vmatpush2.msra.mxu0 %v924
          %1203 = vmatprep.subr.mxu0 0.0
          %1204 = vmatpush2.msra.mxu0 %v923
          %1205 = vmatprep.subr.mxu0 0.0
          %1206 = vmatpush2.msra.mxu0 %v922
          %1207 = vmatprep.subr.mxu0 0.0
          %1208 = vmatpush2.msra.mxu0 %v921
          %1209 = vmatprep.subr.mxu0 0.0
          %1210 = vmatpush2.msra.mxu0 %v920
          %1211 = vmatprep.subr.mxu0 0.0
          %1212 = vmatpush2.msra.mxu0 %v919
          %1213 = vmatprep.subr.mxu0 0.0
          %1214 = vmatpush2.msra.mxu0 %v918
          %1215 = vmatprep.subr.mxu0 0.0
          %1216 = vmatpush2.msra.mxu0 %v917
          %1217 = vmatprep.subr.mxu0 0.0
          %1218 = vmatpush2.msra.mxu0 %v916
          %1219 = vmatprep.mubr.f32.mxu0 %v1005
          %1220 = vmatmul.mubr.f32.gmra.mxu0 %v997
          %v1221 = vpop.f32.mrf.mxu0
          %v1222 = vadd.f32 %v1152, %v1221
          %v1223 = vpop.f32.mrf.mxu0
          %1224 = vdwg.mxu0
          %1225 = vmatprep.subr.mxu0 0.0
          %1226 = vmatpush1.msra.mxu0 %v947
          %1227 = vmatprep.subr.mxu0 0.0
          %1228 = vmatpush1.msra.mxu0 %v946
          %1229 = vmatprep.subr.mxu0 0.0
          %1230 = vmatpush1.msra.mxu0 %v945
          %1231 = vmatprep.subr.mxu0 0.0
          %1232 = vmatpush1.msra.mxu0 %v944
          %1233 = vmatprep.subr.mxu0 0.0
          %1234 = vmatpush1.msra.mxu0 %v943
          %1235 = vmatprep.subr.mxu0 0.0
          %1236 = vmatpush1.msra.mxu0 %v942
          %1237 = vmatprep.subr.mxu0 0.0
          %1238 = vmatpush1.msra.mxu0 %v941
          %1239 = vmatprep.subr.mxu0 0.0
          %1240 = vmatpush1.msra.mxu0 %v940
          %1241 = vmatprep.subr.mxu0 0.0
          %1242 = vmatpush1.msra.mxu0 %v939
          %1243 = vmatprep.subr.mxu0 0.0
          %1244 = vmatpush1.msra.mxu0 %v938
          %1245 = vmatprep.subr.mxu0 0.0
          %1246 = vmatpush1.msra.mxu0 %v937
          %1247 = vmatprep.subr.mxu0 0.0
          %1248 = vmatpush1.msra.mxu0 %v936
          %1249 = vmatprep.subr.mxu0 0.0
          %1250 = vmatpush1.msra.mxu0 %v935
          %1251 = vmatprep.subr.mxu0 0.0
          %1252 = vmatpush1.msra.mxu0 %v934
          %1253 = vmatprep.subr.mxu0 0.0
          %1254 = vmatpush1.msra.mxu0 %v933
          %1255 = vmatprep.subr.mxu0 0.0
          %1256 = vmatpush1.msra.mxu0 %v932
          %1257 = vmatprep.subr.mxu0 0.0
          %1258 = vmatpush2.msra.mxu0 %v963
          %1259 = vmatprep.subr.mxu0 0.0
          %1260 = vmatpush2.msra.mxu0 %v962
          %1261 = vmatprep.subr.mxu0 0.0
          %1262 = vmatpush2.msra.mxu0 %v961
          %1263 = vmatprep.subr.mxu0 0.0
          %1264 = vmatpush2.msra.mxu0 %v960
          %1265 = vmatprep.subr.mxu0 0.0
          %1266 = vmatpush2.msra.mxu0 %v959
          %1267 = vmatprep.subr.mxu0 0.0
          %1268 = vmatpush2.msra.mxu0 %v958
          %1269 = vmatprep.subr.mxu0 0.0
          %1270 = vmatpush2.msra.mxu0 %v957
          %1271 = vmatprep.subr.mxu0 0.0
          %1272 = vmatpush2.msra.mxu0 %v956
          %1273 = vmatprep.subr.mxu0 0.0
          %1274 = vmatpush2.msra.mxu0 %v955
          %1275 = vmatprep.subr.mxu0 0.0
          %1276 = vmatpush2.msra.mxu0 %v954
          %1277 = vmatprep.subr.mxu0 0.0
          %1278 = vmatpush2.msra.mxu0 %v953
          %1279 = vmatprep.subr.mxu0 0.0
          %1280 = vmatpush2.msra.mxu0 %v952
          %1281 = vmatprep.subr.mxu0 0.0
          %1282 = vmatpush2.msra.mxu0 %v951
          %1283 = vmatprep.subr.mxu0 0.0
          %1284 = vmatpush2.msra.mxu0 %v950
          %1285 = vmatprep.subr.mxu0 0.0
          %1286 = vmatpush2.msra.mxu0 %v949
          %1287 = vmatprep.subr.mxu0 0.0
          %1288 = vmatpush2.msra.mxu0 %v948
          %1289 = vmatprep.mubr.f32.mxu0 %v1006
          %1290 = vmatmul.mubr.f32.gmra.mxu0 %v1004
          %v1291 = vpop.f32.mrf.mxu0
          %v1292 = vadd.f32 %v1222, %v1291
          %v1293 = vpop.f32.mrf.mxu0
          %1294 = vdwg.mxu0
          %v1295 = vmax.f32 %v1292, 0.0
          %v1296 = vld [vmem:[%s5] sm:$0xff]
          %v1297 = vld [vmem:[%s5 + $0x8] sm:$0xff]
          %v1298 = vld [vmem:[%s5 + $0x10] sm:$0xff]
          %v1299 = vld [vmem:[%s5 + $0x18] sm:$0xff]
          %v1300 = vld [vmem:[%s5 + $0x20] sm:$0xff]
          %v1301 = vld [vmem:[%s5 + $0x28] sm:$0xff]
          %v1302 = vld [vmem:[%s5 + $0x30] sm:$0xff]
          %v1303 = vld [vmem:[%s5 + $0x38] sm:$0xff]
          %v1304 = vld [vmem:[%s5 + $0x40] sm:$0xff]
          %v1305 = vld [vmem:[%s5 + $0x48] sm:$0xff]
          %v1306 = vld [vmem:[%s5 + $0x50] sm:$0xff]
          %v1307 = vld [vmem:[%s5 + $0x58] sm:$0xff]
          %v1308 = vld [vmem:[%s5 + $0x60] sm:$0xff]
          %v1309 = vld [vmem:[%s5 + $0x68] sm:$0xff]
          %v1310 = vld [vmem:[%s5 + $0x70] sm:$0xff]
          %v1311 = vld [vmem:[%s5 + $0x78] sm:$0xff]
          %v1312 = vld [vmem:[%s6] sm:$0x1]
          %v1314 = vlaneseq
          %v1315 = vshrl.u32 %v1314, 7
          %v1316 = vsub.s32 0, %v1315
          %v1317 = vrot.slane %v1312, %v1316
          %1319 = vmatprep.subr.mxu0 0.0
          %1320 = vmatpush1.msra.mxu0 %v1311
          %1321 = vmatprep.subr.mxu0 0.0
          %1322 = vmatpush1.msra.mxu0 %v1310
          %1323 = vmatprep.subr.mxu0 0.0
          %1324 = vmatpush1.msra.mxu0 %v1309
          %1325 = vmatprep.subr.mxu0 0.0
          %1326 = vmatpush1.msra.mxu0 %v1308
          %1327 = vmatprep.subr.mxu0 0.0
          %1328 = vmatpush1.msra.mxu0 %v1307
          %1329 = vmatprep.subr.mxu0 0.0
          %1330 = vmatpush1.msra.mxu0 %v1306
          %1331 = vmatprep.subr.mxu0 0.0
          %1332 = vmatpush1.msra.mxu0 %v1305
          %1333 = vmatprep.subr.mxu0 0.0
          %1334 = vmatpush1.msra.mxu0 %v1304
          %1335 = vmatprep.subr.mxu0 0.0
          %1336 = vmatpush1.msra.mxu0 %v1303
          %1337 = vmatprep.subr.mxu0 0.0
          %1338 = vmatpush1.msra.mxu0 %v1302
          %1339 = vmatprep.subr.mxu0 0.0
          %1340 = vmatpush1.msra.mxu0 %v1301
          %1341 = vmatprep.subr.mxu0 0.0
          %1342 = vmatpush1.msra.mxu0 %v1300
          %1343 = vmatprep.subr.mxu0 0.0
          %1344 = vmatpush1.msra.mxu0 %v1299
          %1345 = vmatprep.subr.mxu0 0.0
          %1346 = vmatpush1.msra.mxu0 %v1298
          %1347 = vmatprep.subr.mxu0 0.0
          %1348 = vmatpush1.msra.mxu0 %v1297
          %1349 = vmatprep.subr.mxu0 0.0
          %1350 = vmatpush1.msra.mxu0 %v1296
          %1351 = vmatprep.subr.mxu0 0.0
          %1352 = vmatpush2.msra.mxu0 0.0
          %1353 = vmatprep.subr.mxu0 0.0
          %1354 = vmatpush2.msra.mxu0 0.0
          %1355 = vmatprep.subr.mxu0 0.0
          %1356 = vmatpush2.msra.mxu0 0.0
          %1357 = vmatprep.subr.mxu0 0.0
          %1358 = vmatpush2.msra.mxu0 0.0
          %1359 = vmatprep.subr.mxu0 0.0
          %1360 = vmatpush2.msra.mxu0 0.0
          %1361 = vmatprep.subr.mxu0 0.0
          %1362 = vmatpush2.msra.mxu0 0.0
          %1363 = vmatprep.subr.mxu0 0.0
          %1364 = vmatpush2.msra.mxu0 0.0
          %1365 = vmatprep.subr.mxu0 0.0
          %1366 = vmatpush2.msra.mxu0 0.0
          %1367 = vmatprep.subr.mxu0 0.0
          %1368 = vmatpush2.msra.mxu0 0.0
          %1369 = vmatprep.subr.mxu0 0.0
          %1370 = vmatpush2.msra.mxu0 0.0
          %1371 = vmatprep.subr.mxu0 0.0
          %1372 = vmatpush2.msra.mxu0 0.0
          %1373 = vmatprep.subr.mxu0 0.0
          %1374 = vmatpush2.msra.mxu0 0.0
          %1375 = vmatprep.subr.mxu0 0.0
          %1376 = vmatpush2.msra.mxu0 0.0
          %1377 = vmatprep.subr.mxu0 0.0
          %1378 = vmatpush2.msra.mxu0 0.0
          %1379 = vmatprep.subr.mxu0 0.0
          %1380 = vmatpush2.msra.mxu0 0.0
          %1381 = vmatprep.subr.mxu0 0.0
          %1382 = vmatpush2.msra.mxu0 0.0
          %1383 = vmatprep.mubr.f32.mxu0 0.0
          %1384 = vmatmul.mubr.f32.gmra.mxu0 %v1295
          %v1385 = vpop.f32.mrf.mxu0
          %v1386 = vadd.f32 %v1317, %v1385
          %v1387 = vpop.f32.mrf.mxu0
          %1388 = vdwg.mxu0
          %vm1389 = vcmask 9216
          %1390 = vst.msk [vmem:[#allocation3] sm:$0x3] %vm1389, %v1386
        $region56: #{cnn_forward.7} parent=47 // pred_fallthru
          _
        // Predicated region
        $region57: #{cnn_forward.7} parent=47 // pred_check
          %p1391 = pneg %p189
        $region58: #{cnn_forward.7} parent=47 // pred_check_branch
          %1393 = sbr.rel (%p1391) target = $region60
        $region59: #{cnn_forward.7} parent=47 // pred_region
          %s1395 = ssub.s32 32, 32
          %1396 = vsyncadd [#allocation4], %s1395
          %s1398 = sshll.u32 [#allocation3], 4
          %s1399 = int_to_ptr.vmem [resolvable:$true] %s1398
          %1401 = dma.vmem_to_hbm [thread:$0]  %s1399, 32, %s7, [#allocation4]
        $region60: #{cnn_forward.7} parent=47 // pred_fallthru
          _
        // Predicated region
        $region61: #{cnn_forward.7} parent=47 // pred_check
          %p1402 = pneg %p189
        $region62: #{cnn_forward.7} parent=47 // pred_check_branch
          %1404 = sbr.rel (%p1402) target = $region64
        $region63: #{cnn_forward.7} parent=47 // pred_region
          %1405 = dma.done [#allocation4], 32
        $region64: #{cnn_forward.7} parent=47 // pred_fallthru
          _
      $region48: #{cnn_forward.7} parent=5 // pred_fallthru
        _
      %p1406 = scmp.le.s32.totalorder 2, %s14
      // Predicated region
      $region65: #{cnn_forward.7} parent=5 // pred_check
        %p1407 = pneg %p1406
      $region66: #{cnn_forward.7} parent=5 // pred_check_branch
        %1409 = sbr.rel (%p1407) target = $region68
      $region67: #{cnn_forward.7} parent=5 // pred_region
        %s1410 = ssub.s32 %s14, 2
      $region68: #{cnn_forward.7} parent=5 // pred_fallthru
        _
    $region6: #{cnn_forward.7} parent=1 // loop_footer
      %s18 = sadd.s32 1, %s14
    $region7: #{cnn_forward.7} parent=1 // loop_footer_branch
      %13 = sbr.rel target = $region3
    $region8: #{cnn_forward.7} parent=1 // loop_exit
      _
    %1411 = vsyncpa [#allocation4], 1
    %s1412 = scalar_lea.sflag [#allocation4], 1
    %1413 = vsyncpa %s1412, 1

</llo_original>
